<compile_context>
chip_gen: v7x
topology: tpu7x:2x2x1
jax: 0.10.0
libtpu: 0.0.40
codegen_flags: <defaults>
</compile_context>

<pallas_src>
import math

import jax
import jax.numpy as jnp
from jax.experimental import pallas as pl
from jax.experimental.pallas import tpu as pltpu


# --------------------------------------------------------------------------- #
# Kernel
# --------------------------------------------------------------------------- #
def _make_kernel(L, R, Tc, TB, dist_dims):
    f32 = jnp.float32
    OUT = 2 * sum(dist_dims)
    M = Tc * TB

    # Row layout of the packed (20, H) bias / LayerNorm-parameter array.
    BE, GE, NE = 0, 1, 2          # in_feature_embed: bias, LN weight, LN bias
    R1 = 3                        # res1: b1, g1, n1, b2, g2, n2   (rows 3..8)
    LN1 = 9                       # side_net LN after res1         (rows 9..10)
    R2 = 11                       # res2                           (rows 11..16)
    LN2 = 17                      # side_net LN after res2         (rows 17..18)
    BB1 = 19                      # backbone first-layer bias

    def kernel(x_ref, vec_ref, gb_ref, bb2_ref, we_ref,
               r1a_ref, r1b_ref, r2a_ref, r2b_ref,
               wb1s_ref, wb1r_ref, wb2_ref, *rest):
        gru_refs = rest[:2 * L]                     # wih_0, whh_0, wih_1, whh_1, ...
        out_ref = rest[2 * L]
        h_ref, gi0_ref, rnn_ref = rest[2 * L + 1:2 * L + 4]

        # GRU initial hidden state (self.h = None in the module) is zeros.
        # Time axis (grid axis 1) MUST stay innermost + "arbitrary".
        @pl.when(pl.program_id(1) == 0)
        def _init():
            h_ref[...] = jnp.zeros_like(h_ref)

        def vrow(k):                                # (1, H) f32 row of packed vectors
            return vec_ref[pl.ds(k, 1), :]

        def grow(k):                                # (1, 3R) f32 GRU bias row
            return gb_ref[pl.ds(k, 1), :]

        def mm(a, w_ref):                           # MXU matmul, f32 accumulation
            return jnp.dot(a.astype(w_ref.dtype), w_ref[...],
                           preferred_element_type=f32)

        def layer_norm(a, gk, bk, eps=1e-5):
            mu = jnp.mean(a, axis=-1, keepdims=True)
            var = jnp.mean(jnp.square(a - mu), axis=-1, keepdims=True)
            return (a - mu) * jax.lax.rsqrt(var + eps) * vrow(gk) + vrow(bk)

        def relu(a):
            return jnp.maximum(a, 0.0)

        def res_block(a, wa_ref, wb_ref, base):
            h1 = relu(layer_norm(mm(a, wa_ref) + vrow(base), base + 1, base + 2))
            h2 = relu(layer_norm(mm(h1, wb_ref) + vrow(base + 3), base + 4, base + 5))
            return h2 + a                            # skip = Identity (H == H)

        # ---- chunk-batched (Tc*TB rows) non-recurrent layers ------------------
        x = x_ref[...].astype(f32).reshape(M, x_ref.shape[2])          # (M, IN)

        # in_feature_embed: Linear -> ReLU -> Dropout(id, eval) -> LayerNorm
        x_embed = layer_norm(relu(mm(x, we_ref) + vrow(BE)), GE, NE)   # (M, H)

        # side_net: ResBlock -> Dropout(id) -> LN -> ResBlock -> Dropout(id) -> LN
        side = layer_norm(res_block(x_embed, r1a_ref, r1b_ref, R1), LN1, LN1 + 1)
        side = layer_norm(res_block(side, r2a_ref, r2b_ref, R2), LN2, LN2 + 1)

        # GRU layer-0 input projection for the whole chunk (large-M matmul)
        gi0 = mm(x_embed, gru_refs[0]) + grow(0)                        # (M, 3R)
        gi0_ref[...] = gi0.reshape(Tc, TB, 3 * R)

        # ---- sequential GRU recurrence (the only per-timestep work) -----------
        bih = [grow(2 * l) for l in range(L)]
        bhh = [grow(2 * l + 1) for l in range(L)]
        h = [h_ref[l] for l in range(L)]
        for t in range(Tc):                          # static unroll, Tc is small
            inp = None
            for l in range(L):
                gi = gi0_ref[t] if l == 0 else mm(inp, gru_refs[2 * l]) + bih[l]
                gh = mm(h[l], gru_refs[2 * l + 1]) + bhh[l]
                r = jax.nn.sigmoid(gi[:, 0 * R:1 * R] + gh[:, 0 * R:1 * R])
                z = jax.nn.sigmoid(gi[:, 1 * R:2 * R] + gh[:, 1 * R:2 * R])
                n = jnp.tanh(gi[:, 2 * R:3 * R] + r * gh[:, 2 * R:3 * R])
                h[l] = (1.0 - z) * n + z * h[l]
                inp = h[l]
            rnn_ref[t] = inp
        for l in range(L):                           # carry hidden state to next chunk
            h_ref[l] = h[l]

        rnn_out = rnn_ref[...].reshape(M, R)         # (M, R)

        # ---- backbone MLP (wb1 pre-split host-side -> no concat) --------------
        hid = mm(side, wb1s_ref) + mm(rnn_out, wb1r_ref) + vrow(BB1)
        hid = jnp.where(hid > 0, hid, 0.1 * hid)     # LeakyReLU(0.1)
        logits = mm(hid, wb2_ref) + bb2_ref[...]     # (M, OUT)

        # ---- DistributionWrapper('mix' of conditioned-std 'normal') -----------
        # Whole-tile head: tanh / std affine everywhere, lane-mask select keeps
        # the logits layout (per dist: [tanh(mu_d) | std_d]) -> no relayout.
        th = jnp.tanh(logits)
        std = (th + 1.0) * 0.5 * (0.5 - 0.001) + 0.001
        lane = jax.lax.broadcasted_iota(jnp.int32, logits.shape, 1)
        is_mu = jnp.zeros(logits.shape, jnp.bool_)
        off = 0
        for d in dist_dims:
            is_mu = jnp.logical_or(is_mu,
                                   jnp.logical_and(lane >= off, lane < off + d))
            off += 2 * d
        packed = jnp.where(is_mu, th, std)
        out_ref[...] = packed.reshape(Tc, TB, OUT).astype(out_ref.dtype)

    return kernel


# --------------------------------------------------------------------------- #
# Wrapper
# --------------------------------------------------------------------------- #
def _pick_batch_tile(B):
    # Multiples of 8 (sublane alignment) dividing B, <= 256; prefer nb >= 2 so
    # both v7x TensorCores get work on the "parallel" batch axis.
    cands = [d for d in range(8, min(B, 256) + 1, 8) if B % d == 0]
    if not cands:
        return B                                   # tiny batch: one full tile
    two_core = [d for d in cands if B // d >= 2]
    return max(two_core) if two_core else max(cands)


def _pick_time_chunk(T, cap=8):
    for c in range(min(T, cap), 0, -1):
        if T % c == 0:
            return c
    return 1


def recurrent_res_policy_forward(x_seq, params, dist_dims, *, batch_tile=None,
                                 time_chunk=None, mxu_dtype=None, interpret=False):
    """x_seq: (T, B, IN) -> packed (T, B, 2*sum(dist_dims)) in the logits layout
    (per dist: [tanh(mu_d) | std_d]).  Use split_mix() for (mus, stds) views."""
    T, B, IN = x_seq.shape
    we, be, ge, ne = params['embed']
    H = we.shape[1]
    gru = params['gru']
    L = len(gru)
    R = gru[0][1].shape[0]
    wb1, bb1, wb2, bb2 = params['backbone']
    OUT = wb2.shape[1]
    D = sum(dist_dims)
    assert OUT == 2 * D

    TB = _pick_batch_tile(B) if batch_tile is None else batch_tile
    assert B % TB == 0, "batch must be divisible by the batch tile"
    nb = B // TB
    Tc = _pick_time_chunk(T) if time_chunk is None else time_chunk
    assert T % Tc == 0, "sequence length must be divisible by the time chunk"
    nt = T // Tc

    f32 = jnp.float32

    def cast_w(w):
        # Optional host-side cast of matmul weights (fast bf16 MXU path).
        return w if mxu_dtype is None else w.astype(mxu_dtype)

    def row(v):
        return jnp.reshape(v, (-1,)).astype(f32)

    r1w1, r1b1, r1g1, r1n1, r1w2, r1b2, r1g2, r1n2 = params['res1']
    r2w1, r2b1, r2g1, r2n1, r2w2, r2b2, r2g2, r2n2 = params['res2']
    g1, n1 = params['ln1']
    g2, n2 = params['ln2']

    # Pack all H-wide bias / LayerNorm vectors into one (20, H) array.
    vecH = jnp.stack([row(be), row(ge), row(ne),
                      row(r1b1), row(r1g1), row(r1n1), row(r1b2), row(r1g2), row(r1n2),
                      row(g1), row(n1),
                      row(r2b1), row(r2g1), row(r2n1), row(r2b2), row(r2g2), row(r2n2),
                      row(g2), row(n2),
                      row(bb1)], axis=0)                                  # (20, H)
    # GRU biases into one (2L, 3R) array: rows 2l = b_ih, 2l+1 = b_hh.
    gbias = jnp.stack([row(v) for l in range(L) for v in (gru[l][2], gru[l][3])],
                      axis=0)                                             # (2L, 3R)

    weights = [vecH, gbias, jnp.reshape(bb2, (1, OUT)).astype(f32),
               cast_w(we),
               cast_w(r1w1), cast_w(r1w2), cast_w(r2w1), cast_w(r2w2),
               cast_w(wb1[:H, :]), cast_w(wb1[H:, :]),                    # wb1 split
               cast_w(wb2)]
    for l in range(L):
        weights += [cast_w(gru[l][0]), cast_w(gru[l][1])]

    def const_spec(arr):
        # Full-array block, constant index map -> weight stays resident in VMEM
        # across the whole grid (no re-DMA between steps).
        rank = arr.ndim
        return pl.BlockSpec(arr.shape, lambda b, t, _r=rank: (0,) * _r)

    in_specs = [pl.BlockSpec((Tc, TB, IN), lambda b, t: (t, b, 0))]
    in_specs += [const_spec(w) for w in weights]
    out_spec = pl.BlockSpec((Tc, TB, OUT), lambda b, t: (t, b, 0))

    scratch_shapes = [pltpu.VMEM((L, TB, R), f32),          # hidden-state carry
                      pltpu.VMEM((Tc, TB, 3 * R), f32),     # layer-0 gi for the chunk
                      pltpu.VMEM((Tc, TB, R), f32)]         # rnn outputs for the chunk

    # Rough VMEM footprint; only set an explicit limit when it exceeds the
    # default scoped budget (matters for large H/R, esp. v7x's 64 MiB VMEM).
    def nbytes(a):
        return int(a.size) * a.dtype.itemsize
    weight_bytes = sum(nbytes(w) for w in weights)
    block_bytes = (Tc * TB * IN + Tc * TB * OUT) * x_seq.dtype.itemsize
    scratch_bytes = (L * TB * R + Tc * TB * 4 * R) * 4
    act_bytes = 12 * Tc * TB * max(H, 3 * R, OUT, IN) * 4
    vmem_need = 2 * weight_bytes + 2 * block_bytes + scratch_bytes + act_bytes
    vmem_limit = int(min(vmem_need * 5 // 4, 100 << 20)) if vmem_need > (24 << 20) else None

    flops_per_row = 2 * (IN * H + 4 * H * H + H * 3 * R + R * 3 * R
                         + max(L - 1, 0) * 2 * R * 3 * R + H * H + R * H + H * OUT)
    cost = pl.CostEstimate(
        flops=int(T * B * flops_per_row),
        transcendentals=int(T * B * (3 * L * R + OUT + 8 * H)),
        bytes_accessed=int(nbytes(x_seq) + T * B * OUT * x_seq.dtype.itemsize + weight_bytes))

    out = pl.pallas_call(
        _make_kernel(L, R, Tc, TB, tuple(dist_dims)),
        out_shape=jax.ShapeDtypeStruct((T, B, OUT), x_seq.dtype),
        grid=(nb, nt),
        in_specs=in_specs,
        out_specs=out_spec,
        scratch_shapes=scratch_shapes,
        compiler_params=pltpu.CompilerParams(
            dimension_semantics=("parallel", "arbitrary"),
            vmem_limit_bytes=vmem_limit,
        ),
        cost_estimate=cost,
        interpret=interpret,
    )(x_seq, *weights)
    return out


def split_mix(packed, dist_dims):
    """Pure-JAX view of the packed output as (mus, stds) (DistributionWrapper params)."""
    mus, stds = [], []
    off = 0
    for d in dist_dims:
        mus.append(packed[..., off:off + d])
        stds.append(packed[..., off + d:off + 2 * d])
        off += 2 * d
    return jnp.concatenate(mus, axis=-1), jnp.concatenate(stds, axis=-1)


# --------------------------------------------------------------------------- #
# Parameter init + pure-JAX reference (mirrors the PyTorch forward, eval mode)
# --------------------------------------------------------------------------- #
def init_params(key, in_features, hidden, rnn_hidden, rnn_layers, out_features,
                dtype=jnp.float32):
    keys = iter(jax.random.split(key, 64))

    def linear_init(k, fan_in, fan_out):
        bound = 1.0 / math.sqrt(fan_in)
        kw, kb = jax.random.split(k)
        w = jax.random.uniform(kw, (fan_in, fan_out), minval=-bound, maxval=bound, dtype=dtype)
        b = jax.random.uniform(kb, (1, fan_out), minval=-bound, maxval=bound, dtype=dtype)
        return w, b

    def ln_init(features):
        return (jnp.ones((1, features), dtype), jnp.zeros((1, features), dtype))

    we, be = linear_init(next(keys), in_features, hidden)
    embed = (we, be) + ln_init(hidden)

    def res_block_init(k):
        k1, k2 = jax.random.split(k)
        w1, b1 = linear_init(k1, hidden, hidden)
        w2, b2 = linear_init(k2, hidden, hidden)
        return (w1, b1) + ln_init(hidden) + (w2, b2) + ln_init(hidden)

    res1 = res_block_init(next(keys))
    res2 = res_block_init(next(keys))
    ln1 = ln_init(hidden)
    ln2 = ln_init(hidden)

    gru = []
    for l in range(rnn_layers):
        inp = hidden if l == 0 else rnn_hidden
        bound = 1.0 / math.sqrt(rnn_hidden)
        k1, k2, k3, k4 = jax.random.split(next(keys), 4)
        wih = jax.random.uniform(k1, (inp, 3 * rnn_hidden), minval=-bound, maxval=bound, dtype=dtype)
        whh = jax.random.uniform(k2, (rnn_hidden, 3 * rnn_hidden), minval=-bound, maxval=bound, dtype=dtype)
        bih = jax.random.uniform(k3, (1, 3 * rnn_hidden), minval=-bound, maxval=bound, dtype=dtype)
        bhh = jax.random.uniform(k4, (1, 3 * rnn_hidden), minval=-bound, maxval=bound, dtype=dtype)
        gru.append((wih, whh, bih, bhh))

    kb1, kb2 = jax.random.split(next(keys))
    wbk1, bbk1 = linear_init(kb1, hidden + rnn_hidden, hidden)
    wbk2, bbk2 = linear_init(kb2, hidden, out_features)
    backbone = (wbk1, bbk1, wbk2, bbk2)

    return dict(embed=embed, res1=res1, ln1=ln1, res2=res2, ln2=ln2,
                gru=gru, backbone=backbone)


def forward_ref(x_seq, params, dist_dims):
    def layer_norm(a, g, b, eps=1e-5):
        mu = jnp.mean(a, axis=-1, keepdims=True)
        var = jnp.mean(jnp.square(a - mu), axis=-1, keepdims=True)
        return (a - mu) / jnp.sqrt(var + eps) * g + b

    def relu(a):
        return jnp.maximum(a, 0.0)

    def res_block(a, p):
        w1, b1, g1, n1, w2, b2, g2, n2 = p
        h1 = relu(layer_norm(a @ w1 + b1, g1, n1))
        h2 = relu(layer_norm(h1 @ w2 + b2, g2, n2))
        return h2 + a

    T, B, _ = x_seq.shape
    gru = params['gru']
    L = len(gru)
    R = gru[0][1].shape[0]
    h = jnp.zeros((L, B, R), jnp.float32)
    outs = []
    for t in range(T):
        x = x_seq[t].astype(jnp.float32)
        we, be, ge, ne = params['embed']
        x_embed = layer_norm(relu(x @ we + be), ge, ne)
        side = layer_norm(res_block(x_embed, params['res1']), *params['ln1'])
        side = layer_norm(res_block(side, params['res2']), *params['ln2'])
        inp = x_embed
        new_h = []
        for l in range(L):
            wih, whh, bih, bhh = gru[l]
            gi = inp @ wih + bih
            gh = h[l] @ whh + bhh
            r = jax.nn.sigmoid(gi[:, :R] + gh[:, :R])
            z = jax.nn.sigmoid(gi[:, R:2 * R] + gh[:, R:2 * R])
            n = jnp.tanh(gi[:, 2 * R:] + r * gh[:, 2 * R:])
            hl = (1.0 - z) * n + z * h[l]
            new_h.append(hl)
            inp = hl
        h = jnp.stack(new_h, axis=0)
        wb1, bb1, wb2, bb2 = params['backbone']
        cat = jnp.concatenate([side, inp], axis=-1)
        hid = cat @ wb1 + bb1
        hid = jnp.where(hid > 0, hid, 0.1 * hid)
        logits = hid @ wb2 + bb2
        th = jnp.tanh(logits)
        std = (th + 1.0) * 0.5 * (0.5 - 0.001) + 0.001
        pieces = []
        off = 0
        for d in dist_dims:
            pieces.append(th[:, off:off + d])
            pieces.append(std[:, off + d:off + 2 * d])
            off += 2 * d
        outs.append(jnp.concatenate(pieces, axis=-1))
    return jnp.stack(outs, axis=0)


# --------------------------------------------------------------------------- #
# Demo
# --------------------------------------------------------------------------- #
if __name__ == "__main__":
    T = 16                        # sequence length (time grid axis, "arbitrary")
    B = 8                         # batch ("parallel" grid axis)
    in_features = 32
    hidden_features = 128         # lane-dense activations
    rnn_hidden_features = 128
    rnn_layers = 2
    dist_dims = (64,)             # one 'normal' head -> out_features = 128 (lane-dense)
    out_features = 2 * sum(dist_dims)

    key = jax.random.PRNGKey(0)
    kx, kp = jax.random.split(key)
    x_seq = jax.random.normal(kx, (T, B, in_features), dtype=jnp.float32)
    params = init_params(kp, in_features, hidden_features, rnn_hidden_features,
                         rnn_layers, out_features)

    packed = recurrent_res_policy_forward(x_seq, params, dist_dims)
    jax.block_until_ready(packed)

    packed_ref = forward_ref(x_seq, params, dist_dims)
    assert packed.shape == (T, B, out_features)
    assert jnp.allclose(packed, packed_ref, atol=2e-2, rtol=2e-2), "packed output mismatch"

    mus, stds = split_mix(packed, dist_dims)
    mus_ref, stds_ref = split_mix(packed_ref, dist_dims)
    assert jnp.allclose(mus, mus_ref, atol=2e-2, rtol=2e-2), "mu mismatch vs reference"
    assert jnp.allclose(stds, stds_ref, atol=2e-2, rtol=2e-2), "std mismatch vs reference"

    print("KERNEL_OK")
</pallas_src>

<mosaic_0001>
module attributes {stable_mosaic.version = 11 : i64} {
  func.func @kernel(%arg0: i32, %arg1: i32, %arg2: memref<8x8x32xf32, #tpu.memory_space<vmem>>, %arg3: memref<20x128xf32, #tpu.memory_space<vmem>>, %arg4: memref<4x384xf32, #tpu.memory_space<vmem>>, %arg5: memref<1x128xf32, #tpu.memory_space<vmem>>, %arg6: memref<32x128xf32, #tpu.memory_space<vmem>>, %arg7: memref<128x128xf32, #tpu.memory_space<vmem>>, %arg8: memref<128x128xf32, #tpu.memory_space<vmem>>, %arg9: memref<128x128xf32, #tpu.memory_space<vmem>>, %arg10: memref<128x128xf32, #tpu.memory_space<vmem>>, %arg11: memref<128x128xf32, #tpu.memory_space<vmem>>, %arg12: memref<128x128xf32, #tpu.memory_space<vmem>>, %arg13: memref<128x128xf32, #tpu.memory_space<vmem>>, %arg14: memref<128x384xf32, #tpu.memory_space<vmem>>, %arg15: memref<128x384xf32, #tpu.memory_space<vmem>>, %arg16: memref<128x384xf32, #tpu.memory_space<vmem>>, %arg17: memref<128x384xf32, #tpu.memory_space<vmem>>, %arg18: memref<8x8x128xf32, #tpu.memory_space<vmem>>, %arg19: memref<2x8x128xf32, #tpu.memory_space<vmem>>, %arg20: memref<8x8x384xf32, #tpu.memory_space<vmem>>, %arg21: memref<8x8x128xf32, #tpu.memory_space<vmem>>) attributes {dimension_semantics = [#tpu.dimension_semantics<parallel>, #tpu.dimension_semantics<arbitrary>], iteration_bounds = array<i64: 1, 2>, scalar_prefetch = 0 : i64, scratch_operands = 3 : i64, tpu.core_type = #tpu.core_type<tc>, window_params = [{transform_indices = @transform_0, window_bounds = array<i64: 8, 8, 32>}, {pipeline_mode = #tpu.pipeline_mode<synchronous>, transform_indices = @transform_1, window_bounds = array<i64: 20, 128>}, {pipeline_mode = #tpu.pipeline_mode<synchronous>, transform_indices = @transform_2, window_bounds = array<i64: 4, 384>}, {pipeline_mode = #tpu.pipeline_mode<synchronous>, transform_indices = @transform_3, window_bounds = array<i64: 1, 128>}, {pipeline_mode = #tpu.pipeline_mode<synchronous>, transform_indices = @transform_4, window_bounds = array<i64: 32, 128>}, {pipeline_mode = #tpu.pipeline_mode<synchronous>, transform_indices = @transform_5, window_bounds = array<i64: 128, 128>}, {pipeline_mode = #tpu.pipeline_mode<synchronous>, transform_indices = @transform_6, window_bounds = array<i64: 128, 128>}, {pipeline_mode = #tpu.pipeline_mode<synchronous>, transform_indices = @transform_7, window_bounds = array<i64: 128, 128>}, {pipeline_mode = #tpu.pipeline_mode<synchronous>, transform_indices = @transform_8, window_bounds = array<i64: 128, 128>}, {pipeline_mode = #tpu.pipeline_mode<synchronous>, transform_indices = @transform_9, window_bounds = array<i64: 128, 128>}, {pipeline_mode = #tpu.pipeline_mode<synchronous>, transform_indices = @transform_10, window_bounds = array<i64: 128, 128>}, {pipeline_mode = #tpu.pipeline_mode<synchronous>, transform_indices = @transform_11, window_bounds = array<i64: 128, 128>}, {pipeline_mode = #tpu.pipeline_mode<synchronous>, transform_indices = @transform_12, window_bounds = array<i64: 128, 384>}, {pipeline_mode = #tpu.pipeline_mode<synchronous>, transform_indices = @transform_13, window_bounds = array<i64: 128, 384>}, {pipeline_mode = #tpu.pipeline_mode<synchronous>, transform_indices = @transform_14, window_bounds = array<i64: 128, 384>}, {pipeline_mode = #tpu.pipeline_mode<synchronous>, transform_indices = @transform_15, window_bounds = array<i64: 128, 384>}, {transform_indices = @transform_16, window_bounds = array<i64: 8, 8, 128>}]} {
    %c0_i32 = arith.constant 0 : i32
    %0 = arith.cmpi eq, %arg1, %c0_i32 : i32
    %1 = arith.extui %0 : i1 to i32
    %c0_i32_0 = arith.constant 0 : i32
    %2 = arith.cmpi ne, %1, %c0_i32_0 : i32
    scf.if %2 {
      %cst_296 = arith.constant 0.000000e+00 : f32
      %822 = vector.broadcast %cst_296 : f32 to vector<2x8x128xf32>
      %c0_297 = arith.constant 0 : index
      %c0_298 = arith.constant 0 : index
      %c0_299 = arith.constant 0 : index
      %823 = vector.load %arg19[%c0_297, %c0_298, %c0_299] : memref<2x8x128xf32, #tpu.memory_space<vmem>>, vector<2x8x128xf32>
      tpu.vector_store %arg19[%c0_297, %c0_298, %c0_299], %822 {strides = array<i32>} : memref<2x8x128xf32, #tpu.memory_space<vmem>>, vector<2x8x128xf32>,
    } else {
    }
    %c0 = arith.constant 0 : index
    %c0_1 = arith.constant 0 : index
    %c0_2 = arith.constant 0 : index
    %3 = vector.load %arg2[%c0, %c0_1, %c0_2] : memref<8x8x32xf32, #tpu.memory_space<vmem>>, vector<8x8x32xf32>
    %4 = vector.shape_cast %3 : vector<8x8x32xf32> to vector<64x32xf32>
    %c0_3 = arith.constant 0 : index
    %c0_4 = arith.constant 0 : index
    %5 = vector.load %arg6[%c0_3, %c0_4] : memref<32x128xf32, #tpu.memory_space<vmem>>, vector<32x128xf32>
    %cst = arith.constant dense<0.000000e+00> : vector<64x128xf32>
    %6 = tpu.matmul %4, %5, %cst {dimension_numbers = #tpu.dot_dimension_numbers<[1], [0], [0], [1], [0, 0, 1, 1], [], []>} : vector<64x32xf32>, vector<32x128xf32>, vector<64x128xf32> -> vector<64x128xf32>
    %c0_5 = arith.constant 0 : index
    %c0_6 = arith.constant 0 : index
    %7 = vector.load %arg3[%c0_5, %c0_6] : memref<20x128xf32, #tpu.memory_space<vmem>>, vector<1x128xf32>
    %8 = vector.broadcast %7 : vector<1x128xf32> to vector<64x128xf32>
    %9 = arith.addf %6, %8 : vector<64x128xf32>
    %cst_7 = arith.constant 0.000000e+00 : f32
    %10 = vector.broadcast %cst_7 : f32 to vector<64x128xf32>
    %11 = arith.maximumf %9, %10 : vector<64x128xf32>
    %cst_8 = arith.constant dense<0.000000e+00> : vector<64xf32>
    %12 = vector.multi_reduction <add>, %11, %cst_8 [1] : vector<64x128xf32> to vector<64xf32>
    %13 = vector.shape_cast %12 : vector<64xf32> to vector<64x1xf32>
    %cst_9 = arith.constant 1.280000e+02 : f32
    %14 = vector.broadcast %cst_9 : f32 to vector<64x1xf32>
    %15 = arith.divf %13, %14 : vector<64x1xf32>
    %16 = vector.broadcast %15 : vector<64x1xf32> to vector<64x128xf32>
    %17 = arith.subf %11, %16 : vector<64x128xf32>
    %18 = arith.mulf %17, %17 : vector<64x128xf32>
    %cst_10 = arith.constant dense<0.000000e+00> : vector<64xf32>
    %19 = vector.multi_reduction <add>, %18, %cst_10 [1] : vector<64x128xf32> to vector<64xf32>
    %20 = vector.shape_cast %19 : vector<64xf32> to vector<64x1xf32>
    %cst_11 = arith.constant 1.280000e+02 : f32
    %21 = vector.broadcast %cst_11 : f32 to vector<64x1xf32>
    %22 = arith.divf %20, %21 : vector<64x1xf32>
    %23 = vector.broadcast %15 : vector<64x1xf32> to vector<64x128xf32>
    %24 = arith.subf %11, %23 : vector<64x128xf32>
    %cst_12 = arith.constant 9.99999974E-6 : f32
    %25 = vector.broadcast %cst_12 : f32 to vector<64x1xf32>
    %26 = arith.addf %22, %25 : vector<64x1xf32>
    %27 = math.rsqrt %26 : vector<64x1xf32>
    %28 = vector.broadcast %27 : vector<64x1xf32> to vector<64x128xf32>
    %29 = arith.mulf %24, %28 : vector<64x128xf32>
    %c1 = arith.constant 1 : index
    %c0_13 = arith.constant 0 : index
    %30 = vector.load %arg3[%c1, %c0_13] : memref<20x128xf32, #tpu.memory_space<vmem>>, vector<1x128xf32>
    %31 = vector.broadcast %30 : vector<1x128xf32> to vector<64x128xf32>
    %32 = arith.mulf %29, %31 : vector<64x128xf32>
    %c2 = arith.constant 2 : index
    %c0_14 = arith.constant 0 : index
    %33 = vector.load %arg3[%c2, %c0_14] : memref<20x128xf32, #tpu.memory_space<vmem>>, vector<1x128xf32>
    %34 = vector.broadcast %33 : vector<1x128xf32> to vector<64x128xf32>
    %35 = arith.addf %32, %34 : vector<64x128xf32>
    %c0_15 = arith.constant 0 : index
    %c0_16 = arith.constant 0 : index
    %36 = vector.load %arg7[%c0_15, %c0_16] : memref<128x128xf32, #tpu.memory_space<vmem>>, vector<128x128xf32>
    %cst_17 = arith.constant dense<0.000000e+00> : vector<64x128xf32>
    %37 = tpu.matmul %35, %36, %cst_17 {dimension_numbers = #tpu.dot_dimension_numbers<[1], [0], [0], [1], [0, 0, 1, 1], [], []>} : vector<64x128xf32>, vector<128x128xf32>, vector<64x128xf32> -> vector<64x128xf32>
    %c3 = arith.constant 3 : index
    %c0_18 = arith.constant 0 : index
    %38 = vector.load %arg3[%c3, %c0_18] : memref<20x128xf32, #tpu.memory_space<vmem>>, vector<1x128xf32>
    %39 = vector.broadcast %38 : vector<1x128xf32> to vector<64x128xf32>
    %40 = arith.addf %37, %39 : vector<64x128xf32>
    %cst_19 = arith.constant dense<0.000000e+00> : vector<64xf32>
    %41 = vector.multi_reduction <add>, %40, %cst_19 [1] : vector<64x128xf32> to vector<64xf32>
    %42 = vector.shape_cast %41 : vector<64xf32> to vector<64x1xf32>
    %cst_20 = arith.constant 1.280000e+02 : f32
    %43 = vector.broadcast %cst_20 : f32 to vector<64x1xf32>
    %44 = arith.divf %42, %43 : vector<64x1xf32>
    %45 = vector.broadcast %44 : vector<64x1xf32> to vector<64x128xf32>
    %46 = arith.subf %40, %45 : vector<64x128xf32>
    %47 = arith.mulf %46, %46 : vector<64x128xf32>
    %cst_21 = arith.constant dense<0.000000e+00> : vector<64xf32>
    %48 = vector.multi_reduction <add>, %47, %cst_21 [1] : vector<64x128xf32> to vector<64xf32>
    %49 = vector.shape_cast %48 : vector<64xf32> to vector<64x1xf32>
    %cst_22 = arith.constant 1.280000e+02 : f32
    %50 = vector.broadcast %cst_22 : f32 to vector<64x1xf32>
    %51 = arith.divf %49, %50 : vector<64x1xf32>
    %52 = vector.broadcast %44 : vector<64x1xf32> to vector<64x128xf32>
    %53 = arith.subf %40, %52 : vector<64x128xf32>
    %cst_23 = arith.constant 9.99999974E-6 : f32
    %54 = vector.broadcast %cst_23 : f32 to vector<64x1xf32>
    %55 = arith.addf %51, %54 : vector<64x1xf32>
    %56 = math.rsqrt %55 : vector<64x1xf32>
    %57 = vector.broadcast %56 : vector<64x1xf32> to vector<64x128xf32>
    %58 = arith.mulf %53, %57 : vector<64x128xf32>
    %c4 = arith.constant 4 : index
    %c0_24 = arith.constant 0 : index
    %59 = vector.load %arg3[%c4, %c0_24] : memref<20x128xf32, #tpu.memory_space<vmem>>, vector<1x128xf32>
    %60 = vector.broadcast %59 : vector<1x128xf32> to vector<64x128xf32>
    %61 = arith.mulf %58, %60 : vector<64x128xf32>
    %c5 = arith.constant 5 : index
    %c0_25 = arith.constant 0 : index
    %62 = vector.load %arg3[%c5, %c0_25] : memref<20x128xf32, #tpu.memory_space<vmem>>, vector<1x128xf32>
    %63 = vector.broadcast %62 : vector<1x128xf32> to vector<64x128xf32>
    %64 = arith.addf %61, %63 : vector<64x128xf32>
    %cst_26 = arith.constant 0.000000e+00 : f32
    %65 = vector.broadcast %cst_26 : f32 to vector<64x128xf32>
    %66 = arith.maximumf %64, %65 : vector<64x128xf32>
    %c0_27 = arith.constant 0 : index
    %c0_28 = arith.constant 0 : index
    %67 = vector.load %arg8[%c0_27, %c0_28] : memref<128x128xf32, #tpu.memory_space<vmem>>, vector<128x128xf32>
    %cst_29 = arith.constant dense<0.000000e+00> : vector<64x128xf32>
    %68 = tpu.matmul %66, %67, %cst_29 {dimension_numbers = #tpu.dot_dimension_numbers<[1], [0], [0], [1], [0, 0, 1, 1], [], []>} : vector<64x128xf32>, vector<128x128xf32>, vector<64x128xf32> -> vector<64x128xf32>
    %c6 = arith.constant 6 : index
    %c0_30 = arith.constant 0 : index
    %69 = vector.load %arg3[%c6, %c0_30] : memref<20x128xf32, #tpu.memory_space<vmem>>, vector<1x128xf32>
    %70 = vector.broadcast %69 : vector<1x128xf32> to vector<64x128xf32>
    %71 = arith.addf %68, %70 : vector<64x128xf32>
    %cst_31 = arith.constant dense<0.000000e+00> : vector<64xf32>
    %72 = vector.multi_reduction <add>, %71, %cst_31 [1] : vector<64x128xf32> to vector<64xf32>
    %73 = vector.shape_cast %72 : vector<64xf32> to vector<64x1xf32>
    %cst_32 = arith.constant 1.280000e+02 : f32
    %74 = vector.broadcast %cst_32 : f32 to vector<64x1xf32>
    %75 = arith.divf %73, %74 : vector<64x1xf32>
    %76 = vector.broadcast %75 : vector<64x1xf32> to vector<64x128xf32>
    %77 = arith.subf %71, %76 : vector<64x128xf32>
    %78 = arith.mulf %77, %77 : vector<64x128xf32>
    %cst_33 = arith.constant dense<0.000000e+00> : vector<64xf32>
    %79 = vector.multi_reduction <add>, %78, %cst_33 [1] : vector<64x128xf32> to vector<64xf32>
    %80 = vector.shape_cast %79 : vector<64xf32> to vector<64x1xf32>
    %cst_34 = arith.constant 1.280000e+02 : f32
    %81 = vector.broadcast %cst_34 : f32 to vector<64x1xf32>
    %82 = arith.divf %80, %81 : vector<64x1xf32>
    %83 = vector.broadcast %75 : vector<64x1xf32> to vector<64x128xf32>
    %84 = arith.subf %71, %83 : vector<64x128xf32>
    %cst_35 = arith.constant 9.99999974E-6 : f32
    %85 = vector.broadcast %cst_35 : f32 to vector<64x1xf32>
    %86 = arith.addf %82, %85 : vector<64x1xf32>
    %87 = math.rsqrt %86 : vector<64x1xf32>
    %88 = vector.broadcast %87 : vector<64x1xf32> to vector<64x128xf32>
    %89 = arith.mulf %84, %88 : vector<64x128xf32>
    %c7 = arith.constant 7 : index
    %c0_36 = arith.constant 0 : index
    %90 = vector.load %arg3[%c7, %c0_36] : memref<20x128xf32, #tpu.memory_space<vmem>>, vector<1x128xf32>
    %91 = vector.broadcast %90 : vector<1x128xf32> to vector<64x128xf32>
    %92 = arith.mulf %89, %91 : vector<64x128xf32>
    %c8 = arith.constant 8 : index
    %c0_37 = arith.constant 0 : index
    %93 = vector.load %arg3[%c8, %c0_37] : memref<20x128xf32, #tpu.memory_space<vmem>>, vector<1x128xf32>
    %94 = vector.broadcast %93 : vector<1x128xf32> to vector<64x128xf32>
    %95 = arith.addf %92, %94 : vector<64x128xf32>
    %cst_38 = arith.constant 0.000000e+00 : f32
    %96 = vector.broadcast %cst_38 : f32 to vector<64x128xf32>
    %97 = arith.maximumf %95, %96 : vector<64x128xf32>
    %98 = arith.addf %97, %35 : vector<64x128xf32>
    %cst_39 = arith.constant dense<0.000000e+00> : vector<64xf32>
    %99 = vector.multi_reduction <add>, %98, %cst_39 [1] : vector<64x128xf32> to vector<64xf32>
    %100 = vector.shape_cast %99 : vector<64xf32> to vector<64x1xf32>
    %cst_40 = arith.constant 1.280000e+02 : f32
    %101 = vector.broadcast %cst_40 : f32 to vector<64x1xf32>
    %102 = arith.divf %100, %101 : vector<64x1xf32>
    %103 = vector.broadcast %102 : vector<64x1xf32> to vector<64x128xf32>
    %104 = arith.subf %98, %103 : vector<64x128xf32>
    %105 = arith.mulf %104, %104 : vector<64x128xf32>
    %cst_41 = arith.constant dense<0.000000e+00> : vector<64xf32>
    %106 = vector.multi_reduction <add>, %105, %cst_41 [1] : vector<64x128xf32> to vector<64xf32>
    %107 = vector.shape_cast %106 : vector<64xf32> to vector<64x1xf32>
    %cst_42 = arith.constant 1.280000e+02 : f32
    %108 = vector.broadcast %cst_42 : f32 to vector<64x1xf32>
    %109 = arith.divf %107, %108 : vector<64x1xf32>
    %110 = vector.broadcast %102 : vector<64x1xf32> to vector<64x128xf32>
    %111 = arith.subf %98, %110 : vector<64x128xf32>
    %cst_43 = arith.constant 9.99999974E-6 : f32
    %112 = vector.broadcast %cst_43 : f32 to vector<64x1xf32>
    %113 = arith.addf %109, %112 : vector<64x1xf32>
    %114 = math.rsqrt %113 : vector<64x1xf32>
    %115 = vector.broadcast %114 : vector<64x1xf32> to vector<64x128xf32>
    %116 = arith.mulf %111, %115 : vector<64x128xf32>
    %c9 = arith.constant 9 : index
    %c0_44 = arith.constant 0 : index
    %117 = vector.load %arg3[%c9, %c0_44] : memref<20x128xf32, #tpu.memory_space<vmem>>, vector<1x128xf32>
    %118 = vector.broadcast %117 : vector<1x128xf32> to vector<64x128xf32>
    %119 = arith.mulf %116, %118 : vector<64x128xf32>
    %c10 = arith.constant 10 : index
    %c0_45 = arith.constant 0 : index
    %120 = vector.load %arg3[%c10, %c0_45] : memref<20x128xf32, #tpu.memory_space<vmem>>, vector<1x128xf32>
    %121 = vector.broadcast %120 : vector<1x128xf32> to vector<64x128xf32>
    %122 = arith.addf %119, %121 : vector<64x128xf32>
    %c0_46 = arith.constant 0 : index
    %c0_47 = arith.constant 0 : index
    %123 = vector.load %arg9[%c0_46, %c0_47] : memref<128x128xf32, #tpu.memory_space<vmem>>, vector<128x128xf32>
    %cst_48 = arith.constant dense<0.000000e+00> : vector<64x128xf32>
    %124 = tpu.matmul %122, %123, %cst_48 {dimension_numbers = #tpu.dot_dimension_numbers<[1], [0], [0], [1], [0, 0, 1, 1], [], []>} : vector<64x128xf32>, vector<128x128xf32>, vector<64x128xf32> -> vector<64x128xf32>
    %c11 = arith.constant 11 : index
    %c0_49 = arith.constant 0 : index
    %125 = vector.load %arg3[%c11, %c0_49] : memref<20x128xf32, #tpu.memory_space<vmem>>, vector<1x128xf32>
    %126 = vector.broadcast %125 : vector<1x128xf32> to vector<64x128xf32>
    %127 = arith.addf %124, %126 : vector<64x128xf32>
    %cst_50 = arith.constant dense<0.000000e+00> : vector<64xf32>
    %128 = vector.multi_reduction <add>, %127, %cst_50 [1] : vector<64x128xf32> to vector<64xf32>
    %129 = vector.shape_cast %128 : vector<64xf32> to vector<64x1xf32>
    %cst_51 = arith.constant 1.280000e+02 : f32
    %130 = vector.broadcast %cst_51 : f32 to vector<64x1xf32>
    %131 = arith.divf %129, %130 : vector<64x1xf32>
    %132 = vector.broadcast %131 : vector<64x1xf32> to vector<64x128xf32>
    %133 = arith.subf %127, %132 : vector<64x128xf32>
    %134 = arith.mulf %133, %133 : vector<64x128xf32>
    %cst_52 = arith.constant dense<0.000000e+00> : vector<64xf32>
    %135 = vector.multi_reduction <add>, %134, %cst_52 [1] : vector<64x128xf32> to vector<64xf32>
    %136 = vector.shape_cast %135 : vector<64xf32> to vector<64x1xf32>
    %cst_53 = arith.constant 1.280000e+02 : f32
    %137 = vector.broadcast %cst_53 : f32 to vector<64x1xf32>
    %138 = arith.divf %136, %137 : vector<64x1xf32>
    %139 = vector.broadcast %131 : vector<64x1xf32> to vector<64x128xf32>
    %140 = arith.subf %127, %139 : vector<64x128xf32>
    %cst_54 = arith.constant 9.99999974E-6 : f32
    %141 = vector.broadcast %cst_54 : f32 to vector<64x1xf32>
    %142 = arith.addf %138, %141 : vector<64x1xf32>
    %143 = math.rsqrt %142 : vector<64x1xf32>
    %144 = vector.broadcast %143 : vector<64x1xf32> to vector<64x128xf32>
    %145 = arith.mulf %140, %144 : vector<64x128xf32>
    %c12 = arith.constant 12 : index
    %c0_55 = arith.constant 0 : index
    %146 = vector.load %arg3[%c12, %c0_55] : memref<20x128xf32, #tpu.memory_space<vmem>>, vector<1x128xf32>
    %147 = vector.broadcast %146 : vector<1x128xf32> to vector<64x128xf32>
    %148 = arith.mulf %145, %147 : vector<64x128xf32>
    %c13 = arith.constant 13 : index
    %c0_56 = arith.constant 0 : index
    %149 = vector.load %arg3[%c13, %c0_56] : memref<20x128xf32, #tpu.memory_space<vmem>>, vector<1x128xf32>
    %150 = vector.broadcast %149 : vector<1x128xf32> to vector<64x128xf32>
    %151 = arith.addf %148, %150 : vector<64x128xf32>
    %cst_57 = arith.constant 0.000000e+00 : f32
    %152 = vector.broadcast %cst_57 : f32 to vector<64x128xf32>
    %153 = arith.maximumf %151, %152 : vector<64x128xf32>
    %c0_58 = arith.constant 0 : index
    %c0_59 = arith.constant 0 : index
    %154 = vector.load %arg10[%c0_58, %c0_59] : memref<128x128xf32, #tpu.memory_space<vmem>>, vector<128x128xf32>
    %cst_60 = arith.constant dense<0.000000e+00> : vector<64x128xf32>
    %155 = tpu.matmul %153, %154, %cst_60 {dimension_numbers = #tpu.dot_dimension_numbers<[1], [0], [0], [1], [0, 0, 1, 1], [], []>} : vector<64x128xf32>, vector<128x128xf32>, vector<64x128xf32> -> vector<64x128xf32>
    %c14 = arith.constant 14 : index
    %c0_61 = arith.constant 0 : index
    %156 = vector.load %arg3[%c14, %c0_61] : memref<20x128xf32, #tpu.memory_space<vmem>>, vector<1x128xf32>
    %157 = vector.broadcast %156 : vector<1x128xf32> to vector<64x128xf32>
    %158 = arith.addf %155, %157 : vector<64x128xf32>
    %cst_62 = arith.constant dense<0.000000e+00> : vector<64xf32>
    %159 = vector.multi_reduction <add>, %158, %cst_62 [1] : vector<64x128xf32> to vector<64xf32>
    %160 = vector.shape_cast %159 : vector<64xf32> to vector<64x1xf32>
    %cst_63 = arith.constant 1.280000e+02 : f32
    %161 = vector.broadcast %cst_63 : f32 to vector<64x1xf32>
    %162 = arith.divf %160, %161 : vector<64x1xf32>
    %163 = vector.broadcast %162 : vector<64x1xf32> to vector<64x128xf32>
    %164 = arith.subf %158, %163 : vector<64x128xf32>
    %165 = arith.mulf %164, %164 : vector<64x128xf32>
    %cst_64 = arith.constant dense<0.000000e+00> : vector<64xf32>
    %166 = vector.multi_reduction <add>, %165, %cst_64 [1] : vector<64x128xf32> to vector<64xf32>
    %167 = vector.shape_cast %166 : vector<64xf32> to vector<64x1xf32>
    %cst_65 = arith.constant 1.280000e+02 : f32
    %168 = vector.broadcast %cst_65 : f32 to vector<64x1xf32>
    %169 = arith.divf %167, %168 : vector<64x1xf32>
    %170 = vector.broadcast %162 : vector<64x1xf32> to vector<64x128xf32>
    %171 = arith.subf %158, %170 : vector<64x128xf32>
    %cst_66 = arith.constant 9.99999974E-6 : f32
    %172 = vector.broadcast %cst_66 : f32 to vector<64x1xf32>
    %173 = arith.addf %169, %172 : vector<64x1xf32>
    %174 = math.rsqrt %173 : vector<64x1xf32>
    %175 = vector.broadcast %174 : vector<64x1xf32> to vector<64x128xf32>
    %176 = arith.mulf %171, %175 : vector<64x128xf32>
    %c15 = arith.constant 15 : index
    %c0_67 = arith.constant 0 : index
    %177 = vector.load %arg3[%c15, %c0_67] : memref<20x128xf32, #tpu.memory_space<vmem>>, vector<1x128xf32>
    %178 = vector.broadcast %177 : vector<1x128xf32> to vector<64x128xf32>
    %179 = arith.mulf %176, %178 : vector<64x128xf32>
    %c16 = arith.constant 16 : index
    %c0_68 = arith.constant 0 : index
    %180 = vector.load %arg3[%c16, %c0_68] : memref<20x128xf32, #tpu.memory_space<vmem>>, vector<1x128xf32>
    %181 = vector.broadcast %180 : vector<1x128xf32> to vector<64x128xf32>
    %182 = arith.addf %179, %181 : vector<64x128xf32>
    %cst_69 = arith.constant 0.000000e+00 : f32
    %183 = vector.broadcast %cst_69 : f32 to vector<64x128xf32>
    %184 = arith.maximumf %182, %183 : vector<64x128xf32>
    %185 = arith.addf %184, %122 : vector<64x128xf32>
    %cst_70 = arith.constant dense<0.000000e+00> : vector<64xf32>
    %186 = vector.multi_reduction <add>, %185, %cst_70 [1] : vector<64x128xf32> to vector<64xf32>
    %187 = vector.shape_cast %186 : vector<64xf32> to vector<64x1xf32>
    %cst_71 = arith.constant 1.280000e+02 : f32
    %188 = vector.broadcast %cst_71 : f32 to vector<64x1xf32>
    %189 = arith.divf %187, %188 : vector<64x1xf32>
    %190 = vector.broadcast %189 : vector<64x1xf32> to vector<64x128xf32>
    %191 = arith.subf %185, %190 : vector<64x128xf32>
    %192 = arith.mulf %191, %191 : vector<64x128xf32>
    %cst_72 = arith.constant dense<0.000000e+00> : vector<64xf32>
    %193 = vector.multi_reduction <add>, %192, %cst_72 [1] : vector<64x128xf32> to vector<64xf32>
    %194 = vector.shape_cast %193 : vector<64xf32> to vector<64x1xf32>
    %cst_73 = arith.constant 1.280000e+02 : f32
    %195 = vector.broadcast %cst_73 : f32 to vector<64x1xf32>
    %196 = arith.divf %194, %195 : vector<64x1xf32>
    %197 = vector.broadcast %189 : vector<64x1xf32> to vector<64x128xf32>
    %198 = arith.subf %185, %197 : vector<64x128xf32>
    %cst_74 = arith.constant 9.99999974E-6 : f32
    %199 = vector.broadcast %cst_74 : f32 to vector<64x1xf32>
    %200 = arith.addf %196, %199 : vector<64x1xf32>
    %201 = math.rsqrt %200 : vector<64x1xf32>
    %202 = vector.broadcast %201 : vector<64x1xf32> to vector<64x128xf32>
    %203 = arith.mulf %198, %202 : vector<64x128xf32>
    %c17 = arith.constant 17 : index
    %c0_75 = arith.constant 0 : index
    %204 = vector.load %arg3[%c17, %c0_75] : memref<20x128xf32, #tpu.memory_space<vmem>>, vector<1x128xf32>
    %205 = vector.broadcast %204 : vector<1x128xf32> to vector<64x128xf32>
    %206 = arith.mulf %203, %205 : vector<64x128xf32>
    %c18 = arith.constant 18 : index
    %c0_76 = arith.constant 0 : index
    %207 = vector.load %arg3[%c18, %c0_76] : memref<20x128xf32, #tpu.memory_space<vmem>>, vector<1x128xf32>
    %208 = vector.broadcast %207 : vector<1x128xf32> to vector<64x128xf32>
    %209 = arith.addf %206, %208 : vector<64x128xf32>
    %c0_77 = arith.constant 0 : index
    %c0_78 = arith.constant 0 : index
    %210 = vector.load %arg14[%c0_77, %c0_78] : memref<128x384xf32, #tpu.memory_space<vmem>>, vector<128x384xf32>
    %cst_79 = arith.constant dense<0.000000e+00> : vector<64x384xf32>
    %211 = tpu.matmul %35, %210, %cst_79 {dimension_numbers = #tpu.dot_dimension_numbers<[1], [0], [0], [1], [0, 0, 1, 1], [], []>} : vector<64x128xf32>, vector<128x384xf32>, vector<64x384xf32> -> vector<64x384xf32>
    %c0_80 = arith.constant 0 : index
    %c0_81 = arith.constant 0 : index
    %212 = vector.load %arg4[%c0_80, %c0_81] : memref<4x384xf32, #tpu.memory_space<vmem>>, vector<1x384xf32>
    %213 = vector.broadcast %212 : vector<1x384xf32> to vector<64x384xf32>
    %214 = arith.addf %211, %213 : vector<64x384xf32>
    %215 = vector.shape_cast %214 : vector<64x384xf32> to vector<8x8x384xf32>
    %c0_82 = arith.constant 0 : index
    %c0_83 = arith.constant 0 : index
    %c0_84 = arith.constant 0 : index
    %216 = vector.load %arg20[%c0_82, %c0_83, %c0_84] : memref<8x8x384xf32, #tpu.memory_space<vmem>>, vector<8x8x384xf32>
    tpu.vector_store %arg20[%c0_82, %c0_83, %c0_84], %215 {strides = array<i32>} : memref<8x8x384xf32, #tpu.memory_space<vmem>>, vector<8x8x384xf32>,
    %c2_85 = arith.constant 2 : index
    %c0_86 = arith.constant 0 : index
    %217 = vector.load %arg4[%c2_85, %c0_86] : memref<4x384xf32, #tpu.memory_space<vmem>>, vector<1x384xf32>
    %c1_87 = arith.constant 1 : index
    %c0_88 = arith.constant 0 : index
    %218 = vector.load %arg4[%c1_87, %c0_88] : memref<4x384xf32, #tpu.memory_space<vmem>>, vector<1x384xf32>
    %c3_89 = arith.constant 3 : index
    %c0_90 = arith.constant 0 : index
    %219 = vector.load %arg4[%c3_89, %c0_90] : memref<4x384xf32, #tpu.memory_space<vmem>>, vector<1x384xf32>
    %c0_91 = arith.constant 0 : index
    %c0_92 = arith.constant 0 : index
    %c0_93 = arith.constant 0 : index
    %220 = vector.load %arg19[%c0_91, %c0_92, %c0_93] : memref<2x8x128xf32, #tpu.memory_space<vmem>>, vector<1x8x128xf32>
    %221 = vector.shape_cast %220 : vector<1x8x128xf32> to vector<8x128xf32>
    %c1_94 = arith.constant 1 : index
    %c0_95 = arith.constant 0 : index
    %c0_96 = arith.constant 0 : index
    %222 = vector.load %arg19[%c1_94, %c0_95, %c0_96] : memref<2x8x128xf32, #tpu.memory_space<vmem>>, vector<1x8x128xf32>
    %223 = vector.shape_cast %222 : vector<1x8x128xf32> to vector<8x128xf32>
    %c0_97 = arith.constant 0 : index
    %c0_98 = arith.constant 0 : index
    %c0_99 = arith.constant 0 : index
    %224 = vector.load %arg20[%c0_97, %c0_98, %c0_99] : memref<8x8x384xf32, #tpu.memory_space<vmem>>, vector<1x8x384xf32>
    %225 = vector.shape_cast %224 : vector<1x8x384xf32> to vector<8x384xf32>
    %c0_100 = arith.constant 0 : index
    %c0_101 = arith.constant 0 : index
    %226 = vector.load %arg15[%c0_100, %c0_101] : memref<128x384xf32, #tpu.memory_space<vmem>>, vector<128x384xf32>
    %cst_102 = arith.constant dense<0.000000e+00> : vector<8x384xf32>
    %227 = tpu.matmul %221, %226, %cst_102 {dimension_numbers = #tpu.dot_dimension_numbers<[1], [0], [0], [1], [0, 0, 1, 1], [], []>} : vector<8x128xf32>, vector<128x384xf32>, vector<8x384xf32> -> vector<8x384xf32>
    %228 = vector.broadcast %218 : vector<1x384xf32> to vector<8x384xf32>
    %229 = arith.addf %227, %228 : vector<8x384xf32>
    %230 = vector.extract_strided_slice %225 {offsets = [0, 0], sizes = [8, 128], strides = [1, 1]} : vector<8x384xf32> to vector<8x128xf32>
    %231 = vector.extract_strided_slice %229 {offsets = [0, 0], sizes = [8, 128], strides = [1, 1]} : vector<8x384xf32> to vector<8x128xf32>
    %232 = arith.addf %230, %231 : vector<8x128xf32>
    %233 = arith.negf %232 : vector<8x128xf32>
    %234 = math.exp %233 : vector<8x128xf32>
    %cst_103 = arith.constant 1.000000e+00 : f32
    %235 = vector.broadcast %cst_103 : f32 to vector<8x128xf32>
    %236 = arith.addf %235, %234 : vector<8x128xf32>
    %237 = arith.divf %235, %236 : vector<8x128xf32>
    %238 = vector.extract_strided_slice %225 {offsets = [0, 128], sizes = [8, 128], strides = [1, 1]} : vector<8x384xf32> to vector<8x128xf32>
    %239 = vector.extract_strided_slice %229 {offsets = [0, 128], sizes = [8, 128], strides = [1, 1]} : vector<8x384xf32> to vector<8x128xf32>
    %240 = arith.addf %238, %239 : vector<8x128xf32>
    %241 = arith.negf %240 : vector<8x128xf32>
    %242 = math.exp %241 : vector<8x128xf32>
    %cst_104 = arith.constant 1.000000e+00 : f32
    %243 = vector.broadcast %cst_104 : f32 to vector<8x128xf32>
    %244 = arith.addf %243, %242 : vector<8x128xf32>
    %245 = arith.divf %243, %244 : vector<8x128xf32>
    %246 = vector.extract_strided_slice %225 {offsets = [0, 256], sizes = [8, 128], strides = [1, 1]} : vector<8x384xf32> to vector<8x128xf32>
    %247 = vector.extract_strided_slice %229 {offsets = [0, 256], sizes = [8, 128], strides = [1, 1]} : vector<8x384xf32> to vector<8x128xf32>
    %248 = arith.mulf %237, %247 : vector<8x128xf32>
    %249 = arith.addf %246, %248 : vector<8x128xf32>
    %250 = math.tanh %249 : vector<8x128xf32>
    %cst_105 = arith.constant 1.000000e+00 : f32
    %251 = vector.broadcast %cst_105 : f32 to vector<8x128xf32>
    %252 = arith.subf %251, %245 : vector<8x128xf32>
    %253 = arith.mulf %252, %250 : vector<8x128xf32>
    %254 = arith.mulf %245, %221 : vector<8x128xf32>
    %255 = arith.addf %253, %254 : vector<8x128xf32>
    %c0_106 = arith.constant 0 : index
    %c0_107 = arith.constant 0 : index
    %256 = vector.load %arg16[%c0_106, %c0_107] : memref<128x384xf32, #tpu.memory_space<vmem>>, vector<128x384xf32>
    %cst_108 = arith.constant dense<0.000000e+00> : vector<8x384xf32>
    %257 = tpu.matmul %255, %256, %cst_108 {dimension_numbers = #tpu.dot_dimension_numbers<[1], [0], [0], [1], [0, 0, 1, 1], [], []>} : vector<8x128xf32>, vector<128x384xf32>, vector<8x384xf32> -> vector<8x384xf32>
    %258 = vector.broadcast %217 : vector<1x384xf32> to vector<8x384xf32>
    %259 = arith.addf %257, %258 : vector<8x384xf32>
    %c0_109 = arith.constant 0 : index
    %c0_110 = arith.constant 0 : index
    %260 = vector.load %arg17[%c0_109, %c0_110] : memref<128x384xf32, #tpu.memory_space<vmem>>, vector<128x384xf32>
    %cst_111 = arith.constant dense<0.000000e+00> : vector<8x384xf32>
    %261 = tpu.matmul %223, %260, %cst_111 {dimension_numbers = #tpu.dot_dimension_numbers<[1], [0], [0], [1], [0, 0, 1, 1], [], []>} : vector<8x128xf32>, vector<128x384xf32>, vector<8x384xf32> -> vector<8x384xf32>
    %262 = vector.broadcast %219 : vector<1x384xf32> to vector<8x384xf32>
    %263 = arith.addf %261, %262 : vector<8x384xf32>
    %264 = vector.extract_strided_slice %259 {offsets = [0, 0], sizes = [8, 128], strides = [1, 1]} : vector<8x384xf32> to vector<8x128xf32>
    %265 = vector.extract_strided_slice %263 {offsets = [0, 0], sizes = [8, 128], strides = [1, 1]} : vector<8x384xf32> to vector<8x128xf32>
    %266 = arith.addf %264, %265 : vector<8x128xf32>
    %267 = arith.negf %266 : vector<8x128xf32>
    %268 = math.exp %267 : vector<8x128xf32>
    %cst_112 = arith.constant 1.000000e+00 : f32
    %269 = vector.broadcast %cst_112 : f32 to vector<8x128xf32>
    %270 = arith.addf %269, %268 : vector<8x128xf32>
    %271 = arith.divf %269, %270 : vector<8x128xf32>
    %272 = vector.extract_strided_slice %259 {offsets = [0, 128], sizes = [8, 128], strides = [1, 1]} : vector<8x384xf32> to vector<8x128xf32>
    %273 = vector.extract_strided_slice %263 {offsets = [0, 128], sizes = [8, 128], strides = [1, 1]} : vector<8x384xf32> to vector<8x128xf32>
    %274 = arith.addf %272, %273 : vector<8x128xf32>
    %275 = arith.negf %274 : vector<8x128xf32>
    %276 = math.exp %275 : vector<8x128xf32>
    %cst_113 = arith.constant 1.000000e+00 : f32
    %277 = vector.broadcast %cst_113 : f32 to vector<8x128xf32>
    %278 = arith.addf %277, %276 : vector<8x128xf32>
    %279 = arith.divf %277, %278 : vector<8x128xf32>
    %280 = vector.extract_strided_slice %259 {offsets = [0, 256], sizes = [8, 128], strides = [1, 1]} : vector<8x384xf32> to vector<8x128xf32>
    %281 = vector.extract_strided_slice %263 {offsets = [0, 256], sizes = [8, 128], strides = [1, 1]} : vector<8x384xf32> to vector<8x128xf32>
    %282 = arith.mulf %271, %281 : vector<8x128xf32>
    %283 = arith.addf %280, %282 : vector<8x128xf32>
    %284 = math.tanh %283 : vector<8x128xf32>
    %cst_114 = arith.constant 1.000000e+00 : f32
    %285 = vector.broadcast %cst_114 : f32 to vector<8x128xf32>
    %286 = arith.subf %285, %279 : vector<8x128xf32>
    %287 = arith.mulf %286, %284 : vector<8x128xf32>
    %288 = arith.mulf %279, %223 : vector<8x128xf32>
    %289 = arith.addf %287, %288 : vector<8x128xf32>
    %c0_115 = arith.constant 0 : index
    %c0_116 = arith.constant 0 : index
    %c0_117 = arith.constant 0 : index
    %290 = vector.load %arg21[%c0_115, %c0_116, %c0_117] : memref<8x8x128xf32, #tpu.memory_space<vmem>>, vector<1x8x128xf32>
    %291 = vector.shape_cast %290 : vector<1x8x128xf32> to vector<8x128xf32>
    %292 = vector.shape_cast %289 : vector<8x128xf32> to vector<1x8x128xf32>
    tpu.vector_store %arg21[%c0_115, %c0_116, %c0_117], %292 {strides = array<i32>} : memref<8x8x128xf32, #tpu.memory_space<vmem>>, vector<1x8x128xf32>,
    %c1_118 = arith.constant 1 : index
    %c0_119 = arith.constant 0 : index
    %c0_120 = arith.constant 0 : index
    %293 = vector.load %arg20[%c1_118, %c0_119, %c0_120] : memref<8x8x384xf32, #tpu.memory_space<vmem>>, vector<1x8x384xf32>
    %294 = vector.shape_cast %293 : vector<1x8x384xf32> to vector<8x384xf32>
    %c0_121 = arith.constant 0 : index
    %c0_122 = arith.constant 0 : index
    %295 = vector.load %arg15[%c0_121, %c0_122] : memref<128x384xf32, #tpu.memory_space<vmem>>, vector<128x384xf32>
    %cst_123 = arith.constant dense<0.000000e+00> : vector<8x384xf32>
    %296 = tpu.matmul %255, %295, %cst_123 {dimension_numbers = #tpu.dot_dimension_numbers<[1], [0], [0], [1], [0, 0, 1, 1], [], []>} : vector<8x128xf32>, vector<128x384xf32>, vector<8x384xf32> -> vector<8x384xf32>
    %297 = vector.broadcast %218 : vector<1x384xf32> to vector<8x384xf32>
    %298 = arith.addf %296, %297 : vector<8x384xf32>
    %299 = vector.extract_strided_slice %294 {offsets = [0, 0], sizes = [8, 128], strides = [1, 1]} : vector<8x384xf32> to vector<8x128xf32>
    %300 = vector.extract_strided_slice %298 {offsets = [0, 0], sizes = [8, 128], strides = [1, 1]} : vector<8x384xf32> to vector<8x128xf32>
    %301 = arith.addf %299, %300 : vector<8x128xf32>
    %302 = arith.negf %301 : vector<8x128xf32>
    %303 = math.exp %302 : vector<8x128xf32>
    %cst_124 = arith.constant 1.000000e+00 : f32
    %304 = vector.broadcast %cst_124 : f32 to vector<8x128xf32>
    %305 = arith.addf %304, %303 : vector<8x128xf32>
    %306 = arith.divf %304, %305 : vector<8x128xf32>
    %307 = vector.extract_strided_slice %294 {offsets = [0, 128], sizes = [8, 128], strides = [1, 1]} : vector<8x384xf32> to vector<8x128xf32>
    %308 = vector.extract_strided_slice %298 {offsets = [0, 128], sizes = [8, 128], strides = [1, 1]} : vector<8x384xf32> to vector<8x128xf32>
    %309 = arith.addf %307, %308 : vector<8x128xf32>
    %310 = arith.negf %309 : vector<8x128xf32>
    %311 = math.exp %310 : vector<8x128xf32>
    %cst_125 = arith.constant 1.000000e+00 : f32
    %312 = vector.broadcast %cst_125 : f32 to vector<8x128xf32>
    %313 = arith.addf %312, %311 : vector<8x128xf32>
    %314 = arith.divf %312, %313 : vector<8x128xf32>
    %315 = vector.extract_strided_slice %294 {offsets = [0, 256], sizes = [8, 128], strides = [1, 1]} : vector<8x384xf32> to vector<8x128xf32>
    %316 = vector.extract_strided_slice %298 {offsets = [0, 256], sizes = [8, 128], strides = [1, 1]} : vector<8x384xf32> to vector<8x128xf32>
    %317 = arith.mulf %306, %316 : vector<8x128xf32>
    %318 = arith.addf %315, %317 : vector<8x128xf32>
    %319 = math.tanh %318 : vector<8x128xf32>
    %cst_126 = arith.constant 1.000000e+00 : f32
    %320 = vector.broadcast %cst_126 : f32 to vector<8x128xf32>
    %321 = arith.subf %320, %314 : vector<8x128xf32>
    %322 = arith.mulf %321, %319 : vector<8x128xf32>
    %323 = arith.mulf %314, %255 : vector<8x128xf32>
    %324 = arith.addf %322, %323 : vector<8x128xf32>
    %c0_127 = arith.constant 0 : index
    %c0_128 = arith.constant 0 : index
    %325 = vector.load %arg16[%c0_127, %c0_128] : memref<128x384xf32, #tpu.memory_space<vmem>>, vector<128x384xf32>
    %cst_129 = arith.constant dense<0.000000e+00> : vector<8x384xf32>
    %326 = tpu.matmul %324, %325, %cst_129 {dimension_numbers = #tpu.dot_dimension_numbers<[1], [0], [0], [1], [0, 0, 1, 1], [], []>} : vector<8x128xf32>, vector<128x384xf32>, vector<8x384xf32> -> vector<8x384xf32>
    %327 = vector.broadcast %217 : vector<1x384xf32> to vector<8x384xf32>
    %328 = arith.addf %326, %327 : vector<8x384xf32>
    %c0_130 = arith.constant 0 : index
    %c0_131 = arith.constant 0 : index
    %329 = vector.load %arg17[%c0_130, %c0_131] : memref<128x384xf32, #tpu.memory_space<vmem>>, vector<128x384xf32>
    %cst_132 = arith.constant dense<0.000000e+00> : vector<8x384xf32>
    %330 = tpu.matmul %289, %329, %cst_132 {dimension_numbers = #tpu.dot_dimension_numbers<[1], [0], [0], [1], [0, 0, 1, 1], [], []>} : vector<8x128xf32>, vector<128x384xf32>, vector<8x384xf32> -> vector<8x384xf32>
    %331 = vector.broadcast %219 : vector<1x384xf32> to vector<8x384xf32>
    %332 = arith.addf %330, %331 : vector<8x384xf32>
    %333 = vector.extract_strided_slice %328 {offsets = [0, 0], sizes = [8, 128], strides = [1, 1]} : vector<8x384xf32> to vector<8x128xf32>
    %334 = vector.extract_strided_slice %332 {offsets = [0, 0], sizes = [8, 128], strides = [1, 1]} : vector<8x384xf32> to vector<8x128xf32>
    %335 = arith.addf %333, %334 : vector<8x128xf32>
    %336 = arith.negf %335 : vector<8x128xf32>
    %337 = math.exp %336 : vector<8x128xf32>
    %cst_133 = arith.constant 1.000000e+00 : f32
    %338 = vector.broadcast %cst_133 : f32 to vector<8x128xf32>
    %339 = arith.addf %338, %337 : vector<8x128xf32>
    %340 = arith.divf %338, %339 : vector<8x128xf32>
    %341 = vector.extract_strided_slice %328 {offsets = [0, 128], sizes = [8, 128], strides = [1, 1]} : vector<8x384xf32> to vector<8x128xf32>
    %342 = vector.extract_strided_slice %332 {offsets = [0, 128], sizes = [8, 128], strides = [1, 1]} : vector<8x384xf32> to vector<8x128xf32>
    %343 = arith.addf %341, %342 : vector<8x128xf32>
    %344 = arith.negf %343 : vector<8x128xf32>
    %345 = math.exp %344 : vector<8x128xf32>
    %cst_134 = arith.constant 1.000000e+00 : f32
    %346 = vector.broadcast %cst_134 : f32 to vector<8x128xf32>
    %347 = arith.addf %346, %345 : vector<8x128xf32>
    %348 = arith.divf %346, %347 : vector<8x128xf32>
    %349 = vector.extract_strided_slice %328 {offsets = [0, 256], sizes = [8, 128], strides = [1, 1]} : vector<8x384xf32> to vector<8x128xf32>
    %350 = vector.extract_strided_slice %332 {offsets = [0, 256], sizes = [8, 128], strides = [1, 1]} : vector<8x384xf32> to vector<8x128xf32>
    %351 = arith.mulf %340, %350 : vector<8x128xf32>
    %352 = arith.addf %349, %351 : vector<8x128xf32>
    %353 = math.tanh %352 : vector<8x128xf32>
    %cst_135 = arith.constant 1.000000e+00 : f32
    %354 = vector.broadcast %cst_135 : f32 to vector<8x128xf32>
    %355 = arith.subf %354, %348 : vector<8x128xf32>
    %356 = arith.mulf %355, %353 : vector<8x128xf32>
    %357 = arith.mulf %348, %289 : vector<8x128xf32>
    %358 = arith.addf %356, %357 : vector<8x128xf32>
    %c1_136 = arith.constant 1 : index
    %c0_137 = arith.constant 0 : index
    %c0_138 = arith.constant 0 : index
    %359 = vector.load %arg21[%c1_136, %c0_137, %c0_138] : memref<8x8x128xf32, #tpu.memory_space<vmem>>, vector<1x8x128xf32>
    %360 = vector.shape_cast %359 : vector<1x8x128xf32> to vector<8x128xf32>
    %361 = vector.shape_cast %358 : vector<8x128xf32> to vector<1x8x128xf32>
    tpu.vector_store %arg21[%c1_136, %c0_137, %c0_138], %361 {strides = array<i32>} : memref<8x8x128xf32, #tpu.memory_space<vmem>>, vector<1x8x128xf32>,
    %c2_139 = arith.constant 2 : index
    %c0_140 = arith.constant 0 : index
    %c0_141 = arith.constant 0 : index
    %362 = vector.load %arg20[%c2_139, %c0_140, %c0_141] : memref<8x8x384xf32, #tpu.memory_space<vmem>>, vector<1x8x384xf32>
    %363 = vector.shape_cast %362 : vector<1x8x384xf32> to vector<8x384xf32>
    %c0_142 = arith.constant 0 : index
    %c0_143 = arith.constant 0 : index
    %364 = vector.load %arg15[%c0_142, %c0_143] : memref<128x384xf32, #tpu.memory_space<vmem>>, vector<128x384xf32>
    %cst_144 = arith.constant dense<0.000000e+00> : vector<8x384xf32>
    %365 = tpu.matmul %324, %364, %cst_144 {dimension_numbers = #tpu.dot_dimension_numbers<[1], [0], [0], [1], [0, 0, 1, 1], [], []>} : vector<8x128xf32>, vector<128x384xf32>, vector<8x384xf32> -> vector<8x384xf32>
    %366 = vector.broadcast %218 : vector<1x384xf32> to vector<8x384xf32>
    %367 = arith.addf %365, %366 : vector<8x384xf32>
    %368 = vector.extract_strided_slice %363 {offsets = [0, 0], sizes = [8, 128], strides = [1, 1]} : vector<8x384xf32> to vector<8x128xf32>
    %369 = vector.extract_strided_slice %367 {offsets = [0, 0], sizes = [8, 128], strides = [1, 1]} : vector<8x384xf32> to vector<8x128xf32>
    %370 = arith.addf %368, %369 : vector<8x128xf32>
    %371 = arith.negf %370 : vector<8x128xf32>
    %372 = math.exp %371 : vector<8x128xf32>
    %cst_145 = arith.constant 1.000000e+00 : f32
    %373 = vector.broadcast %cst_145 : f32 to vector<8x128xf32>
    %374 = arith.addf %373, %372 : vector<8x128xf32>
    %375 = arith.divf %373, %374 : vector<8x128xf32>
    %376 = vector.extract_strided_slice %363 {offsets = [0, 128], sizes = [8, 128], strides = [1, 1]} : vector<8x384xf32> to vector<8x128xf32>
    %377 = vector.extract_strided_slice %367 {offsets = [0, 128], sizes = [8, 128], strides = [1, 1]} : vector<8x384xf32> to vector<8x128xf32>
    %378 = arith.addf %376, %377 : vector<8x128xf32>
    %379 = arith.negf %378 : vector<8x128xf32>
    %380 = math.exp %379 : vector<8x128xf32>
    %cst_146 = arith.constant 1.000000e+00 : f32
    %381 = vector.broadcast %cst_146 : f32 to vector<8x128xf32>
    %382 = arith.addf %381, %380 : vector<8x128xf32>
    %383 = arith.divf %381, %382 : vector<8x128xf32>
    %384 = vector.extract_strided_slice %363 {offsets = [0, 256], sizes = [8, 128], strides = [1, 1]} : vector<8x384xf32> to vector<8x128xf32>
    %385 = vector.extract_strided_slice %367 {offsets = [0, 256], sizes = [8, 128], strides = [1, 1]} : vector<8x384xf32> to vector<8x128xf32>
    %386 = arith.mulf %375, %385 : vector<8x128xf32>
    %387 = arith.addf %384, %386 : vector<8x128xf32>
    %388 = math.tanh %387 : vector<8x128xf32>
    %cst_147 = arith.constant 1.000000e+00 : f32
    %389 = vector.broadcast %cst_147 : f32 to vector<8x128xf32>
    %390 = arith.subf %389, %383 : vector<8x128xf32>
    %391 = arith.mulf %390, %388 : vector<8x128xf32>
    %392 = arith.mulf %383, %324 : vector<8x128xf32>
    %393 = arith.addf %391, %392 : vector<8x128xf32>
    %c0_148 = arith.constant 0 : index
    %c0_149 = arith.constant 0 : index
    %394 = vector.load %arg16[%c0_148, %c0_149] : memref<128x384xf32, #tpu.memory_space<vmem>>, vector<128x384xf32>
    %cst_150 = arith.constant dense<0.000000e+00> : vector<8x384xf32>
    %395 = tpu.matmul %393, %394, %cst_150 {dimension_numbers = #tpu.dot_dimension_numbers<[1], [0], [0], [1], [0, 0, 1, 1], [], []>} : vector<8x128xf32>, vector<128x384xf32>, vector<8x384xf32> -> vector<8x384xf32>
    %396 = vector.broadcast %217 : vector<1x384xf32> to vector<8x384xf32>
    %397 = arith.addf %395, %396 : vector<8x384xf32>
    %c0_151 = arith.constant 0 : index
    %c0_152 = arith.constant 0 : index
    %398 = vector.load %arg17[%c0_151, %c0_152] : memref<128x384xf32, #tpu.memory_space<vmem>>, vector<128x384xf32>
    %cst_153 = arith.constant dense<0.000000e+00> : vector<8x384xf32>
    %399 = tpu.matmul %358, %398, %cst_153 {dimension_numbers = #tpu.dot_dimension_numbers<[1], [0], [0], [1], [0, 0, 1, 1], [], []>} : vector<8x128xf32>, vector<128x384xf32>, vector<8x384xf32> -> vector<8x384xf32>
    %400 = vector.broadcast %219 : vector<1x384xf32> to vector<8x384xf32>
    %401 = arith.addf %399, %400 : vector<8x384xf32>
    %402 = vector.extract_strided_slice %397 {offsets = [0, 0], sizes = [8, 128], strides = [1, 1]} : vector<8x384xf32> to vector<8x128xf32>
    %403 = vector.extract_strided_slice %401 {offsets = [0, 0], sizes = [8, 128], strides = [1, 1]} : vector<8x384xf32> to vector<8x128xf32>
    %404 = arith.addf %402, %403 : vector<8x128xf32>
    %405 = arith.negf %404 : vector<8x128xf32>
    %406 = math.exp %405 : vector<8x128xf32>
    %cst_154 = arith.constant 1.000000e+00 : f32
    %407 = vector.broadcast %cst_154 : f32 to vector<8x128xf32>
    %408 = arith.addf %407, %406 : vector<8x128xf32>
    %409 = arith.divf %407, %408 : vector<8x128xf32>
    %410 = vector.extract_strided_slice %397 {offsets = [0, 128], sizes = [8, 128], strides = [1, 1]} : vector<8x384xf32> to vector<8x128xf32>
    %411 = vector.extract_strided_slice %401 {offsets = [0, 128], sizes = [8, 128], strides = [1, 1]} : vector<8x384xf32> to vector<8x128xf32>
    %412 = arith.addf %410, %411 : vector<8x128xf32>
    %413 = arith.negf %412 : vector<8x128xf32>
    %414 = math.exp %413 : vector<8x128xf32>
    %cst_155 = arith.constant 1.000000e+00 : f32
    %415 = vector.broadcast %cst_155 : f32 to vector<8x128xf32>
    %416 = arith.addf %415, %414 : vector<8x128xf32>
    %417 = arith.divf %415, %416 : vector<8x128xf32>
    %418 = vector.extract_strided_slice %397 {offsets = [0, 256], sizes = [8, 128], strides = [1, 1]} : vector<8x384xf32> to vector<8x128xf32>
    %419 = vector.extract_strided_slice %401 {offsets = [0, 256], sizes = [8, 128], strides = [1, 1]} : vector<8x384xf32> to vector<8x128xf32>
    %420 = arith.mulf %409, %419 : vector<8x128xf32>
    %421 = arith.addf %418, %420 : vector<8x128xf32>
    %422 = math.tanh %421 : vector<8x128xf32>
    %cst_156 = arith.constant 1.000000e+00 : f32
    %423 = vector.broadcast %cst_156 : f32 to vector<8x128xf32>
    %424 = arith.subf %423, %417 : vector<8x128xf32>
    %425 = arith.mulf %424, %422 : vector<8x128xf32>
    %426 = arith.mulf %417, %358 : vector<8x128xf32>
    %427 = arith.addf %425, %426 : vector<8x128xf32>
    %c2_157 = arith.constant 2 : index
    %c0_158 = arith.constant 0 : index
    %c0_159 = arith.constant 0 : index
    %428 = vector.load %arg21[%c2_157, %c0_158, %c0_159] : memref<8x8x128xf32, #tpu.memory_space<vmem>>, vector<1x8x128xf32>
    %429 = vector.shape_cast %428 : vector<1x8x128xf32> to vector<8x128xf32>
    %430 = vector.shape_cast %427 : vector<8x128xf32> to vector<1x8x128xf32>
    tpu.vector_store %arg21[%c2_157, %c0_158, %c0_159], %430 {strides = array<i32>} : memref<8x8x128xf32, #tpu.memory_space<vmem>>, vector<1x8x128xf32>,
    %c3_160 = arith.constant 3 : index
    %c0_161 = arith.constant 0 : index
    %c0_162 = arith.constant 0 : index
    %431 = vector.load %arg20[%c3_160, %c0_161, %c0_162] : memref<8x8x384xf32, #tpu.memory_space<vmem>>, vector<1x8x384xf32>
    %432 = vector.shape_cast %431 : vector<1x8x384xf32> to vector<8x384xf32>
    %c0_163 = arith.constant 0 : index
    %c0_164 = arith.constant 0 : index
    %433 = vector.load %arg15[%c0_163, %c0_164] : memref<128x384xf32, #tpu.memory_space<vmem>>, vector<128x384xf32>
    %cst_165 = arith.constant dense<0.000000e+00> : vector<8x384xf32>
    %434 = tpu.matmul %393, %433, %cst_165 {dimension_numbers = #tpu.dot_dimension_numbers<[1], [0], [0], [1], [0, 0, 1, 1], [], []>} : vector<8x128xf32>, vector<128x384xf32>, vector<8x384xf32> -> vector<8x384xf32>
    %435 = vector.broadcast %218 : vector<1x384xf32> to vector<8x384xf32>
    %436 = arith.addf %434, %435 : vector<8x384xf32>
    %437 = vector.extract_strided_slice %432 {offsets = [0, 0], sizes = [8, 128], strides = [1, 1]} : vector<8x384xf32> to vector<8x128xf32>
    %438 = vector.extract_strided_slice %436 {offsets = [0, 0], sizes = [8, 128], strides = [1, 1]} : vector<8x384xf32> to vector<8x128xf32>
    %439 = arith.addf %437, %438 : vector<8x128xf32>
    %440 = arith.negf %439 : vector<8x128xf32>
    %441 = math.exp %440 : vector<8x128xf32>
    %cst_166 = arith.constant 1.000000e+00 : f32
    %442 = vector.broadcast %cst_166 : f32 to vector<8x128xf32>
    %443 = arith.addf %442, %441 : vector<8x128xf32>
    %444 = arith.divf %442, %443 : vector<8x128xf32>
    %445 = vector.extract_strided_slice %432 {offsets = [0, 128], sizes = [8, 128], strides = [1, 1]} : vector<8x384xf32> to vector<8x128xf32>
    %446 = vector.extract_strided_slice %436 {offsets = [0, 128], sizes = [8, 128], strides = [1, 1]} : vector<8x384xf32> to vector<8x128xf32>
    %447 = arith.addf %445, %446 : vector<8x128xf32>
    %448 = arith.negf %447 : vector<8x128xf32>
    %449 = math.exp %448 : vector<8x128xf32>
    %cst_167 = arith.constant 1.000000e+00 : f32
    %450 = vector.broadcast %cst_167 : f32 to vector<8x128xf32>
    %451 = arith.addf %450, %449 : vector<8x128xf32>
    %452 = arith.divf %450, %451 : vector<8x128xf32>
    %453 = vector.extract_strided_slice %432 {offsets = [0, 256], sizes = [8, 128], strides = [1, 1]} : vector<8x384xf32> to vector<8x128xf32>
    %454 = vector.extract_strided_slice %436 {offsets = [0, 256], sizes = [8, 128], strides = [1, 1]} : vector<8x384xf32> to vector<8x128xf32>
    %455 = arith.mulf %444, %454 : vector<8x128xf32>
    %456 = arith.addf %453, %455 : vector<8x128xf32>
    %457 = math.tanh %456 : vector<8x128xf32>
    %cst_168 = arith.constant 1.000000e+00 : f32
    %458 = vector.broadcast %cst_168 : f32 to vector<8x128xf32>
    %459 = arith.subf %458, %452 : vector<8x128xf32>
    %460 = arith.mulf %459, %457 : vector<8x128xf32>
    %461 = arith.mulf %452, %393 : vector<8x128xf32>
    %462 = arith.addf %460, %461 : vector<8x128xf32>
    %c0_169 = arith.constant 0 : index
    %c0_170 = arith.constant 0 : index
    %463 = vector.load %arg16[%c0_169, %c0_170] : memref<128x384xf32, #tpu.memory_space<vmem>>, vector<128x384xf32>
    %cst_171 = arith.constant dense<0.000000e+00> : vector<8x384xf32>
    %464 = tpu.matmul %462, %463, %cst_171 {dimension_numbers = #tpu.dot_dimension_numbers<[1], [0], [0], [1], [0, 0, 1, 1], [], []>} : vector<8x128xf32>, vector<128x384xf32>, vector<8x384xf32> -> vector<8x384xf32>
    %465 = vector.broadcast %217 : vector<1x384xf32> to vector<8x384xf32>
    %466 = arith.addf %464, %465 : vector<8x384xf32>
    %c0_172 = arith.constant 0 : index
    %c0_173 = arith.constant 0 : index
    %467 = vector.load %arg17[%c0_172, %c0_173] : memref<128x384xf32, #tpu.memory_space<vmem>>, vector<128x384xf32>
    %cst_174 = arith.constant dense<0.000000e+00> : vector<8x384xf32>
    %468 = tpu.matmul %427, %467, %cst_174 {dimension_numbers = #tpu.dot_dimension_numbers<[1], [0], [0], [1], [0, 0, 1, 1], [], []>} : vector<8x128xf32>, vector<128x384xf32>, vector<8x384xf32> -> vector<8x384xf32>
    %469 = vector.broadcast %219 : vector<1x384xf32> to vector<8x384xf32>
    %470 = arith.addf %468, %469 : vector<8x384xf32>
    %471 = vector.extract_strided_slice %466 {offsets = [0, 0], sizes = [8, 128], strides = [1, 1]} : vector<8x384xf32> to vector<8x128xf32>
    %472 = vector.extract_strided_slice %470 {offsets = [0, 0], sizes = [8, 128], strides = [1, 1]} : vector<8x384xf32> to vector<8x128xf32>
    %473 = arith.addf %471, %472 : vector<8x128xf32>
    %474 = arith.negf %473 : vector<8x128xf32>
    %475 = math.exp %474 : vector<8x128xf32>
    %cst_175 = arith.constant 1.000000e+00 : f32
    %476 = vector.broadcast %cst_175 : f32 to vector<8x128xf32>
    %477 = arith.addf %476, %475 : vector<8x128xf32>
    %478 = arith.divf %476, %477 : vector<8x128xf32>
    %479 = vector.extract_strided_slice %466 {offsets = [0, 128], sizes = [8, 128], strides = [1, 1]} : vector<8x384xf32> to vector<8x128xf32>
    %480 = vector.extract_strided_slice %470 {offsets = [0, 128], sizes = [8, 128], strides = [1, 1]} : vector<8x384xf32> to vector<8x128xf32>
    %481 = arith.addf %479, %480 : vector<8x128xf32>
    %482 = arith.negf %481 : vector<8x128xf32>
    %483 = math.exp %482 : vector<8x128xf32>
    %cst_176 = arith.constant 1.000000e+00 : f32
    %484 = vector.broadcast %cst_176 : f32 to vector<8x128xf32>
    %485 = arith.addf %484, %483 : vector<8x128xf32>
    %486 = arith.divf %484, %485 : vector<8x128xf32>
    %487 = vector.extract_strided_slice %466 {offsets = [0, 256], sizes = [8, 128], strides = [1, 1]} : vector<8x384xf32> to vector<8x128xf32>
    %488 = vector.extract_strided_slice %470 {offsets = [0, 256], sizes = [8, 128], strides = [1, 1]} : vector<8x384xf32> to vector<8x128xf32>
    %489 = arith.mulf %478, %488 : vector<8x128xf32>
    %490 = arith.addf %487, %489 : vector<8x128xf32>
    %491 = math.tanh %490 : vector<8x128xf32>
    %cst_177 = arith.constant 1.000000e+00 : f32
    %492 = vector.broadcast %cst_177 : f32 to vector<8x128xf32>
    %493 = arith.subf %492, %486 : vector<8x128xf32>
    %494 = arith.mulf %493, %491 : vector<8x128xf32>
    %495 = arith.mulf %486, %427 : vector<8x128xf32>
    %496 = arith.addf %494, %495 : vector<8x128xf32>
    %c3_178 = arith.constant 3 : index
    %c0_179 = arith.constant 0 : index
    %c0_180 = arith.constant 0 : index
    %497 = vector.load %arg21[%c3_178, %c0_179, %c0_180] : memref<8x8x128xf32, #tpu.memory_space<vmem>>, vector<1x8x128xf32>
    %498 = vector.shape_cast %497 : vector<1x8x128xf32> to vector<8x128xf32>
    %499 = vector.shape_cast %496 : vector<8x128xf32> to vector<1x8x128xf32>
    tpu.vector_store %arg21[%c3_178, %c0_179, %c0_180], %499 {strides = array<i32>} : memref<8x8x128xf32, #tpu.memory_space<vmem>>, vector<1x8x128xf32>,
    %c4_181 = arith.constant 4 : index
    %c0_182 = arith.constant 0 : index
    %c0_183 = arith.constant 0 : index
    %500 = vector.load %arg20[%c4_181, %c0_182, %c0_183] : memref<8x8x384xf32, #tpu.memory_space<vmem>>, vector<1x8x384xf32>
    %501 = vector.shape_cast %500 : vector<1x8x384xf32> to vector<8x384xf32>
    %c0_184 = arith.constant 0 : index
    %c0_185 = arith.constant 0 : index
    %502 = vector.load %arg15[%c0_184, %c0_185] : memref<128x384xf32, #tpu.memory_space<vmem>>, vector<128x384xf32>
    %cst_186 = arith.constant dense<0.000000e+00> : vector<8x384xf32>
    %503 = tpu.matmul %462, %502, %cst_186 {dimension_numbers = #tpu.dot_dimension_numbers<[1], [0], [0], [1], [0, 0, 1, 1], [], []>} : vector<8x128xf32>, vector<128x384xf32>, vector<8x384xf32> -> vector<8x384xf32>
    %504 = vector.broadcast %218 : vector<1x384xf32> to vector<8x384xf32>
    %505 = arith.addf %503, %504 : vector<8x384xf32>
    %506 = vector.extract_strided_slice %501 {offsets = [0, 0], sizes = [8, 128], strides = [1, 1]} : vector<8x384xf32> to vector<8x128xf32>
    %507 = vector.extract_strided_slice %505 {offsets = [0, 0], sizes = [8, 128], strides = [1, 1]} : vector<8x384xf32> to vector<8x128xf32>
    %508 = arith.addf %506, %507 : vector<8x128xf32>
    %509 = arith.negf %508 : vector<8x128xf32>
    %510 = math.exp %509 : vector<8x128xf32>
    %cst_187 = arith.constant 1.000000e+00 : f32
    %511 = vector.broadcast %cst_187 : f32 to vector<8x128xf32>
    %512 = arith.addf %511, %510 : vector<8x128xf32>
    %513 = arith.divf %511, %512 : vector<8x128xf32>
    %514 = vector.extract_strided_slice %501 {offsets = [0, 128], sizes = [8, 128], strides = [1, 1]} : vector<8x384xf32> to vector<8x128xf32>
    %515 = vector.extract_strided_slice %505 {offsets = [0, 128], sizes = [8, 128], strides = [1, 1]} : vector<8x384xf32> to vector<8x128xf32>
    %516 = arith.addf %514, %515 : vector<8x128xf32>
    %517 = arith.negf %516 : vector<8x128xf32>
    %518 = math.exp %517 : vector<8x128xf32>
    %cst_188 = arith.constant 1.000000e+00 : f32
    %519 = vector.broadcast %cst_188 : f32 to vector<8x128xf32>
    %520 = arith.addf %519, %518 : vector<8x128xf32>
    %521 = arith.divf %519, %520 : vector<8x128xf32>
    %522 = vector.extract_strided_slice %501 {offsets = [0, 256], sizes = [8, 128], strides = [1, 1]} : vector<8x384xf32> to vector<8x128xf32>
    %523 = vector.extract_strided_slice %505 {offsets = [0, 256], sizes = [8, 128], strides = [1, 1]} : vector<8x384xf32> to vector<8x128xf32>
    %524 = arith.mulf %513, %523 : vector<8x128xf32>
    %525 = arith.addf %522, %524 : vector<8x128xf32>
    %526 = math.tanh %525 : vector<8x128xf32>
    %cst_189 = arith.constant 1.000000e+00 : f32
    %527 = vector.broadcast %cst_189 : f32 to vector<8x128xf32>
    %528 = arith.subf %527, %521 : vector<8x128xf32>
    %529 = arith.mulf %528, %526 : vector<8x128xf32>
    %530 = arith.mulf %521, %462 : vector<8x128xf32>
    %531 = arith.addf %529, %530 : vector<8x128xf32>
    %c0_190 = arith.constant 0 : index
    %c0_191 = arith.constant 0 : index
    %532 = vector.load %arg16[%c0_190, %c0_191] : memref<128x384xf32, #tpu.memory_space<vmem>>, vector<128x384xf32>
    %cst_192 = arith.constant dense<0.000000e+00> : vector<8x384xf32>
    %533 = tpu.matmul %531, %532, %cst_192 {dimension_numbers = #tpu.dot_dimension_numbers<[1], [0], [0], [1], [0, 0, 1, 1], [], []>} : vector<8x128xf32>, vector<128x384xf32>, vector<8x384xf32> -> vector<8x384xf32>
    %534 = vector.broadcast %217 : vector<1x384xf32> to vector<8x384xf32>
    %535 = arith.addf %533, %534 : vector<8x384xf32>
    %c0_193 = arith.constant 0 : index
    %c0_194 = arith.constant 0 : index
    %536 = vector.load %arg17[%c0_193, %c0_194] : memref<128x384xf32, #tpu.memory_space<vmem>>, vector<128x384xf32>
    %cst_195 = arith.constant dense<0.000000e+00> : vector<8x384xf32>
    %537 = tpu.matmul %496, %536, %cst_195 {dimension_numbers = #tpu.dot_dimension_numbers<[1], [0], [0], [1], [0, 0, 1, 1], [], []>} : vector<8x128xf32>, vector<128x384xf32>, vector<8x384xf32> -> vector<8x384xf32>
    %538 = vector.broadcast %219 : vector<1x384xf32> to vector<8x384xf32>
    %539 = arith.addf %537, %538 : vector<8x384xf32>
    %540 = vector.extract_strided_slice %535 {offsets = [0, 0], sizes = [8, 128], strides = [1, 1]} : vector<8x384xf32> to vector<8x128xf32>
    %541 = vector.extract_strided_slice %539 {offsets = [0, 0], sizes = [8, 128], strides = [1, 1]} : vector<8x384xf32> to vector<8x128xf32>
    %542 = arith.addf %540, %541 : vector<8x128xf32>
    %543 = arith.negf %542 : vector<8x128xf32>
    %544 = math.exp %543 : vector<8x128xf32>
    %cst_196 = arith.constant 1.000000e+00 : f32
    %545 = vector.broadcast %cst_196 : f32 to vector<8x128xf32>
    %546 = arith.addf %545, %544 : vector<8x128xf32>
    %547 = arith.divf %545, %546 : vector<8x128xf32>
    %548 = vector.extract_strided_slice %535 {offsets = [0, 128], sizes = [8, 128], strides = [1, 1]} : vector<8x384xf32> to vector<8x128xf32>
    %549 = vector.extract_strided_slice %539 {offsets = [0, 128], sizes = [8, 128], strides = [1, 1]} : vector<8x384xf32> to vector<8x128xf32>
    %550 = arith.addf %548, %549 : vector<8x128xf32>
    %551 = arith.negf %550 : vector<8x128xf32>
    %552 = math.exp %551 : vector<8x128xf32>
    %cst_197 = arith.constant 1.000000e+00 : f32
    %553 = vector.broadcast %cst_197 : f32 to vector<8x128xf32>
    %554 = arith.addf %553, %552 : vector<8x128xf32>
    %555 = arith.divf %553, %554 : vector<8x128xf32>
    %556 = vector.extract_strided_slice %535 {offsets = [0, 256], sizes = [8, 128], strides = [1, 1]} : vector<8x384xf32> to vector<8x128xf32>
    %557 = vector.extract_strided_slice %539 {offsets = [0, 256], sizes = [8, 128], strides = [1, 1]} : vector<8x384xf32> to vector<8x128xf32>
    %558 = arith.mulf %547, %557 : vector<8x128xf32>
    %559 = arith.addf %556, %558 : vector<8x128xf32>
    %560 = math.tanh %559 : vector<8x128xf32>
    %cst_198 = arith.constant 1.000000e+00 : f32
    %561 = vector.broadcast %cst_198 : f32 to vector<8x128xf32>
    %562 = arith.subf %561, %555 : vector<8x128xf32>
    %563 = arith.mulf %562, %560 : vector<8x128xf32>
    %564 = arith.mulf %555, %496 : vector<8x128xf32>
    %565 = arith.addf %563, %564 : vector<8x128xf32>
    %c4_199 = arith.constant 4 : index
    %c0_200 = arith.constant 0 : index
    %c0_201 = arith.constant 0 : index
    %566 = vector.load %arg21[%c4_199, %c0_200, %c0_201] : memref<8x8x128xf32, #tpu.memory_space<vmem>>, vector<1x8x128xf32>
    %567 = vector.shape_cast %566 : vector<1x8x128xf32> to vector<8x128xf32>
    %568 = vector.shape_cast %565 : vector<8x128xf32> to vector<1x8x128xf32>
    tpu.vector_store %arg21[%c4_199, %c0_200, %c0_201], %568 {strides = array<i32>} : memref<8x8x128xf32, #tpu.memory_space<vmem>>, vector<1x8x128xf32>,
    %c5_202 = arith.constant 5 : index
    %c0_203 = arith.constant 0 : index
    %c0_204 = arith.constant 0 : index
    %569 = vector.load %arg20[%c5_202, %c0_203, %c0_204] : memref<8x8x384xf32, #tpu.memory_space<vmem>>, vector<1x8x384xf32>
    %570 = vector.shape_cast %569 : vector<1x8x384xf32> to vector<8x384xf32>
    %c0_205 = arith.constant 0 : index
    %c0_206 = arith.constant 0 : index
    %571 = vector.load %arg15[%c0_205, %c0_206] : memref<128x384xf32, #tpu.memory_space<vmem>>, vector<128x384xf32>
    %cst_207 = arith.constant dense<0.000000e+00> : vector<8x384xf32>
    %572 = tpu.matmul %531, %571, %cst_207 {dimension_numbers = #tpu.dot_dimension_numbers<[1], [0], [0], [1], [0, 0, 1, 1], [], []>} : vector<8x128xf32>, vector<128x384xf32>, vector<8x384xf32> -> vector<8x384xf32>
    %573 = vector.broadcast %218 : vector<1x384xf32> to vector<8x384xf32>
    %574 = arith.addf %572, %573 : vector<8x384xf32>
    %575 = vector.extract_strided_slice %570 {offsets = [0, 0], sizes = [8, 128], strides = [1, 1]} : vector<8x384xf32> to vector<8x128xf32>
    %576 = vector.extract_strided_slice %574 {offsets = [0, 0], sizes = [8, 128], strides = [1, 1]} : vector<8x384xf32> to vector<8x128xf32>
    %577 = arith.addf %575, %576 : vector<8x128xf32>
    %578 = arith.negf %577 : vector<8x128xf32>
    %579 = math.exp %578 : vector<8x128xf32>
    %cst_208 = arith.constant 1.000000e+00 : f32
    %580 = vector.broadcast %cst_208 : f32 to vector<8x128xf32>
    %581 = arith.addf %580, %579 : vector<8x128xf32>
    %582 = arith.divf %580, %581 : vector<8x128xf32>
    %583 = vector.extract_strided_slice %570 {offsets = [0, 128], sizes = [8, 128], strides = [1, 1]} : vector<8x384xf32> to vector<8x128xf32>
    %584 = vector.extract_strided_slice %574 {offsets = [0, 128], sizes = [8, 128], strides = [1, 1]} : vector<8x384xf32> to vector<8x128xf32>
    %585 = arith.addf %583, %584 : vector<8x128xf32>
    %586 = arith.negf %585 : vector<8x128xf32>
    %587 = math.exp %586 : vector<8x128xf32>
    %cst_209 = arith.constant 1.000000e+00 : f32
    %588 = vector.broadcast %cst_209 : f32 to vector<8x128xf32>
    %589 = arith.addf %588, %587 : vector<8x128xf32>
    %590 = arith.divf %588, %589 : vector<8x128xf32>
    %591 = vector.extract_strided_slice %570 {offsets = [0, 256], sizes = [8, 128], strides = [1, 1]} : vector<8x384xf32> to vector<8x128xf32>
    %592 = vector.extract_strided_slice %574 {offsets = [0, 256], sizes = [8, 128], strides = [1, 1]} : vector<8x384xf32> to vector<8x128xf32>
    %593 = arith.mulf %582, %592 : vector<8x128xf32>
    %594 = arith.addf %591, %593 : vector<8x128xf32>
    %595 = math.tanh %594 : vector<8x128xf32>
    %cst_210 = arith.constant 1.000000e+00 : f32
    %596 = vector.broadcast %cst_210 : f32 to vector<8x128xf32>
    %597 = arith.subf %596, %590 : vector<8x128xf32>
    %598 = arith.mulf %597, %595 : vector<8x128xf32>
    %599 = arith.mulf %590, %531 : vector<8x128xf32>
    %600 = arith.addf %598, %599 : vector<8x128xf32>
    %c0_211 = arith.constant 0 : index
    %c0_212 = arith.constant 0 : index
    %601 = vector.load %arg16[%c0_211, %c0_212] : memref<128x384xf32, #tpu.memory_space<vmem>>, vector<128x384xf32>
    %cst_213 = arith.constant dense<0.000000e+00> : vector<8x384xf32>
    %602 = tpu.matmul %600, %601, %cst_213 {dimension_numbers = #tpu.dot_dimension_numbers<[1], [0], [0], [1], [0, 0, 1, 1], [], []>} : vector<8x128xf32>, vector<128x384xf32>, vector<8x384xf32> -> vector<8x384xf32>
    %603 = vector.broadcast %217 : vector<1x384xf32> to vector<8x384xf32>
    %604 = arith.addf %602, %603 : vector<8x384xf32>
    %c0_214 = arith.constant 0 : index
    %c0_215 = arith.constant 0 : index
    %605 = vector.load %arg17[%c0_214, %c0_215] : memref<128x384xf32, #tpu.memory_space<vmem>>, vector<128x384xf32>
    %cst_216 = arith.constant dense<0.000000e+00> : vector<8x384xf32>
    %606 = tpu.matmul %565, %605, %cst_216 {dimension_numbers = #tpu.dot_dimension_numbers<[1], [0], [0], [1], [0, 0, 1, 1], [], []>} : vector<8x128xf32>, vector<128x384xf32>, vector<8x384xf32> -> vector<8x384xf32>
    %607 = vector.broadcast %219 : vector<1x384xf32> to vector<8x384xf32>
    %608 = arith.addf %606, %607 : vector<8x384xf32>
    %609 = vector.extract_strided_slice %604 {offsets = [0, 0], sizes = [8, 128], strides = [1, 1]} : vector<8x384xf32> to vector<8x128xf32>
    %610 = vector.extract_strided_slice %608 {offsets = [0, 0], sizes = [8, 128], strides = [1, 1]} : vector<8x384xf32> to vector<8x128xf32>
    %611 = arith.addf %609, %610 : vector<8x128xf32>
    %612 = arith.negf %611 : vector<8x128xf32>
    %613 = math.exp %612 : vector<8x128xf32>
    %cst_217 = arith.constant 1.000000e+00 : f32
    %614 = vector.broadcast %cst_217 : f32 to vector<8x128xf32>
    %615 = arith.addf %614, %613 : vector<8x128xf32>
    %616 = arith.divf %614, %615 : vector<8x128xf32>
    %617 = vector.extract_strided_slice %604 {offsets = [0, 128], sizes = [8, 128], strides = [1, 1]} : vector<8x384xf32> to vector<8x128xf32>
    %618 = vector.extract_strided_slice %608 {offsets = [0, 128], sizes = [8, 128], strides = [1, 1]} : vector<8x384xf32> to vector<8x128xf32>
    %619 = arith.addf %617, %618 : vector<8x128xf32>
    %620 = arith.negf %619 : vector<8x128xf32>
    %621 = math.exp %620 : vector<8x128xf32>
    %cst_218 = arith.constant 1.000000e+00 : f32
    %622 = vector.broadcast %cst_218 : f32 to vector<8x128xf32>
    %623 = arith.addf %622, %621 : vector<8x128xf32>
    %624 = arith.divf %622, %623 : vector<8x128xf32>
    %625 = vector.extract_strided_slice %604 {offsets = [0, 256], sizes = [8, 128], strides = [1, 1]} : vector<8x384xf32> to vector<8x128xf32>
    %626 = vector.extract_strided_slice %608 {offsets = [0, 256], sizes = [8, 128], strides = [1, 1]} : vector<8x384xf32> to vector<8x128xf32>
    %627 = arith.mulf %616, %626 : vector<8x128xf32>
    %628 = arith.addf %625, %627 : vector<8x128xf32>
    %629 = math.tanh %628 : vector<8x128xf32>
    %cst_219 = arith.constant 1.000000e+00 : f32
    %630 = vector.broadcast %cst_219 : f32 to vector<8x128xf32>
    %631 = arith.subf %630, %624 : vector<8x128xf32>
    %632 = arith.mulf %631, %629 : vector<8x128xf32>
    %633 = arith.mulf %624, %565 : vector<8x128xf32>
    %634 = arith.addf %632, %633 : vector<8x128xf32>
    %c5_220 = arith.constant 5 : index
    %c0_221 = arith.constant 0 : index
    %c0_222 = arith.constant 0 : index
    %635 = vector.load %arg21[%c5_220, %c0_221, %c0_222] : memref<8x8x128xf32, #tpu.memory_space<vmem>>, vector<1x8x128xf32>
    %636 = vector.shape_cast %635 : vector<1x8x128xf32> to vector<8x128xf32>
    %637 = vector.shape_cast %634 : vector<8x128xf32> to vector<1x8x128xf32>
    tpu.vector_store %arg21[%c5_220, %c0_221, %c0_222], %637 {strides = array<i32>} : memref<8x8x128xf32, #tpu.memory_space<vmem>>, vector<1x8x128xf32>,
    %c6_223 = arith.constant 6 : index
    %c0_224 = arith.constant 0 : index
    %c0_225 = arith.constant 0 : index
    %638 = vector.load %arg20[%c6_223, %c0_224, %c0_225] : memref<8x8x384xf32, #tpu.memory_space<vmem>>, vector<1x8x384xf32>
    %639 = vector.shape_cast %638 : vector<1x8x384xf32> to vector<8x384xf32>
    %c0_226 = arith.constant 0 : index
    %c0_227 = arith.constant 0 : index
    %640 = vector.load %arg15[%c0_226, %c0_227] : memref<128x384xf32, #tpu.memory_space<vmem>>, vector<128x384xf32>
    %cst_228 = arith.constant dense<0.000000e+00> : vector<8x384xf32>
    %641 = tpu.matmul %600, %640, %cst_228 {dimension_numbers = #tpu.dot_dimension_numbers<[1], [0], [0], [1], [0, 0, 1, 1], [], []>} : vector<8x128xf32>, vector<128x384xf32>, vector<8x384xf32> -> vector<8x384xf32>
    %642 = vector.broadcast %218 : vector<1x384xf32> to vector<8x384xf32>
    %643 = arith.addf %641, %642 : vector<8x384xf32>
    %644 = vector.extract_strided_slice %639 {offsets = [0, 0], sizes = [8, 128], strides = [1, 1]} : vector<8x384xf32> to vector<8x128xf32>
    %645 = vector.extract_strided_slice %643 {offsets = [0, 0], sizes = [8, 128], strides = [1, 1]} : vector<8x384xf32> to vector<8x128xf32>
    %646 = arith.addf %644, %645 : vector<8x128xf32>
    %647 = arith.negf %646 : vector<8x128xf32>
    %648 = math.exp %647 : vector<8x128xf32>
    %cst_229 = arith.constant 1.000000e+00 : f32
    %649 = vector.broadcast %cst_229 : f32 to vector<8x128xf32>
    %650 = arith.addf %649, %648 : vector<8x128xf32>
    %651 = arith.divf %649, %650 : vector<8x128xf32>
    %652 = vector.extract_strided_slice %639 {offsets = [0, 128], sizes = [8, 128], strides = [1, 1]} : vector<8x384xf32> to vector<8x128xf32>
    %653 = vector.extract_strided_slice %643 {offsets = [0, 128], sizes = [8, 128], strides = [1, 1]} : vector<8x384xf32> to vector<8x128xf32>
    %654 = arith.addf %652, %653 : vector<8x128xf32>
    %655 = arith.negf %654 : vector<8x128xf32>
    %656 = math.exp %655 : vector<8x128xf32>
    %cst_230 = arith.constant 1.000000e+00 : f32
    %657 = vector.broadcast %cst_230 : f32 to vector<8x128xf32>
    %658 = arith.addf %657, %656 : vector<8x128xf32>
    %659 = arith.divf %657, %658 : vector<8x128xf32>
    %660 = vector.extract_strided_slice %639 {offsets = [0, 256], sizes = [8, 128], strides = [1, 1]} : vector<8x384xf32> to vector<8x128xf32>
    %661 = vector.extract_strided_slice %643 {offsets = [0, 256], sizes = [8, 128], strides = [1, 1]} : vector<8x384xf32> to vector<8x128xf32>
    %662 = arith.mulf %651, %661 : vector<8x128xf32>
    %663 = arith.addf %660, %662 : vector<8x128xf32>
    %664 = math.tanh %663 : vector<8x128xf32>
    %cst_231 = arith.constant 1.000000e+00 : f32
    %665 = vector.broadcast %cst_231 : f32 to vector<8x128xf32>
    %666 = arith.subf %665, %659 : vector<8x128xf32>
    %667 = arith.mulf %666, %664 : vector<8x128xf32>
    %668 = arith.mulf %659, %600 : vector<8x128xf32>
    %669 = arith.addf %667, %668 : vector<8x128xf32>
    %c0_232 = arith.constant 0 : index
    %c0_233 = arith.constant 0 : index
    %670 = vector.load %arg16[%c0_232, %c0_233] : memref<128x384xf32, #tpu.memory_space<vmem>>, vector<128x384xf32>
    %cst_234 = arith.constant dense<0.000000e+00> : vector<8x384xf32>
    %671 = tpu.matmul %669, %670, %cst_234 {dimension_numbers = #tpu.dot_dimension_numbers<[1], [0], [0], [1], [0, 0, 1, 1], [], []>} : vector<8x128xf32>, vector<128x384xf32>, vector<8x384xf32> -> vector<8x384xf32>
    %672 = vector.broadcast %217 : vector<1x384xf32> to vector<8x384xf32>
    %673 = arith.addf %671, %672 : vector<8x384xf32>
    %c0_235 = arith.constant 0 : index
    %c0_236 = arith.constant 0 : index
    %674 = vector.load %arg17[%c0_235, %c0_236] : memref<128x384xf32, #tpu.memory_space<vmem>>, vector<128x384xf32>
    %cst_237 = arith.constant dense<0.000000e+00> : vector<8x384xf32>
    %675 = tpu.matmul %634, %674, %cst_237 {dimension_numbers = #tpu.dot_dimension_numbers<[1], [0], [0], [1], [0, 0, 1, 1], [], []>} : vector<8x128xf32>, vector<128x384xf32>, vector<8x384xf32> -> vector<8x384xf32>
    %676 = vector.broadcast %219 : vector<1x384xf32> to vector<8x384xf32>
    %677 = arith.addf %675, %676 : vector<8x384xf32>
    %678 = vector.extract_strided_slice %673 {offsets = [0, 0], sizes = [8, 128], strides = [1, 1]} : vector<8x384xf32> to vector<8x128xf32>
    %679 = vector.extract_strided_slice %677 {offsets = [0, 0], sizes = [8, 128], strides = [1, 1]} : vector<8x384xf32> to vector<8x128xf32>
    %680 = arith.addf %678, %679 : vector<8x128xf32>
    %681 = arith.negf %680 : vector<8x128xf32>
    %682 = math.exp %681 : vector<8x128xf32>
    %cst_238 = arith.constant 1.000000e+00 : f32
    %683 = vector.broadcast %cst_238 : f32 to vector<8x128xf32>
    %684 = arith.addf %683, %682 : vector<8x128xf32>
    %685 = arith.divf %683, %684 : vector<8x128xf32>
    %686 = vector.extract_strided_slice %673 {offsets = [0, 128], sizes = [8, 128], strides = [1, 1]} : vector<8x384xf32> to vector<8x128xf32>
    %687 = vector.extract_strided_slice %677 {offsets = [0, 128], sizes = [8, 128], strides = [1, 1]} : vector<8x384xf32> to vector<8x128xf32>
    %688 = arith.addf %686, %687 : vector<8x128xf32>
    %689 = arith.negf %688 : vector<8x128xf32>
    %690 = math.exp %689 : vector<8x128xf32>
    %cst_239 = arith.constant 1.000000e+00 : f32
    %691 = vector.broadcast %cst_239 : f32 to vector<8x128xf32>
    %692 = arith.addf %691, %690 : vector<8x128xf32>
    %693 = arith.divf %691, %692 : vector<8x128xf32>
    %694 = vector.extract_strided_slice %673 {offsets = [0, 256], sizes = [8, 128], strides = [1, 1]} : vector<8x384xf32> to vector<8x128xf32>
    %695 = vector.extract_strided_slice %677 {offsets = [0, 256], sizes = [8, 128], strides = [1, 1]} : vector<8x384xf32> to vector<8x128xf32>
    %696 = arith.mulf %685, %695 : vector<8x128xf32>
    %697 = arith.addf %694, %696 : vector<8x128xf32>
    %698 = math.tanh %697 : vector<8x128xf32>
    %cst_240 = arith.constant 1.000000e+00 : f32
    %699 = vector.broadcast %cst_240 : f32 to vector<8x128xf32>
    %700 = arith.subf %699, %693 : vector<8x128xf32>
    %701 = arith.mulf %700, %698 : vector<8x128xf32>
    %702 = arith.mulf %693, %634 : vector<8x128xf32>
    %703 = arith.addf %701, %702 : vector<8x128xf32>
    %c6_241 = arith.constant 6 : index
    %c0_242 = arith.constant 0 : index
    %c0_243 = arith.constant 0 : index
    %704 = vector.load %arg21[%c6_241, %c0_242, %c0_243] : memref<8x8x128xf32, #tpu.memory_space<vmem>>, vector<1x8x128xf32>
    %705 = vector.shape_cast %704 : vector<1x8x128xf32> to vector<8x128xf32>
    %706 = vector.shape_cast %703 : vector<8x128xf32> to vector<1x8x128xf32>
    tpu.vector_store %arg21[%c6_241, %c0_242, %c0_243], %706 {strides = array<i32>} : memref<8x8x128xf32, #tpu.memory_space<vmem>>, vector<1x8x128xf32>,
    %c7_244 = arith.constant 7 : index
    %c0_245 = arith.constant 0 : index
    %c0_246 = arith.constant 0 : index
    %707 = vector.load %arg20[%c7_244, %c0_245, %c0_246] : memref<8x8x384xf32, #tpu.memory_space<vmem>>, vector<1x8x384xf32>
    %708 = vector.shape_cast %707 : vector<1x8x384xf32> to vector<8x384xf32>
    %c0_247 = arith.constant 0 : index
    %c0_248 = arith.constant 0 : index
    %709 = vector.load %arg15[%c0_247, %c0_248] : memref<128x384xf32, #tpu.memory_space<vmem>>, vector<128x384xf32>
    %cst_249 = arith.constant dense<0.000000e+00> : vector<8x384xf32>
    %710 = tpu.matmul %669, %709, %cst_249 {dimension_numbers = #tpu.dot_dimension_numbers<[1], [0], [0], [1], [0, 0, 1, 1], [], []>} : vector<8x128xf32>, vector<128x384xf32>, vector<8x384xf32> -> vector<8x384xf32>
    %711 = vector.broadcast %218 : vector<1x384xf32> to vector<8x384xf32>
    %712 = arith.addf %710, %711 : vector<8x384xf32>
    %713 = vector.extract_strided_slice %708 {offsets = [0, 0], sizes = [8, 128], strides = [1, 1]} : vector<8x384xf32> to vector<8x128xf32>
    %714 = vector.extract_strided_slice %712 {offsets = [0, 0], sizes = [8, 128], strides = [1, 1]} : vector<8x384xf32> to vector<8x128xf32>
    %715 = arith.addf %713, %714 : vector<8x128xf32>
    %716 = arith.negf %715 : vector<8x128xf32>
    %717 = math.exp %716 : vector<8x128xf32>
    %cst_250 = arith.constant 1.000000e+00 : f32
    %718 = vector.broadcast %cst_250 : f32 to vector<8x128xf32>
    %719 = arith.addf %718, %717 : vector<8x128xf32>
    %720 = arith.divf %718, %719 : vector<8x128xf32>
    %721 = vector.extract_strided_slice %708 {offsets = [0, 128], sizes = [8, 128], strides = [1, 1]} : vector<8x384xf32> to vector<8x128xf32>
    %722 = vector.extract_strided_slice %712 {offsets = [0, 128], sizes = [8, 128], strides = [1, 1]} : vector<8x384xf32> to vector<8x128xf32>
    %723 = arith.addf %721, %722 : vector<8x128xf32>
    %724 = arith.negf %723 : vector<8x128xf32>
    %725 = math.exp %724 : vector<8x128xf32>
    %cst_251 = arith.constant 1.000000e+00 : f32
    %726 = vector.broadcast %cst_251 : f32 to vector<8x128xf32>
    %727 = arith.addf %726, %725 : vector<8x128xf32>
    %728 = arith.divf %726, %727 : vector<8x128xf32>
    %729 = vector.extract_strided_slice %708 {offsets = [0, 256], sizes = [8, 128], strides = [1, 1]} : vector<8x384xf32> to vector<8x128xf32>
    %730 = vector.extract_strided_slice %712 {offsets = [0, 256], sizes = [8, 128], strides = [1, 1]} : vector<8x384xf32> to vector<8x128xf32>
    %731 = arith.mulf %720, %730 : vector<8x128xf32>
    %732 = arith.addf %729, %731 : vector<8x128xf32>
    %733 = math.tanh %732 : vector<8x128xf32>
    %cst_252 = arith.constant 1.000000e+00 : f32
    %734 = vector.broadcast %cst_252 : f32 to vector<8x128xf32>
    %735 = arith.subf %734, %728 : vector<8x128xf32>
    %736 = arith.mulf %735, %733 : vector<8x128xf32>
    %737 = arith.mulf %728, %669 : vector<8x128xf32>
    %738 = arith.addf %736, %737 : vector<8x128xf32>
    %c0_253 = arith.constant 0 : index
    %c0_254 = arith.constant 0 : index
    %739 = vector.load %arg16[%c0_253, %c0_254] : memref<128x384xf32, #tpu.memory_space<vmem>>, vector<128x384xf32>
    %cst_255 = arith.constant dense<0.000000e+00> : vector<8x384xf32>
    %740 = tpu.matmul %738, %739, %cst_255 {dimension_numbers = #tpu.dot_dimension_numbers<[1], [0], [0], [1], [0, 0, 1, 1], [], []>} : vector<8x128xf32>, vector<128x384xf32>, vector<8x384xf32> -> vector<8x384xf32>
    %741 = vector.broadcast %217 : vector<1x384xf32> to vector<8x384xf32>
    %742 = arith.addf %740, %741 : vector<8x384xf32>
    %c0_256 = arith.constant 0 : index
    %c0_257 = arith.constant 0 : index
    %743 = vector.load %arg17[%c0_256, %c0_257] : memref<128x384xf32, #tpu.memory_space<vmem>>, vector<128x384xf32>
    %cst_258 = arith.constant dense<0.000000e+00> : vector<8x384xf32>
    %744 = tpu.matmul %703, %743, %cst_258 {dimension_numbers = #tpu.dot_dimension_numbers<[1], [0], [0], [1], [0, 0, 1, 1], [], []>} : vector<8x128xf32>, vector<128x384xf32>, vector<8x384xf32> -> vector<8x384xf32>
    %745 = vector.broadcast %219 : vector<1x384xf32> to vector<8x384xf32>
    %746 = arith.addf %744, %745 : vector<8x384xf32>
    %747 = vector.extract_strided_slice %742 {offsets = [0, 0], sizes = [8, 128], strides = [1, 1]} : vector<8x384xf32> to vector<8x128xf32>
    %748 = vector.extract_strided_slice %746 {offsets = [0, 0], sizes = [8, 128], strides = [1, 1]} : vector<8x384xf32> to vector<8x128xf32>
    %749 = arith.addf %747, %748 : vector<8x128xf32>
    %750 = arith.negf %749 : vector<8x128xf32>
    %751 = math.exp %750 : vector<8x128xf32>
    %cst_259 = arith.constant 1.000000e+00 : f32
    %752 = vector.broadcast %cst_259 : f32 to vector<8x128xf32>
    %753 = arith.addf %752, %751 : vector<8x128xf32>
    %754 = arith.divf %752, %753 : vector<8x128xf32>
    %755 = vector.extract_strided_slice %742 {offsets = [0, 128], sizes = [8, 128], strides = [1, 1]} : vector<8x384xf32> to vector<8x128xf32>
    %756 = vector.extract_strided_slice %746 {offsets = [0, 128], sizes = [8, 128], strides = [1, 1]} : vector<8x384xf32> to vector<8x128xf32>
    %757 = arith.addf %755, %756 : vector<8x128xf32>
    %758 = arith.negf %757 : vector<8x128xf32>
    %759 = math.exp %758 : vector<8x128xf32>
    %cst_260 = arith.constant 1.000000e+00 : f32
    %760 = vector.broadcast %cst_260 : f32 to vector<8x128xf32>
    %761 = arith.addf %760, %759 : vector<8x128xf32>
    %762 = arith.divf %760, %761 : vector<8x128xf32>
    %763 = vector.extract_strided_slice %742 {offsets = [0, 256], sizes = [8, 128], strides = [1, 1]} : vector<8x384xf32> to vector<8x128xf32>
    %764 = vector.extract_strided_slice %746 {offsets = [0, 256], sizes = [8, 128], strides = [1, 1]} : vector<8x384xf32> to vector<8x128xf32>
    %765 = arith.mulf %754, %764 : vector<8x128xf32>
    %766 = arith.addf %763, %765 : vector<8x128xf32>
    %767 = math.tanh %766 : vector<8x128xf32>
    %cst_261 = arith.constant 1.000000e+00 : f32
    %768 = vector.broadcast %cst_261 : f32 to vector<8x128xf32>
    %769 = arith.subf %768, %762 : vector<8x128xf32>
    %770 = arith.mulf %769, %767 : vector<8x128xf32>
    %771 = arith.mulf %762, %703 : vector<8x128xf32>
    %772 = arith.addf %770, %771 : vector<8x128xf32>
    %c7_262 = arith.constant 7 : index
    %c0_263 = arith.constant 0 : index
    %c0_264 = arith.constant 0 : index
    %773 = vector.load %arg21[%c7_262, %c0_263, %c0_264] : memref<8x8x128xf32, #tpu.memory_space<vmem>>, vector<1x8x128xf32>
    %774 = vector.shape_cast %773 : vector<1x8x128xf32> to vector<8x128xf32>
    %775 = vector.shape_cast %772 : vector<8x128xf32> to vector<1x8x128xf32>
    tpu.vector_store %arg21[%c7_262, %c0_263, %c0_264], %775 {strides = array<i32>} : memref<8x8x128xf32, #tpu.memory_space<vmem>>, vector<1x8x128xf32>,
    %c0_265 = arith.constant 0 : index
    %c0_266 = arith.constant 0 : index
    %c0_267 = arith.constant 0 : index
    %776 = vector.load %arg19[%c0_265, %c0_266, %c0_267] : memref<2x8x128xf32, #tpu.memory_space<vmem>>, vector<1x8x128xf32>
    %777 = vector.shape_cast %776 : vector<1x8x128xf32> to vector<8x128xf32>
    %778 = vector.shape_cast %738 : vector<8x128xf32> to vector<1x8x128xf32>
    tpu.vector_store %arg19[%c0_265, %c0_266, %c0_267], %778 {strides = array<i32>} : memref<2x8x128xf32, #tpu.memory_space<vmem>>, vector<1x8x128xf32>,
    %c1_268 = arith.constant 1 : index
    %c0_269 = arith.constant 0 : index
    %c0_270 = arith.constant 0 : index
    %779 = vector.load %arg19[%c1_268, %c0_269, %c0_270] : memref<2x8x128xf32, #tpu.memory_space<vmem>>, vector<1x8x128xf32>
    %780 = vector.shape_cast %779 : vector<1x8x128xf32> to vector<8x128xf32>
    %781 = vector.shape_cast %772 : vector<8x128xf32> to vector<1x8x128xf32>
    tpu.vector_store %arg19[%c1_268, %c0_269, %c0_270], %781 {strides = array<i32>} : memref<2x8x128xf32, #tpu.memory_space<vmem>>, vector<1x8x128xf32>,
    %c0_271 = arith.constant 0 : index
    %c0_272 = arith.constant 0 : index
    %c0_273 = arith.constant 0 : index
    %782 = vector.load %arg21[%c0_271, %c0_272, %c0_273] : memref<8x8x128xf32, #tpu.memory_space<vmem>>, vector<8x8x128xf32>
    %783 = vector.shape_cast %782 : vector<8x8x128xf32> to vector<64x128xf32>
    %c0_274 = arith.constant 0 : index
    %c0_275 = arith.constant 0 : index
    %784 = vector.load %arg11[%c0_274, %c0_275] : memref<128x128xf32, #tpu.memory_space<vmem>>, vector<128x128xf32>
    %cst_276 = arith.constant dense<0.000000e+00> : vector<64x128xf32>
    %785 = tpu.matmul %209, %784, %cst_276 {dimension_numbers = #tpu.dot_dimension_numbers<[1], [0], [0], [1], [0, 0, 1, 1], [], []>} : vector<64x128xf32>, vector<128x128xf32>, vector<64x128xf32> -> vector<64x128xf32>
    %c0_277 = arith.constant 0 : index
    %c0_278 = arith.constant 0 : index
    %786 = vector.load %arg12[%c0_277, %c0_278] : memref<128x128xf32, #tpu.memory_space<vmem>>, vector<128x128xf32>
    %cst_279 = arith.constant dense<0.000000e+00> : vector<64x128xf32>
    %787 = tpu.matmul %783, %786, %cst_279 {dimension_numbers = #tpu.dot_dimension_numbers<[1], [0], [0], [1], [0, 0, 1, 1], [], []>} : vector<64x128xf32>, vector<128x128xf32>, vector<64x128xf32> -> vector<64x128xf32>
    %788 = arith.addf %785, %787 : vector<64x128xf32>
    %c19 = arith.constant 19 : index
    %c0_280 = arith.constant 0 : index
    %789 = vector.load %arg3[%c19, %c0_280] : memref<20x128xf32, #tpu.memory_space<vmem>>, vector<1x128xf32>
    %790 = vector.broadcast %789 : vector<1x128xf32> to vector<64x128xf32>
    %791 = arith.addf %788, %790 : vector<64x128xf32>
    %cst_281 = arith.constant 0.000000e+00 : f32
    %792 = vector.broadcast %cst_281 : f32 to vector<64x128xf32>
    %793 = arith.cmpf ogt, %791, %792 : vector<64x128xf32>
    %cst_282 = arith.constant 1.000000e-01 : f32
    %794 = vector.broadcast %cst_282 : f32 to vector<64x128xf32>
    %795 = arith.mulf %794, %791 : vector<64x128xf32>
    %796 = arith.select %793, %791, %795 : vector<64x128xi1>, vector<64x128xf32>
    %c0_283 = arith.constant 0 : index
    %c0_284 = arith.constant 0 : index
    %797 = vector.load %arg13[%c0_283, %c0_284] : memref<128x128xf32, #tpu.memory_space<vmem>>, vector<128x128xf32>
    %cst_285 = arith.constant dense<0.000000e+00> : vector<64x128xf32>
    %798 = tpu.matmul %796, %797, %cst_285 {dimension_numbers = #tpu.dot_dimension_numbers<[1], [0], [0], [1], [0, 0, 1, 1], [], []>} : vector<64x128xf32>, vector<128x128xf32>, vector<64x128xf32> -> vector<64x128xf32>
    %c0_286 = arith.constant 0 : index
    %c0_287 = arith.constant 0 : index
    %799 = vector.load %arg5[%c0_286, %c0_287] : memref<1x128xf32, #tpu.memory_space<vmem>>, vector<1x128xf32>
    %800 = vector.broadcast %799 : vector<1x128xf32> to vector<64x128xf32>
    %801 = arith.addf %798, %800 : vector<64x128xf32>
    %802 = math.tanh %801 : vector<64x128xf32>
    %cst_288 = arith.constant 1.000000e+00 : f32
    %803 = vector.broadcast %cst_288 : f32 to vector<64x128xf32>
    %804 = arith.addf %802, %803 : vector<64x128xf32>
    %cst_289 = arith.constant 5.000000e-01 : f32
    %805 = vector.broadcast %cst_289 : f32 to vector<64x128xf32>
    %806 = arith.mulf %804, %805 : vector<64x128xf32>
    %cst_290 = arith.constant 4.990000e-01 : f32
    %807 = vector.broadcast %cst_290 : f32 to vector<64x128xf32>
    %808 = arith.mulf %806, %807 : vector<64x128xf32>
    %cst_291 = arith.constant 1.000000e-03 : f32
    %809 = vector.broadcast %cst_291 : f32 to vector<64x128xf32>
    %810 = arith.addf %808, %809 : vector<64x128xf32>
    %811 = tpu.iota {dimensions = array<i32: 1>} : vector<64x128xi32>
    %false = arith.constant false
    %812 = vector.broadcast %false : i1 to vector<64x128xi1>
    %c0_i32_292 = arith.constant 0 : i32
    %813 = vector.broadcast %c0_i32_292 : i32 to vector<64x128xi32>
    %814 = arith.cmpi sge, %811, %813 : vector<64x128xi32>
    %c64_i32 = arith.constant 64 : i32
    %815 = vector.broadcast %c64_i32 : i32 to vector<64x128xi32>
    %816 = arith.cmpi slt, %811, %815 : vector<64x128xi32>
    %817 = arith.andi %814, %816 : vector<64x128xi1>
    %818 = arith.ori %812, %817 : vector<64x128xi1>
    %819 = arith.select %818, %802, %810 : vector<64x128xi1>, vector<64x128xf32>
    %820 = vector.shape_cast %819 : vector<64x128xf32> to vector<8x8x128xf32>
    %c0_293 = arith.constant 0 : index
    %c0_294 = arith.constant 0 : index
    %c0_295 = arith.constant 0 : index
    %821 = vector.load %arg18[%c0_293, %c0_294, %c0_295] : memref<8x8x128xf32, #tpu.memory_space<vmem>>, vector<8x8x128xf32>
    tpu.vector_store %arg18[%c0_293, %c0_294, %c0_295], %820 {strides = array<i32>} : memref<8x8x128xf32, #tpu.memory_space<vmem>>, vector<8x8x128xf32>,
    return
  }
  func.func @transform_0(%arg0: i32, %arg1: i32) -> (i32, i32, i32) {
    %c0_i32 = arith.constant 0 : i32
    %c0_i32_0 = arith.constant 0 : i32
    return %arg1, %arg0, %c0_i32 : i32, i32, i32
  }
  func.func @transform_1(%arg0: i32, %arg1: i32) -> (i32, i32) {
    %c0_i32 = arith.constant 0 : i32
    %c0_i32_0 = arith.constant 0 : i32
    %c0_i32_1 = arith.constant 0 : i32
    return %c0_i32, %c0_i32_0 : i32, i32
  }
  func.func @transform_2(%arg0: i32, %arg1: i32) -> (i32, i32) {
    %c0_i32 = arith.constant 0 : i32
    %c0_i32_0 = arith.constant 0 : i32
    %c0_i32_1 = arith.constant 0 : i32
    return %c0_i32, %c0_i32_0 : i32, i32
  }
  func.func @transform_3(%arg0: i32, %arg1: i32) -> (i32, i32) {
    %c0_i32 = arith.constant 0 : i32
    %c0_i32_0 = arith.constant 0 : i32
    %c0_i32_1 = arith.constant 0 : i32
    return %c0_i32, %c0_i32_0 : i32, i32
  }
  func.func @transform_4(%arg0: i32, %arg1: i32) -> (i32, i32) {
    %c0_i32 = arith.constant 0 : i32
    %c0_i32_0 = arith.constant 0 : i32
    %c0_i32_1 = arith.constant 0 : i32
    return %c0_i32, %c0_i32_0 : i32, i32
  }
  func.func @transform_5(%arg0: i32, %arg1: i32) -> (i32, i32) {
    %c0_i32 = arith.constant 0 : i32
    %c0_i32_0 = arith.constant 0 : i32
    %c0_i32_1 = arith.constant 0 : i32
    return %c0_i32, %c0_i32_0 : i32, i32
  }
  func.func @transform_6(%arg0: i32, %arg1: i32) -> (i32, i32) {
    %c0_i32 = arith.constant 0 : i32
    %c0_i32_0 = arith.constant 0 : i32
    %c0_i32_1 = arith.constant 0 : i32
    return %c0_i32, %c0_i32_0 : i32, i32
  }
  func.func @transform_7(%arg0: i32, %arg1: i32) -> (i32, i32) {
    %c0_i32 = arith.constant 0 : i32
    %c0_i32_0 = arith.constant 0 : i32
    %c0_i32_1 = arith.constant 0 : i32
    return %c0_i32, %c0_i32_0 : i32, i32
  }
  func.func @transform_8(%arg0: i32, %arg1: i32) -> (i32, i32) {
    %c0_i32 = arith.constant 0 : i32
    %c0_i32_0 = arith.constant 0 : i32
    %c0_i32_1 = arith.constant 0 : i32
    return %c0_i32, %c0_i32_0 : i32, i32
  }
  func.func @transform_9(%arg0: i32, %arg1: i32) -> (i32, i32) {
    %c0_i32 = arith.constant 0 : i32
    %c0_i32_0 = arith.constant 0 : i32
    %c0_i32_1 = arith.constant 0 : i32
    return %c0_i32, %c0_i32_0 : i32, i32
  }
  func.func @transform_10(%arg0: i32, %arg1: i32) -> (i32, i32) {
    %c0_i32 = arith.constant 0 : i32
    %c0_i32_0 = arith.constant 0 : i32
    %c0_i32_1 = arith.constant 0 : i32
    return %c0_i32, %c0_i32_0 : i32, i32
  }
  func.func @transform_11(%arg0: i32, %arg1: i32) -> (i32, i32) {
    %c0_i32 = arith.constant 0 : i32
    %c0_i32_0 = arith.constant 0 : i32
    %c0_i32_1 = arith.constant 0 : i32
    return %c0_i32, %c0_i32_0 : i32, i32
  }
  func.func @transform_12(%arg0: i32, %arg1: i32) -> (i32, i32) {
    %c0_i32 = arith.constant 0 : i32
    %c0_i32_0 = arith.constant 0 : i32
    %c0_i32_1 = arith.constant 0 : i32
    return %c0_i32, %c0_i32_0 : i32, i32
  }
  func.func @transform_13(%arg0: i32, %arg1: i32) -> (i32, i32) {
    %c0_i32 = arith.constant 0 : i32
    %c0_i32_0 = arith.constant 0 : i32
    %c0_i32_1 = arith.constant 0 : i32
    return %c0_i32, %c0_i32_0 : i32, i32
  }
  func.func @transform_14(%arg0: i32, %arg1: i32) -> (i32, i32) {
    %c0_i32 = arith.constant 0 : i32
    %c0_i32_0 = arith.constant 0 : i32
    %c0_i32_1 = arith.constant 0 : i32
    return %c0_i32, %c0_i32_0 : i32, i32
  }
  func.func @transform_15(%arg0: i32, %arg1: i32) -> (i32, i32) {
    %c0_i32 = arith.constant 0 : i32
    %c0_i32_0 = arith.constant 0 : i32
    %c0_i32_1 = arith.constant 0 : i32
    return %c0_i32, %c0_i32_0 : i32, i32
  }
  func.func @transform_16(%arg0: i32, %arg1: i32) -> (i32, i32, i32) {
    %c0_i32 = arith.constant 0 : i32
    %c0_i32_0 = arith.constant 0 : i32
    return %arg1, %arg0, %c0_i32 : i32, i32, i32
  }
}

</mosaic_0001>

<llo_original>
// kernel: tpu_custom_call.1
$region0: #{tpu_custom_call.1}
  #allocation0 [shape = 'u32[]', space=smem, size = 0x4, offset = 0x4, fixed_abs, tag = 'smem constant byte address 0x4 - core index']
  #allocation1 [shape = 'u32[144,128]{1,0:T(1,128)}', space=vmem, size = 0x12000, scoped, tag = 'internal scratch']
  #allocation2 [shape = 'f32[2,8,128]{2,1,0:T(8,128)}', space=vmem, size = 0x2000, scoped, tag = 'scratch operand']
  #allocation3 [shape = 'f32[8,8,384]{2,1,0:T(8,128)}', space=vmem, size = 0x18000, scoped, tag = 'scratch operand']
  #allocation4 [shape = 'f32[8,8,128]{2,1,0:T(8,128)}', space=vmem, size = 0x8000, scoped, tag = 'scratch operand']
  %s0 = inlined_call_operand.hbm [shape: f32[16,8,32], index: 0, kind: input, shape index: {}]
  %s1 = inlined_call_operand.hbm [shape: f32[20,128], index: 1, kind: input, shape index: {}]
  %s2 = inlined_call_operand.hbm [shape: f32[4,384], index: 2, kind: input, shape index: {}]
  %s3 = inlined_call_operand.vmem [shape: f32[1,128], index: 3, kind: input, shape index: {}]
  %s4 = inlined_call_operand.hbm [shape: f32[32,128], index: 4, kind: input, shape index: {}]
  %s5 = inlined_call_operand.hbm [shape: f32[128,128], index: 5, kind: input, shape index: {}]
  %s6 = inlined_call_operand.hbm [shape: f32[128,128], index: 6, kind: input, shape index: {}]
  %s7 = inlined_call_operand.hbm [shape: f32[128,128], index: 7, kind: input, shape index: {}]
  %s8 = inlined_call_operand.hbm [shape: f32[128,128], index: 8, kind: input, shape index: {}]
  %s9 = inlined_call_operand.hbm [shape: f32[128,128], index: 9, kind: input, shape index: {}]
  %s10 = inlined_call_operand.hbm [shape: f32[128,128], index: 10, kind: input, shape index: {}]
  %s11 = inlined_call_operand.hbm [shape: f32[128,128], index: 11, kind: input, shape index: {}]
  %s12 = inlined_call_operand.hbm [shape: f32[128,384], index: 12, kind: input, shape index: {}]
  %s13 = inlined_call_operand.hbm [shape: f32[128,384], index: 13, kind: input, shape index: {}]
  %s14 = inlined_call_operand.hbm [shape: f32[128,384], index: 14, kind: input, shape index: {}]
  %s15 = inlined_call_operand.hbm [shape: f32[128,384], index: 15, kind: input, shape index: {}]
  %s16 = inlined_call_operand.hbm [shape: f32[16,8,128], index: 16, kind: output, shape index: {}]
  %s17 = sld [smem:[#allocation0]]
  $region161: #{tpu_custom_call.1} parent=0
    _
  %s19 = ssub.s32 1, %s17
  %s20 = scalar_select 0, %s19, %s17
  $region1: #{tpu_custom_call.1} parent=0
    #allocation5 [shape = 'u8[65536]{0}', space=vmem, size = 0x10000, scoped, tag = 'input window, operand 0']
    #allocation6 [shape = 's32[2]{0}', space=sflag, size = 0x8, scoped, tag = 'scoped memory for tpu_custom_call.1']
    #allocation7 [shape = 's32[2]{0}', space=sflag, size = 0x8, scoped, tag = 'scoped memory for tpu_custom_call.1']
    #allocation8 [shape = 'u8[12288]{0}', space=vmem, size = 0x3000, scoped, tag = 'input window, operand 1, single buffered']
    #allocation9 [shape = 's32[1]{0}', space=sflag, size = 0x4, scoped, tag = 'scoped memory for tpu_custom_call.1']
    #allocation10 [shape = 'u8[6144]{0}', space=vmem, size = 0x1800, scoped, tag = 'input window, operand 2, single buffered']
    #allocation11 [shape = 'u8[16384]{0}', space=vmem, size = 0x4000, scoped, tag = 'input window, operand 4, single buffered']
    #allocation12 [shape = 's32[1]{0}', space=sflag, size = 0x4, scoped, tag = 'scoped memory for tpu_custom_call.1']
    #allocation13 [shape = 'u8[65536]{0}', space=vmem, size = 0x10000, scoped, tag = 'input window, operand 5, single buffered']
    #allocation14 [shape = 'u8[65536]{0}', space=vmem, size = 0x10000, scoped, tag = 'input window, operand 6, single buffered']
    #allocation15 [shape = 's32[1]{0}', space=sflag, size = 0x4, scoped, tag = 'scoped memory for tpu_custom_call.1']
    #allocation16 [shape = 'u8[65536]{0}', space=vmem, size = 0x10000, scoped, tag = 'input window, operand 7, single buffered']
    #allocation17 [shape = 'u8[65536]{0}', space=vmem, size = 0x10000, scoped, tag = 'input window, operand 8, single buffered']
    #allocation18 [shape = 's32[1]{0}', space=sflag, size = 0x4, scoped, tag = 'scoped memory for tpu_custom_call.1']
    #allocation19 [shape = 'u8[65536]{0}', space=vmem, size = 0x10000, scoped, tag = 'input window, operand 9, single buffered']
    #allocation20 [shape = 'u8[65536]{0}', space=vmem, size = 0x10000, scoped, tag = 'input window, operand 10, single buffered']
    #allocation21 [shape = 's32[1]{0}', space=sflag, size = 0x4, scoped, tag = 'scoped memory for tpu_custom_call.1']
    #allocation22 [shape = 'u8[65536]{0}', space=vmem, size = 0x10000, scoped, tag = 'input window, operand 11, single buffered']
    #allocation23 [shape = 'u8[196608]{0}', space=vmem, size = 0x30000, scoped, tag = 'input window, operand 12, single buffered']
    #allocation24 [shape = 's32[1]{0}', space=sflag, size = 0x4, scoped, tag = 'scoped memory for tpu_custom_call.1']
    #allocation25 [shape = 'u8[196608]{0}', space=vmem, size = 0x30000, scoped, tag = 'input window, operand 13, single buffered']
    #allocation26 [shape = 'u8[196608]{0}', space=vmem, size = 0x30000, scoped, tag = 'input window, operand 14, single buffered']
    #allocation27 [shape = 's32[1]{0}', space=sflag, size = 0x4, scoped, tag = 'scoped memory for tpu_custom_call.1']
    #allocation28 [shape = 'u8[196608]{0}', space=vmem, size = 0x30000, scoped, tag = 'input window, operand 15, single buffered']
    #allocation29 [shape = 'u8[65536]{0}', space=vmem, size = 0x10000, scoped, tag = 'output window, operand 0']
    %21 = vsyncpa [#allocation6], 0
    %s22 = scalar_lea.sflag [#allocation6], 1
    %23 = vsyncpa %s22, 0
    %24 = vsyncpa [#allocation9], 0
    %25 = vsyncpa [#allocation12], 0
    %26 = vsyncpa [#allocation15], 0
    %27 = vsyncpa [#allocation18], 0
    %28 = vsyncpa [#allocation21], 0
    %29 = vsyncpa [#allocation24], 0
    %30 = vsyncpa [#allocation27], 0
    %31 = vsyncpa [#allocation7], 0
    %s32 = scalar_lea.sflag [#allocation7], 1
    %33 = vsyncpa %s32, 0
    loop: start=0, step=1, limit=4
    $region2: #{tpu_custom_call.1} parent=1 // loop_pre_header
      _
    $region3: #{tpu_custom_call.1} parent=1 // loop_header
      %s35 = sphi 0, %s39
      %p36 = scmp.ge.s32.totalorder %s35, 4
      %s42 = sphi 0, %s54
      %s43 = sphi 0, %s50
      %s44 = sphi 0, %s42
      %s45 = sphi 0, %s43
      %s46 = sphi 0, %s44
      %s47 = sphi 0, %s45
      %s59 = sphi 0, %s61
      %s62 = sphi 0, %s59
      %s63 = sphi 0, %s62
      %s79 = sphi 0, %s63
      %s83 = sphi 0, %s83
      %s85 = sphi 0, %s83
      %s86 = sphi 0, %s85
      %s100 = sphi 0, %s86
      %s104 = sphi 0, %s104
      %s106 = sphi 0, %s104
      %s107 = sphi 0, %s106
      %s121 = sphi 0, %s107
      %s125 = sphi 0, %s125
      %s127 = sphi 0, %s125
      %s128 = sphi 0, %s127
      %s142 = sphi 0, %s128
      %s146 = sphi 0, %s146
      %s148 = sphi 0, %s146
      %s149 = sphi 0, %s148
      %s163 = sphi 0, %s149
      %s167 = sphi 0, %s167
      %s169 = sphi 0, %s167
      %s170 = sphi 0, %s169
      %s184 = sphi 0, %s170
      %s188 = sphi 0, %s188
      %s190 = sphi 0, %s188
      %s191 = sphi 0, %s190
      %s205 = sphi 0, %s191
      %s209 = sphi 0, %s209
      %s211 = sphi 0, %s209
      %s212 = sphi 0, %s211
      %s226 = sphi 0, %s212
      %s230 = sphi 0, %s230
      %s232 = sphi 0, %s230
      %s233 = sphi 0, %s232
      %s247 = sphi 0, %s233
      %s251 = sphi 0, %s251
      %s253 = sphi 0, %s251
      %s254 = sphi 0, %s253
      %s268 = sphi 0, %s254
      %s272 = sphi 0, %s272
      %s274 = sphi 0, %s272
      %s275 = sphi 0, %s274
      %s289 = sphi 0, %s275
      %s293 = sphi 0, %s293
      %s295 = sphi 0, %s293
      %s296 = sphi 0, %s295
      %s310 = sphi 0, %s296
      %s314 = sphi 0, %s314
      %s316 = sphi 0, %s314
      %s317 = sphi 0, %s316
      %s331 = sphi 0, %s317
      %s335 = sphi 0, %s335
      %s337 = sphi 0, %s335
      %s338 = sphi 0, %s337
      %s352 = sphi 0, %s338
      %s356 = sphi 0, %s356
      %s358 = sphi 0, %s356
      %s359 = sphi 0, %s358
      %s373 = sphi 0, %s359
      %s377 = sphi 0, %s377
      %s379 = sphi 0, %s377
      %s380 = sphi 0, %s379
      %s394 = sphi 0, %s380
      %s402 = sphi 0, %s404
      %s405 = sphi 0, %s402
      %s406 = sphi 0, %s405
      %s422 = sphi 0, %s406
    $region4: #{tpu_custom_call.1} parent=1 // loop_header_branch
      %38 = sbr.rel (%p36) target = $region8
    $region5: #{tpu_custom_call.1} parent=1 // loop_body
      %s40 = ssub.s32 %s35, 1
      %s41 = ssub.s32 %s35, 2
      %s48 = sadd.s32 1, %s43
      %p49 = scmp.ge.s32.totalorder %s48, 2
      %s50 = scalar_select %p49, 0, %s48
      %s51 = sadd.s32 1, %s42
      %s52 = scalar_select %p49, %s51, %s42
      %p53 = scmp.ge.s32.totalorder %s52, 1
      %s54 = scalar_select %p53, 0, %s52
      %s55 = ssub.s32 %s43, %s50
      %s56 = ssub.s32 %s42, %s54
      %s57 = sor.u32 %s55, %s56
      %p58 = scmp.eq.s32.totalorder %s57, 0
      %s60 = sadd.s32 %s59, 1
      %s61 = scalar_select %p58, %s59, %s60
      %p64 = pneg %p58
      %p65 = scmp.eq.s32.totalorder %s35, 1
      %p66 = por %p64, %p65
      %p67 = scmp.ne.s32.totalorder %s59, %s62
      %p68 = scmp.eq.s32.totalorder %s35, 0
      %p69 = por %p67, %p68
      %p70 = scmp.ne.s32.totalorder %s59, %s62
      %p71 = scmp.eq.s32.totalorder %s40, 1
      %p72 = por %p70, %p71
      %p73 = scmp.ne.s32.totalorder %s62, %s63
      %p74 = scmp.eq.s32.totalorder %s40, 0
      %p75 = por %p73, %p74
      %p76 = scmp.ne.s32.totalorder %s62, %s63
      %p77 = scmp.eq.s32.totalorder %s41, 1
      %p78 = por %p76, %p77
      %p80 = scmp.ne.s32.totalorder %s63, %s79
      %p81 = scmp.eq.s32.totalorder %s41, 0
      %p82 = por %p80, %p81
      %s84 = sadd.s32 %s83, 1
      %p87 = scmp.eq.s32.totalorder %s35, 1
      %p88 = scmp.ne.s32.totalorder %s83, %s85
      %p89 = scmp.eq.s32.totalorder %s35, 0
      %p90 = por %p88, %p89
      %p91 = scmp.ne.s32.totalorder %s83, %s85
      %p92 = scmp.eq.s32.totalorder %s40, 1
      %p93 = por %p91, %p92
      %p94 = scmp.ne.s32.totalorder %s85, %s86
      %p95 = scmp.eq.s32.totalorder %s40, 0
      %p96 = por %p94, %p95
      %p97 = scmp.ne.s32.totalorder %s85, %s86
      %p98 = scmp.eq.s32.totalorder %s41, 1
      %p99 = por %p97, %p98
      %p101 = scmp.ne.s32.totalorder %s86, %s100
      %p102 = scmp.eq.s32.totalorder %s41, 0
      %p103 = por %p101, %p102
      %s105 = sadd.s32 %s104, 1
      %p108 = scmp.eq.s32.totalorder %s35, 1
      %p109 = scmp.ne.s32.totalorder %s104, %s106
      %p110 = scmp.eq.s32.totalorder %s35, 0
      %p111 = por %p109, %p110
      %p112 = scmp.ne.s32.totalorder %s104, %s106
      %p113 = scmp.eq.s32.totalorder %s40, 1
      %p114 = por %p112, %p113
      %p115 = scmp.ne.s32.totalorder %s106, %s107
      %p116 = scmp.eq.s32.totalorder %s40, 0
      %p117 = por %p115, %p116
      %p118 = scmp.ne.s32.totalorder %s106, %s107
      %p119 = scmp.eq.s32.totalorder %s41, 1
      %p120 = por %p118, %p119
      %p122 = scmp.ne.s32.totalorder %s107, %s121
      %p123 = scmp.eq.s32.totalorder %s41, 0
      %p124 = por %p122, %p123
      %s126 = sadd.s32 %s125, 1
      %p129 = scmp.eq.s32.totalorder %s35, 1
      %p130 = scmp.ne.s32.totalorder %s125, %s127
      %p131 = scmp.eq.s32.totalorder %s35, 0
      %p132 = por %p130, %p131
      %p133 = scmp.ne.s32.totalorder %s125, %s127
      %p134 = scmp.eq.s32.totalorder %s40, 1
      %p135 = por %p133, %p134
      %p136 = scmp.ne.s32.totalorder %s127, %s128
      %p137 = scmp.eq.s32.totalorder %s40, 0
      %p138 = por %p136, %p137
      %p139 = scmp.ne.s32.totalorder %s127, %s128
      %p140 = scmp.eq.s32.totalorder %s41, 1
      %p141 = por %p139, %p140
      %p143 = scmp.ne.s32.totalorder %s128, %s142
      %p144 = scmp.eq.s32.totalorder %s41, 0
      %p145 = por %p143, %p144
      %s147 = sadd.s32 %s146, 1
      %p150 = scmp.eq.s32.totalorder %s35, 1
      %p151 = scmp.ne.s32.totalorder %s146, %s148
      %p152 = scmp.eq.s32.totalorder %s35, 0
      %p153 = por %p151, %p152
      %p154 = scmp.ne.s32.totalorder %s146, %s148
      %p155 = scmp.eq.s32.totalorder %s40, 1
      %p156 = por %p154, %p155
      %p157 = scmp.ne.s32.totalorder %s148, %s149
      %p158 = scmp.eq.s32.totalorder %s40, 0
      %p159 = por %p157, %p158
      %p160 = scmp.ne.s32.totalorder %s148, %s149
      %p161 = scmp.eq.s32.totalorder %s41, 1
      %p162 = por %p160, %p161
      %p164 = scmp.ne.s32.totalorder %s149, %s163
      %p165 = scmp.eq.s32.totalorder %s41, 0
      %p166 = por %p164, %p165
      %s168 = sadd.s32 %s167, 1
      %p171 = scmp.eq.s32.totalorder %s35, 1
      %p172 = scmp.ne.s32.totalorder %s167, %s169
      %p173 = scmp.eq.s32.totalorder %s35, 0
      %p174 = por %p172, %p173
      %p175 = scmp.ne.s32.totalorder %s167, %s169
      %p176 = scmp.eq.s32.totalorder %s40, 1
      %p177 = por %p175, %p176
      %p178 = scmp.ne.s32.totalorder %s169, %s170
      %p179 = scmp.eq.s32.totalorder %s40, 0
      %p180 = por %p178, %p179
      %p181 = scmp.ne.s32.totalorder %s169, %s170
      %p182 = scmp.eq.s32.totalorder %s41, 1
      %p183 = por %p181, %p182
      %p185 = scmp.ne.s32.totalorder %s170, %s184
      %p186 = scmp.eq.s32.totalorder %s41, 0
      %p187 = por %p185, %p186
      %s189 = sadd.s32 %s188, 1
      %p192 = scmp.eq.s32.totalorder %s35, 1
      %p193 = scmp.ne.s32.totalorder %s188, %s190
      %p194 = scmp.eq.s32.totalorder %s35, 0
      %p195 = por %p193, %p194
      %p196 = scmp.ne.s32.totalorder %s188, %s190
      %p197 = scmp.eq.s32.totalorder %s40, 1
      %p198 = por %p196, %p197
      %p199 = scmp.ne.s32.totalorder %s190, %s191
      %p200 = scmp.eq.s32.totalorder %s40, 0
      %p201 = por %p199, %p200
      %p202 = scmp.ne.s32.totalorder %s190, %s191
      %p203 = scmp.eq.s32.totalorder %s41, 1
      %p204 = por %p202, %p203
      %p206 = scmp.ne.s32.totalorder %s191, %s205
      %p207 = scmp.eq.s32.totalorder %s41, 0
      %p208 = por %p206, %p207
      %s210 = sadd.s32 %s209, 1
      %p213 = scmp.eq.s32.totalorder %s35, 1
      %p214 = scmp.ne.s32.totalorder %s209, %s211
      %p215 = scmp.eq.s32.totalorder %s35, 0
      %p216 = por %p214, %p215
      %p217 = scmp.ne.s32.totalorder %s209, %s211
      %p218 = scmp.eq.s32.totalorder %s40, 1
      %p219 = por %p217, %p218
      %p220 = scmp.ne.s32.totalorder %s211, %s212
      %p221 = scmp.eq.s32.totalorder %s40, 0
      %p222 = por %p220, %p221
      %p223 = scmp.ne.s32.totalorder %s211, %s212
      %p224 = scmp.eq.s32.totalorder %s41, 1
      %p225 = por %p223, %p224
      %p227 = scmp.ne.s32.totalorder %s212, %s226
      %p228 = scmp.eq.s32.totalorder %s41, 0
      %p229 = por %p227, %p228
      %s231 = sadd.s32 %s230, 1
      %p234 = scmp.eq.s32.totalorder %s35, 1
      %p235 = scmp.ne.s32.totalorder %s230, %s232
      %p236 = scmp.eq.s32.totalorder %s35, 0
      %p237 = por %p235, %p236
      %p238 = scmp.ne.s32.totalorder %s230, %s232
      %p239 = scmp.eq.s32.totalorder %s40, 1
      %p240 = por %p238, %p239
      %p241 = scmp.ne.s32.totalorder %s232, %s233
      %p242 = scmp.eq.s32.totalorder %s40, 0
      %p243 = por %p241, %p242
      %p244 = scmp.ne.s32.totalorder %s232, %s233
      %p245 = scmp.eq.s32.totalorder %s41, 1
      %p246 = por %p244, %p245
      %p248 = scmp.ne.s32.totalorder %s233, %s247
      %p249 = scmp.eq.s32.totalorder %s41, 0
      %p250 = por %p248, %p249
      %s252 = sadd.s32 %s251, 1
      %p255 = scmp.eq.s32.totalorder %s35, 1
      %p256 = scmp.ne.s32.totalorder %s251, %s253
      %p257 = scmp.eq.s32.totalorder %s35, 0
      %p258 = por %p256, %p257
      %p259 = scmp.ne.s32.totalorder %s251, %s253
      %p260 = scmp.eq.s32.totalorder %s40, 1
      %p261 = por %p259, %p260
      %p262 = scmp.ne.s32.totalorder %s253, %s254
      %p263 = scmp.eq.s32.totalorder %s40, 0
      %p264 = por %p262, %p263
      %p265 = scmp.ne.s32.totalorder %s253, %s254
      %p266 = scmp.eq.s32.totalorder %s41, 1
      %p267 = por %p265, %p266
      %p269 = scmp.ne.s32.totalorder %s254, %s268
      %p270 = scmp.eq.s32.totalorder %s41, 0
      %p271 = por %p269, %p270
      %s273 = sadd.s32 %s272, 1
      %p276 = scmp.eq.s32.totalorder %s35, 1
      %p277 = scmp.ne.s32.totalorder %s272, %s274
      %p278 = scmp.eq.s32.totalorder %s35, 0
      %p279 = por %p277, %p278
      %p280 = scmp.ne.s32.totalorder %s272, %s274
      %p281 = scmp.eq.s32.totalorder %s40, 1
      %p282 = por %p280, %p281
      %p283 = scmp.ne.s32.totalorder %s274, %s275
      %p284 = scmp.eq.s32.totalorder %s40, 0
      %p285 = por %p283, %p284
      %p286 = scmp.ne.s32.totalorder %s274, %s275
      %p287 = scmp.eq.s32.totalorder %s41, 1
      %p288 = por %p286, %p287
      %p290 = scmp.ne.s32.totalorder %s275, %s289
      %p291 = scmp.eq.s32.totalorder %s41, 0
      %p292 = por %p290, %p291
      %s294 = sadd.s32 %s293, 1
      %p297 = scmp.eq.s32.totalorder %s35, 1
      %p298 = scmp.ne.s32.totalorder %s293, %s295
      %p299 = scmp.eq.s32.totalorder %s35, 0
      %p300 = por %p298, %p299
      %p301 = scmp.ne.s32.totalorder %s293, %s295
      %p302 = scmp.eq.s32.totalorder %s40, 1
      %p303 = por %p301, %p302
      %p304 = scmp.ne.s32.totalorder %s295, %s296
      %p305 = scmp.eq.s32.totalorder %s40, 0
      %p306 = por %p304, %p305
      %p307 = scmp.ne.s32.totalorder %s295, %s296
      %p308 = scmp.eq.s32.totalorder %s41, 1
      %p309 = por %p307, %p308
      %p311 = scmp.ne.s32.totalorder %s296, %s310
      %p312 = scmp.eq.s32.totalorder %s41, 0
      %p313 = por %p311, %p312
      %s315 = sadd.s32 %s314, 1
      %p318 = scmp.eq.s32.totalorder %s35, 1
      %p319 = scmp.ne.s32.totalorder %s314, %s316
      %p320 = scmp.eq.s32.totalorder %s35, 0
      %p321 = por %p319, %p320
      %p322 = scmp.ne.s32.totalorder %s314, %s316
      %p323 = scmp.eq.s32.totalorder %s40, 1
      %p324 = por %p322, %p323
      %p325 = scmp.ne.s32.totalorder %s316, %s317
      %p326 = scmp.eq.s32.totalorder %s40, 0
      %p327 = por %p325, %p326
      %p328 = scmp.ne.s32.totalorder %s316, %s317
      %p329 = scmp.eq.s32.totalorder %s41, 1
      %p330 = por %p328, %p329
      %p332 = scmp.ne.s32.totalorder %s317, %s331
      %p333 = scmp.eq.s32.totalorder %s41, 0
      %p334 = por %p332, %p333
      %s336 = sadd.s32 %s335, 1
      %p339 = scmp.eq.s32.totalorder %s35, 1
      %p340 = scmp.ne.s32.totalorder %s335, %s337
      %p341 = scmp.eq.s32.totalorder %s35, 0
      %p342 = por %p340, %p341
      %p343 = scmp.ne.s32.totalorder %s335, %s337
      %p344 = scmp.eq.s32.totalorder %s40, 1
      %p345 = por %p343, %p344
      %p346 = scmp.ne.s32.totalorder %s337, %s338
      %p347 = scmp.eq.s32.totalorder %s40, 0
      %p348 = por %p346, %p347
      %p349 = scmp.ne.s32.totalorder %s337, %s338
      %p350 = scmp.eq.s32.totalorder %s41, 1
      %p351 = por %p349, %p350
      %p353 = scmp.ne.s32.totalorder %s338, %s352
      %p354 = scmp.eq.s32.totalorder %s41, 0
      %p355 = por %p353, %p354
      %s357 = sadd.s32 %s356, 1
      %p360 = scmp.eq.s32.totalorder %s35, 1
      %p361 = scmp.ne.s32.totalorder %s356, %s358
      %p362 = scmp.eq.s32.totalorder %s35, 0
      %p363 = por %p361, %p362
      %p364 = scmp.ne.s32.totalorder %s356, %s358
      %p365 = scmp.eq.s32.totalorder %s40, 1
      %p366 = por %p364, %p365
      %p367 = scmp.ne.s32.totalorder %s358, %s359
      %p368 = scmp.eq.s32.totalorder %s40, 0
      %p369 = por %p367, %p368
      %p370 = scmp.ne.s32.totalorder %s358, %s359
      %p371 = scmp.eq.s32.totalorder %s41, 1
      %p372 = por %p370, %p371
      %p374 = scmp.ne.s32.totalorder %s359, %s373
      %p375 = scmp.eq.s32.totalorder %s41, 0
      %p376 = por %p374, %p375
      %s378 = sadd.s32 %s377, 1
      %p381 = scmp.eq.s32.totalorder %s35, 1
      %p382 = scmp.ne.s32.totalorder %s377, %s379
      %p383 = scmp.eq.s32.totalorder %s35, 0
      %p384 = por %p382, %p383
      %p385 = scmp.ne.s32.totalorder %s377, %s379
      %p386 = scmp.eq.s32.totalorder %s40, 1
      %p387 = por %p385, %p386
      %p388 = scmp.ne.s32.totalorder %s379, %s380
      %p389 = scmp.eq.s32.totalorder %s40, 0
      %p390 = por %p388, %p389
      %p391 = scmp.ne.s32.totalorder %s379, %s380
      %p392 = scmp.eq.s32.totalorder %s41, 1
      %p393 = por %p391, %p392
      %p395 = scmp.ne.s32.totalorder %s380, %s394
      %p396 = scmp.eq.s32.totalorder %s41, 0
      %p397 = por %p395, %p396
      %s398 = ssub.s32 %s43, %s50
      %s399 = ssub.s32 %s42, %s54
      %s400 = sor.u32 %s398, %s399
      %p401 = scmp.eq.s32.totalorder %s400, 0
      %s403 = sadd.s32 %s402, 1
      %s404 = scalar_select %p401, %s402, %s403
      %p407 = pneg %p401
      %p408 = scmp.eq.s32.totalorder %s35, 1
      %p409 = por %p407, %p408
      %p410 = scmp.ne.s32.totalorder %s402, %s405
      %p411 = scmp.eq.s32.totalorder %s35, 0
      %p412 = por %p410, %p411
      %p413 = scmp.ne.s32.totalorder %s402, %s405
      %p414 = scmp.eq.s32.totalorder %s40, 1
      %p415 = por %p413, %p414
      %p416 = scmp.ne.s32.totalorder %s405, %s406
      %p417 = scmp.eq.s32.totalorder %s40, 0
      %p418 = por %p416, %p417
      %p419 = scmp.ne.s32.totalorder %s405, %s406
      %p420 = scmp.eq.s32.totalorder %s41, 1
      %p421 = por %p419, %p420
      %p423 = scmp.ne.s32.totalorder %s406, %s422
      %p424 = scmp.eq.s32.totalorder %s41, 0
      %p425 = por %p423, %p424
      %p426 = scmp.le.s32.totalorder 1, %s35
      %p427 = scmp.lt.s32.totalorder %s35, 3
      %p428 = pnand %p426, %p427
      %p429 = pneg %p428
      // Predicated region
      $region9: #{tpu_custom_call.1} parent=5 // pred_check
        _
      $region10: #{tpu_custom_call.1} parent=5 // pred_check_branch
        %431 = sbr.rel (%p428) target = $region12
      $region11: #{tpu_custom_call.1} parent=5 // pred_region
        %s432 = ssub.s32 %s35, 1
        // Predicated region
        $region13: #{tpu_custom_call.1} parent=11 // pred_check
          %p433 = pneg %p96
        $region14: #{tpu_custom_call.1} parent=11 // pred_check_branch
          %435 = sbr.rel (%p433) target = $region16
        $region15: #{tpu_custom_call.1} parent=11 // pred_region
          %s437 = ssub.s32 384, 384
          %438 = vsyncadd [#allocation9], %s437
          %s439 = sshll.u32 [#allocation8], 4
          %s440 = int_to_ptr.vmem [resolvable:$true] %s439
          %445 = dma.hbm_to_vmem [thread:$0]  %s1, 384, %s440, [#allocation9], 128, 128, 8
        $region16: #{tpu_custom_call.1} parent=11 // pred_fallthru
          _
        // Predicated region
        $region17: #{tpu_custom_call.1} parent=11 // pred_check
          %p446 = pneg %p117
        $region18: #{tpu_custom_call.1} parent=11 // pred_check_branch
          %448 = sbr.rel (%p446) target = $region20
        $region19: #{tpu_custom_call.1} parent=11 // pred_region
          %s450 = ssub.s32 192, 192
          %451 = vsyncadd [#allocation9], %s450
          %s453 = sshll.u32 [#allocation10], 4
          %s454 = int_to_ptr.vmem [resolvable:$true] %s453
          %456 = dma.hbm_to_vmem [thread:$0]  %s2, 192, %s454, [#allocation9]
        $region20: #{tpu_custom_call.1} parent=11 // pred_fallthru
          _
        // Predicated region
        $region21: #{tpu_custom_call.1} parent=11 // pred_check
          %p457 = pneg %p138
        $region22: #{tpu_custom_call.1} parent=11 // pred_check_branch
          %459 = sbr.rel (%p457) target = $region24
        $region23: #{tpu_custom_call.1} parent=11 // pred_region
          _
        $region24: #{tpu_custom_call.1} parent=11 // pred_fallthru
          _
        // Predicated region
        $region25: #{tpu_custom_call.1} parent=11 // pred_check
          %p460 = pneg %p159
        $region26: #{tpu_custom_call.1} parent=11 // pred_check_branch
          %462 = sbr.rel (%p460) target = $region28
        $region27: #{tpu_custom_call.1} parent=11 // pred_region
          %s464 = ssub.s32 512, 512
          %465 = vsyncadd [#allocation12], %s464
          %s466 = sshll.u32 [#allocation11], 4
          %s467 = int_to_ptr.vmem [resolvable:$true] %s466
          %472 = dma.hbm_to_vmem [thread:$0]  %s4, 512, %s467, [#allocation12], 128, 128, 8
        $region28: #{tpu_custom_call.1} parent=11 // pred_fallthru
          _
        // Predicated region
        $region29: #{tpu_custom_call.1} parent=11 // pred_check
          %p473 = pneg %p180
        $region30: #{tpu_custom_call.1} parent=11 // pred_check_branch
          %475 = sbr.rel (%p473) target = $region32
        $region31: #{tpu_custom_call.1} parent=11 // pred_region
          %s477 = ssub.s32 2048, 2048
          %478 = vsyncadd [#allocation12], %s477
          %s479 = sshll.u32 [#allocation13], 4
          %s480 = int_to_ptr.vmem [resolvable:$true] %s479
          %485 = dma.hbm_to_vmem [thread:$0]  %s5, 2048, %s480, [#allocation12], 128, 128, 8
        $region32: #{tpu_custom_call.1} parent=11 // pred_fallthru
          _
        // Predicated region
        $region33: #{tpu_custom_call.1} parent=11 // pred_check
          %p486 = pneg %p201
        $region34: #{tpu_custom_call.1} parent=11 // pred_check_branch
          %488 = sbr.rel (%p486) target = $region36
        $region35: #{tpu_custom_call.1} parent=11 // pred_region
          %s490 = ssub.s32 2048, 2048
          %491 = vsyncadd [#allocation15], %s490
          %s492 = sshll.u32 [#allocation14], 4
          %s493 = int_to_ptr.vmem [resolvable:$true] %s492
          %498 = dma.hbm_to_vmem [thread:$0]  %s6, 2048, %s493, [#allocation15], 128, 128, 8
        $region36: #{tpu_custom_call.1} parent=11 // pred_fallthru
          _
        // Predicated region
        $region37: #{tpu_custom_call.1} parent=11 // pred_check
          %p499 = pneg %p222
        $region38: #{tpu_custom_call.1} parent=11 // pred_check_branch
          %501 = sbr.rel (%p499) target = $region40
        $region39: #{tpu_custom_call.1} parent=11 // pred_region
          %s503 = ssub.s32 2048, 2048
          %504 = vsyncadd [#allocation15], %s503
          %s505 = sshll.u32 [#allocation16], 4
          %s506 = int_to_ptr.vmem [resolvable:$true] %s505
          %511 = dma.hbm_to_vmem [thread:$0]  %s7, 2048, %s506, [#allocation15], 128, 128, 8
        $region40: #{tpu_custom_call.1} parent=11 // pred_fallthru
          _
        // Predicated region
        $region41: #{tpu_custom_call.1} parent=11 // pred_check
          %p512 = pneg %p243
        $region42: #{tpu_custom_call.1} parent=11 // pred_check_branch
          %514 = sbr.rel (%p512) target = $region44
        $region43: #{tpu_custom_call.1} parent=11 // pred_region
          %s516 = ssub.s32 2048, 2048
          %517 = vsyncadd [#allocation18], %s516
          %s518 = sshll.u32 [#allocation17], 4
          %s519 = int_to_ptr.vmem [resolvable:$true] %s518
          %524 = dma.hbm_to_vmem [thread:$0]  %s8, 2048, %s519, [#allocation18], 128, 128, 8
        $region44: #{tpu_custom_call.1} parent=11 // pred_fallthru
          _
        // Predicated region
        $region45: #{tpu_custom_call.1} parent=11 // pred_check
          %p525 = pneg %p264
        $region46: #{tpu_custom_call.1} parent=11 // pred_check_branch
          %527 = sbr.rel (%p525) target = $region48
        $region47: #{tpu_custom_call.1} parent=11 // pred_region
          %s529 = ssub.s32 2048, 2048
          %530 = vsyncadd [#allocation18], %s529
          %s531 = sshll.u32 [#allocation19], 4
          %s532 = int_to_ptr.vmem [resolvable:$true] %s531
          %537 = dma.hbm_to_vmem [thread:$0]  %s9, 2048, %s532, [#allocation18], 128, 128, 8
        $region48: #{tpu_custom_call.1} parent=11 // pred_fallthru
          _
        // Predicated region
        $region49: #{tpu_custom_call.1} parent=11 // pred_check
          %p538 = pneg %p285
        $region50: #{tpu_custom_call.1} parent=11 // pred_check_branch
          %540 = sbr.rel (%p538) target = $region52
        $region51: #{tpu_custom_call.1} parent=11 // pred_region
          %s542 = ssub.s32 2048, 2048
          %543 = vsyncadd [#allocation21], %s542
          %s544 = sshll.u32 [#allocation20], 4
          %s545 = int_to_ptr.vmem [resolvable:$true] %s544
          %550 = dma.hbm_to_vmem [thread:$0]  %s10, 2048, %s545, [#allocation21], 128, 128, 8
        $region52: #{tpu_custom_call.1} parent=11 // pred_fallthru
          _
        // Predicated region
        $region53: #{tpu_custom_call.1} parent=11 // pred_check
          %p551 = pneg %p306
        $region54: #{tpu_custom_call.1} parent=11 // pred_check_branch
          %553 = sbr.rel (%p551) target = $region56
        $region55: #{tpu_custom_call.1} parent=11 // pred_region
          %s555 = ssub.s32 2048, 2048
          %556 = vsyncadd [#allocation21], %s555
          %s557 = sshll.u32 [#allocation22], 4
          %s558 = int_to_ptr.vmem [resolvable:$true] %s557
          %563 = dma.hbm_to_vmem [thread:$0]  %s11, 2048, %s558, [#allocation21], 128, 128, 8
        $region56: #{tpu_custom_call.1} parent=11 // pred_fallthru
          _
        // Predicated region
        $region57: #{tpu_custom_call.1} parent=11 // pred_check
          %p564 = pneg %p327
        $region58: #{tpu_custom_call.1} parent=11 // pred_check_branch
          %566 = sbr.rel (%p564) target = $region60
        $region59: #{tpu_custom_call.1} parent=11 // pred_region
          %s568 = ssub.s32 6144, 6144
          %569 = vsyncadd [#allocation24], %s568
          %s570 = sshll.u32 [#allocation23], 4
          %s571 = int_to_ptr.vmem [resolvable:$true] %s570
          %576 = dma.hbm_to_vmem [thread:$0]  %s12, 6144, %s571, [#allocation24], 384, 384, 24
        $region60: #{tpu_custom_call.1} parent=11 // pred_fallthru
          _
        // Predicated region
        $region61: #{tpu_custom_call.1} parent=11 // pred_check
          %p577 = pneg %p348
        $region62: #{tpu_custom_call.1} parent=11 // pred_check_branch
          %579 = sbr.rel (%p577) target = $region64
        $region63: #{tpu_custom_call.1} parent=11 // pred_region
          %s581 = ssub.s32 6144, 6144
          %582 = vsyncadd [#allocation24], %s581
          %s583 = sshll.u32 [#allocation25], 4
          %s584 = int_to_ptr.vmem [resolvable:$true] %s583
          %589 = dma.hbm_to_vmem [thread:$0]  %s13, 6144, %s584, [#allocation24], 384, 384, 24
        $region64: #{tpu_custom_call.1} parent=11 // pred_fallthru
          _
        // Predicated region
        $region65: #{tpu_custom_call.1} parent=11 // pred_check
          %p590 = pneg %p369
        $region66: #{tpu_custom_call.1} parent=11 // pred_check_branch
          %592 = sbr.rel (%p590) target = $region68
        $region67: #{tpu_custom_call.1} parent=11 // pred_region
          %s594 = ssub.s32 6144, 6144
          %595 = vsyncadd [#allocation27], %s594
          %s596 = sshll.u32 [#allocation26], 4
          %s597 = int_to_ptr.vmem [resolvable:$true] %s596
          %602 = dma.hbm_to_vmem [thread:$0]  %s14, 6144, %s597, [#allocation27], 384, 384, 24
        $region68: #{tpu_custom_call.1} parent=11 // pred_fallthru
          _
        // Predicated region
        $region69: #{tpu_custom_call.1} parent=11 // pred_check
          %p603 = pneg %p390
        $region70: #{tpu_custom_call.1} parent=11 // pred_check_branch
          %605 = sbr.rel (%p603) target = $region72
        $region71: #{tpu_custom_call.1} parent=11 // pred_region
          %s607 = ssub.s32 6144, 6144
          %608 = vsyncadd [#allocation27], %s607
          %s609 = sshll.u32 [#allocation28], 4
          %s610 = int_to_ptr.vmem [resolvable:$true] %s609
          %615 = dma.hbm_to_vmem [thread:$0]  %s15, 6144, %s610, [#allocation27], 384, 384, 24
        $region72: #{tpu_custom_call.1} parent=11 // pred_fallthru
          _
      $region12: #{tpu_custom_call.1} parent=5 // pred_fallthru
        _
      %p616 = scmp.lt.s32.totalorder %s35, 2
      // Predicated region
      $region73: #{tpu_custom_call.1} parent=5 // pred_check
        %p617 = pneg %p616
      $region74: #{tpu_custom_call.1} parent=5 // pred_check_branch
        %619 = sbr.rel (%p617) target = $region76
      $region75: #{tpu_custom_call.1} parent=5 // pred_region
        // Predicated region
        $region77: #{tpu_custom_call.1} parent=75 // pred_check
          %p620 = pneg %p69
        $region78: #{tpu_custom_call.1} parent=75 // pred_check_branch
          %622 = sbr.rel (%p620) target = $region80
        $region79: #{tpu_custom_call.1} parent=75 // pred_region
          %s623 = sand.u32 %s59, 1
          %s624 = scalar_lea.sflag [#allocation6], %s623
          %s625 = sand.u32 %s59, 1
          %s626 = smul.addr %s625, 64
          %s627 = scalar_lea.vmem [#allocation5], %s626
          %s628 = smul.u32 8, %s43
          %s630 = ssub.s32 1024, 1024
          %631 = vsyncadd %s624, %s630
          %s632 = sadd.s32 %s42, %s628
          %s633 = smul.addr %s632, 128
          %s634 = scalar_lea.hbm %s0, %s633
          %s635 = sshll.u32 %s627, 4
          %s636 = int_to_ptr.vmem [resolvable:$true] %s635
          %641 = dma.hbm_to_vmem [thread:$0]  %s634, 1024, %s636, %s624, 128, 128, 8
        $region80: #{tpu_custom_call.1} parent=75 // pred_fallthru
          _
      $region76: #{tpu_custom_call.1} parent=5 // pred_fallthru
        _
      %p642 = scmp.le.s32.totalorder 1, %s35
      %p643 = scmp.lt.s32.totalorder %s35, 3
      %p644 = pnand %p642, %p643
      %p645 = pneg %p644
      // Predicated region
      $region81: #{tpu_custom_call.1} parent=5 // pred_check
        _
      $region82: #{tpu_custom_call.1} parent=5 // pred_check_branch
        %647 = sbr.rel (%p644) target = $region84
      $region83: #{tpu_custom_call.1} parent=5 // pred_region
        %s648 = ssub.s32 %s35, 1
        %s649 = sand.u32 %s62, 1
        %s650 = scalar_lea.sflag [#allocation6], %s649
        %s651 = sand.u32 %s62, 1
        %s652 = smul.addr %s651, 64
        %s653 = scalar_lea.vmem [#allocation5], %s652
        // Predicated region
        $region85: #{tpu_custom_call.1} parent=83 // pred_check
          %p654 = pneg %p75
        $region86: #{tpu_custom_call.1} parent=83 // pred_check_branch
          %656 = sbr.rel (%p654) target = $region88
        $region87: #{tpu_custom_call.1} parent=83 // pred_region
          %657 = dma.done %s650, 1024
        $region88: #{tpu_custom_call.1} parent=83 // pred_fallthru
          _
        // Predicated region
        $region89: #{tpu_custom_call.1} parent=83 // pred_check
          %p658 = pneg %p96
        $region90: #{tpu_custom_call.1} parent=83 // pred_check_branch
          %660 = sbr.rel (%p658) target = $region92
        $region91: #{tpu_custom_call.1} parent=83 // pred_region
          %661 = dma.done [#allocation9], 384
        $region92: #{tpu_custom_call.1} parent=83 // pred_fallthru
          _
        // Predicated region
        $region93: #{tpu_custom_call.1} parent=83 // pred_check
          %p662 = pneg %p117
        $region94: #{tpu_custom_call.1} parent=83 // pred_check_branch
          %664 = sbr.rel (%p662) target = $region96
        $region95: #{tpu_custom_call.1} parent=83 // pred_region
          %665 = dma.done [#allocation9], 192
        $region96: #{tpu_custom_call.1} parent=83 // pred_fallthru
          _
        // Predicated region
        $region97: #{tpu_custom_call.1} parent=83 // pred_check
          %p666 = pneg %p159
        $region98: #{tpu_custom_call.1} parent=83 // pred_check_branch
          %668 = sbr.rel (%p666) target = $region100
        $region99: #{tpu_custom_call.1} parent=83 // pred_region
          %669 = dma.done [#allocation12], 512
        $region100: #{tpu_custom_call.1} parent=83 // pred_fallthru
          _
        // Predicated region
        $region101: #{tpu_custom_call.1} parent=83 // pred_check
          %p670 = pneg %p180
        $region102: #{tpu_custom_call.1} parent=83 // pred_check_branch
          %672 = sbr.rel (%p670) target = $region104
        $region103: #{tpu_custom_call.1} parent=83 // pred_region
          %673 = dma.done [#allocation12], 2048
        $region104: #{tpu_custom_call.1} parent=83 // pred_fallthru
          _
        // Predicated region
        $region105: #{tpu_custom_call.1} parent=83 // pred_check
          %p674 = pneg %p201
        $region106: #{tpu_custom_call.1} parent=83 // pred_check_branch
          %676 = sbr.rel (%p674) target = $region108
        $region107: #{tpu_custom_call.1} parent=83 // pred_region
          %677 = dma.done [#allocation15], 2048
        $region108: #{tpu_custom_call.1} parent=83 // pred_fallthru
          _
        // Predicated region
        $region109: #{tpu_custom_call.1} parent=83 // pred_check
          %p678 = pneg %p222
        $region110: #{tpu_custom_call.1} parent=83 // pred_check_branch
          %680 = sbr.rel (%p678) target = $region112
        $region111: #{tpu_custom_call.1} parent=83 // pred_region
          %681 = dma.done [#allocation15], 2048
        $region112: #{tpu_custom_call.1} parent=83 // pred_fallthru
          _
        // Predicated region
        $region113: #{tpu_custom_call.1} parent=83 // pred_check
          %p682 = pneg %p243
        $region114: #{tpu_custom_call.1} parent=83 // pred_check_branch
          %684 = sbr.rel (%p682) target = $region116
        $region115: #{tpu_custom_call.1} parent=83 // pred_region
          %685 = dma.done [#allocation18], 2048
        $region116: #{tpu_custom_call.1} parent=83 // pred_fallthru
          _
        // Predicated region
        $region117: #{tpu_custom_call.1} parent=83 // pred_check
          %p686 = pneg %p264
        $region118: #{tpu_custom_call.1} parent=83 // pred_check_branch
          %688 = sbr.rel (%p686) target = $region120
        $region119: #{tpu_custom_call.1} parent=83 // pred_region
          %689 = dma.done [#allocation18], 2048
        $region120: #{tpu_custom_call.1} parent=83 // pred_fallthru
          _
        // Predicated region
        $region121: #{tpu_custom_call.1} parent=83 // pred_check
          %p690 = pneg %p285
        $region122: #{tpu_custom_call.1} parent=83 // pred_check_branch
          %692 = sbr.rel (%p690) target = $region124
        $region123: #{tpu_custom_call.1} parent=83 // pred_region
          %693 = dma.done [#allocation21], 2048
        $region124: #{tpu_custom_call.1} parent=83 // pred_fallthru
          _
        // Predicated region
        $region125: #{tpu_custom_call.1} parent=83 // pred_check
          %p694 = pneg %p306
        $region126: #{tpu_custom_call.1} parent=83 // pred_check_branch
          %696 = sbr.rel (%p694) target = $region128
        $region127: #{tpu_custom_call.1} parent=83 // pred_region
          %697 = dma.done [#allocation21], 2048
        $region128: #{tpu_custom_call.1} parent=83 // pred_fallthru
          _
        // Predicated region
        $region129: #{tpu_custom_call.1} parent=83 // pred_check
          %p698 = pneg %p327
        $region130: #{tpu_custom_call.1} parent=83 // pred_check_branch
          %700 = sbr.rel (%p698) target = $region132
        $region131: #{tpu_custom_call.1} parent=83 // pred_region
          %701 = dma.done [#allocation24], 6144
        $region132: #{tpu_custom_call.1} parent=83 // pred_fallthru
          _
        // Predicated region
        $region133: #{tpu_custom_call.1} parent=83 // pred_check
          %p702 = pneg %p348
        $region134: #{tpu_custom_call.1} parent=83 // pred_check_branch
          %704 = sbr.rel (%p702) target = $region136
        $region135: #{tpu_custom_call.1} parent=83 // pred_region
          %705 = dma.done [#allocation24], 6144
        $region136: #{tpu_custom_call.1} parent=83 // pred_fallthru
          _
        // Predicated region
        $region137: #{tpu_custom_call.1} parent=83 // pred_check
          %p706 = pneg %p369
        $region138: #{tpu_custom_call.1} parent=83 // pred_check_branch
          %708 = sbr.rel (%p706) target = $region140
        $region139: #{tpu_custom_call.1} parent=83 // pred_region
          %709 = dma.done [#allocation27], 6144
        $region140: #{tpu_custom_call.1} parent=83 // pred_fallthru
          _
        // Predicated region
        $region141: #{tpu_custom_call.1} parent=83 // pred_check
          %p710 = pneg %p390
        $region142: #{tpu_custom_call.1} parent=83 // pred_check_branch
          %712 = sbr.rel (%p710) target = $region144
        $region143: #{tpu_custom_call.1} parent=83 // pred_region
          %713 = dma.done [#allocation27], 6144
        $region144: #{tpu_custom_call.1} parent=83 // pred_fallthru
          _
        %s714 = sand.u32 %s62, 1
        %s715 = scalar_lea.sflag [#allocation6], %s714
        %s716 = sand.u32 %s62, 1
        %s717 = smul.addr %s716, 64
        %s718 = scalar_lea.vmem [#allocation5], %s717
        %p719 = pneg %p75
        %p720 = pneg %p72
        %p721 = pneg %p96
        %p722 = pneg %p93
        %p723 = pneg %p117
        %p724 = pneg %p114
        %p725 = pneg %p138
        %p726 = pneg %p135
        %p727 = pneg %p159
        %p728 = pneg %p156
        %p729 = pneg %p180
        %p730 = pneg %p177
        %p731 = pneg %p201
        %p732 = pneg %p198
        %p733 = pneg %p222
        %p734 = pneg %p219
        %p735 = pneg %p243
        %p736 = pneg %p240
        %p737 = pneg %p264
        %p738 = pneg %p261
        %p739 = pneg %p285
        %p740 = pneg %p282
        %p741 = pneg %p306
        %p742 = pneg %p303
        %p743 = pneg %p327
        %p744 = pneg %p324
        %p745 = pneg %p348
        %p746 = pneg %p345
        %p747 = pneg %p369
        %p748 = pneg %p366
        %p749 = pneg %p390
        %p750 = pneg %p387
        %p751 = pneg %p418
        %p752 = pneg %p415
        %s753 = sand.u32 %s405, 1
        %s754 = scalar_lea.sflag [#allocation7], %s753
        %s755 = sand.u32 %s405, 1
        %s756 = smul.addr %s755, 64
        %s757 = scalar_lea.vmem [#allocation29], %s756
        %s758 = smul.u32 8, %s45
        %s759 = smul.u32 8, %s45
        %p760 = scmp.eq.s32.totalorder %s45, 0
        // Predicated region
        $region145: #{tpu_custom_call.1} parent=83 // pred_check
          %p761 = pneg %p760
        $region146: #{tpu_custom_call.1} parent=83 // pred_check_branch
          %763 = sbr.rel (%p761) target = $region148
        $region147: #{tpu_custom_call.1} parent=83 // pred_region
          %764 = vst [vmem:[#allocation2] sm:$0xff] 0.0
          %765 = vst [vmem:[#allocation2 + $0x8] sm:$0xff] 0.0
        $region148: #{tpu_custom_call.1} parent=83 // pred_fallthru
          _
        %v766 = vld [vmem:[%s653] sm:$0xff]
        %v767 = vld [vmem:[%s653 + $0x8] sm:$0xff]
        %v768 = vld [vmem:[%s653 + $0x10] sm:$0xff]
        %v769 = vld [vmem:[%s653 + $0x18] sm:$0xff]
        %v770 = vld [vmem:[%s653 + $0x20] sm:$0xff]
        %v771 = vld [vmem:[%s653 + $0x28] sm:$0xff]
        %v772 = vld [vmem:[%s653 + $0x30] sm:$0xff]
        %v773 = vld [vmem:[%s653 + $0x38] sm:$0xff]
        %v774 = vld [vmem:[#allocation11] sm:$0xff]
        %v775 = vld [vmem:[#allocation11 + $0x8] sm:$0xff]
        %v776 = vld [vmem:[#allocation11 + $0x10] sm:$0xff]
        %v777 = vld [vmem:[#allocation11 + $0x18] sm:$0xff]
        %v778 = vld [vmem:[#allocation8] sm:$0x1]
        %v779 = vlaneseq
        %v780 = vshrl.u32 %v779, 7
        %v781 = vsub.s32 0, %v780
        %v782 = vrot.slane %v778, %v781
        %vm783 = vcmask 261120
        %v785 = vsel %vm783, %v766, 0
        %v788 = vsel %vm783, %v767, 0
        %v791 = vsel %vm783, %v768, 0
        %v794 = vsel %vm783, %v769, 0
        %v797 = vsel %vm783, %v770, 0
        %v800 = vsel %vm783, %v771, 0
        %v803 = vsel %vm783, %v772, 0
        %v806 = vsel %vm783, %v773, 0
        %808 = vmatprep.subr.mxu0 0.0
        %809 = vmatpush1.msra.mxu0 %v774
        %810 = vmatprep.subr.mxu0 0.0
        %811 = vmatpush1.msra.mxu0 %v775
        %812 = vmatprep.subr.mxu0 0.0
        %813 = vmatpush1.msra.mxu0 %v776
        %814 = vmatprep.subr.mxu0 0.0
        %815 = vmatpush1.msra.mxu0 %v777
        %816 = vmatprep.subr.mxu0 0.0
        %817 = vmatpush1.msra.mxu0 0.0
        %818 = vmatprep.subr.mxu0 0.0
        %819 = vmatpush1.msra.mxu0 0.0
        %820 = vmatprep.subr.mxu0 0.0
        %821 = vmatpush1.msra.mxu0 0.0
        %822 = vmatprep.subr.mxu0 0.0
        %823 = vmatpush1.msra.mxu0 0.0
        %824 = vmatprep.subr.mxu0 0.0
        %825 = vmatpush1.msra.mxu0 0.0
        %826 = vmatprep.subr.mxu0 0.0
        %827 = vmatpush1.msra.mxu0 0.0
        %828 = vmatprep.subr.mxu0 0.0
        %829 = vmatpush1.msra.mxu0 0.0
        %830 = vmatprep.subr.mxu0 0.0
        %831 = vmatpush1.msra.mxu0 0.0
        %832 = vmatprep.subr.mxu0 0.0
        %833 = vmatpush1.msra.mxu0 0.0
        %834 = vmatprep.subr.mxu0 0.0
        %835 = vmatpush1.msra.mxu0 0.0
        %836 = vmatprep.subr.mxu0 0.0
        %837 = vmatpush1.msra.mxu0 0.0
        %838 = vmatprep.subr.mxu0 0.0
        %839 = vmatpush1.msra.mxu0 0.0
        %840 = vmatprep.subr.mxu0 0.0
        %841 = vmatpush1.msra.mxu0 0.0
        %842 = vmatprep.subr.mxu0 0.0
        %843 = vmatpush1.msra.mxu0 0.0
        %844 = vmatprep.subr.mxu0 0.0
        %845 = vmatpush1.msra.mxu0 0.0
        %846 = vmatprep.subr.mxu0 0.0
        %847 = vmatpush1.msra.mxu0 0.0
        %848 = vmatprep.subr.mxu0 0.0
        %849 = vmatpush1.msra.mxu0 0.0
        %850 = vmatprep.subr.mxu0 0.0
        %851 = vmatpush1.msra.mxu0 0.0
        %852 = vmatprep.subr.mxu0 0.0
        %853 = vmatpush1.msra.mxu0 0.0
        %854 = vmatprep.subr.mxu0 0.0
        %855 = vmatpush1.msra.mxu0 0.0
        %856 = vmatprep.subr.mxu0 0.0
        %857 = vmatpush1.msra.mxu0 0.0
        %858 = vmatprep.subr.mxu0 0.0
        %859 = vmatpush1.msra.mxu0 0.0
        %860 = vmatprep.subr.mxu0 0.0
        %861 = vmatpush1.msra.mxu0 0.0
        %862 = vmatprep.subr.mxu0 0.0
        %863 = vmatpush1.msra.mxu0 0.0
        %864 = vmatprep.subr.mxu0 0.0
        %865 = vmatpush1.msra.mxu0 0.0
        %866 = vmatprep.subr.mxu0 0.0
        %867 = vmatpush1.msra.mxu0 0.0
        %868 = vmatprep.subr.mxu0 0.0
        %869 = vmatpush1.msra.mxu0 0.0
        %870 = vmatprep.subr.mxu0 0.0
        %871 = vmatpush1.msra.mxu0 0.0
        %872 = vmatprep.mubr.f32.mxu0 0.0
        %873 = vmatmul.mubr.f32.gmra.mrb[0].mxu0 %v785
        %v874 = vpop.f32.mrb[0].mxu0
        %v875 = vadd.f32 %v782, %v874
        %v876 = vpop.f32.mrb[0].mxu0
        %877 = vmatprep.mubr.f32.mxu0 0.0
        %878 = vmatmul.mubr.f32.gmra.mrb[0].mxu0 %v788
        %v879 = vpop.f32.mrb[0].mxu0
        %v880 = vadd.f32 %v782, %v879
        %v881 = vpop.f32.mrb[0].mxu0
        %882 = vmatprep.mubr.f32.mxu0 0.0
        %883 = vmatmul.mubr.f32.gmra.mrb[0].mxu0 %v791
        %v884 = vpop.f32.mrb[0].mxu0
        %v885 = vadd.f32 %v782, %v884
        %v886 = vpop.f32.mrb[0].mxu0
        %887 = vmatprep.mubr.f32.mxu0 0.0
        %888 = vmatmul.mubr.f32.gmra.mrb[0].mxu0 %v794
        %v889 = vpop.f32.mrb[0].mxu0
        %v890 = vadd.f32 %v782, %v889
        %v891 = vpop.f32.mrb[0].mxu0
        %892 = vmatprep.mubr.f32.mxu0 0.0
        %893 = vmatmul.mubr.f32.gmra.mrb[0].mxu0 %v797
        %v894 = vpop.f32.mrb[0].mxu0
        %v895 = vadd.f32 %v782, %v894
        %v896 = vpop.f32.mrb[0].mxu0
        %897 = vmatprep.mubr.f32.mxu0 0.0
        %898 = vmatmul.mubr.f32.gmra.mrb[0].mxu0 %v800
        %v899 = vpop.f32.mrb[0].mxu0
        %v900 = vadd.f32 %v782, %v899
        %v901 = vpop.f32.mrb[0].mxu0
        %902 = vmatprep.mubr.f32.mxu0 0.0
        %903 = vmatmul.mubr.f32.gmra.mrb[0].mxu0 %v803
        %v904 = vpop.f32.mrb[0].mxu0
        %v905 = vadd.f32 %v782, %v904
        %v906 = vpop.f32.mrb[0].mxu0
        %907 = vmatprep.mubr.f32.mxu0 0.0
        %908 = vmatmul.mubr.f32.gmra.mrb[0].mxu0 %v806
        %v909 = vpop.f32.mrb[0].mxu0
        %v910 = vadd.f32 %v782, %v909
        %v911 = vpop.f32.mrb[0].mxu0
        %912 = vdwg.mxu0
        %v913 = vmax.f32 %v875, 0.0
        %v914 = vmax.f32 %v880, 0.0
        %v915 = vmax.f32 %v885, 0.0
        %v916 = vmax.f32 %v890, 0.0
        %v917 = vmax.f32 %v895, 0.0
        %v918 = vmax.f32 %v900, 0.0
        %v919 = vmax.f32 %v905, 0.0
        %v920 = vmax.f32 %v910, 0.0
        %921 = vadd.xlane.f32.xlu0 %v913
        %v922 = vpop.xlane.xlu0 %921
        %923 = vadd.xlane.f32.xlu0 %v914
        %v924 = vpop.xlane.xlu0 %923
        %925 = vadd.xlane.f32.xlu0 %v915
        %v926 = vpop.xlane.xlu0 %925
        %927 = vadd.xlane.f32.xlu0 %v916
        %v928 = vpop.xlane.xlu0 %927
        %929 = vadd.xlane.f32.xlu0 %v917
        %v930 = vpop.xlane.xlu0 %929
        %931 = vadd.xlane.f32.xlu0 %v918
        %v932 = vpop.xlane.xlu0 %931
        %933 = vadd.xlane.f32.xlu0 %v919
        %v934 = vpop.xlane.xlu0 %933
        %935 = vadd.xlane.f32.xlu0 %v920
        %v936 = vpop.xlane.xlu0 %935
        %v937 = vrcp.pop 128.0
        %v938 = vmul.f32 %v922, %v937
        %v939 = vmul.f32 %v924, %v937
        %v940 = vmul.f32 %v926, %v937
        %v941 = vmul.f32 %v928, %v937
        %v942 = vmul.f32 %v930, %v937
        %v943 = vmul.f32 %v932, %v937
        %v944 = vmul.f32 %v934, %v937
        %v945 = vmul.f32 %v936, %v937
        %v946 = vsub.f32 %v913, %v938
        %v947 = vsub.f32 %v914, %v939
        %v948 = vsub.f32 %v915, %v940
        %v949 = vsub.f32 %v916, %v941
        %v950 = vsub.f32 %v917, %v942
        %v951 = vsub.f32 %v918, %v943
        %v952 = vsub.f32 %v919, %v944
        %v953 = vsub.f32 %v920, %v945
        %v954 = vmul.f32 %v946, %v946
        %v955 = vmul.f32 %v947, %v947
        %v956 = vmul.f32 %v948, %v948
        %v957 = vmul.f32 %v949, %v949
        %v958 = vmul.f32 %v950, %v950
        %v959 = vmul.f32 %v951, %v951
        %v960 = vmul.f32 %v952, %v952
        %v961 = vmul.f32 %v953, %v953
        %962 = vadd.xlane.f32.xlu0 %v954
        %v963 = vpop.xlane.xlu0 %962
        %964 = vadd.xlane.f32.xlu0 %v955
        %v965 = vpop.xlane.xlu0 %964
        %966 = vadd.xlane.f32.xlu0 %v956
        %v967 = vpop.xlane.xlu0 %966
        %968 = vadd.xlane.f32.xlu0 %v957
        %v969 = vpop.xlane.xlu0 %968
        %970 = vadd.xlane.f32.xlu0 %v958
        %v971 = vpop.xlane.xlu0 %970
        %972 = vadd.xlane.f32.xlu0 %v959
        %v973 = vpop.xlane.xlu0 %972
        %974 = vadd.xlane.f32.xlu0 %v960
        %v975 = vpop.xlane.xlu0 %974
        %976 = vadd.xlane.f32.xlu0 %v961
        %v977 = vpop.xlane.xlu0 %976
        %v978 = vmul.f32 %v963, %v937
        %v979 = vmul.f32 %v965, %v937
        %v980 = vmul.f32 %v967, %v937
        %v981 = vmul.f32 %v969, %v937
        %v982 = vmul.f32 %v971, %v937
        %v983 = vmul.f32 %v973, %v937
        %v984 = vmul.f32 %v975, %v937
        %v985 = vmul.f32 %v977, %v937
        %v986 = vadd.f32 %v978, 1e-05
        %v987 = vadd.f32 %v979, 1e-05
        %v988 = vadd.f32 %v980, 1e-05
        %v989 = vadd.f32 %v981, 1e-05
        %v990 = vadd.f32 %v982, 1e-05
        %v991 = vadd.f32 %v983, 1e-05
        %v992 = vadd.f32 %v984, 1e-05
        %v993 = vadd.f32 %v985, 1e-05
        %v994 = vrsqrt.pop %v986
        %v995 = vrsqrt.pop %v987
        %v996 = vrsqrt.pop %v988
        %v997 = vrsqrt.pop %v989
        %v998 = vrsqrt.pop %v990
        %v999 = vrsqrt.pop %v991
        %v1000 = vrsqrt.pop %v992
        %v1001 = vrsqrt.pop %v993
        %v1002 = vmul.f32 %v946, %v994
        %v1003 = vmul.f32 %v947, %v995
        %v1004 = vmul.f32 %v948, %v996
        %v1005 = vmul.f32 %v949, %v997
        %v1006 = vmul.f32 %v950, %v998
        %v1007 = vmul.f32 %v951, %v999
        %v1008 = vmul.f32 %v952, %v1000
        %v1009 = vmul.f32 %v953, %v1001
        %v1010 = vld [vmem:[#allocation8 + $0x1] sm:$0x1]
        %v1011 = vlaneseq
        %v1012 = vshrl.u32 %v1011, 7
        %v1013 = vsub.s32 0, %v1012
        %v1014 = vrot.slane %v1010, %v1013
        %v1015 = vmul.f32 %v1002, %v1014
        %v1016 = vmul.f32 %v1003, %v1014
        %v1017 = vmul.f32 %v1004, %v1014
        %v1018 = vmul.f32 %v1005, %v1014
        %v1019 = vmul.f32 %v1006, %v1014
        %v1020 = vmul.f32 %v1007, %v1014
        %v1021 = vmul.f32 %v1008, %v1014
        %v1022 = vmul.f32 %v1009, %v1014
        %v1023 = vld [vmem:[#allocation8 + $0x2] sm:$0x1]
        %v1024 = vlaneseq
        %v1025 = vshrl.u32 %v1024, 7
        %v1026 = vsub.s32 0, %v1025
        %v1027 = vrot.slane %v1023, %v1026
        %v1028 = vadd.f32 %v1015, %v1027
        %v1029 = vadd.f32 %v1016, %v1027
        %v1030 = vadd.f32 %v1017, %v1027
        %v1031 = vadd.f32 %v1018, %v1027
        %v1032 = vadd.f32 %v1019, %v1027
        %v1033 = vadd.f32 %v1020, %v1027
        %v1034 = vadd.f32 %v1021, %v1027
        %v1035 = vadd.f32 %v1022, %v1027
        %v1036 = vld [vmem:[#allocation13] sm:$0xff]
        %v1037 = vld [vmem:[#allocation13 + $0x8] sm:$0xff]
        %v1038 = vld [vmem:[#allocation13 + $0x10] sm:$0xff]
        %v1039 = vld [vmem:[#allocation13 + $0x18] sm:$0xff]
        %v1040 = vld [vmem:[#allocation13 + $0x20] sm:$0xff]
        %v1041 = vld [vmem:[#allocation13 + $0x28] sm:$0xff]
        %v1042 = vld [vmem:[#allocation13 + $0x30] sm:$0xff]
        %v1043 = vld [vmem:[#allocation13 + $0x38] sm:$0xff]
        %v1044 = vld [vmem:[#allocation13 + $0x40] sm:$0xff]
        %v1045 = vld [vmem:[#allocation13 + $0x48] sm:$0xff]
        %v1046 = vld [vmem:[#allocation13 + $0x50] sm:$0xff]
        %v1047 = vld [vmem:[#allocation13 + $0x58] sm:$0xff]
        %v1048 = vld [vmem:[#allocation13 + $0x60] sm:$0xff]
        %v1049 = vld [vmem:[#allocation13 + $0x68] sm:$0xff]
        %v1050 = vld [vmem:[#allocation13 + $0x70] sm:$0xff]
        %v1051 = vld [vmem:[#allocation13 + $0x78] sm:$0xff]
        %v1052 = vld [vmem:[#allocation8 + $0x3] sm:$0x1]
        %v1053 = vlaneseq
        %v1054 = vshrl.u32 %v1053, 7
        %v1055 = vsub.s32 0, %v1054
        %v1056 = vrot.slane %v1052, %v1055
        %1057 = vmatprep.subr.mxu0 0.0
        %1058 = vmatpush1.msra.mxu0 %v1036
        %1059 = vmatprep.subr.mxu0 0.0
        %1060 = vmatpush1.msra.mxu0 %v1037
        %1061 = vmatprep.subr.mxu0 0.0
        %1062 = vmatpush1.msra.mxu0 %v1038
        %1063 = vmatprep.subr.mxu0 0.0
        %1064 = vmatpush1.msra.mxu0 %v1039
        %1065 = vmatprep.subr.mxu0 0.0
        %1066 = vmatpush1.msra.mxu0 %v1040
        %1067 = vmatprep.subr.mxu0 0.0
        %1068 = vmatpush1.msra.mxu0 %v1041
        %1069 = vmatprep.subr.mxu0 0.0
        %1070 = vmatpush1.msra.mxu0 %v1042
        %1071 = vmatprep.subr.mxu0 0.0
        %1072 = vmatpush1.msra.mxu0 %v1043
        %1073 = vmatprep.subr.mxu0 0.0
        %1074 = vmatpush1.msra.mxu0 %v1044
        %1075 = vmatprep.subr.mxu0 0.0
        %1076 = vmatpush1.msra.mxu0 %v1045
        %1077 = vmatprep.subr.mxu0 0.0
        %1078 = vmatpush1.msra.mxu0 %v1046
        %1079 = vmatprep.subr.mxu0 0.0
        %1080 = vmatpush1.msra.mxu0 %v1047
        %1081 = vmatprep.subr.mxu0 0.0
        %1082 = vmatpush1.msra.mxu0 %v1048
        %1083 = vmatprep.subr.mxu0 0.0
        %1084 = vmatpush1.msra.mxu0 %v1049
        %1085 = vmatprep.subr.mxu0 0.0
        %1086 = vmatpush1.msra.mxu0 %v1050
        %1087 = vmatprep.subr.mxu0 0.0
        %1088 = vmatpush1.msra.mxu0 %v1051
        %1089 = vmatprep.subr.mxu0 0.0
        %1090 = vmatpush1.msra.mxu0 0.0
        %1091 = vmatprep.subr.mxu0 0.0
        %1092 = vmatpush1.msra.mxu0 0.0
        %1093 = vmatprep.subr.mxu0 0.0
        %1094 = vmatpush1.msra.mxu0 0.0
        %1095 = vmatprep.subr.mxu0 0.0
        %1096 = vmatpush1.msra.mxu0 0.0
        %1097 = vmatprep.subr.mxu0 0.0
        %1098 = vmatpush1.msra.mxu0 0.0
        %1099 = vmatprep.subr.mxu0 0.0
        %1100 = vmatpush1.msra.mxu0 0.0
        %1101 = vmatprep.subr.mxu0 0.0
        %1102 = vmatpush1.msra.mxu0 0.0
        %1103 = vmatprep.subr.mxu0 0.0
        %1104 = vmatpush1.msra.mxu0 0.0
        %1105 = vmatprep.subr.mxu0 0.0
        %1106 = vmatpush1.msra.mxu0 0.0
        %1107 = vmatprep.subr.mxu0 0.0
        %1108 = vmatpush1.msra.mxu0 0.0
        %1109 = vmatprep.subr.mxu0 0.0
        %1110 = vmatpush1.msra.mxu0 0.0
        %1111 = vmatprep.subr.mxu0 0.0
        %1112 = vmatpush1.msra.mxu0 0.0
        %1113 = vmatprep.subr.mxu0 0.0
        %1114 = vmatpush1.msra.mxu0 0.0
        %1115 = vmatprep.subr.mxu0 0.0
        %1116 = vmatpush1.msra.mxu0 0.0
        %1117 = vmatprep.subr.mxu0 0.0
        %1118 = vmatpush1.msra.mxu0 0.0
        %1119 = vmatprep.subr.mxu0 0.0
        %1120 = vmatpush1.msra.mxu0 0.0
        %1121 = vmatprep.mubr.f32.mxu0 0.0
        %1122 = vmatmul.mubr.f32.gmra.mrb[0].mxu0 %v1028
        %v1123 = vpop.f32.mrb[0].mxu0
        %v1124 = vadd.f32 %v1056, %v1123
        %v1125 = vpop.f32.mrb[0].mxu0
        %1126 = vmatprep.mubr.f32.mxu0 0.0
        %1127 = vmatmul.mubr.f32.gmra.mrb[0].mxu0 %v1029
        %v1128 = vpop.f32.mrb[0].mxu0
        %v1129 = vadd.f32 %v1056, %v1128
        %v1130 = vpop.f32.mrb[0].mxu0
        %1131 = vmatprep.mubr.f32.mxu0 0.0
        %1132 = vmatmul.mubr.f32.gmra.mrb[0].mxu0 %v1030
        %v1133 = vpop.f32.mrb[0].mxu0
        %v1134 = vadd.f32 %v1056, %v1133
        %v1135 = vpop.f32.mrb[0].mxu0
        %1136 = vmatprep.mubr.f32.mxu0 0.0
        %1137 = vmatmul.mubr.f32.gmra.mrb[0].mxu0 %v1031
        %v1138 = vpop.f32.mrb[0].mxu0
        %v1139 = vadd.f32 %v1056, %v1138
        %v1140 = vpop.f32.mrb[0].mxu0
        %1141 = vmatprep.mubr.f32.mxu0 0.0
        %1142 = vmatmul.mubr.f32.gmra.mrb[0].mxu0 %v1032
        %v1143 = vpop.f32.mrb[0].mxu0
        %v1144 = vadd.f32 %v1056, %v1143
        %v1145 = vpop.f32.mrb[0].mxu0
        %1146 = vmatprep.mubr.f32.mxu0 0.0
        %1147 = vmatmul.mubr.f32.gmra.mrb[0].mxu0 %v1033
        %v1148 = vpop.f32.mrb[0].mxu0
        %v1149 = vadd.f32 %v1056, %v1148
        %v1150 = vpop.f32.mrb[0].mxu0
        %1151 = vmatprep.mubr.f32.mxu0 0.0
        %1152 = vmatmul.mubr.f32.gmra.mrb[0].mxu0 %v1034
        %v1153 = vpop.f32.mrb[0].mxu0
        %v1154 = vadd.f32 %v1056, %v1153
        %v1155 = vpop.f32.mrb[0].mxu0
        %1156 = vmatprep.mubr.f32.mxu0 0.0
        %1157 = vmatmul.mubr.f32.gmra.mrb[0].mxu0 %v1035
        %v1158 = vpop.f32.mrb[0].mxu0
        %v1159 = vadd.f32 %v1056, %v1158
        %v1160 = vpop.f32.mrb[0].mxu0
        %1161 = vdwg.mxu0
        %1162 = vadd.xlane.f32.xlu0 %v1124
        %v1163 = vpop.xlane.xlu0 %1162
        %1164 = vadd.xlane.f32.xlu0 %v1129
        %v1165 = vpop.xlane.xlu0 %1164
        %1166 = vadd.xlane.f32.xlu0 %v1134
        %v1167 = vpop.xlane.xlu0 %1166
        %1168 = vadd.xlane.f32.xlu0 %v1139
        %v1169 = vpop.xlane.xlu0 %1168
        %1170 = vadd.xlane.f32.xlu0 %v1144
        %v1171 = vpop.xlane.xlu0 %1170
        %1172 = vadd.xlane.f32.xlu0 %v1149
        %v1173 = vpop.xlane.xlu0 %1172
        %1174 = vadd.xlane.f32.xlu0 %v1154
        %v1175 = vpop.xlane.xlu0 %1174
        %1176 = vadd.xlane.f32.xlu0 %v1159
        %v1177 = vpop.xlane.xlu0 %1176
        %v1178 = vmul.f32 %v1163, %v937
        %v1179 = vmul.f32 %v1165, %v937
        %v1180 = vmul.f32 %v1167, %v937
        %v1181 = vmul.f32 %v1169, %v937
        %v1182 = vmul.f32 %v1171, %v937
        %v1183 = vmul.f32 %v1173, %v937
        %v1184 = vmul.f32 %v1175, %v937
        %v1185 = vmul.f32 %v1177, %v937
        %v1186 = vsub.f32 %v1124, %v1178
        %v1187 = vsub.f32 %v1129, %v1179
        %v1188 = vsub.f32 %v1134, %v1180
        %v1189 = vsub.f32 %v1139, %v1181
        %v1190 = vsub.f32 %v1144, %v1182
        %v1191 = vsub.f32 %v1149, %v1183
        %v1192 = vsub.f32 %v1154, %v1184
        %v1193 = vsub.f32 %v1159, %v1185
        %v1194 = vmul.f32 %v1186, %v1186
        %v1195 = vmul.f32 %v1187, %v1187
        %v1196 = vmul.f32 %v1188, %v1188
        %v1197 = vmul.f32 %v1189, %v1189
        %v1198 = vmul.f32 %v1190, %v1190
        %v1199 = vmul.f32 %v1191, %v1191
        %v1200 = vmul.f32 %v1192, %v1192
        %v1201 = vmul.f32 %v1193, %v1193
        %1202 = vadd.xlane.f32.xlu0 %v1194
        %v1203 = vpop.xlane.xlu0 %1202
        %1204 = vadd.xlane.f32.xlu0 %v1195
        %v1205 = vpop.xlane.xlu0 %1204
        %1206 = vadd.xlane.f32.xlu0 %v1196
        %v1207 = vpop.xlane.xlu0 %1206
        %1208 = vadd.xlane.f32.xlu0 %v1197
        %v1209 = vpop.xlane.xlu0 %1208
        %1210 = vadd.xlane.f32.xlu0 %v1198
        %v1211 = vpop.xlane.xlu0 %1210
        %1212 = vadd.xlane.f32.xlu0 %v1199
        %v1213 = vpop.xlane.xlu0 %1212
        %1214 = vadd.xlane.f32.xlu0 %v1200
        %v1215 = vpop.xlane.xlu0 %1214
        %1216 = vadd.xlane.f32.xlu0 %v1201
        %v1217 = vpop.xlane.xlu0 %1216
        %v1218 = vmul.f32 %v1203, %v937
        %v1219 = vmul.f32 %v1205, %v937
        %v1220 = vmul.f32 %v1207, %v937
        %v1221 = vmul.f32 %v1209, %v937
        %v1222 = vmul.f32 %v1211, %v937
        %v1223 = vmul.f32 %v1213, %v937
        %v1224 = vmul.f32 %v1215, %v937
        %v1225 = vmul.f32 %v1217, %v937
        %v1226 = vadd.f32 %v1218, 1e-05
        %v1227 = vadd.f32 %v1219, 1e-05
        %v1228 = vadd.f32 %v1220, 1e-05
        %v1229 = vadd.f32 %v1221, 1e-05
        %v1230 = vadd.f32 %v1222, 1e-05
        %v1231 = vadd.f32 %v1223, 1e-05
        %v1232 = vadd.f32 %v1224, 1e-05
        %v1233 = vadd.f32 %v1225, 1e-05
        %v1234 = vrsqrt.pop %v1226
        %v1235 = vrsqrt.pop %v1227
        %v1236 = vrsqrt.pop %v1228
        %v1237 = vrsqrt.pop %v1229
        %v1238 = vrsqrt.pop %v1230
        %v1239 = vrsqrt.pop %v1231
        %v1240 = vrsqrt.pop %v1232
        %v1241 = vrsqrt.pop %v1233
        %v1242 = vmul.f32 %v1186, %v1234
        %v1243 = vmul.f32 %v1187, %v1235
        %v1244 = vmul.f32 %v1188, %v1236
        %v1245 = vmul.f32 %v1189, %v1237
        %v1246 = vmul.f32 %v1190, %v1238
        %v1247 = vmul.f32 %v1191, %v1239
        %v1248 = vmul.f32 %v1192, %v1240
        %v1249 = vmul.f32 %v1193, %v1241
        %v1250 = vld [vmem:[#allocation8 + $0x4] sm:$0x1]
        %v1251 = vlaneseq
        %v1252 = vshrl.u32 %v1251, 7
        %v1253 = vsub.s32 0, %v1252
        %v1254 = vrot.slane %v1250, %v1253
        %v1255 = vmul.f32 %v1242, %v1254
        %v1256 = vmul.f32 %v1243, %v1254
        %v1257 = vmul.f32 %v1244, %v1254
        %v1258 = vmul.f32 %v1245, %v1254
        %v1259 = vmul.f32 %v1246, %v1254
        %v1260 = vmul.f32 %v1247, %v1254
        %v1261 = vmul.f32 %v1248, %v1254
        %v1262 = vmul.f32 %v1249, %v1254
        %v1263 = vld [vmem:[#allocation8 + $0x5] sm:$0x1]
        %v1264 = vlaneseq
        %v1265 = vshrl.u32 %v1264, 7
        %v1266 = vsub.s32 0, %v1265
        %v1267 = vrot.slane %v1263, %v1266
        %v1268 = vadd.f32 %v1255, %v1267
        %v1269 = vadd.f32 %v1256, %v1267
        %v1270 = vadd.f32 %v1257, %v1267
        %v1271 = vadd.f32 %v1258, %v1267
        %v1272 = vadd.f32 %v1259, %v1267
        %v1273 = vadd.f32 %v1260, %v1267
        %v1274 = vadd.f32 %v1261, %v1267
        %v1275 = vadd.f32 %v1262, %v1267
        %v1276 = vmax.f32 %v1268, 0.0
        %v1277 = vmax.f32 %v1269, 0.0
        %v1278 = vmax.f32 %v1270, 0.0
        %v1279 = vmax.f32 %v1271, 0.0
        %v1280 = vmax.f32 %v1272, 0.0
        %v1281 = vmax.f32 %v1273, 0.0
        %v1282 = vmax.f32 %v1274, 0.0
        %v1283 = vmax.f32 %v1275, 0.0
        %v1284 = vld [vmem:[#allocation14] sm:$0xff]
        %v1285 = vld [vmem:[#allocation14 + $0x8] sm:$0xff]
        %v1286 = vld [vmem:[#allocation14 + $0x10] sm:$0xff]
        %v1287 = vld [vmem:[#allocation14 + $0x18] sm:$0xff]
        %v1288 = vld [vmem:[#allocation14 + $0x20] sm:$0xff]
        %v1289 = vld [vmem:[#allocation14 + $0x28] sm:$0xff]
        %v1290 = vld [vmem:[#allocation14 + $0x30] sm:$0xff]
        %v1291 = vld [vmem:[#allocation14 + $0x38] sm:$0xff]
        %v1292 = vld [vmem:[#allocation14 + $0x40] sm:$0xff]
        %v1293 = vld [vmem:[#allocation14 + $0x48] sm:$0xff]
        %v1294 = vld [vmem:[#allocation14 + $0x50] sm:$0xff]
        %v1295 = vld [vmem:[#allocation14 + $0x58] sm:$0xff]
        %v1296 = vld [vmem:[#allocation14 + $0x60] sm:$0xff]
        %v1297 = vld [vmem:[#allocation14 + $0x68] sm:$0xff]
        %v1298 = vld [vmem:[#allocation14 + $0x70] sm:$0xff]
        %v1299 = vld [vmem:[#allocation14 + $0x78] sm:$0xff]
        %v1300 = vld [vmem:[#allocation8 + $0x6] sm:$0x1]
        %v1301 = vlaneseq
        %v1302 = vshrl.u32 %v1301, 7
        %v1303 = vsub.s32 0, %v1302
        %v1304 = vrot.slane %v1300, %v1303
        %1305 = vmatprep.subr.mxu0 0.0
        %1306 = vmatpush1.msra.mxu0 %v1284
        %1307 = vmatprep.subr.mxu0 0.0
        %1308 = vmatpush1.msra.mxu0 %v1285
        %1309 = vmatprep.subr.mxu0 0.0
        %1310 = vmatpush1.msra.mxu0 %v1286
        %1311 = vmatprep.subr.mxu0 0.0
        %1312 = vmatpush1.msra.mxu0 %v1287
        %1313 = vmatprep.subr.mxu0 0.0
        %1314 = vmatpush1.msra.mxu0 %v1288
        %1315 = vmatprep.subr.mxu0 0.0
        %1316 = vmatpush1.msra.mxu0 %v1289
        %1317 = vmatprep.subr.mxu0 0.0
        %1318 = vmatpush1.msra.mxu0 %v1290
        %1319 = vmatprep.subr.mxu0 0.0
        %1320 = vmatpush1.msra.mxu0 %v1291
        %1321 = vmatprep.subr.mxu0 0.0
        %1322 = vmatpush1.msra.mxu0 %v1292
        %1323 = vmatprep.subr.mxu0 0.0
        %1324 = vmatpush1.msra.mxu0 %v1293
        %1325 = vmatprep.subr.mxu0 0.0
        %1326 = vmatpush1.msra.mxu0 %v1294
        %1327 = vmatprep.subr.mxu0 0.0
        %1328 = vmatpush1.msra.mxu0 %v1295
        %1329 = vmatprep.subr.mxu0 0.0
        %1330 = vmatpush1.msra.mxu0 %v1296
        %1331 = vmatprep.subr.mxu0 0.0
        %1332 = vmatpush1.msra.mxu0 %v1297
        %1333 = vmatprep.subr.mxu0 0.0
        %1334 = vmatpush1.msra.mxu0 %v1298
        %1335 = vmatprep.subr.mxu0 0.0
        %1336 = vmatpush1.msra.mxu0 %v1299
        %1337 = vmatprep.subr.mxu0 0.0
        %1338 = vmatpush1.msra.mxu0 0.0
        %1339 = vmatprep.subr.mxu0 0.0
        %1340 = vmatpush1.msra.mxu0 0.0
        %1341 = vmatprep.subr.mxu0 0.0
        %1342 = vmatpush1.msra.mxu0 0.0
        %1343 = vmatprep.subr.mxu0 0.0
        %1344 = vmatpush1.msra.mxu0 0.0
        %1345 = vmatprep.subr.mxu0 0.0
        %1346 = vmatpush1.msra.mxu0 0.0
        %1347 = vmatprep.subr.mxu0 0.0
        %1348 = vmatpush1.msra.mxu0 0.0
        %1349 = vmatprep.subr.mxu0 0.0
        %1350 = vmatpush1.msra.mxu0 0.0
        %1351 = vmatprep.subr.mxu0 0.0
        %1352 = vmatpush1.msra.mxu0 0.0
        %1353 = vmatprep.subr.mxu0 0.0
        %1354 = vmatpush1.msra.mxu0 0.0
        %1355 = vmatprep.subr.mxu0 0.0
        %1356 = vmatpush1.msra.mxu0 0.0
        %1357 = vmatprep.subr.mxu0 0.0
        %1358 = vmatpush1.msra.mxu0 0.0
        %1359 = vmatprep.subr.mxu0 0.0
        %1360 = vmatpush1.msra.mxu0 0.0
        %1361 = vmatprep.subr.mxu0 0.0
        %1362 = vmatpush1.msra.mxu0 0.0
        %1363 = vmatprep.subr.mxu0 0.0
        %1364 = vmatpush1.msra.mxu0 0.0
        %1365 = vmatprep.subr.mxu0 0.0
        %1366 = vmatpush1.msra.mxu0 0.0
        %1367 = vmatprep.subr.mxu0 0.0
        %1368 = vmatpush1.msra.mxu0 0.0
        %1369 = vmatprep.mubr.f32.mxu0 0.0
        %1370 = vmatmul.mubr.f32.gmra.mrb[0].mxu0 %v1276
        %v1371 = vpop.f32.mrb[0].mxu0
        %v1372 = vadd.f32 %v1304, %v1371
        %v1373 = vpop.f32.mrb[0].mxu0
        %1374 = vmatprep.mubr.f32.mxu0 0.0
        %1375 = vmatmul.mubr.f32.gmra.mrb[0].mxu0 %v1277
        %v1376 = vpop.f32.mrb[0].mxu0
        %v1377 = vadd.f32 %v1304, %v1376
        %v1378 = vpop.f32.mrb[0].mxu0
        %1379 = vmatprep.mubr.f32.mxu0 0.0
        %1380 = vmatmul.mubr.f32.gmra.mrb[0].mxu0 %v1278
        %v1381 = vpop.f32.mrb[0].mxu0
        %v1382 = vadd.f32 %v1304, %v1381
        %v1383 = vpop.f32.mrb[0].mxu0
        %1384 = vmatprep.mubr.f32.mxu0 0.0
        %1385 = vmatmul.mubr.f32.gmra.mrb[0].mxu0 %v1279
        %v1386 = vpop.f32.mrb[0].mxu0
        %v1387 = vadd.f32 %v1304, %v1386
        %v1388 = vpop.f32.mrb[0].mxu0
        %1389 = vmatprep.mubr.f32.mxu0 0.0
        %1390 = vmatmul.mubr.f32.gmra.mrb[0].mxu0 %v1280
        %v1391 = vpop.f32.mrb[0].mxu0
        %v1392 = vadd.f32 %v1304, %v1391
        %v1393 = vpop.f32.mrb[0].mxu0
        %1394 = vmatprep.mubr.f32.mxu0 0.0
        %1395 = vmatmul.mubr.f32.gmra.mrb[0].mxu0 %v1281
        %v1396 = vpop.f32.mrb[0].mxu0
        %v1397 = vadd.f32 %v1304, %v1396
        %v1398 = vpop.f32.mrb[0].mxu0
        %1399 = vmatprep.mubr.f32.mxu0 0.0
        %1400 = vmatmul.mubr.f32.gmra.mrb[0].mxu0 %v1282
        %v1401 = vpop.f32.mrb[0].mxu0
        %v1402 = vadd.f32 %v1304, %v1401
        %v1403 = vpop.f32.mrb[0].mxu0
        %1404 = vmatprep.mubr.f32.mxu0 0.0
        %1405 = vmatmul.mubr.f32.gmra.mrb[0].mxu0 %v1283
        %v1406 = vpop.f32.mrb[0].mxu0
        %v1407 = vadd.f32 %v1304, %v1406
        %v1408 = vpop.f32.mrb[0].mxu0
        %1409 = vdwg.mxu0
        %1410 = vadd.xlane.f32.xlu0 %v1372
        %v1411 = vpop.xlane.xlu0 %1410
        %1412 = vadd.xlane.f32.xlu0 %v1377
        %v1413 = vpop.xlane.xlu0 %1412
        %1414 = vadd.xlane.f32.xlu0 %v1382
        %v1415 = vpop.xlane.xlu0 %1414
        %1416 = vadd.xlane.f32.xlu0 %v1387
        %v1417 = vpop.xlane.xlu0 %1416
        %1418 = vadd.xlane.f32.xlu0 %v1392
        %v1419 = vpop.xlane.xlu0 %1418
        %1420 = vadd.xlane.f32.xlu0 %v1397
        %v1421 = vpop.xlane.xlu0 %1420
        %1422 = vadd.xlane.f32.xlu0 %v1402
        %v1423 = vpop.xlane.xlu0 %1422
        %1424 = vadd.xlane.f32.xlu0 %v1407
        %v1425 = vpop.xlane.xlu0 %1424
        %v1426 = vmul.f32 %v1411, %v937
        %v1427 = vmul.f32 %v1413, %v937
        %v1428 = vmul.f32 %v1415, %v937
        %v1429 = vmul.f32 %v1417, %v937
        %v1430 = vmul.f32 %v1419, %v937
        %v1431 = vmul.f32 %v1421, %v937
        %v1432 = vmul.f32 %v1423, %v937
        %v1433 = vmul.f32 %v1425, %v937
        %v1434 = vsub.f32 %v1372, %v1426
        %v1435 = vsub.f32 %v1377, %v1427
        %v1436 = vsub.f32 %v1382, %v1428
        %v1437 = vsub.f32 %v1387, %v1429
        %v1438 = vsub.f32 %v1392, %v1430
        %v1439 = vsub.f32 %v1397, %v1431
        %v1440 = vsub.f32 %v1402, %v1432
        %v1441 = vsub.f32 %v1407, %v1433
        %v1442 = vmul.f32 %v1434, %v1434
        %v1443 = vmul.f32 %v1435, %v1435
        %v1444 = vmul.f32 %v1436, %v1436
        %v1445 = vmul.f32 %v1437, %v1437
        %v1446 = vmul.f32 %v1438, %v1438
        %v1447 = vmul.f32 %v1439, %v1439
        %v1448 = vmul.f32 %v1440, %v1440
        %v1449 = vmul.f32 %v1441, %v1441
        %1450 = vadd.xlane.f32.xlu0 %v1442
        %v1451 = vpop.xlane.xlu0 %1450
        %1452 = vadd.xlane.f32.xlu0 %v1443
        %v1453 = vpop.xlane.xlu0 %1452
        %1454 = vadd.xlane.f32.xlu0 %v1444
        %v1455 = vpop.xlane.xlu0 %1454
        %1456 = vadd.xlane.f32.xlu0 %v1445
        %v1457 = vpop.xlane.xlu0 %1456
        %1458 = vadd.xlane.f32.xlu0 %v1446
        %v1459 = vpop.xlane.xlu0 %1458
        %1460 = vadd.xlane.f32.xlu0 %v1447
        %v1461 = vpop.xlane.xlu0 %1460
        %1462 = vadd.xlane.f32.xlu0 %v1448
        %v1463 = vpop.xlane.xlu0 %1462
        %1464 = vadd.xlane.f32.xlu0 %v1449
        %v1465 = vpop.xlane.xlu0 %1464
        %v1466 = vmul.f32 %v1451, %v937
        %v1467 = vmul.f32 %v1453, %v937
        %v1468 = vmul.f32 %v1455, %v937
        %v1469 = vmul.f32 %v1457, %v937
        %v1470 = vmul.f32 %v1459, %v937
        %v1471 = vmul.f32 %v1461, %v937
        %v1472 = vmul.f32 %v1463, %v937
        %v1473 = vmul.f32 %v1465, %v937
        %v1474 = vadd.f32 %v1466, 1e-05
        %v1475 = vadd.f32 %v1467, 1e-05
        %v1476 = vadd.f32 %v1468, 1e-05
        %v1477 = vadd.f32 %v1469, 1e-05
        %v1478 = vadd.f32 %v1470, 1e-05
        %v1479 = vadd.f32 %v1471, 1e-05
        %v1480 = vadd.f32 %v1472, 1e-05
        %v1481 = vadd.f32 %v1473, 1e-05
        %v1482 = vrsqrt.pop %v1474
        %v1483 = vrsqrt.pop %v1475
        %v1484 = vrsqrt.pop %v1476
        %v1485 = vrsqrt.pop %v1477
        %v1486 = vrsqrt.pop %v1478
        %v1487 = vrsqrt.pop %v1479
        %v1488 = vrsqrt.pop %v1480
        %v1489 = vrsqrt.pop %v1481
        %v1490 = vmul.f32 %v1434, %v1482
        %v1491 = vmul.f32 %v1435, %v1483
        %v1492 = vmul.f32 %v1436, %v1484
        %v1493 = vmul.f32 %v1437, %v1485
        %v1494 = vmul.f32 %v1438, %v1486
        %v1495 = vmul.f32 %v1439, %v1487
        %v1496 = vmul.f32 %v1440, %v1488
        %v1497 = vmul.f32 %v1441, %v1489
        %v1498 = vld [vmem:[#allocation8 + $0x7] sm:$0x1]
        %v1499 = vlaneseq
        %v1500 = vshrl.u32 %v1499, 7
        %v1501 = vsub.s32 0, %v1500
        %v1502 = vrot.slane %v1498, %v1501
        %v1503 = vmul.f32 %v1490, %v1502
        %v1504 = vmul.f32 %v1491, %v1502
        %v1505 = vmul.f32 %v1492, %v1502
        %v1506 = vmul.f32 %v1493, %v1502
        %v1507 = vmul.f32 %v1494, %v1502
        %v1508 = vmul.f32 %v1495, %v1502
        %v1509 = vmul.f32 %v1496, %v1502
        %v1510 = vmul.f32 %v1497, %v1502
        %v1511 = vld [vmem:[#allocation8 + $0x8] sm:$0x1]
        %v1512 = vlaneseq
        %v1513 = vshrl.u32 %v1512, 7
        %v1514 = vsub.s32 0, %v1513
        %v1515 = vrot.slane %v1511, %v1514
        %v1516 = vadd.f32 %v1503, %v1515
        %v1517 = vadd.f32 %v1504, %v1515
        %v1518 = vadd.f32 %v1505, %v1515
        %v1519 = vadd.f32 %v1506, %v1515
        %v1520 = vadd.f32 %v1507, %v1515
        %v1521 = vadd.f32 %v1508, %v1515
        %v1522 = vadd.f32 %v1509, %v1515
        %v1523 = vadd.f32 %v1510, %v1515
        %v1524 = vmax.f32 %v1516, 0.0
        %v1525 = vmax.f32 %v1517, 0.0
        %v1526 = vmax.f32 %v1518, 0.0
        %v1527 = vmax.f32 %v1519, 0.0
        %v1528 = vmax.f32 %v1520, 0.0
        %v1529 = vmax.f32 %v1521, 0.0
        %v1530 = vmax.f32 %v1522, 0.0
        %v1531 = vmax.f32 %v1523, 0.0
        %v1532 = vadd.f32 %v1524, %v1028
        %v1533 = vadd.f32 %v1525, %v1029
        %v1534 = vadd.f32 %v1526, %v1030
        %v1535 = vadd.f32 %v1527, %v1031
        %v1536 = vadd.f32 %v1528, %v1032
        %v1537 = vadd.f32 %v1529, %v1033
        %v1538 = vadd.f32 %v1530, %v1034
        %v1539 = vadd.f32 %v1531, %v1035
        %1540 = vadd.xlane.f32.xlu0 %v1532
        %v1541 = vpop.xlane.xlu0 %1540
        %1542 = vadd.xlane.f32.xlu0 %v1533
        %v1543 = vpop.xlane.xlu0 %1542
        %1544 = vadd.xlane.f32.xlu0 %v1534
        %v1545 = vpop.xlane.xlu0 %1544
        %1546 = vadd.xlane.f32.xlu0 %v1535
        %v1547 = vpop.xlane.xlu0 %1546
        %1548 = vadd.xlane.f32.xlu0 %v1536
        %v1549 = vpop.xlane.xlu0 %1548
        %1550 = vadd.xlane.f32.xlu0 %v1537
        %v1551 = vpop.xlane.xlu0 %1550
        %1552 = vadd.xlane.f32.xlu0 %v1538
        %v1553 = vpop.xlane.xlu0 %1552
        %1554 = vadd.xlane.f32.xlu0 %v1539
        %v1555 = vpop.xlane.xlu0 %1554
        %v1556 = vmul.f32 %v1541, %v937
        %v1557 = vmul.f32 %v1543, %v937
        %v1558 = vmul.f32 %v1545, %v937
        %v1559 = vmul.f32 %v1547, %v937
        %v1560 = vmul.f32 %v1549, %v937
        %v1561 = vmul.f32 %v1551, %v937
        %v1562 = vmul.f32 %v1553, %v937
        %v1563 = vmul.f32 %v1555, %v937
        %v1564 = vsub.f32 %v1532, %v1556
        %v1565 = vsub.f32 %v1533, %v1557
        %v1566 = vsub.f32 %v1534, %v1558
        %v1567 = vsub.f32 %v1535, %v1559
        %v1568 = vsub.f32 %v1536, %v1560
        %v1569 = vsub.f32 %v1537, %v1561
        %v1570 = vsub.f32 %v1538, %v1562
        %v1571 = vsub.f32 %v1539, %v1563
        %v1572 = vmul.f32 %v1564, %v1564
        %v1573 = vmul.f32 %v1565, %v1565
        %v1574 = vmul.f32 %v1566, %v1566
        %v1575 = vmul.f32 %v1567, %v1567
        %v1576 = vmul.f32 %v1568, %v1568
        %v1577 = vmul.f32 %v1569, %v1569
        %v1578 = vmul.f32 %v1570, %v1570
        %v1579 = vmul.f32 %v1571, %v1571
        %1580 = vadd.xlane.f32.xlu0 %v1572
        %v1581 = vpop.xlane.xlu0 %1580
        %1582 = vadd.xlane.f32.xlu0 %v1573
        %v1583 = vpop.xlane.xlu0 %1582
        %1584 = vadd.xlane.f32.xlu0 %v1574
        %v1585 = vpop.xlane.xlu0 %1584
        %1586 = vadd.xlane.f32.xlu0 %v1575
        %v1587 = vpop.xlane.xlu0 %1586
        %1588 = vadd.xlane.f32.xlu0 %v1576
        %v1589 = vpop.xlane.xlu0 %1588
        %1590 = vadd.xlane.f32.xlu0 %v1577
        %v1591 = vpop.xlane.xlu0 %1590
        %1592 = vadd.xlane.f32.xlu0 %v1578
        %v1593 = vpop.xlane.xlu0 %1592
        %1594 = vadd.xlane.f32.xlu0 %v1579
        %v1595 = vpop.xlane.xlu0 %1594
        %v1596 = vmul.f32 %v1581, %v937
        %v1597 = vmul.f32 %v1583, %v937
        %v1598 = vmul.f32 %v1585, %v937
        %v1599 = vmul.f32 %v1587, %v937
        %v1600 = vmul.f32 %v1589, %v937
        %v1601 = vmul.f32 %v1591, %v937
        %v1602 = vmul.f32 %v1593, %v937
        %v1603 = vmul.f32 %v1595, %v937
        %v1604 = vadd.f32 %v1596, 1e-05
        %v1605 = vadd.f32 %v1597, 1e-05
        %v1606 = vadd.f32 %v1598, 1e-05
        %v1607 = vadd.f32 %v1599, 1e-05
        %v1608 = vadd.f32 %v1600, 1e-05
        %v1609 = vadd.f32 %v1601, 1e-05
        %v1610 = vadd.f32 %v1602, 1e-05
        %v1611 = vadd.f32 %v1603, 1e-05
        %v1612 = vrsqrt.pop %v1604
        %v1613 = vrsqrt.pop %v1605
        %v1614 = vrsqrt.pop %v1606
        %v1615 = vrsqrt.pop %v1607
        %v1616 = vrsqrt.pop %v1608
        %v1617 = vrsqrt.pop %v1609
        %v1618 = vrsqrt.pop %v1610
        %v1619 = vrsqrt.pop %v1611
        %v1620 = vmul.f32 %v1564, %v1612
        %v1621 = vmul.f32 %v1565, %v1613
        %v1622 = vmul.f32 %v1566, %v1614
        %v1623 = vmul.f32 %v1567, %v1615
        %v1624 = vmul.f32 %v1568, %v1616
        %v1625 = vmul.f32 %v1569, %v1617
        %v1626 = vmul.f32 %v1570, %v1618
        %v1627 = vmul.f32 %v1571, %v1619
        %v1628 = vld [vmem:[#allocation8 + $0x9] sm:$0x1]
        %v1629 = vlaneseq
        %v1630 = vshrl.u32 %v1629, 7
        %v1631 = vsub.s32 0, %v1630
        %v1632 = vrot.slane %v1628, %v1631
        %v1633 = vmul.f32 %v1620, %v1632
        %v1634 = vmul.f32 %v1621, %v1632
        %v1635 = vmul.f32 %v1622, %v1632
        %v1636 = vmul.f32 %v1623, %v1632
        %v1637 = vmul.f32 %v1624, %v1632
        %v1638 = vmul.f32 %v1625, %v1632
        %v1639 = vmul.f32 %v1626, %v1632
        %v1640 = vmul.f32 %v1627, %v1632
        %v1641 = vld [vmem:[#allocation8 + $0xa] sm:$0x1]
        %v1642 = vlaneseq
        %v1643 = vshrl.u32 %v1642, 7
        %v1644 = vsub.s32 0, %v1643
        %v1645 = vrot.slane %v1641, %v1644
        %v1646 = vadd.f32 %v1633, %v1645
        %v1647 = vadd.f32 %v1634, %v1645
        %v1648 = vadd.f32 %v1635, %v1645
        %v1649 = vadd.f32 %v1636, %v1645
        %v1650 = vadd.f32 %v1637, %v1645
        %v1651 = vadd.f32 %v1638, %v1645
        %v1652 = vadd.f32 %v1639, %v1645
        %v1653 = vadd.f32 %v1640, %v1645
        %v1654 = vld [vmem:[#allocation16] sm:$0xff]
        %v1655 = vld [vmem:[#allocation16 + $0x8] sm:$0xff]
        %v1656 = vld [vmem:[#allocation16 + $0x10] sm:$0xff]
        %v1657 = vld [vmem:[#allocation16 + $0x18] sm:$0xff]
        %v1658 = vld [vmem:[#allocation16 + $0x20] sm:$0xff]
        %v1659 = vld [vmem:[#allocation16 + $0x28] sm:$0xff]
        %v1660 = vld [vmem:[#allocation16 + $0x30] sm:$0xff]
        %v1661 = vld [vmem:[#allocation16 + $0x38] sm:$0xff]
        %v1662 = vld [vmem:[#allocation16 + $0x40] sm:$0xff]
        %v1663 = vld [vmem:[#allocation16 + $0x48] sm:$0xff]
        %v1664 = vld [vmem:[#allocation16 + $0x50] sm:$0xff]
        %v1665 = vld [vmem:[#allocation16 + $0x58] sm:$0xff]
        %v1666 = vld [vmem:[#allocation16 + $0x60] sm:$0xff]
        %v1667 = vld [vmem:[#allocation16 + $0x68] sm:$0xff]
        %v1668 = vld [vmem:[#allocation16 + $0x70] sm:$0xff]
        %v1669 = vld [vmem:[#allocation16 + $0x78] sm:$0xff]
        %v1670 = vld [vmem:[#allocation8 + $0xb] sm:$0x1]
        %v1671 = vlaneseq
        %v1672 = vshrl.u32 %v1671, 7
        %v1673 = vsub.s32 0, %v1672
        %v1674 = vrot.slane %v1670, %v1673
        %1675 = vmatprep.subr.mxu0 0.0
        %1676 = vmatpush1.msra.mxu0 %v1654
        %1677 = vmatprep.subr.mxu0 0.0
        %1678 = vmatpush1.msra.mxu0 %v1655
        %1679 = vmatprep.subr.mxu0 0.0
        %1680 = vmatpush1.msra.mxu0 %v1656
        %1681 = vmatprep.subr.mxu0 0.0
        %1682 = vmatpush1.msra.mxu0 %v1657
        %1683 = vmatprep.subr.mxu0 0.0
        %1684 = vmatpush1.msra.mxu0 %v1658
        %1685 = vmatprep.subr.mxu0 0.0
        %1686 = vmatpush1.msra.mxu0 %v1659
        %1687 = vmatprep.subr.mxu0 0.0
        %1688 = vmatpush1.msra.mxu0 %v1660
        %1689 = vmatprep.subr.mxu0 0.0
        %1690 = vmatpush1.msra.mxu0 %v1661
        %1691 = vmatprep.subr.mxu0 0.0
        %1692 = vmatpush1.msra.mxu0 %v1662
        %1693 = vmatprep.subr.mxu0 0.0
        %1694 = vmatpush1.msra.mxu0 %v1663
        %1695 = vmatprep.subr.mxu0 0.0
        %1696 = vmatpush1.msra.mxu0 %v1664
        %1697 = vmatprep.subr.mxu0 0.0
        %1698 = vmatpush1.msra.mxu0 %v1665
        %1699 = vmatprep.subr.mxu0 0.0
        %1700 = vmatpush1.msra.mxu0 %v1666
        %1701 = vmatprep.subr.mxu0 0.0
        %1702 = vmatpush1.msra.mxu0 %v1667
        %1703 = vmatprep.subr.mxu0 0.0
        %1704 = vmatpush1.msra.mxu0 %v1668
        %1705 = vmatprep.subr.mxu0 0.0
        %1706 = vmatpush1.msra.mxu0 %v1669
        %1707 = vmatprep.subr.mxu0 0.0
        %1708 = vmatpush1.msra.mxu0 0.0
        %1709 = vmatprep.subr.mxu0 0.0
        %1710 = vmatpush1.msra.mxu0 0.0
        %1711 = vmatprep.subr.mxu0 0.0
        %1712 = vmatpush1.msra.mxu0 0.0
        %1713 = vmatprep.subr.mxu0 0.0
        %1714 = vmatpush1.msra.mxu0 0.0
        %1715 = vmatprep.subr.mxu0 0.0
        %1716 = vmatpush1.msra.mxu0 0.0
        %1717 = vmatprep.subr.mxu0 0.0
        %1718 = vmatpush1.msra.mxu0 0.0
        %1719 = vmatprep.subr.mxu0 0.0
        %1720 = vmatpush1.msra.mxu0 0.0
        %1721 = vmatprep.subr.mxu0 0.0
        %1722 = vmatpush1.msra.mxu0 0.0
        %1723 = vmatprep.subr.mxu0 0.0
        %1724 = vmatpush1.msra.mxu0 0.0
        %1725 = vmatprep.subr.mxu0 0.0
        %1726 = vmatpush1.msra.mxu0 0.0
        %1727 = vmatprep.subr.mxu0 0.0
        %1728 = vmatpush1.msra.mxu0 0.0
        %1729 = vmatprep.subr.mxu0 0.0
        %1730 = vmatpush1.msra.mxu0 0.0
        %1731 = vmatprep.subr.mxu0 0.0
        %1732 = vmatpush1.msra.mxu0 0.0
        %1733 = vmatprep.subr.mxu0 0.0
        %1734 = vmatpush1.msra.mxu0 0.0
        %1735 = vmatprep.subr.mxu0 0.0
        %1736 = vmatpush1.msra.mxu0 0.0
        %1737 = vmatprep.subr.mxu0 0.0
        %1738 = vmatpush1.msra.mxu0 0.0
        %1739 = vmatprep.mubr.f32.mxu0 0.0
        %1740 = vmatmul.mubr.f32.gmra.mrb[0].mxu0 %v1646
        %v1741 = vpop.f32.mrb[0].mxu0
        %v1742 = vadd.f32 %v1674, %v1741
        %v1743 = vpop.f32.mrb[0].mxu0
        %1744 = vmatprep.mubr.f32.mxu0 0.0
        %1745 = vmatmul.mubr.f32.gmra.mrb[0].mxu0 %v1647
        %v1746 = vpop.f32.mrb[0].mxu0
        %v1747 = vadd.f32 %v1674, %v1746
        %v1748 = vpop.f32.mrb[0].mxu0
        %1749 = vmatprep.mubr.f32.mxu0 0.0
        %1750 = vmatmul.mubr.f32.gmra.mrb[0].mxu0 %v1648
        %v1751 = vpop.f32.mrb[0].mxu0
        %v1752 = vadd.f32 %v1674, %v1751
        %v1753 = vpop.f32.mrb[0].mxu0
        %1754 = vmatprep.mubr.f32.mxu0 0.0
        %1755 = vmatmul.mubr.f32.gmra.mrb[0].mxu0 %v1649
        %v1756 = vpop.f32.mrb[0].mxu0
        %v1757 = vadd.f32 %v1674, %v1756
        %v1758 = vpop.f32.mrb[0].mxu0
        %1759 = vmatprep.mubr.f32.mxu0 0.0
        %1760 = vmatmul.mubr.f32.gmra.mrb[0].mxu0 %v1650
        %v1761 = vpop.f32.mrb[0].mxu0
        %v1762 = vadd.f32 %v1674, %v1761
        %v1763 = vpop.f32.mrb[0].mxu0
        %1764 = vmatprep.mubr.f32.mxu0 0.0
        %1765 = vmatmul.mubr.f32.gmra.mrb[0].mxu0 %v1651
        %v1766 = vpop.f32.mrb[0].mxu0
        %v1767 = vadd.f32 %v1674, %v1766
        %v1768 = vpop.f32.mrb[0].mxu0
        %1769 = vmatprep.mubr.f32.mxu0 0.0
        %1770 = vmatmul.mubr.f32.gmra.mrb[0].mxu0 %v1652
        %v1771 = vpop.f32.mrb[0].mxu0
        %v1772 = vadd.f32 %v1674, %v1771
        %v1773 = vpop.f32.mrb[0].mxu0
        %1774 = vmatprep.mubr.f32.mxu0 0.0
        %1775 = vmatmul.mubr.f32.gmra.mrb[0].mxu0 %v1653
        %v1776 = vpop.f32.mrb[0].mxu0
        %v1777 = vadd.f32 %v1674, %v1776
        %v1778 = vpop.f32.mrb[0].mxu0
        %1779 = vdwg.mxu0
        %1780 = vadd.xlane.f32.xlu0 %v1742
        %v1781 = vpop.xlane.xlu0 %1780
        %1782 = vadd.xlane.f32.xlu0 %v1747
        %v1783 = vpop.xlane.xlu0 %1782
        %1784 = vadd.xlane.f32.xlu0 %v1752
        %v1785 = vpop.xlane.xlu0 %1784
        %1786 = vadd.xlane.f32.xlu0 %v1757
        %v1787 = vpop.xlane.xlu0 %1786
        %1788 = vadd.xlane.f32.xlu0 %v1762
        %v1789 = vpop.xlane.xlu0 %1788
        %1790 = vadd.xlane.f32.xlu0 %v1767
        %v1791 = vpop.xlane.xlu0 %1790
        %1792 = vadd.xlane.f32.xlu0 %v1772
        %v1793 = vpop.xlane.xlu0 %1792
        %1794 = vadd.xlane.f32.xlu0 %v1777
        %v1795 = vpop.xlane.xlu0 %1794
        %v1796 = vmul.f32 %v1781, %v937
        %v1797 = vmul.f32 %v1783, %v937
        %v1798 = vmul.f32 %v1785, %v937
        %v1799 = vmul.f32 %v1787, %v937
        %v1800 = vmul.f32 %v1789, %v937
        %v1801 = vmul.f32 %v1791, %v937
        %v1802 = vmul.f32 %v1793, %v937
        %v1803 = vmul.f32 %v1795, %v937
        %v1804 = vsub.f32 %v1742, %v1796
        %v1805 = vsub.f32 %v1747, %v1797
        %v1806 = vsub.f32 %v1752, %v1798
        %v1807 = vsub.f32 %v1757, %v1799
        %v1808 = vsub.f32 %v1762, %v1800
        %v1809 = vsub.f32 %v1767, %v1801
        %v1810 = vsub.f32 %v1772, %v1802
        %v1811 = vsub.f32 %v1777, %v1803
        %v1812 = vmul.f32 %v1804, %v1804
        %v1813 = vmul.f32 %v1805, %v1805
        %v1814 = vmul.f32 %v1806, %v1806
        %v1815 = vmul.f32 %v1807, %v1807
        %v1816 = vmul.f32 %v1808, %v1808
        %v1817 = vmul.f32 %v1809, %v1809
        %v1818 = vmul.f32 %v1810, %v1810
        %v1819 = vmul.f32 %v1811, %v1811
        %1820 = vadd.xlane.f32.xlu0 %v1812
        %v1821 = vpop.xlane.xlu0 %1820
        %1822 = vadd.xlane.f32.xlu0 %v1813
        %v1823 = vpop.xlane.xlu0 %1822
        %1824 = vadd.xlane.f32.xlu0 %v1814
        %v1825 = vpop.xlane.xlu0 %1824
        %1826 = vadd.xlane.f32.xlu0 %v1815
        %v1827 = vpop.xlane.xlu0 %1826
        %1828 = vadd.xlane.f32.xlu0 %v1816
        %v1829 = vpop.xlane.xlu0 %1828
        %1830 = vadd.xlane.f32.xlu0 %v1817
        %v1831 = vpop.xlane.xlu0 %1830
        %1832 = vadd.xlane.f32.xlu0 %v1818
        %v1833 = vpop.xlane.xlu0 %1832
        %1834 = vadd.xlane.f32.xlu0 %v1819
        %v1835 = vpop.xlane.xlu0 %1834
        %v1836 = vmul.f32 %v1821, %v937
        %v1837 = vmul.f32 %v1823, %v937
        %v1838 = vmul.f32 %v1825, %v937
        %v1839 = vmul.f32 %v1827, %v937
        %v1840 = vmul.f32 %v1829, %v937
        %v1841 = vmul.f32 %v1831, %v937
        %v1842 = vmul.f32 %v1833, %v937
        %v1843 = vmul.f32 %v1835, %v937
        %v1844 = vadd.f32 %v1836, 1e-05
        %v1845 = vadd.f32 %v1837, 1e-05
        %v1846 = vadd.f32 %v1838, 1e-05
        %v1847 = vadd.f32 %v1839, 1e-05
        %v1848 = vadd.f32 %v1840, 1e-05
        %v1849 = vadd.f32 %v1841, 1e-05
        %v1850 = vadd.f32 %v1842, 1e-05
        %v1851 = vadd.f32 %v1843, 1e-05
        %v1852 = vrsqrt.pop %v1844
        %v1853 = vrsqrt.pop %v1845
        %v1854 = vrsqrt.pop %v1846
        %v1855 = vrsqrt.pop %v1847
        %v1856 = vrsqrt.pop %v1848
        %v1857 = vrsqrt.pop %v1849
        %v1858 = vrsqrt.pop %v1850
        %v1859 = vrsqrt.pop %v1851
        %v1860 = vmul.f32 %v1804, %v1852
        %v1861 = vmul.f32 %v1805, %v1853
        %v1862 = vmul.f32 %v1806, %v1854
        %v1863 = vmul.f32 %v1807, %v1855
        %v1864 = vmul.f32 %v1808, %v1856
        %v1865 = vmul.f32 %v1809, %v1857
        %v1866 = vmul.f32 %v1810, %v1858
        %v1867 = vmul.f32 %v1811, %v1859
        %v1868 = vld [vmem:[#allocation8 + $0xc] sm:$0x1]
        %v1869 = vlaneseq
        %v1870 = vshrl.u32 %v1869, 7
        %v1871 = vsub.s32 0, %v1870
        %v1872 = vrot.slane %v1868, %v1871
        %v1873 = vmul.f32 %v1860, %v1872
        %v1874 = vmul.f32 %v1861, %v1872
        %v1875 = vmul.f32 %v1862, %v1872
        %v1876 = vmul.f32 %v1863, %v1872
        %v1877 = vmul.f32 %v1864, %v1872
        %v1878 = vmul.f32 %v1865, %v1872
        %v1879 = vmul.f32 %v1866, %v1872
        %v1880 = vmul.f32 %v1867, %v1872
        %v1881 = vld [vmem:[#allocation8 + $0xd] sm:$0x1]
        %v1882 = vlaneseq
        %v1883 = vshrl.u32 %v1882, 7
        %v1884 = vsub.s32 0, %v1883
        %v1885 = vrot.slane %v1881, %v1884
        %v1886 = vadd.f32 %v1873, %v1885
        %v1887 = vadd.f32 %v1874, %v1885
        %v1888 = vadd.f32 %v1875, %v1885
        %v1889 = vadd.f32 %v1876, %v1885
        %v1890 = vadd.f32 %v1877, %v1885
        %v1891 = vadd.f32 %v1878, %v1885
        %v1892 = vadd.f32 %v1879, %v1885
        %v1893 = vadd.f32 %v1880, %v1885
        %v1894 = vmax.f32 %v1886, 0.0
        %v1895 = vmax.f32 %v1887, 0.0
        %v1896 = vmax.f32 %v1888, 0.0
        %v1897 = vmax.f32 %v1889, 0.0
        %v1898 = vmax.f32 %v1890, 0.0
        %v1899 = vmax.f32 %v1891, 0.0
        %v1900 = vmax.f32 %v1892, 0.0
        %v1901 = vmax.f32 %v1893, 0.0
        %v1902 = vld [vmem:[#allocation17] sm:$0xff]
        %v1903 = vld [vmem:[#allocation17 + $0x8] sm:$0xff]
        %v1904 = vld [vmem:[#allocation17 + $0x10] sm:$0xff]
        %v1905 = vld [vmem:[#allocation17 + $0x18] sm:$0xff]
        %v1906 = vld [vmem:[#allocation17 + $0x20] sm:$0xff]
        %v1907 = vld [vmem:[#allocation17 + $0x28] sm:$0xff]
        %v1908 = vld [vmem:[#allocation17 + $0x30] sm:$0xff]
        %v1909 = vld [vmem:[#allocation17 + $0x38] sm:$0xff]
        %v1910 = vld [vmem:[#allocation17 + $0x40] sm:$0xff]
        %v1911 = vld [vmem:[#allocation17 + $0x48] sm:$0xff]
        %v1912 = vld [vmem:[#allocation17 + $0x50] sm:$0xff]
        %v1913 = vld [vmem:[#allocation17 + $0x58] sm:$0xff]
        %v1914 = vld [vmem:[#allocation17 + $0x60] sm:$0xff]
        %v1915 = vld [vmem:[#allocation17 + $0x68] sm:$0xff]
        %v1916 = vld [vmem:[#allocation17 + $0x70] sm:$0xff]
        %v1917 = vld [vmem:[#allocation17 + $0x78] sm:$0xff]
        %v1918 = vld [vmem:[#allocation8 + $0xe] sm:$0x1]
        %v1919 = vlaneseq
        %v1920 = vshrl.u32 %v1919, 7
        %v1921 = vsub.s32 0, %v1920
        %v1922 = vrot.slane %v1918, %v1921
        %1923 = vmatprep.subr.mxu0 0.0
        %1924 = vmatpush1.msra.mxu0 %v1902
        %1925 = vmatprep.subr.mxu0 0.0
        %1926 = vmatpush1.msra.mxu0 %v1903
        %1927 = vmatprep.subr.mxu0 0.0
        %1928 = vmatpush1.msra.mxu0 %v1904
        %1929 = vmatprep.subr.mxu0 0.0
        %1930 = vmatpush1.msra.mxu0 %v1905
        %1931 = vmatprep.subr.mxu0 0.0
        %1932 = vmatpush1.msra.mxu0 %v1906
        %1933 = vmatprep.subr.mxu0 0.0
        %1934 = vmatpush1.msra.mxu0 %v1907
        %1935 = vmatprep.subr.mxu0 0.0
        %1936 = vmatpush1.msra.mxu0 %v1908
        %1937 = vmatprep.subr.mxu0 0.0
        %1938 = vmatpush1.msra.mxu0 %v1909
        %1939 = vmatprep.subr.mxu0 0.0
        %1940 = vmatpush1.msra.mxu0 %v1910
        %1941 = vmatprep.subr.mxu0 0.0
        %1942 = vmatpush1.msra.mxu0 %v1911
        %1943 = vmatprep.subr.mxu0 0.0
        %1944 = vmatpush1.msra.mxu0 %v1912
        %1945 = vmatprep.subr.mxu0 0.0
        %1946 = vmatpush1.msra.mxu0 %v1913
        %1947 = vmatprep.subr.mxu0 0.0
        %1948 = vmatpush1.msra.mxu0 %v1914
        %1949 = vmatprep.subr.mxu0 0.0
        %1950 = vmatpush1.msra.mxu0 %v1915
        %1951 = vmatprep.subr.mxu0 0.0
        %1952 = vmatpush1.msra.mxu0 %v1916
        %1953 = vmatprep.subr.mxu0 0.0
        %1954 = vmatpush1.msra.mxu0 %v1917
        %1955 = vmatprep.subr.mxu0 0.0
        %1956 = vmatpush1.msra.mxu0 0.0
        %1957 = vmatprep.subr.mxu0 0.0
        %1958 = vmatpush1.msra.mxu0 0.0
        %1959 = vmatprep.subr.mxu0 0.0
        %1960 = vmatpush1.msra.mxu0 0.0
        %1961 = vmatprep.subr.mxu0 0.0
        %1962 = vmatpush1.msra.mxu0 0.0
        %1963 = vmatprep.subr.mxu0 0.0
        %1964 = vmatpush1.msra.mxu0 0.0
        %1965 = vmatprep.subr.mxu0 0.0
        %1966 = vmatpush1.msra.mxu0 0.0
        %1967 = vmatprep.subr.mxu0 0.0
        %1968 = vmatpush1.msra.mxu0 0.0
        %1969 = vmatprep.subr.mxu0 0.0
        %1970 = vmatpush1.msra.mxu0 0.0
        %1971 = vmatprep.subr.mxu0 0.0
        %1972 = vmatpush1.msra.mxu0 0.0
        %1973 = vmatprep.subr.mxu0 0.0
        %1974 = vmatpush1.msra.mxu0 0.0
        %1975 = vmatprep.subr.mxu0 0.0
        %1976 = vmatpush1.msra.mxu0 0.0
        %1977 = vmatprep.subr.mxu0 0.0
        %1978 = vmatpush1.msra.mxu0 0.0
        %1979 = vmatprep.subr.mxu0 0.0
        %1980 = vmatpush1.msra.mxu0 0.0
        %1981 = vmatprep.subr.mxu0 0.0
        %1982 = vmatpush1.msra.mxu0 0.0
        %1983 = vmatprep.subr.mxu0 0.0
        %1984 = vmatpush1.msra.mxu0 0.0
        %1985 = vmatprep.subr.mxu0 0.0
        %1986 = vmatpush1.msra.mxu0 0.0
        %1987 = vmatprep.mubr.f32.mxu0 0.0
        %1988 = vmatmul.mubr.f32.gmra.mrb[0].mxu0 %v1894
        %v1989 = vpop.f32.mrb[0].mxu0
        %v1990 = vadd.f32 %v1922, %v1989
        %v1991 = vpop.f32.mrb[0].mxu0
        %1992 = vmatprep.mubr.f32.mxu0 0.0
        %1993 = vmatmul.mubr.f32.gmra.mrb[0].mxu0 %v1895
        %v1994 = vpop.f32.mrb[0].mxu0
        %v1995 = vadd.f32 %v1922, %v1994
        %v1996 = vpop.f32.mrb[0].mxu0
        %1997 = vmatprep.mubr.f32.mxu0 0.0
        %1998 = vmatmul.mubr.f32.gmra.mrb[0].mxu0 %v1896
        %v1999 = vpop.f32.mrb[0].mxu0
        %v2000 = vadd.f32 %v1922, %v1999
        %v2001 = vpop.f32.mrb[0].mxu0
        %2002 = vmatprep.mubr.f32.mxu0 0.0
        %2003 = vmatmul.mubr.f32.gmra.mrb[0].mxu0 %v1897
        %v2004 = vpop.f32.mrb[0].mxu0
        %v2005 = vadd.f32 %v1922, %v2004
        %v2006 = vpop.f32.mrb[0].mxu0
        %2007 = vmatprep.mubr.f32.mxu0 0.0
        %2008 = vmatmul.mubr.f32.gmra.mrb[0].mxu0 %v1898
        %v2009 = vpop.f32.mrb[0].mxu0
        %v2010 = vadd.f32 %v1922, %v2009
        %v2011 = vpop.f32.mrb[0].mxu0
        %2012 = vmatprep.mubr.f32.mxu0 0.0
        %2013 = vmatmul.mubr.f32.gmra.mrb[0].mxu0 %v1899
        %v2014 = vpop.f32.mrb[0].mxu0
        %v2015 = vadd.f32 %v1922, %v2014
        %v2016 = vpop.f32.mrb[0].mxu0
        %2017 = vmatprep.mubr.f32.mxu0 0.0
        %2018 = vmatmul.mubr.f32.gmra.mrb[0].mxu0 %v1900
        %v2019 = vpop.f32.mrb[0].mxu0
        %v2020 = vadd.f32 %v1922, %v2019
        %v2021 = vpop.f32.mrb[0].mxu0
        %2022 = vmatprep.mubr.f32.mxu0 0.0
        %2023 = vmatmul.mubr.f32.gmra.mrb[0].mxu0 %v1901
        %v2024 = vpop.f32.mrb[0].mxu0
        %v2025 = vadd.f32 %v1922, %v2024
        %v2026 = vpop.f32.mrb[0].mxu0
        %2027 = vdwg.mxu0
        %2028 = vadd.xlane.f32.xlu0 %v1990
        %v2029 = vpop.xlane.xlu0 %2028
        %2030 = vadd.xlane.f32.xlu0 %v1995
        %v2031 = vpop.xlane.xlu0 %2030
        %2032 = vadd.xlane.f32.xlu0 %v2000
        %v2033 = vpop.xlane.xlu0 %2032
        %2034 = vadd.xlane.f32.xlu0 %v2005
        %v2035 = vpop.xlane.xlu0 %2034
        %2036 = vadd.xlane.f32.xlu0 %v2010
        %v2037 = vpop.xlane.xlu0 %2036
        %2038 = vadd.xlane.f32.xlu0 %v2015
        %v2039 = vpop.xlane.xlu0 %2038
        %2040 = vadd.xlane.f32.xlu0 %v2020
        %v2041 = vpop.xlane.xlu0 %2040
        %2042 = vadd.xlane.f32.xlu0 %v2025
        %v2043 = vpop.xlane.xlu0 %2042
        %v2044 = vmul.f32 %v2029, %v937
        %v2045 = vmul.f32 %v2031, %v937
        %v2046 = vmul.f32 %v2033, %v937
        %v2047 = vmul.f32 %v2035, %v937
        %v2048 = vmul.f32 %v2037, %v937
        %v2049 = vmul.f32 %v2039, %v937
        %v2050 = vmul.f32 %v2041, %v937
        %v2051 = vmul.f32 %v2043, %v937
        %v2052 = vsub.f32 %v1990, %v2044
        %v2053 = vsub.f32 %v1995, %v2045
        %v2054 = vsub.f32 %v2000, %v2046
        %v2055 = vsub.f32 %v2005, %v2047
        %v2056 = vsub.f32 %v2010, %v2048
        %v2057 = vsub.f32 %v2015, %v2049
        %v2058 = vsub.f32 %v2020, %v2050
        %v2059 = vsub.f32 %v2025, %v2051
        %v2060 = vmul.f32 %v2052, %v2052
        %v2061 = vmul.f32 %v2053, %v2053
        %v2062 = vmul.f32 %v2054, %v2054
        %v2063 = vmul.f32 %v2055, %v2055
        %v2064 = vmul.f32 %v2056, %v2056
        %v2065 = vmul.f32 %v2057, %v2057
        %v2066 = vmul.f32 %v2058, %v2058
        %v2067 = vmul.f32 %v2059, %v2059
        %2068 = vadd.xlane.f32.xlu0 %v2060
        %v2069 = vpop.xlane.xlu0 %2068
        %2070 = vadd.xlane.f32.xlu0 %v2061
        %v2071 = vpop.xlane.xlu0 %2070
        %2072 = vadd.xlane.f32.xlu0 %v2062
        %v2073 = vpop.xlane.xlu0 %2072
        %2074 = vadd.xlane.f32.xlu0 %v2063
        %v2075 = vpop.xlane.xlu0 %2074
        %2076 = vadd.xlane.f32.xlu0 %v2064
        %v2077 = vpop.xlane.xlu0 %2076
        %2078 = vadd.xlane.f32.xlu0 %v2065
        %v2079 = vpop.xlane.xlu0 %2078
        %2080 = vadd.xlane.f32.xlu0 %v2066
        %v2081 = vpop.xlane.xlu0 %2080
        %2082 = vadd.xlane.f32.xlu0 %v2067
        %v2083 = vpop.xlane.xlu0 %2082
        %v2084 = vmul.f32 %v2069, %v937
        %v2085 = vmul.f32 %v2071, %v937
        %v2086 = vmul.f32 %v2073, %v937
        %v2087 = vmul.f32 %v2075, %v937
        %v2088 = vmul.f32 %v2077, %v937
        %v2089 = vmul.f32 %v2079, %v937
        %v2090 = vmul.f32 %v2081, %v937
        %v2091 = vmul.f32 %v2083, %v937
        %v2092 = vadd.f32 %v2084, 1e-05
        %v2093 = vadd.f32 %v2085, 1e-05
        %v2094 = vadd.f32 %v2086, 1e-05
        %v2095 = vadd.f32 %v2087, 1e-05
        %v2096 = vadd.f32 %v2088, 1e-05
        %v2097 = vadd.f32 %v2089, 1e-05
        %v2098 = vadd.f32 %v2090, 1e-05
        %v2099 = vadd.f32 %v2091, 1e-05
        %v2100 = vrsqrt.pop %v2092
        %v2101 = vrsqrt.pop %v2093
        %v2102 = vrsqrt.pop %v2094
        %v2103 = vrsqrt.pop %v2095
        %v2104 = vrsqrt.pop %v2096
        %v2105 = vrsqrt.pop %v2097
        %v2106 = vrsqrt.pop %v2098
        %v2107 = vrsqrt.pop %v2099
        %v2108 = vmul.f32 %v2052, %v2100
        %v2109 = vmul.f32 %v2053, %v2101
        %v2110 = vmul.f32 %v2054, %v2102
        %v2111 = vmul.f32 %v2055, %v2103
        %v2112 = vmul.f32 %v2056, %v2104
        %v2113 = vmul.f32 %v2057, %v2105
        %v2114 = vmul.f32 %v2058, %v2106
        %v2115 = vmul.f32 %v2059, %v2107
        %v2116 = vld [vmem:[#allocation8 + $0xf] sm:$0x1]
        %v2117 = vlaneseq
        %v2118 = vshrl.u32 %v2117, 7
        %v2119 = vsub.s32 0, %v2118
        %v2120 = vrot.slane %v2116, %v2119
        %v2121 = vmul.f32 %v2108, %v2120
        %v2122 = vmul.f32 %v2109, %v2120
        %v2123 = vmul.f32 %v2110, %v2120
        %v2124 = vmul.f32 %v2111, %v2120
        %v2125 = vmul.f32 %v2112, %v2120
        %v2126 = vmul.f32 %v2113, %v2120
        %v2127 = vmul.f32 %v2114, %v2120
        %v2128 = vmul.f32 %v2115, %v2120
        %v2129 = vld [vmem:[#allocation8 + $0x10] sm:$0x1]
        %v2130 = vlaneseq
        %v2131 = vshrl.u32 %v2130, 7
        %v2132 = vsub.s32 0, %v2131
        %v2133 = vrot.slane %v2129, %v2132
        %v2134 = vadd.f32 %v2121, %v2133
        %v2135 = vadd.f32 %v2122, %v2133
        %v2136 = vadd.f32 %v2123, %v2133
        %v2137 = vadd.f32 %v2124, %v2133
        %v2138 = vadd.f32 %v2125, %v2133
        %v2139 = vadd.f32 %v2126, %v2133
        %v2140 = vadd.f32 %v2127, %v2133
        %v2141 = vadd.f32 %v2128, %v2133
        %v2142 = vmax.f32 %v2134, 0.0
        %v2143 = vmax.f32 %v2135, 0.0
        %v2144 = vmax.f32 %v2136, 0.0
        %v2145 = vmax.f32 %v2137, 0.0
        %v2146 = vmax.f32 %v2138, 0.0
        %v2147 = vmax.f32 %v2139, 0.0
        %v2148 = vmax.f32 %v2140, 0.0
        %v2149 = vmax.f32 %v2141, 0.0
        %v2150 = vadd.f32 %v2142, %v1646
        %v2151 = vadd.f32 %v2143, %v1647
        %v2152 = vadd.f32 %v2144, %v1648
        %v2153 = vadd.f32 %v2145, %v1649
        %v2154 = vadd.f32 %v2146, %v1650
        %v2155 = vadd.f32 %v2147, %v1651
        %v2156 = vadd.f32 %v2148, %v1652
        %v2157 = vadd.f32 %v2149, %v1653
        %2158 = vadd.xlane.f32.xlu0 %v2150
        %v2159 = vpop.xlane.xlu0 %2158
        %2160 = vadd.xlane.f32.xlu0 %v2151
        %v2161 = vpop.xlane.xlu0 %2160
        %2162 = vadd.xlane.f32.xlu0 %v2152
        %v2163 = vpop.xlane.xlu0 %2162
        %2164 = vadd.xlane.f32.xlu0 %v2153
        %v2165 = vpop.xlane.xlu0 %2164
        %2166 = vadd.xlane.f32.xlu0 %v2154
        %v2167 = vpop.xlane.xlu0 %2166
        %2168 = vadd.xlane.f32.xlu0 %v2155
        %v2169 = vpop.xlane.xlu0 %2168
        %2170 = vadd.xlane.f32.xlu0 %v2156
        %v2171 = vpop.xlane.xlu0 %2170
        %2172 = vadd.xlane.f32.xlu0 %v2157
        %v2173 = vpop.xlane.xlu0 %2172
        %v2174 = vmul.f32 %v2159, %v937
        %v2175 = vmul.f32 %v2161, %v937
        %v2176 = vmul.f32 %v2163, %v937
        %v2177 = vmul.f32 %v2165, %v937
        %v2178 = vmul.f32 %v2167, %v937
        %v2179 = vmul.f32 %v2169, %v937
        %v2180 = vmul.f32 %v2171, %v937
        %v2181 = vmul.f32 %v2173, %v937
        %v2182 = vsub.f32 %v2150, %v2174
        %v2183 = vsub.f32 %v2151, %v2175
        %v2184 = vsub.f32 %v2152, %v2176
        %v2185 = vsub.f32 %v2153, %v2177
        %v2186 = vsub.f32 %v2154, %v2178
        %v2187 = vsub.f32 %v2155, %v2179
        %v2188 = vsub.f32 %v2156, %v2180
        %v2189 = vsub.f32 %v2157, %v2181
        %v2190 = vmul.f32 %v2182, %v2182
        %v2191 = vmul.f32 %v2183, %v2183
        %v2192 = vmul.f32 %v2184, %v2184
        %v2193 = vmul.f32 %v2185, %v2185
        %v2194 = vmul.f32 %v2186, %v2186
        %v2195 = vmul.f32 %v2187, %v2187
        %v2196 = vmul.f32 %v2188, %v2188
        %v2197 = vmul.f32 %v2189, %v2189
        %2198 = vadd.xlane.f32.xlu0 %v2190
        %v2199 = vpop.xlane.xlu0 %2198
        %2200 = vadd.xlane.f32.xlu0 %v2191
        %v2201 = vpop.xlane.xlu0 %2200
        %2202 = vadd.xlane.f32.xlu0 %v2192
        %v2203 = vpop.xlane.xlu0 %2202
        %2204 = vadd.xlane.f32.xlu0 %v2193
        %v2205 = vpop.xlane.xlu0 %2204
        %2206 = vadd.xlane.f32.xlu0 %v2194
        %v2207 = vpop.xlane.xlu0 %2206
        %2208 = vadd.xlane.f32.xlu0 %v2195
        %v2209 = vpop.xlane.xlu0 %2208
        %2210 = vadd.xlane.f32.xlu0 %v2196
        %v2211 = vpop.xlane.xlu0 %2210
        %2212 = vadd.xlane.f32.xlu0 %v2197
        %v2213 = vpop.xlane.xlu0 %2212
        %v2214 = vmul.f32 %v2199, %v937
        %v2215 = vmul.f32 %v2201, %v937
        %v2216 = vmul.f32 %v2203, %v937
        %v2217 = vmul.f32 %v2205, %v937
        %v2218 = vmul.f32 %v2207, %v937
        %v2219 = vmul.f32 %v2209, %v937
        %v2220 = vmul.f32 %v2211, %v937
        %v2221 = vmul.f32 %v2213, %v937
        %v2222 = vadd.f32 %v2214, 1e-05
        %v2223 = vadd.f32 %v2215, 1e-05
        %v2224 = vadd.f32 %v2216, 1e-05
        %v2225 = vadd.f32 %v2217, 1e-05
        %v2226 = vadd.f32 %v2218, 1e-05
        %v2227 = vadd.f32 %v2219, 1e-05
        %v2228 = vadd.f32 %v2220, 1e-05
        %v2229 = vadd.f32 %v2221, 1e-05
        %v2230 = vrsqrt.pop %v2222
        %v2231 = vrsqrt.pop %v2223
        %v2232 = vrsqrt.pop %v2224
        %v2233 = vrsqrt.pop %v2225
        %v2234 = vrsqrt.pop %v2226
        %v2235 = vrsqrt.pop %v2227
        %v2236 = vrsqrt.pop %v2228
        %v2237 = vrsqrt.pop %v2229
        %v2238 = vmul.f32 %v2182, %v2230
        %v2239 = vmul.f32 %v2183, %v2231
        %v2240 = vmul.f32 %v2184, %v2232
        %v2241 = vmul.f32 %v2185, %v2233
        %v2242 = vmul.f32 %v2186, %v2234
        %v2243 = vmul.f32 %v2187, %v2235
        %v2244 = vmul.f32 %v2188, %v2236
        %v2245 = vmul.f32 %v2189, %v2237
        %v2246 = vld [vmem:[#allocation8 + $0x11] sm:$0x1]
        %v2247 = vlaneseq
        %v2248 = vshrl.u32 %v2247, 7
        %v2249 = vsub.s32 0, %v2248
        %v2250 = vrot.slane %v2246, %v2249
        %v2251 = vmul.f32 %v2238, %v2250
        %v2252 = vmul.f32 %v2239, %v2250
        %v2253 = vmul.f32 %v2240, %v2250
        %v2254 = vmul.f32 %v2241, %v2250
        %v2255 = vmul.f32 %v2242, %v2250
        %v2256 = vmul.f32 %v2243, %v2250
        %v2257 = vmul.f32 %v2244, %v2250
        %v2258 = vmul.f32 %v2245, %v2250
        %v2259 = vld [vmem:[#allocation8 + $0x12] sm:$0x1]
        %v2260 = vlaneseq
        %v2261 = vshrl.u32 %v2260, 7
        %v2262 = vsub.s32 0, %v2261
        %v2263 = vrot.slane %v2259, %v2262
        %v2264 = vadd.f32 %v2251, %v2263
        %v2265 = vadd.f32 %v2252, %v2263
        %v2266 = vadd.f32 %v2253, %v2263
        %v2267 = vadd.f32 %v2254, %v2263
        %v2268 = vadd.f32 %v2255, %v2263
        %v2269 = vadd.f32 %v2256, %v2263
        %v2270 = vadd.f32 %v2257, %v2263
        %v2271 = vadd.f32 %v2258, %v2263
        %v2272 = vld [vmem:[#allocation23] sm:$0xff]
        %v2273 = vld [vmem:[#allocation23 + $0x8] sm:$0xff]
        %v2274 = vld [vmem:[#allocation23 + $0x10] sm:$0xff]
        %v2275 = vld [vmem:[#allocation23 + $0x18] sm:$0xff]
        %v2276 = vld [vmem:[#allocation23 + $0x20] sm:$0xff]
        %v2277 = vld [vmem:[#allocation23 + $0x28] sm:$0xff]
        %v2278 = vld [vmem:[#allocation23 + $0x30] sm:$0xff]
        %v2279 = vld [vmem:[#allocation23 + $0x38] sm:$0xff]
        %v2280 = vld [vmem:[#allocation23 + $0x40] sm:$0xff]
        %v2281 = vld [vmem:[#allocation23 + $0x48] sm:$0xff]
        %v2282 = vld [vmem:[#allocation23 + $0x50] sm:$0xff]
        %v2283 = vld [vmem:[#allocation23 + $0x58] sm:$0xff]
        %v2284 = vld [vmem:[#allocation23 + $0x60] sm:$0xff]
        %v2285 = vld [vmem:[#allocation23 + $0x68] sm:$0xff]
        %v2286 = vld [vmem:[#allocation23 + $0x70] sm:$0xff]
        %v2287 = vld [vmem:[#allocation23 + $0x78] sm:$0xff]
        %v2288 = vld [vmem:[#allocation23 + $0x80] sm:$0xff]
        %v2289 = vld [vmem:[#allocation23 + $0x88] sm:$0xff]
        %v2290 = vld [vmem:[#allocation23 + $0x90] sm:$0xff]
        %v2291 = vld [vmem:[#allocation23 + $0x98] sm:$0xff]
        %v2292 = vld [vmem:[#allocation23 + $0xa0] sm:$0xff]
        %v2293 = vld [vmem:[#allocation23 + $0xa8] sm:$0xff]
        %v2294 = vld [vmem:[#allocation23 + $0xb0] sm:$0xff]
        %v2295 = vld [vmem:[#allocation23 + $0xb8] sm:$0xff]
        %v2296 = vld [vmem:[#allocation23 + $0xc0] sm:$0xff]
        %v2297 = vld [vmem:[#allocation23 + $0xc8] sm:$0xff]
        %v2298 = vld [vmem:[#allocation23 + $0xd0] sm:$0xff]
        %v2299 = vld [vmem:[#allocation23 + $0xd8] sm:$0xff]
        %v2300 = vld [vmem:[#allocation23 + $0xe0] sm:$0xff]
        %v2301 = vld [vmem:[#allocation23 + $0xe8] sm:$0xff]
        %v2302 = vld [vmem:[#allocation23 + $0xf0] sm:$0xff]
        %v2303 = vld [vmem:[#allocation23 + $0xf8] sm:$0xff]
        %v2304 = vld [vmem:[#allocation23 + $0x100] sm:$0xff]
        %v2305 = vld [vmem:[#allocation23 + $0x108] sm:$0xff]
        %v2306 = vld [vmem:[#allocation23 + $0x110] sm:$0xff]
        %v2307 = vld [vmem:[#allocation23 + $0x118] sm:$0xff]
        %v2308 = vld [vmem:[#allocation23 + $0x120] sm:$0xff]
        %v2309 = vld [vmem:[#allocation23 + $0x128] sm:$0xff]
        %v2310 = vld [vmem:[#allocation23 + $0x130] sm:$0xff]
        %v2311 = vld [vmem:[#allocation23 + $0x138] sm:$0xff]
        %v2312 = vld [vmem:[#allocation23 + $0x140] sm:$0xff]
        %v2313 = vld [vmem:[#allocation23 + $0x148] sm:$0xff]
        %v2314 = vld [vmem:[#allocation23 + $0x150] sm:$0xff]
        %v2315 = vld [vmem:[#allocation23 + $0x158] sm:$0xff]
        %v2316 = vld [vmem:[#allocation23 + $0x160] sm:$0xff]
        %v2317 = vld [vmem:[#allocation23 + $0x168] sm:$0xff]
        %v2318 = vld [vmem:[#allocation23 + $0x170] sm:$0xff]
        %v2319 = vld [vmem:[#allocation23 + $0x178] sm:$0xff]
        %v2320 = vld [vmem:[#allocation10] ss:$4 sm:$0x7]
        %v2322 = vlaneseq
        %v2323 = vshrl.u32 %v2322, 7
        %v2324 = vsub.s32 0, %v2323
        %v2325 = vrot.slane %v2320, %v2324
        %v2326 = vlaneseq
        %v2327 = vshrl.u32 %v2326, 7
        %v2328 = vsub.s32 1, %v2327
        %v2329 = vrot.slane %v2320, %v2328
        %v2330 = vlaneseq
        %v2331 = vshrl.u32 %v2330, 7
        %v2332 = vsub.s32 2, %v2331
        %v2333 = vrot.slane %v2320, %v2332
        %2337 = vmatprep.subr.mxu0 %v2273
        %2338 = vmatpush1.msra.mxu0 %v2272
        %2339 = vmatprep.subr.mxu0 %v2276
        %2340 = vmatpush1.msra.mxu0 %v2275
        %2341 = vmatprep.subr.mxu0 %v2279
        %2342 = vmatpush1.msra.mxu0 %v2278
        %2343 = vmatprep.subr.mxu0 %v2282
        %2344 = vmatpush1.msra.mxu0 %v2281
        %2345 = vmatprep.subr.mxu0 %v2285
        %2346 = vmatpush1.msra.mxu0 %v2284
        %2347 = vmatprep.subr.mxu0 %v2288
        %2348 = vmatpush1.msra.mxu0 %v2287
        %2349 = vmatprep.subr.mxu0 %v2291
        %2350 = vmatpush1.msra.mxu0 %v2290
        %2351 = vmatprep.subr.mxu0 %v2294
        %2352 = vmatpush1.msra.mxu0 %v2293
        %2353 = vmatprep.subr.mxu0 %v2297
        %2354 = vmatpush1.msra.mxu0 %v2296
        %2355 = vmatprep.subr.mxu0 %v2300
        %2356 = vmatpush1.msra.mxu0 %v2299
        %2357 = vmatprep.subr.mxu0 %v2303
        %2358 = vmatpush1.msra.mxu0 %v2302
        %2359 = vmatprep.subr.mxu0 %v2306
        %2360 = vmatpush1.msra.mxu0 %v2305
        %2361 = vmatprep.subr.mxu0 %v2309
        %2362 = vmatpush1.msra.mxu0 %v2308
        %2363 = vmatprep.subr.mxu0 %v2312
        %2364 = vmatpush1.msra.mxu0 %v2311
        %2365 = vmatprep.subr.mxu0 %v2315
        %2366 = vmatpush1.msra.mxu0 %v2314
        %2367 = vmatprep.subr.mxu0 %v2318
        %2368 = vmatpush1.msra.mxu0 %v2317
        %2369 = vmatprep.subr.mxu0 0.0
        %2370 = vmatpush1.msra.mxu0 0.0
        %2371 = vmatprep.subr.mxu0 0.0
        %2372 = vmatpush1.msra.mxu0 0.0
        %2373 = vmatprep.subr.mxu0 0.0
        %2374 = vmatpush1.msra.mxu0 0.0
        %2375 = vmatprep.subr.mxu0 0.0
        %2376 = vmatpush1.msra.mxu0 0.0
        %2377 = vmatprep.subr.mxu0 0.0
        %2378 = vmatpush1.msra.mxu0 0.0
        %2379 = vmatprep.subr.mxu0 0.0
        %2380 = vmatpush1.msra.mxu0 0.0
        %2381 = vmatprep.subr.mxu0 0.0
        %2382 = vmatpush1.msra.mxu0 0.0
        %2383 = vmatprep.subr.mxu0 0.0
        %2384 = vmatpush1.msra.mxu0 0.0
        %2385 = vmatprep.subr.mxu0 0.0
        %2386 = vmatpush1.msra.mxu0 0.0
        %2387 = vmatprep.subr.mxu0 0.0
        %2388 = vmatpush1.msra.mxu0 0.0
        %2389 = vmatprep.subr.mxu0 0.0
        %2390 = vmatpush1.msra.mxu0 0.0
        %2391 = vmatprep.subr.mxu0 0.0
        %2392 = vmatpush1.msra.mxu0 0.0
        %2393 = vmatprep.subr.mxu0 0.0
        %2394 = vmatpush1.msra.mxu0 0.0
        %2395 = vmatprep.subr.mxu0 0.0
        %2396 = vmatpush1.msra.mxu0 0.0
        %2397 = vmatprep.subr.mxu0 0.0
        %2398 = vmatpush1.msra.mxu0 0.0
        %2399 = vmatprep.subr.mxu0 0.0
        %2400 = vmatpush1.msra.mxu0 0.0
        %2401 = vmatprep.mubr.f32.mxu0 0.0
        %2402 = vmatmul.mubr.f32.gmra.mrb[0].mxu0 %v1028
        %v2403 = vpop.f32.mrb[0].mxu0
        %v2404 = vadd.f32 %v2325, %v2403
        %v2405 = vpop.f32.mrb[0].mxu0
        %v2406 = vadd.f32 %v2329, %v2405
        %2407 = vmatprep.mubr.f32.mxu0 0.0
        %2408 = vmatmul.mubr.f32.gmra.mrb[0].mxu0 %v1029
        %v2409 = vpop.f32.mrb[0].mxu0
        %v2410 = vadd.f32 %v2325, %v2409
        %v2411 = vpop.f32.mrb[0].mxu0
        %v2412 = vadd.f32 %v2329, %v2411
        %2413 = vmatprep.mubr.f32.mxu0 0.0
        %2414 = vmatmul.mubr.f32.gmra.mrb[0].mxu0 %v1030
        %v2415 = vpop.f32.mrb[0].mxu0
        %v2416 = vadd.f32 %v2325, %v2415
        %v2417 = vpop.f32.mrb[0].mxu0
        %v2418 = vadd.f32 %v2329, %v2417
        %2419 = vmatprep.mubr.f32.mxu0 0.0
        %2420 = vmatmul.mubr.f32.gmra.mrb[0].mxu0 %v1031
        %v2421 = vpop.f32.mrb[0].mxu0
        %v2422 = vadd.f32 %v2325, %v2421
        %v2423 = vpop.f32.mrb[0].mxu0
        %v2424 = vadd.f32 %v2329, %v2423
        %2425 = vmatprep.mubr.f32.mxu0 0.0
        %2426 = vmatmul.mubr.f32.gmra.mrb[0].mxu0 %v1032
        %v2427 = vpop.f32.mrb[0].mxu0
        %v2428 = vadd.f32 %v2325, %v2427
        %v2429 = vpop.f32.mrb[0].mxu0
        %v2430 = vadd.f32 %v2329, %v2429
        %2431 = vmatprep.mubr.f32.mxu0 0.0
        %2432 = vmatmul.mubr.f32.gmra.mrb[0].mxu0 %v1033
        %v2433 = vpop.f32.mrb[0].mxu0
        %v2434 = vadd.f32 %v2325, %v2433
        %v2435 = vpop.f32.mrb[0].mxu0
        %v2436 = vadd.f32 %v2329, %v2435
        %2437 = vmatprep.mubr.f32.mxu0 0.0
        %2438 = vmatmul.mubr.f32.gmra.mrb[0].mxu0 %v1034
        %v2439 = vpop.f32.mrb[0].mxu0
        %v2440 = vadd.f32 %v2325, %v2439
        %v2441 = vpop.f32.mrb[0].mxu0
        %v2442 = vadd.f32 %v2329, %v2441
        %2443 = vmatprep.mubr.f32.mxu0 0.0
        %2444 = vmatmul.mubr.f32.gmra.mrb[0].mxu0 %v1035
        %v2445 = vpop.f32.mrb[0].mxu0
        %v2446 = vadd.f32 %v2325, %v2445
        %v2447 = vpop.f32.mrb[0].mxu0
        %v2448 = vadd.f32 %v2329, %v2447
        %2449 = vdwg.mxu0
        %2450 = vmatprep.subr.mxu0 0.0
        %2451 = vmatpush1.msra.mxu0 %v2274
        %2452 = vmatprep.subr.mxu0 0.0
        %2453 = vmatpush1.msra.mxu0 %v2277
        %2454 = vmatprep.subr.mxu0 0.0
        %2455 = vmatpush1.msra.mxu0 %v2280
        %2456 = vmatprep.subr.mxu0 0.0
        %2457 = vmatpush1.msra.mxu0 %v2283
        %2458 = vmatprep.subr.mxu0 0.0
        %2459 = vmatpush1.msra.mxu0 %v2286
        %2460 = vmatprep.subr.mxu0 0.0
        %2461 = vmatpush1.msra.mxu0 %v2289
        %2462 = vmatprep.subr.mxu0 0.0
        %2463 = vmatpush1.msra.mxu0 %v2292
        %2464 = vmatprep.subr.mxu0 0.0
        %2465 = vmatpush1.msra.mxu0 %v2295
        %2466 = vmatprep.subr.mxu0 0.0
        %2467 = vmatpush1.msra.mxu0 %v2298
        %2468 = vmatprep.subr.mxu0 0.0
        %2469 = vmatpush1.msra.mxu0 %v2301
        %2470 = vmatprep.subr.mxu0 0.0
        %2471 = vmatpush1.msra.mxu0 %v2304
        %2472 = vmatprep.subr.mxu0 0.0
        %2473 = vmatpush1.msra.mxu0 %v2307
        %2474 = vmatprep.subr.mxu0 0.0
        %2475 = vmatpush1.msra.mxu0 %v2310
        %2476 = vmatprep.subr.mxu0 0.0
        %2477 = vmatpush1.msra.mxu0 %v2313
        %2478 = vmatprep.subr.mxu0 0.0
        %2479 = vmatpush1.msra.mxu0 %v2316
        %2480 = vmatprep.subr.mxu0 0.0
        %2481 = vmatpush1.msra.mxu0 %v2319
        %2482 = vmatprep.subr.mxu0 0.0
        %2483 = vmatpush1.msra.mxu0 0.0
        %2484 = vmatprep.subr.mxu0 0.0
        %2485 = vmatpush1.msra.mxu0 0.0
        %2486 = vmatprep.subr.mxu0 0.0
        %2487 = vmatpush1.msra.mxu0 0.0
        %2488 = vmatprep.subr.mxu0 0.0
        %2489 = vmatpush1.msra.mxu0 0.0
        %2490 = vmatprep.subr.mxu0 0.0
        %2491 = vmatpush1.msra.mxu0 0.0
        %2492 = vmatprep.subr.mxu0 0.0
        %2493 = vmatpush1.msra.mxu0 0.0
        %2494 = vmatprep.subr.mxu0 0.0
        %2495 = vmatpush1.msra.mxu0 0.0
        %2496 = vmatprep.subr.mxu0 0.0
        %2497 = vmatpush1.msra.mxu0 0.0
        %2498 = vmatprep.subr.mxu0 0.0
        %2499 = vmatpush1.msra.mxu0 0.0
        %2500 = vmatprep.subr.mxu0 0.0
        %2501 = vmatpush1.msra.mxu0 0.0
        %2502 = vmatprep.subr.mxu0 0.0
        %2503 = vmatpush1.msra.mxu0 0.0
        %2504 = vmatprep.subr.mxu0 0.0
        %2505 = vmatpush1.msra.mxu0 0.0
        %2506 = vmatprep.subr.mxu0 0.0
        %2507 = vmatpush1.msra.mxu0 0.0
        %2508 = vmatprep.subr.mxu0 0.0
        %2509 = vmatpush1.msra.mxu0 0.0
        %2510 = vmatprep.subr.mxu0 0.0
        %2511 = vmatpush1.msra.mxu0 0.0
        %2512 = vmatprep.subr.mxu0 0.0
        %2513 = vmatpush1.msra.mxu0 0.0
        %2514 = vmatprep.mubr.f32.mxu0 0.0
        %2515 = vmatmul.mubr.f32.gmra.mrb[0].mxu0 %v1028
        %v2516 = vpop.f32.mrb[0].mxu0
        %v2517 = vadd.f32 %v2333, %v2516
        %v2518 = vpop.f32.mrb[0].mxu0
        %2519 = vmatprep.mubr.f32.mxu0 0.0
        %2520 = vmatmul.mubr.f32.gmra.mrb[0].mxu0 %v1029
        %v2521 = vpop.f32.mrb[0].mxu0
        %v2522 = vadd.f32 %v2333, %v2521
        %v2523 = vpop.f32.mrb[0].mxu0
        %2524 = vmatprep.mubr.f32.mxu0 0.0
        %2525 = vmatmul.mubr.f32.gmra.mrb[0].mxu0 %v1030
        %v2526 = vpop.f32.mrb[0].mxu0
        %v2527 = vadd.f32 %v2333, %v2526
        %v2528 = vpop.f32.mrb[0].mxu0
        %2529 = vmatprep.mubr.f32.mxu0 0.0
        %2530 = vmatmul.mubr.f32.gmra.mrb[0].mxu0 %v1031
        %v2531 = vpop.f32.mrb[0].mxu0
        %v2532 = vadd.f32 %v2333, %v2531
        %v2533 = vpop.f32.mrb[0].mxu0
        %2534 = vmatprep.mubr.f32.mxu0 0.0
        %2535 = vmatmul.mubr.f32.gmra.mrb[0].mxu0 %v1032
        %v2536 = vpop.f32.mrb[0].mxu0
        %v2537 = vadd.f32 %v2333, %v2536
        %v2538 = vpop.f32.mrb[0].mxu0
        %2539 = vmatprep.mubr.f32.mxu0 0.0
        %2540 = vmatmul.mubr.f32.gmra.mrb[0].mxu0 %v1033
        %v2541 = vpop.f32.mrb[0].mxu0
        %v2542 = vadd.f32 %v2333, %v2541
        %v2543 = vpop.f32.mrb[0].mxu0
        %2544 = vmatprep.mubr.f32.mxu0 0.0
        %2545 = vmatmul.mubr.f32.gmra.mrb[0].mxu0 %v1034
        %v2546 = vpop.f32.mrb[0].mxu0
        %v2547 = vadd.f32 %v2333, %v2546
        %v2548 = vpop.f32.mrb[0].mxu0
        %2549 = vmatprep.mubr.f32.mxu0 0.0
        %2550 = vmatmul.mubr.f32.gmra.mrb[0].mxu0 %v1035
        %v2551 = vpop.f32.mrb[0].mxu0
        %v2552 = vadd.f32 %v2333, %v2551
        %v2553 = vpop.f32.mrb[0].mxu0
        %2554 = vdwg.mxu0
        %2555 = vst [vmem:[#allocation3] sm:$0xff] %v2404
        %2556 = vst [vmem:[#allocation3 + $0x8] sm:$0xff] %v2406
        %2557 = vst [vmem:[#allocation3 + $0x10] sm:$0xff] %v2517
        %2558 = vst [vmem:[#allocation3 + $0x18] sm:$0xff] %v2410
        %2559 = vst [vmem:[#allocation3 + $0x20] sm:$0xff] %v2412
        %2560 = vst [vmem:[#allocation3 + $0x28] sm:$0xff] %v2522
        %2561 = vst [vmem:[#allocation3 + $0x30] sm:$0xff] %v2416
        %2562 = vst [vmem:[#allocation3 + $0x38] sm:$0xff] %v2418
        %2563 = vst [vmem:[#allocation3 + $0x40] sm:$0xff] %v2527
        %2564 = vst [vmem:[#allocation3 + $0x48] sm:$0xff] %v2422
        %2565 = vst [vmem:[#allocation3 + $0x50] sm:$0xff] %v2424
        %2566 = vst [vmem:[#allocation3 + $0x58] sm:$0xff] %v2532
        %2567 = vst [vmem:[#allocation3 + $0x60] sm:$0xff] %v2428
        %2568 = vst [vmem:[#allocation3 + $0x68] sm:$0xff] %v2430
        %2569 = vst [vmem:[#allocation3 + $0x70] sm:$0xff] %v2537
        %2570 = vst [vmem:[#allocation3 + $0x78] sm:$0xff] %v2434
        %2571 = vst [vmem:[#allocation3 + $0x80] sm:$0xff] %v2436
        %2572 = vst [vmem:[#allocation3 + $0x88] sm:$0xff] %v2542
        %2573 = vst [vmem:[#allocation3 + $0x90] sm:$0xff] %v2440
        %2574 = vst [vmem:[#allocation3 + $0x98] sm:$0xff] %v2442
        %2575 = vst [vmem:[#allocation3 + $0xa0] sm:$0xff] %v2547
        %2576 = vst [vmem:[#allocation3 + $0xa8] sm:$0xff] %v2446
        %2577 = vst [vmem:[#allocation3 + $0xb0] sm:$0xff] %v2448
        %2578 = vst [vmem:[#allocation3 + $0xb8] sm:$0xff] %v2552
        %s2579 = scalar_lea.vmem [#allocation10], 2
        %v2580 = vld [vmem:[%s2579] ss:$4 sm:$0x7]
        %s2581 = scalar_lea.vmem [#allocation10], 1
        %v2582 = vld [vmem:[%s2581] ss:$4 sm:$0x7]
        %s2583 = scalar_lea.vmem [#allocation10], 3
        %v2584 = vld [vmem:[%s2583] ss:$4 sm:$0x7]
        %v2585 = vld [vmem:[#allocation2] sm:$0xff]
        %s2586 = scalar_lea.vmem [#allocation2], 8
        %v2587 = vld [vmem:[%s2586] sm:$0xff]
        %v2588 = vld [vmem:[#allocation3] sm:$0xff]
        %v2589 = vld [vmem:[#allocation3 + $0x8] sm:$0xff]
        %v2590 = vld [vmem:[#allocation3 + $0x10] sm:$0xff]
        %v2591 = vld [vmem:[#allocation25] sm:$0xff]
        %v2592 = vld [vmem:[#allocation25 + $0x8] sm:$0xff]
        %v2593 = vld [vmem:[#allocation25 + $0x10] sm:$0xff]
        %v2594 = vld [vmem:[#allocation25 + $0x18] sm:$0xff]
        %v2595 = vld [vmem:[#allocation25 + $0x20] sm:$0xff]
        %v2596 = vld [vmem:[#allocation25 + $0x28] sm:$0xff]
        %v2597 = vld [vmem:[#allocation25 + $0x30] sm:$0xff]
        %v2598 = vld [vmem:[#allocation25 + $0x38] sm:$0xff]
        %v2599 = vld [vmem:[#allocation25 + $0x40] sm:$0xff]
        %v2600 = vld [vmem:[#allocation25 + $0x48] sm:$0xff]
        %v2601 = vld [vmem:[#allocation25 + $0x50] sm:$0xff]
        %v2602 = vld [vmem:[#allocation25 + $0x58] sm:$0xff]
        %v2603 = vld [vmem:[#allocation25 + $0x60] sm:$0xff]
        %v2604 = vld [vmem:[#allocation25 + $0x68] sm:$0xff]
        %v2605 = vld [vmem:[#allocation25 + $0x70] sm:$0xff]
        %v2606 = vld [vmem:[#allocation25 + $0x78] sm:$0xff]
        %v2607 = vld [vmem:[#allocation25 + $0x80] sm:$0xff]
        %v2608 = vld [vmem:[#allocation25 + $0x88] sm:$0xff]
        %v2609 = vld [vmem:[#allocation25 + $0x90] sm:$0xff]
        %v2610 = vld [vmem:[#allocation25 + $0x98] sm:$0xff]
        %v2611 = vld [vmem:[#allocation25 + $0xa0] sm:$0xff]
        %v2612 = vld [vmem:[#allocation25 + $0xa8] sm:$0xff]
        %v2613 = vld [vmem:[#allocation25 + $0xb0] sm:$0xff]
        %v2614 = vld [vmem:[#allocation25 + $0xb8] sm:$0xff]
        %v2615 = vld [vmem:[#allocation25 + $0xc0] sm:$0xff]
        %v2616 = vld [vmem:[#allocation25 + $0xc8] sm:$0xff]
        %v2617 = vld [vmem:[#allocation25 + $0xd0] sm:$0xff]
        %v2618 = vld [vmem:[#allocation25 + $0xd8] sm:$0xff]
        %v2619 = vld [vmem:[#allocation25 + $0xe0] sm:$0xff]
        %v2620 = vld [vmem:[#allocation25 + $0xe8] sm:$0xff]
        %v2621 = vld [vmem:[#allocation25 + $0xf0] sm:$0xff]
        %v2622 = vld [vmem:[#allocation25 + $0xf8] sm:$0xff]
        %v2623 = vld [vmem:[#allocation25 + $0x100] sm:$0xff]
        %v2624 = vld [vmem:[#allocation25 + $0x108] sm:$0xff]
        %v2625 = vld [vmem:[#allocation25 + $0x110] sm:$0xff]
        %v2626 = vld [vmem:[#allocation25 + $0x118] sm:$0xff]
        %v2627 = vld [vmem:[#allocation25 + $0x120] sm:$0xff]
        %v2628 = vld [vmem:[#allocation25 + $0x128] sm:$0xff]
        %v2629 = vld [vmem:[#allocation25 + $0x130] sm:$0xff]
        %v2630 = vld [vmem:[#allocation25 + $0x138] sm:$0xff]
        %v2631 = vld [vmem:[#allocation25 + $0x140] sm:$0xff]
        %v2632 = vld [vmem:[#allocation25 + $0x148] sm:$0xff]
        %v2633 = vld [vmem:[#allocation25 + $0x150] sm:$0xff]
        %v2634 = vld [vmem:[#allocation25 + $0x158] sm:$0xff]
        %v2635 = vld [vmem:[#allocation25 + $0x160] sm:$0xff]
        %v2636 = vld [vmem:[#allocation25 + $0x168] sm:$0xff]
        %v2637 = vld [vmem:[#allocation25 + $0x170] sm:$0xff]
        %v2638 = vld [vmem:[#allocation25 + $0x178] sm:$0xff]
        %v2640 = vlaneseq
        %v2641 = vshrl.u32 %v2640, 7
        %v2642 = vsub.s32 0, %v2641
        %v2643 = vrot.slane %v2582, %v2642
        %v2644 = vlaneseq
        %v2645 = vshrl.u32 %v2644, 7
        %v2646 = vsub.s32 1, %v2645
        %v2647 = vrot.slane %v2582, %v2646
        %v2648 = vlaneseq
        %v2649 = vshrl.u32 %v2648, 7
        %v2650 = vsub.s32 2, %v2649
        %v2651 = vrot.slane %v2582, %v2650
        %2655 = vmatprep.subr.mxu0 %v2592
        %2656 = vmatpush1.msra.mxu0 %v2591
        %2657 = vmatprep.subr.mxu0 %v2595
        %2658 = vmatpush1.msra.mxu0 %v2594
        %2659 = vmatprep.subr.mxu0 %v2598
        %2660 = vmatpush1.msra.mxu0 %v2597
        %2661 = vmatprep.subr.mxu0 %v2601
        %2662 = vmatpush1.msra.mxu0 %v2600
        %2663 = vmatprep.subr.mxu0 %v2604
        %2664 = vmatpush1.msra.mxu0 %v2603
        %2665 = vmatprep.subr.mxu0 %v2607
        %2666 = vmatpush1.msra.mxu0 %v2606
        %2667 = vmatprep.subr.mxu0 %v2610
        %2668 = vmatpush1.msra.mxu0 %v2609
        %2669 = vmatprep.subr.mxu0 %v2613
        %2670 = vmatpush1.msra.mxu0 %v2612
        %2671 = vmatprep.subr.mxu0 %v2616
        %2672 = vmatpush1.msra.mxu0 %v2615
        %2673 = vmatprep.subr.mxu0 %v2619
        %2674 = vmatpush1.msra.mxu0 %v2618
        %2675 = vmatprep.subr.mxu0 %v2622
        %2676 = vmatpush1.msra.mxu0 %v2621
        %2677 = vmatprep.subr.mxu0 %v2625
        %2678 = vmatpush1.msra.mxu0 %v2624
        %2679 = vmatprep.subr.mxu0 %v2628
        %2680 = vmatpush1.msra.mxu0 %v2627
        %2681 = vmatprep.subr.mxu0 %v2631
        %2682 = vmatpush1.msra.mxu0 %v2630
        %2683 = vmatprep.subr.mxu0 %v2634
        %2684 = vmatpush1.msra.mxu0 %v2633
        %2685 = vmatprep.subr.mxu0 %v2637
        %2686 = vmatpush1.msra.mxu0 %v2636
        %2687 = vmatprep.subr.mxu0 0.0
        %2688 = vmatpush1.msra.mxu0 0.0
        %2689 = vmatprep.subr.mxu0 0.0
        %2690 = vmatpush1.msra.mxu0 0.0
        %2691 = vmatprep.subr.mxu0 0.0
        %2692 = vmatpush1.msra.mxu0 0.0
        %2693 = vmatprep.subr.mxu0 0.0
        %2694 = vmatpush1.msra.mxu0 0.0
        %2695 = vmatprep.subr.mxu0 0.0
        %2696 = vmatpush1.msra.mxu0 0.0
        %2697 = vmatprep.subr.mxu0 0.0
        %2698 = vmatpush1.msra.mxu0 0.0
        %2699 = vmatprep.subr.mxu0 0.0
        %2700 = vmatpush1.msra.mxu0 0.0
        %2701 = vmatprep.subr.mxu0 0.0
        %2702 = vmatpush1.msra.mxu0 0.0
        %2703 = vmatprep.subr.mxu0 0.0
        %2704 = vmatpush1.msra.mxu0 0.0
        %2705 = vmatprep.subr.mxu0 0.0
        %2706 = vmatpush1.msra.mxu0 0.0
        %2707 = vmatprep.subr.mxu0 0.0
        %2708 = vmatpush1.msra.mxu0 0.0
        %2709 = vmatprep.subr.mxu0 0.0
        %2710 = vmatpush1.msra.mxu0 0.0
        %2711 = vmatprep.subr.mxu0 0.0
        %2712 = vmatpush1.msra.mxu0 0.0
        %2713 = vmatprep.subr.mxu0 0.0
        %2714 = vmatpush1.msra.mxu0 0.0
        %2715 = vmatprep.subr.mxu0 0.0
        %2716 = vmatpush1.msra.mxu0 0.0
        %2717 = vmatprep.subr.mxu0 0.0
        %2718 = vmatpush1.msra.mxu0 0.0
        %2719 = vmatprep.mubr.f32.mxu0 0.0
        %2720 = vmatmul.mubr.f32.gmra.mrb[0].mxu0 %v2585
        %v2721 = vpop.f32.mrb[0].mxu0
        %v2722 = vadd.f32 %v2643, %v2721
        %v2723 = vpop.f32.mrb[0].mxu0
        %v2724 = vadd.f32 %v2647, %v2723
        %2725 = vdwg.mxu0
        %2726 = vmatprep.subr.mxu0 0.0
        %2727 = vmatpush1.msra.mxu0 %v2593
        %2728 = vmatprep.subr.mxu0 0.0
        %2729 = vmatpush1.msra.mxu0 %v2596
        %2730 = vmatprep.subr.mxu0 0.0
        %2731 = vmatpush1.msra.mxu0 %v2599
        %2732 = vmatprep.subr.mxu0 0.0
        %2733 = vmatpush1.msra.mxu0 %v2602
        %2734 = vmatprep.subr.mxu0 0.0
        %2735 = vmatpush1.msra.mxu0 %v2605
        %2736 = vmatprep.subr.mxu0 0.0
        %2737 = vmatpush1.msra.mxu0 %v2608
        %2738 = vmatprep.subr.mxu0 0.0
        %2739 = vmatpush1.msra.mxu0 %v2611
        %2740 = vmatprep.subr.mxu0 0.0
        %2741 = vmatpush1.msra.mxu0 %v2614
        %2742 = vmatprep.subr.mxu0 0.0
        %2743 = vmatpush1.msra.mxu0 %v2617
        %2744 = vmatprep.subr.mxu0 0.0
        %2745 = vmatpush1.msra.mxu0 %v2620
        %2746 = vmatprep.subr.mxu0 0.0
        %2747 = vmatpush1.msra.mxu0 %v2623
        %2748 = vmatprep.subr.mxu0 0.0
        %2749 = vmatpush1.msra.mxu0 %v2626
        %2750 = vmatprep.subr.mxu0 0.0
        %2751 = vmatpush1.msra.mxu0 %v2629
        %2752 = vmatprep.subr.mxu0 0.0
        %2753 = vmatpush1.msra.mxu0 %v2632
        %2754 = vmatprep.subr.mxu0 0.0
        %2755 = vmatpush1.msra.mxu0 %v2635
        %2756 = vmatprep.subr.mxu0 0.0
        %2757 = vmatpush1.msra.mxu0 %v2638
        %2758 = vmatprep.subr.mxu0 0.0
        %2759 = vmatpush1.msra.mxu0 0.0
        %2760 = vmatprep.subr.mxu0 0.0
        %2761 = vmatpush1.msra.mxu0 0.0
        %2762 = vmatprep.subr.mxu0 0.0
        %2763 = vmatpush1.msra.mxu0 0.0
        %2764 = vmatprep.subr.mxu0 0.0
        %2765 = vmatpush1.msra.mxu0 0.0
        %2766 = vmatprep.subr.mxu0 0.0
        %2767 = vmatpush1.msra.mxu0 0.0
        %2768 = vmatprep.subr.mxu0 0.0
        %2769 = vmatpush1.msra.mxu0 0.0
        %2770 = vmatprep.subr.mxu0 0.0
        %2771 = vmatpush1.msra.mxu0 0.0
        %2772 = vmatprep.subr.mxu0 0.0
        %2773 = vmatpush1.msra.mxu0 0.0
        %2774 = vmatprep.subr.mxu0 0.0
        %2775 = vmatpush1.msra.mxu0 0.0
        %2776 = vmatprep.subr.mxu0 0.0
        %2777 = vmatpush1.msra.mxu0 0.0
        %2778 = vmatprep.subr.mxu0 0.0
        %2779 = vmatpush1.msra.mxu0 0.0
        %2780 = vmatprep.subr.mxu0 0.0
        %2781 = vmatpush1.msra.mxu0 0.0
        %2782 = vmatprep.subr.mxu0 0.0
        %2783 = vmatpush1.msra.mxu0 0.0
        %2784 = vmatprep.subr.mxu0 0.0
        %2785 = vmatpush1.msra.mxu0 0.0
        %2786 = vmatprep.subr.mxu0 0.0
        %2787 = vmatpush1.msra.mxu0 0.0
        %2788 = vmatprep.subr.mxu0 0.0
        %2789 = vmatpush1.msra.mxu0 0.0
        %2790 = vmatprep.mubr.f32.mxu0 0.0
        %2791 = vmatmul.mubr.f32.gmra.mrb[0].mxu0 %v2585
        %v2792 = vpop.f32.mrb[0].mxu0
        %v2793 = vadd.f32 %v2651, %v2792
        %v2794 = vpop.f32.mrb[0].mxu0
        %2795 = vdwg.mxu0
        %v2796 = vadd.f32 %v2588, %v2722
        %v2797 = vxor.u32 %v2796, 2147483648
        %v2798 = vmul.f32 %v2797, 1.442695
        %v2799 = vpow.pop %v2798
        %v2800 = vadd.f32 %v2799, 1.0
        %v2801 = vrcp.pop %v2800
        %v2802 = vmul.f32 1.0, %v2801
        %v2803 = vadd.f32 %v2589, %v2724
        %v2804 = vxor.u32 %v2803, 2147483648
        %v2805 = vmul.f32 %v2804, 1.442695
        %v2806 = vpow.pop %v2805
        %v2807 = vadd.f32 %v2806, 1.0
        %v2808 = vrcp.pop %v2807
        %v2809 = vmul.f32 1.0, %v2808
        %v2810 = vmul.f32 %v2802, %v2793
        %v2811 = vadd.f32 %v2590, %v2810
        %v2812 = vtanh.pop %v2811
        %v2813 = vsub.f32 1.0, %v2809
        %v2814 = vmul.f32 %v2813, %v2812
        %v2815 = vmul.f32 %v2809, %v2585
        %v2816 = vadd.f32 %v2814, %v2815
        %v2817 = vld [vmem:[#allocation26] sm:$0xff]
        %v2818 = vld [vmem:[#allocation26 + $0x8] sm:$0xff]
        %v2819 = vld [vmem:[#allocation26 + $0x10] sm:$0xff]
        %v2820 = vld [vmem:[#allocation26 + $0x18] sm:$0xff]
        %v2821 = vld [vmem:[#allocation26 + $0x20] sm:$0xff]
        %v2822 = vld [vmem:[#allocation26 + $0x28] sm:$0xff]
        %v2823 = vld [vmem:[#allocation26 + $0x30] sm:$0xff]
        %v2824 = vld [vmem:[#allocation26 + $0x38] sm:$0xff]
        %v2825 = vld [vmem:[#allocation26 + $0x40] sm:$0xff]
        %v2826 = vld [vmem:[#allocation26 + $0x48] sm:$0xff]
        %v2827 = vld [vmem:[#allocation26 + $0x50] sm:$0xff]
        %v2828 = vld [vmem:[#allocation26 + $0x58] sm:$0xff]
        %v2829 = vld [vmem:[#allocation26 + $0x60] sm:$0xff]
        %v2830 = vld [vmem:[#allocation26 + $0x68] sm:$0xff]
        %v2831 = vld [vmem:[#allocation26 + $0x70] sm:$0xff]
        %v2832 = vld [vmem:[#allocation26 + $0x78] sm:$0xff]
        %v2833 = vld [vmem:[#allocation26 + $0x80] sm:$0xff]
        %v2834 = vld [vmem:[#allocation26 + $0x88] sm:$0xff]
        %v2835 = vld [vmem:[#allocation26 + $0x90] sm:$0xff]
        %v2836 = vld [vmem:[#allocation26 + $0x98] sm:$0xff]
        %v2837 = vld [vmem:[#allocation26 + $0xa0] sm:$0xff]
        %v2838 = vld [vmem:[#allocation26 + $0xa8] sm:$0xff]
        %v2839 = vld [vmem:[#allocation26 + $0xb0] sm:$0xff]
        %v2840 = vld [vmem:[#allocation26 + $0xb8] sm:$0xff]
        %v2841 = vld [vmem:[#allocation26 + $0xc0] sm:$0xff]
        %v2842 = vld [vmem:[#allocation26 + $0xc8] sm:$0xff]
        %v2843 = vld [vmem:[#allocation26 + $0xd0] sm:$0xff]
        %v2844 = vld [vmem:[#allocation26 + $0xd8] sm:$0xff]
        %v2845 = vld [vmem:[#allocation26 + $0xe0] sm:$0xff]
        %v2846 = vld [vmem:[#allocation26 + $0xe8] sm:$0xff]
        %v2847 = vld [vmem:[#allocation26 + $0xf0] sm:$0xff]
        %v2848 = vld [vmem:[#allocation26 + $0xf8] sm:$0xff]
        %v2849 = vld [vmem:[#allocation26 + $0x100] sm:$0xff]
        %v2850 = vld [vmem:[#allocation26 + $0x108] sm:$0xff]
        %v2851 = vld [vmem:[#allocation26 + $0x110] sm:$0xff]
        %v2852 = vld [vmem:[#allocation26 + $0x118] sm:$0xff]
        %v2853 = vld [vmem:[#allocation26 + $0x120] sm:$0xff]
        %v2854 = vld [vmem:[#allocation26 + $0x128] sm:$0xff]
        %v2855 = vld [vmem:[#allocation26 + $0x130] sm:$0xff]
        %v2856 = vld [vmem:[#allocation26 + $0x138] sm:$0xff]
        %v2857 = vld [vmem:[#allocation26 + $0x140] sm:$0xff]
        %v2858 = vld [vmem:[#allocation26 + $0x148] sm:$0xff]
        %v2859 = vld [vmem:[#allocation26 + $0x150] sm:$0xff]
        %v2860 = vld [vmem:[#allocation26 + $0x158] sm:$0xff]
        %v2861 = vld [vmem:[#allocation26 + $0x160] sm:$0xff]
        %v2862 = vld [vmem:[#allocation26 + $0x168] sm:$0xff]
        %v2863 = vld [vmem:[#allocation26 + $0x170] sm:$0xff]
        %v2864 = vld [vmem:[#allocation26 + $0x178] sm:$0xff]
        %v2866 = vlaneseq
        %v2867 = vshrl.u32 %v2866, 7
        %v2868 = vsub.s32 0, %v2867
        %v2869 = vrot.slane %v2580, %v2868
        %v2870 = vlaneseq
        %v2871 = vshrl.u32 %v2870, 7
        %v2872 = vsub.s32 1, %v2871
        %v2873 = vrot.slane %v2580, %v2872
        %v2874 = vlaneseq
        %v2875 = vshrl.u32 %v2874, 7
        %v2876 = vsub.s32 2, %v2875
        %v2877 = vrot.slane %v2580, %v2876
        %2881 = vmatprep.subr.mxu0 %v2818
        %2882 = vmatpush1.msra.mxu0 %v2817
        %2883 = vmatprep.subr.mxu0 %v2821
        %2884 = vmatpush1.msra.mxu0 %v2820
        %2885 = vmatprep.subr.mxu0 %v2824
        %2886 = vmatpush1.msra.mxu0 %v2823
        %2887 = vmatprep.subr.mxu0 %v2827
        %2888 = vmatpush1.msra.mxu0 %v2826
        %2889 = vmatprep.subr.mxu0 %v2830
        %2890 = vmatpush1.msra.mxu0 %v2829
        %2891 = vmatprep.subr.mxu0 %v2833
        %2892 = vmatpush1.msra.mxu0 %v2832
        %2893 = vmatprep.subr.mxu0 %v2836
        %2894 = vmatpush1.msra.mxu0 %v2835
        %2895 = vmatprep.subr.mxu0 %v2839
        %2896 = vmatpush1.msra.mxu0 %v2838
        %2897 = vmatprep.subr.mxu0 %v2842
        %2898 = vmatpush1.msra.mxu0 %v2841
        %2899 = vmatprep.subr.mxu0 %v2845
        %2900 = vmatpush1.msra.mxu0 %v2844
        %2901 = vmatprep.subr.mxu0 %v2848
        %2902 = vmatpush1.msra.mxu0 %v2847
        %2903 = vmatprep.subr.mxu0 %v2851
        %2904 = vmatpush1.msra.mxu0 %v2850
        %2905 = vmatprep.subr.mxu0 %v2854
        %2906 = vmatpush1.msra.mxu0 %v2853
        %2907 = vmatprep.subr.mxu0 %v2857
        %2908 = vmatpush1.msra.mxu0 %v2856
        %2909 = vmatprep.subr.mxu0 %v2860
        %2910 = vmatpush1.msra.mxu0 %v2859
        %2911 = vmatprep.subr.mxu0 %v2863
        %2912 = vmatpush1.msra.mxu0 %v2862
        %2913 = vmatprep.subr.mxu0 0.0
        %2914 = vmatpush1.msra.mxu0 0.0
        %2915 = vmatprep.subr.mxu0 0.0
        %2916 = vmatpush1.msra.mxu0 0.0
        %2917 = vmatprep.subr.mxu0 0.0
        %2918 = vmatpush1.msra.mxu0 0.0
        %2919 = vmatprep.subr.mxu0 0.0
        %2920 = vmatpush1.msra.mxu0 0.0
        %2921 = vmatprep.subr.mxu0 0.0
        %2922 = vmatpush1.msra.mxu0 0.0
        %2923 = vmatprep.subr.mxu0 0.0
        %2924 = vmatpush1.msra.mxu0 0.0
        %2925 = vmatprep.subr.mxu0 0.0
        %2926 = vmatpush1.msra.mxu0 0.0
        %2927 = vmatprep.subr.mxu0 0.0
        %2928 = vmatpush1.msra.mxu0 0.0
        %2929 = vmatprep.subr.mxu0 0.0
        %2930 = vmatpush1.msra.mxu0 0.0
        %2931 = vmatprep.subr.mxu0 0.0
        %2932 = vmatpush1.msra.mxu0 0.0
        %2933 = vmatprep.subr.mxu0 0.0
        %2934 = vmatpush1.msra.mxu0 0.0
        %2935 = vmatprep.subr.mxu0 0.0
        %2936 = vmatpush1.msra.mxu0 0.0
        %2937 = vmatprep.subr.mxu0 0.0
        %2938 = vmatpush1.msra.mxu0 0.0
        %2939 = vmatprep.subr.mxu0 0.0
        %2940 = vmatpush1.msra.mxu0 0.0
        %2941 = vmatprep.subr.mxu0 0.0
        %2942 = vmatpush1.msra.mxu0 0.0
        %2943 = vmatprep.subr.mxu0 0.0
        %2944 = vmatpush1.msra.mxu0 0.0
        %2945 = vmatprep.mubr.f32.mxu0 0.0
        %2946 = vmatmul.mubr.f32.gmra.mrb[0].mxu0 %v2816
        %v2947 = vpop.f32.mrb[0].mxu0
        %v2948 = vadd.f32 %v2869, %v2947
        %v2949 = vpop.f32.mrb[0].mxu0
        %v2950 = vadd.f32 %v2873, %v2949
        %2951 = vdwg.mxu0
        %2952 = vmatprep.subr.mxu0 0.0
        %2953 = vmatpush1.msra.mxu0 %v2819
        %2954 = vmatprep.subr.mxu0 0.0
        %2955 = vmatpush1.msra.mxu0 %v2822
        %2956 = vmatprep.subr.mxu0 0.0
        %2957 = vmatpush1.msra.mxu0 %v2825
        %2958 = vmatprep.subr.mxu0 0.0
        %2959 = vmatpush1.msra.mxu0 %v2828
        %2960 = vmatprep.subr.mxu0 0.0
        %2961 = vmatpush1.msra.mxu0 %v2831
        %2962 = vmatprep.subr.mxu0 0.0
        %2963 = vmatpush1.msra.mxu0 %v2834
        %2964 = vmatprep.subr.mxu0 0.0
        %2965 = vmatpush1.msra.mxu0 %v2837
        %2966 = vmatprep.subr.mxu0 0.0
        %2967 = vmatpush1.msra.mxu0 %v2840
        %2968 = vmatprep.subr.mxu0 0.0
        %2969 = vmatpush1.msra.mxu0 %v2843
        %2970 = vmatprep.subr.mxu0 0.0
        %2971 = vmatpush1.msra.mxu0 %v2846
        %2972 = vmatprep.subr.mxu0 0.0
        %2973 = vmatpush1.msra.mxu0 %v2849
        %2974 = vmatprep.subr.mxu0 0.0
        %2975 = vmatpush1.msra.mxu0 %v2852
        %2976 = vmatprep.subr.mxu0 0.0
        %2977 = vmatpush1.msra.mxu0 %v2855
        %2978 = vmatprep.subr.mxu0 0.0
        %2979 = vmatpush1.msra.mxu0 %v2858
        %2980 = vmatprep.subr.mxu0 0.0
        %2981 = vmatpush1.msra.mxu0 %v2861
        %2982 = vmatprep.subr.mxu0 0.0
        %2983 = vmatpush1.msra.mxu0 %v2864
        %2984 = vmatprep.subr.mxu0 0.0
        %2985 = vmatpush1.msra.mxu0 0.0
        %2986 = vmatprep.subr.mxu0 0.0
        %2987 = vmatpush1.msra.mxu0 0.0
        %2988 = vmatprep.subr.mxu0 0.0
        %2989 = vmatpush1.msra.mxu0 0.0
        %2990 = vmatprep.subr.mxu0 0.0
        %2991 = vmatpush1.msra.mxu0 0.0
        %2992 = vmatprep.subr.mxu0 0.0
        %2993 = vmatpush1.msra.mxu0 0.0
        %2994 = vmatprep.subr.mxu0 0.0
        %2995 = vmatpush1.msra.mxu0 0.0
        %2996 = vmatprep.subr.mxu0 0.0
        %2997 = vmatpush1.msra.mxu0 0.0
        %2998 = vmatprep.subr.mxu0 0.0
        %2999 = vmatpush1.msra.mxu0 0.0
        %3000 = vmatprep.subr.mxu0 0.0
        %3001 = vmatpush1.msra.mxu0 0.0
        %3002 = vmatprep.subr.mxu0 0.0
        %3003 = vmatpush1.msra.mxu0 0.0
        %3004 = vmatprep.subr.mxu0 0.0
        %3005 = vmatpush1.msra.mxu0 0.0
        %3006 = vmatprep.subr.mxu0 0.0
        %3007 = vmatpush1.msra.mxu0 0.0
        %3008 = vmatprep.subr.mxu0 0.0
        %3009 = vmatpush1.msra.mxu0 0.0
        %3010 = vmatprep.subr.mxu0 0.0
        %3011 = vmatpush1.msra.mxu0 0.0
        %3012 = vmatprep.subr.mxu0 0.0
        %3013 = vmatpush1.msra.mxu0 0.0
        %3014 = vmatprep.subr.mxu0 0.0
        %3015 = vmatpush1.msra.mxu0 0.0
        %3016 = vmatprep.mubr.f32.mxu0 0.0
        %3017 = vmatmul.mubr.f32.gmra.mrb[0].mxu0 %v2816
        %v3018 = vpop.f32.mrb[0].mxu0
        %v3019 = vadd.f32 %v2877, %v3018
        %v3020 = vpop.f32.mrb[0].mxu0
        %3021 = vdwg.mxu0
        %v3022 = vld [vmem:[#allocation28] sm:$0xff]
        %v3023 = vld [vmem:[#allocation28 + $0x8] sm:$0xff]
        %v3024 = vld [vmem:[#allocation28 + $0x10] sm:$0xff]
        %v3025 = vld [vmem:[#allocation28 + $0x18] sm:$0xff]
        %v3026 = vld [vmem:[#allocation28 + $0x20] sm:$0xff]
        %v3027 = vld [vmem:[#allocation28 + $0x28] sm:$0xff]
        %v3028 = vld [vmem:[#allocation28 + $0x30] sm:$0xff]
        %v3029 = vld [vmem:[#allocation28 + $0x38] sm:$0xff]
        %v3030 = vld [vmem:[#allocation28 + $0x40] sm:$0xff]
        %v3031 = vld [vmem:[#allocation28 + $0x48] sm:$0xff]
        %v3032 = vld [vmem:[#allocation28 + $0x50] sm:$0xff]
        %v3033 = vld [vmem:[#allocation28 + $0x58] sm:$0xff]
        %v3034 = vld [vmem:[#allocation28 + $0x60] sm:$0xff]
        %v3035 = vld [vmem:[#allocation28 + $0x68] sm:$0xff]
        %v3036 = vld [vmem:[#allocation28 + $0x70] sm:$0xff]
        %v3037 = vld [vmem:[#allocation28 + $0x78] sm:$0xff]
        %v3038 = vld [vmem:[#allocation28 + $0x80] sm:$0xff]
        %v3039 = vld [vmem:[#allocation28 + $0x88] sm:$0xff]
        %v3040 = vld [vmem:[#allocation28 + $0x90] sm:$0xff]
        %v3041 = vld [vmem:[#allocation28 + $0x98] sm:$0xff]
        %v3042 = vld [vmem:[#allocation28 + $0xa0] sm:$0xff]
        %v3043 = vld [vmem:[#allocation28 + $0xa8] sm:$0xff]
        %v3044 = vld [vmem:[#allocation28 + $0xb0] sm:$0xff]
        %v3045 = vld [vmem:[#allocation28 + $0xb8] sm:$0xff]
        %v3046 = vld [vmem:[#allocation28 + $0xc0] sm:$0xff]
        %v3047 = vld [vmem:[#allocation28 + $0xc8] sm:$0xff]
        %v3048 = vld [vmem:[#allocation28 + $0xd0] sm:$0xff]
        %v3049 = vld [vmem:[#allocation28 + $0xd8] sm:$0xff]
        %v3050 = vld [vmem:[#allocation28 + $0xe0] sm:$0xff]
        %v3051 = vld [vmem:[#allocation28 + $0xe8] sm:$0xff]
        %v3052 = vld [vmem:[#allocation28 + $0xf0] sm:$0xff]
        %v3053 = vld [vmem:[#allocation28 + $0xf8] sm:$0xff]
        %v3054 = vld [vmem:[#allocation28 + $0x100] sm:$0xff]
        %v3055 = vld [vmem:[#allocation28 + $0x108] sm:$0xff]
        %v3056 = vld [vmem:[#allocation28 + $0x110] sm:$0xff]
        %v3057 = vld [vmem:[#allocation28 + $0x118] sm:$0xff]
        %v3058 = vld [vmem:[#allocation28 + $0x120] sm:$0xff]
        %v3059 = vld [vmem:[#allocation28 + $0x128] sm:$0xff]
        %v3060 = vld [vmem:[#allocation28 + $0x130] sm:$0xff]
        %v3061 = vld [vmem:[#allocation28 + $0x138] sm:$0xff]
        %v3062 = vld [vmem:[#allocation28 + $0x140] sm:$0xff]
        %v3063 = vld [vmem:[#allocation28 + $0x148] sm:$0xff]
        %v3064 = vld [vmem:[#allocation28 + $0x150] sm:$0xff]
        %v3065 = vld [vmem:[#allocation28 + $0x158] sm:$0xff]
        %v3066 = vld [vmem:[#allocation28 + $0x160] sm:$0xff]
        %v3067 = vld [vmem:[#allocation28 + $0x168] sm:$0xff]
        %v3068 = vld [vmem:[#allocation28 + $0x170] sm:$0xff]
        %v3069 = vld [vmem:[#allocation28 + $0x178] sm:$0xff]
        %v3071 = vlaneseq
        %v3072 = vshrl.u32 %v3071, 7
        %v3073 = vsub.s32 0, %v3072
        %v3074 = vrot.slane %v2584, %v3073
        %v3075 = vlaneseq
        %v3076 = vshrl.u32 %v3075, 7
        %v3077 = vsub.s32 1, %v3076
        %v3078 = vrot.slane %v2584, %v3077
        %v3079 = vlaneseq
        %v3080 = vshrl.u32 %v3079, 7
        %v3081 = vsub.s32 2, %v3080
        %v3082 = vrot.slane %v2584, %v3081
        %3086 = vmatprep.subr.mxu0 %v3023
        %3087 = vmatpush1.msra.mxu0 %v3022
        %3088 = vmatprep.subr.mxu0 %v3026
        %3089 = vmatpush1.msra.mxu0 %v3025
        %3090 = vmatprep.subr.mxu0 %v3029
        %3091 = vmatpush1.msra.mxu0 %v3028
        %3092 = vmatprep.subr.mxu0 %v3032
        %3093 = vmatpush1.msra.mxu0 %v3031
        %3094 = vmatprep.subr.mxu0 %v3035
        %3095 = vmatpush1.msra.mxu0 %v3034
        %3096 = vmatprep.subr.mxu0 %v3038
        %3097 = vmatpush1.msra.mxu0 %v3037
        %3098 = vmatprep.subr.mxu0 %v3041
        %3099 = vmatpush1.msra.mxu0 %v3040
        %3100 = vmatprep.subr.mxu0 %v3044
        %3101 = vmatpush1.msra.mxu0 %v3043
        %3102 = vmatprep.subr.mxu0 %v3047
        %3103 = vmatpush1.msra.mxu0 %v3046
        %3104 = vmatprep.subr.mxu0 %v3050
        %3105 = vmatpush1.msra.mxu0 %v3049
        %3106 = vmatprep.subr.mxu0 %v3053
        %3107 = vmatpush1.msra.mxu0 %v3052
        %3108 = vmatprep.subr.mxu0 %v3056
        %3109 = vmatpush1.msra.mxu0 %v3055
        %3110 = vmatprep.subr.mxu0 %v3059
        %3111 = vmatpush1.msra.mxu0 %v3058
        %3112 = vmatprep.subr.mxu0 %v3062
        %3113 = vmatpush1.msra.mxu0 %v3061
        %3114 = vmatprep.subr.mxu0 %v3065
        %3115 = vmatpush1.msra.mxu0 %v3064
        %3116 = vmatprep.subr.mxu0 %v3068
        %3117 = vmatpush1.msra.mxu0 %v3067
        %3118 = vmatprep.subr.mxu0 0.0
        %3119 = vmatpush1.msra.mxu0 0.0
        %3120 = vmatprep.subr.mxu0 0.0
        %3121 = vmatpush1.msra.mxu0 0.0
        %3122 = vmatprep.subr.mxu0 0.0
        %3123 = vmatpush1.msra.mxu0 0.0
        %3124 = vmatprep.subr.mxu0 0.0
        %3125 = vmatpush1.msra.mxu0 0.0
        %3126 = vmatprep.subr.mxu0 0.0
        %3127 = vmatpush1.msra.mxu0 0.0
        %3128 = vmatprep.subr.mxu0 0.0
        %3129 = vmatpush1.msra.mxu0 0.0
        %3130 = vmatprep.subr.mxu0 0.0
        %3131 = vmatpush1.msra.mxu0 0.0
        %3132 = vmatprep.subr.mxu0 0.0
        %3133 = vmatpush1.msra.mxu0 0.0
        %3134 = vmatprep.subr.mxu0 0.0
        %3135 = vmatpush1.msra.mxu0 0.0
        %3136 = vmatprep.subr.mxu0 0.0
        %3137 = vmatpush1.msra.mxu0 0.0
        %3138 = vmatprep.subr.mxu0 0.0
        %3139 = vmatpush1.msra.mxu0 0.0
        %3140 = vmatprep.subr.mxu0 0.0
        %3141 = vmatpush1.msra.mxu0 0.0
        %3142 = vmatprep.subr.mxu0 0.0
        %3143 = vmatpush1.msra.mxu0 0.0
        %3144 = vmatprep.subr.mxu0 0.0
        %3145 = vmatpush1.msra.mxu0 0.0
        %3146 = vmatprep.subr.mxu0 0.0
        %3147 = vmatpush1.msra.mxu0 0.0
        %3148 = vmatprep.subr.mxu0 0.0
        %3149 = vmatpush1.msra.mxu0 0.0
        %3150 = vmatprep.mubr.f32.mxu0 0.0
        %3151 = vmatmul.mubr.f32.gmra.mrb[0].mxu0 %v2587
        %v3152 = vpop.f32.mrb[0].mxu0
        %v3153 = vadd.f32 %v3074, %v3152
        %v3154 = vpop.f32.mrb[0].mxu0
        %v3155 = vadd.f32 %v3078, %v3154
        %3156 = vdwg.mxu0
        %3157 = vmatprep.subr.mxu0 0.0
        %3158 = vmatpush1.msra.mxu0 %v3024
        %3159 = vmatprep.subr.mxu0 0.0
        %3160 = vmatpush1.msra.mxu0 %v3027
        %3161 = vmatprep.subr.mxu0 0.0
        %3162 = vmatpush1.msra.mxu0 %v3030
        %3163 = vmatprep.subr.mxu0 0.0
        %3164 = vmatpush1.msra.mxu0 %v3033
        %3165 = vmatprep.subr.mxu0 0.0
        %3166 = vmatpush1.msra.mxu0 %v3036
        %3167 = vmatprep.subr.mxu0 0.0
        %3168 = vmatpush1.msra.mxu0 %v3039
        %3169 = vmatprep.subr.mxu0 0.0
        %3170 = vmatpush1.msra.mxu0 %v3042
        %3171 = vmatprep.subr.mxu0 0.0
        %3172 = vmatpush1.msra.mxu0 %v3045
        %3173 = vmatprep.subr.mxu0 0.0
        %3174 = vmatpush1.msra.mxu0 %v3048
        %3175 = vmatprep.subr.mxu0 0.0
        %3176 = vmatpush1.msra.mxu0 %v3051
        %3177 = vmatprep.subr.mxu0 0.0
        %3178 = vmatpush1.msra.mxu0 %v3054
        %3179 = vmatprep.subr.mxu0 0.0
        %3180 = vmatpush1.msra.mxu0 %v3057
        %3181 = vmatprep.subr.mxu0 0.0
        %3182 = vmatpush1.msra.mxu0 %v3060
        %3183 = vmatprep.subr.mxu0 0.0
        %3184 = vmatpush1.msra.mxu0 %v3063
        %3185 = vmatprep.subr.mxu0 0.0
        %3186 = vmatpush1.msra.mxu0 %v3066
        %3187 = vmatprep.subr.mxu0 0.0
        %3188 = vmatpush1.msra.mxu0 %v3069
        %3189 = vmatprep.subr.mxu0 0.0
        %3190 = vmatpush1.msra.mxu0 0.0
        %3191 = vmatprep.subr.mxu0 0.0
        %3192 = vmatpush1.msra.mxu0 0.0
        %3193 = vmatprep.subr.mxu0 0.0
        %3194 = vmatpush1.msra.mxu0 0.0
        %3195 = vmatprep.subr.mxu0 0.0
        %3196 = vmatpush1.msra.mxu0 0.0
        %3197 = vmatprep.subr.mxu0 0.0
        %3198 = vmatpush1.msra.mxu0 0.0
        %3199 = vmatprep.subr.mxu0 0.0
        %3200 = vmatpush1.msra.mxu0 0.0
        %3201 = vmatprep.subr.mxu0 0.0
        %3202 = vmatpush1.msra.mxu0 0.0
        %3203 = vmatprep.subr.mxu0 0.0
        %3204 = vmatpush1.msra.mxu0 0.0
        %3205 = vmatprep.subr.mxu0 0.0
        %3206 = vmatpush1.msra.mxu0 0.0
        %3207 = vmatprep.subr.mxu0 0.0
        %3208 = vmatpush1.msra.mxu0 0.0
        %3209 = vmatprep.subr.mxu0 0.0
        %3210 = vmatpush1.msra.mxu0 0.0
        %3211 = vmatprep.subr.mxu0 0.0
        %3212 = vmatpush1.msra.mxu0 0.0
        %3213 = vmatprep.subr.mxu0 0.0
        %3214 = vmatpush1.msra.mxu0 0.0
        %3215 = vmatprep.subr.mxu0 0.0
        %3216 = vmatpush1.msra.mxu0 0.0
        %3217 = vmatprep.subr.mxu0 0.0
        %3218 = vmatpush1.msra.mxu0 0.0
        %3219 = vmatprep.subr.mxu0 0.0
        %3220 = vmatpush1.msra.mxu0 0.0
        %3221 = vmatprep.mubr.f32.mxu0 0.0
        %3222 = vmatmul.mubr.f32.gmra.mrb[0].mxu0 %v2587
        %v3223 = vpop.f32.mrb[0].mxu0
        %v3224 = vadd.f32 %v3082, %v3223
        %v3225 = vpop.f32.mrb[0].mxu0
        %3226 = vdwg.mxu0
        %v3227 = vadd.f32 %v2948, %v3153
        %v3228 = vxor.u32 %v3227, 2147483648
        %v3229 = vmul.f32 %v3228, 1.442695
        %v3230 = vpow.pop %v3229
        %v3231 = vadd.f32 %v3230, 1.0
        %v3232 = vrcp.pop %v3231
        %v3233 = vmul.f32 1.0, %v3232
        %v3234 = vadd.f32 %v2950, %v3155
        %v3235 = vxor.u32 %v3234, 2147483648
        %v3236 = vmul.f32 %v3235, 1.442695
        %v3237 = vpow.pop %v3236
        %v3238 = vadd.f32 %v3237, 1.0
        %v3239 = vrcp.pop %v3238
        %v3240 = vmul.f32 1.0, %v3239
        %v3241 = vmul.f32 %v3233, %v3224
        %v3242 = vadd.f32 %v3019, %v3241
        %v3243 = vtanh.pop %v3242
        %v3244 = vsub.f32 1.0, %v3240
        %v3245 = vmul.f32 %v3244, %v3243
        %v3246 = vmul.f32 %v3240, %v2587
        %v3247 = vadd.f32 %v3245, %v3246
        %3248 = vst [vmem:[#allocation4] sm:$0xff] %v3247
        %s3249 = scalar_lea.vmem [#allocation3], 24
        %v3250 = vld [vmem:[%s3249] sm:$0xff]
        %v3251 = vld [vmem:[%s3249 + $0x8] sm:$0xff]
        %v3252 = vld [vmem:[%s3249 + $0x10] sm:$0xff]
        %v3253 = vld [vmem:[#allocation25] sm:$0xff]
        %v3254 = vld [vmem:[#allocation25 + $0x8] sm:$0xff]
        %v3255 = vld [vmem:[#allocation25 + $0x10] sm:$0xff]
        %v3256 = vld [vmem:[#allocation25 + $0x18] sm:$0xff]
        %v3257 = vld [vmem:[#allocation25 + $0x20] sm:$0xff]
        %v3258 = vld [vmem:[#allocation25 + $0x28] sm:$0xff]
        %v3259 = vld [vmem:[#allocation25 + $0x30] sm:$0xff]
        %v3260 = vld [vmem:[#allocation25 + $0x38] sm:$0xff]
        %v3261 = vld [vmem:[#allocation25 + $0x40] sm:$0xff]
        %v3262 = vld [vmem:[#allocation25 + $0x48] sm:$0xff]
        %v3263 = vld [vmem:[#allocation25 + $0x50] sm:$0xff]
        %v3264 = vld [vmem:[#allocation25 + $0x58] sm:$0xff]
        %v3265 = vld [vmem:[#allocation25 + $0x60] sm:$0xff]
        %v3266 = vld [vmem:[#allocation25 + $0x68] sm:$0xff]
        %v3267 = vld [vmem:[#allocation25 + $0x70] sm:$0xff]
        %v3268 = vld [vmem:[#allocation25 + $0x78] sm:$0xff]
        %v3269 = vld [vmem:[#allocation25 + $0x80] sm:$0xff]
        %v3270 = vld [vmem:[#allocation25 + $0x88] sm:$0xff]
        %v3271 = vld [vmem:[#allocation25 + $0x90] sm:$0xff]
        %v3272 = vld [vmem:[#allocation25 + $0x98] sm:$0xff]
        %v3273 = vld [vmem:[#allocation25 + $0xa0] sm:$0xff]
        %v3274 = vld [vmem:[#allocation25 + $0xa8] sm:$0xff]
        %v3275 = vld [vmem:[#allocation25 + $0xb0] sm:$0xff]
        %v3276 = vld [vmem:[#allocation25 + $0xb8] sm:$0xff]
        %v3277 = vld [vmem:[#allocation25 + $0xc0] sm:$0xff]
        %v3278 = vld [vmem:[#allocation25 + $0xc8] sm:$0xff]
        %v3279 = vld [vmem:[#allocation25 + $0xd0] sm:$0xff]
        %v3280 = vld [vmem:[#allocation25 + $0xd8] sm:$0xff]
        %v3281 = vld [vmem:[#allocation25 + $0xe0] sm:$0xff]
        %v3282 = vld [vmem:[#allocation25 + $0xe8] sm:$0xff]
        %v3283 = vld [vmem:[#allocation25 + $0xf0] sm:$0xff]
        %v3284 = vld [vmem:[#allocation25 + $0xf8] sm:$0xff]
        %v3285 = vld [vmem:[#allocation25 + $0x100] sm:$0xff]
        %v3286 = vld [vmem:[#allocation25 + $0x108] sm:$0xff]
        %v3287 = vld [vmem:[#allocation25 + $0x110] sm:$0xff]
        %v3288 = vld [vmem:[#allocation25 + $0x118] sm:$0xff]
        %v3289 = vld [vmem:[#allocation25 + $0x120] sm:$0xff]
        %v3290 = vld [vmem:[#allocation25 + $0x128] sm:$0xff]
        %v3291 = vld [vmem:[#allocation25 + $0x130] sm:$0xff]
        %v3292 = vld [vmem:[#allocation25 + $0x138] sm:$0xff]
        %v3293 = vld [vmem:[#allocation25 + $0x140] sm:$0xff]
        %v3294 = vld [vmem:[#allocation25 + $0x148] sm:$0xff]
        %v3295 = vld [vmem:[#allocation25 + $0x150] sm:$0xff]
        %v3296 = vld [vmem:[#allocation25 + $0x158] sm:$0xff]
        %v3297 = vld [vmem:[#allocation25 + $0x160] sm:$0xff]
        %v3298 = vld [vmem:[#allocation25 + $0x168] sm:$0xff]
        %v3299 = vld [vmem:[#allocation25 + $0x170] sm:$0xff]
        %v3300 = vld [vmem:[#allocation25 + $0x178] sm:$0xff]
        %3301 = vmatprep.subr.mxu0 %v3254
        %3302 = vmatpush1.msra.mxu0 %v3253
        %3303 = vmatprep.subr.mxu0 %v3257
        %3304 = vmatpush1.msra.mxu0 %v3256
        %3305 = vmatprep.subr.mxu0 %v3260
        %3306 = vmatpush1.msra.mxu0 %v3259
        %3307 = vmatprep.subr.mxu0 %v3263
        %3308 = vmatpush1.msra.mxu0 %v3262
        %3309 = vmatprep.subr.mxu0 %v3266
        %3310 = vmatpush1.msra.mxu0 %v3265
        %3311 = vmatprep.subr.mxu0 %v3269
        %3312 = vmatpush1.msra.mxu0 %v3268
        %3313 = vmatprep.subr.mxu0 %v3272
        %3314 = vmatpush1.msra.mxu0 %v3271
        %3315 = vmatprep.subr.mxu0 %v3275
        %3316 = vmatpush1.msra.mxu0 %v3274
        %3317 = vmatprep.subr.mxu0 %v3278
        %3318 = vmatpush1.msra.mxu0 %v3277
        %3319 = vmatprep.subr.mxu0 %v3281
        %3320 = vmatpush1.msra.mxu0 %v3280
        %3321 = vmatprep.subr.mxu0 %v3284
        %3322 = vmatpush1.msra.mxu0 %v3283
        %3323 = vmatprep.subr.mxu0 %v3287
        %3324 = vmatpush1.msra.mxu0 %v3286
        %3325 = vmatprep.subr.mxu0 %v3290
        %3326 = vmatpush1.msra.mxu0 %v3289
        %3327 = vmatprep.subr.mxu0 %v3293
        %3328 = vmatpush1.msra.mxu0 %v3292
        %3329 = vmatprep.subr.mxu0 %v3296
        %3330 = vmatpush1.msra.mxu0 %v3295
        %3331 = vmatprep.subr.mxu0 %v3299
        %3332 = vmatpush1.msra.mxu0 %v3298
        %3333 = vmatprep.subr.mxu0 0.0
        %3334 = vmatpush1.msra.mxu0 0.0
        %3335 = vmatprep.subr.mxu0 0.0
        %3336 = vmatpush1.msra.mxu0 0.0
        %3337 = vmatprep.subr.mxu0 0.0
        %3338 = vmatpush1.msra.mxu0 0.0
        %3339 = vmatprep.subr.mxu0 0.0
        %3340 = vmatpush1.msra.mxu0 0.0
        %3341 = vmatprep.subr.mxu0 0.0
        %3342 = vmatpush1.msra.mxu0 0.0
        %3343 = vmatprep.subr.mxu0 0.0
        %3344 = vmatpush1.msra.mxu0 0.0
        %3345 = vmatprep.subr.mxu0 0.0
        %3346 = vmatpush1.msra.mxu0 0.0
        %3347 = vmatprep.subr.mxu0 0.0
        %3348 = vmatpush1.msra.mxu0 0.0
        %3349 = vmatprep.subr.mxu0 0.0
        %3350 = vmatpush1.msra.mxu0 0.0
        %3351 = vmatprep.subr.mxu0 0.0
        %3352 = vmatpush1.msra.mxu0 0.0
        %3353 = vmatprep.subr.mxu0 0.0
        %3354 = vmatpush1.msra.mxu0 0.0
        %3355 = vmatprep.subr.mxu0 0.0
        %3356 = vmatpush1.msra.mxu0 0.0
        %3357 = vmatprep.subr.mxu0 0.0
        %3358 = vmatpush1.msra.mxu0 0.0
        %3359 = vmatprep.subr.mxu0 0.0
        %3360 = vmatpush1.msra.mxu0 0.0
        %3361 = vmatprep.subr.mxu0 0.0
        %3362 = vmatpush1.msra.mxu0 0.0
        %3363 = vmatprep.subr.mxu0 0.0
        %3364 = vmatpush1.msra.mxu0 0.0
        %3365 = vmatprep.mubr.f32.mxu0 0.0
        %3366 = vmatmul.mubr.f32.gmra.mrb[0].mxu0 %v2816
        %v3367 = vpop.f32.mrb[0].mxu0
        %v3368 = vadd.f32 %v2643, %v3367
        %v3369 = vpop.f32.mrb[0].mxu0
        %v3370 = vadd.f32 %v2647, %v3369
        %3371 = vdwg.mxu0
        %3372 = vmatprep.subr.mxu0 0.0
        %3373 = vmatpush1.msra.mxu0 %v3255
        %3374 = vmatprep.subr.mxu0 0.0
        %3375 = vmatpush1.msra.mxu0 %v3258
        %3376 = vmatprep.subr.mxu0 0.0
        %3377 = vmatpush1.msra.mxu0 %v3261
        %3378 = vmatprep.subr.mxu0 0.0
        %3379 = vmatpush1.msra.mxu0 %v3264
        %3380 = vmatprep.subr.mxu0 0.0
        %3381 = vmatpush1.msra.mxu0 %v3267
        %3382 = vmatprep.subr.mxu0 0.0
        %3383 = vmatpush1.msra.mxu0 %v3270
        %3384 = vmatprep.subr.mxu0 0.0
        %3385 = vmatpush1.msra.mxu0 %v3273
        %3386 = vmatprep.subr.mxu0 0.0
        %3387 = vmatpush1.msra.mxu0 %v3276
        %3388 = vmatprep.subr.mxu0 0.0
        %3389 = vmatpush1.msra.mxu0 %v3279
        %3390 = vmatprep.subr.mxu0 0.0
        %3391 = vmatpush1.msra.mxu0 %v3282
        %3392 = vmatprep.subr.mxu0 0.0
        %3393 = vmatpush1.msra.mxu0 %v3285
        %3394 = vmatprep.subr.mxu0 0.0
        %3395 = vmatpush1.msra.mxu0 %v3288
        %3396 = vmatprep.subr.mxu0 0.0
        %3397 = vmatpush1.msra.mxu0 %v3291
        %3398 = vmatprep.subr.mxu0 0.0
        %3399 = vmatpush1.msra.mxu0 %v3294
        %3400 = vmatprep.subr.mxu0 0.0
        %3401 = vmatpush1.msra.mxu0 %v3297
        %3402 = vmatprep.subr.mxu0 0.0
        %3403 = vmatpush1.msra.mxu0 %v3300
        %3404 = vmatprep.subr.mxu0 0.0
        %3405 = vmatpush1.msra.mxu0 0.0
        %3406 = vmatprep.subr.mxu0 0.0
        %3407 = vmatpush1.msra.mxu0 0.0
        %3408 = vmatprep.subr.mxu0 0.0
        %3409 = vmatpush1.msra.mxu0 0.0
        %3410 = vmatprep.subr.mxu0 0.0
        %3411 = vmatpush1.msra.mxu0 0.0
        %3412 = vmatprep.subr.mxu0 0.0
        %3413 = vmatpush1.msra.mxu0 0.0
        %3414 = vmatprep.subr.mxu0 0.0
        %3415 = vmatpush1.msra.mxu0 0.0
        %3416 = vmatprep.subr.mxu0 0.0
        %3417 = vmatpush1.msra.mxu0 0.0
        %3418 = vmatprep.subr.mxu0 0.0
        %3419 = vmatpush1.msra.mxu0 0.0
        %3420 = vmatprep.subr.mxu0 0.0
        %3421 = vmatpush1.msra.mxu0 0.0
        %3422 = vmatprep.subr.mxu0 0.0
        %3423 = vmatpush1.msra.mxu0 0.0
        %3424 = vmatprep.subr.mxu0 0.0
        %3425 = vmatpush1.msra.mxu0 0.0
        %3426 = vmatprep.subr.mxu0 0.0
        %3427 = vmatpush1.msra.mxu0 0.0
        %3428 = vmatprep.subr.mxu0 0.0
        %3429 = vmatpush1.msra.mxu0 0.0
        %3430 = vmatprep.subr.mxu0 0.0
        %3431 = vmatpush1.msra.mxu0 0.0
        %3432 = vmatprep.subr.mxu0 0.0
        %3433 = vmatpush1.msra.mxu0 0.0
        %3434 = vmatprep.subr.mxu0 0.0
        %3435 = vmatpush1.msra.mxu0 0.0
        %3436 = vmatprep.mubr.f32.mxu0 0.0
        %3437 = vmatmul.mubr.f32.gmra.mrb[0].mxu0 %v2816
        %v3438 = vpop.f32.mrb[0].mxu0
        %v3439 = vadd.f32 %v2651, %v3438
        %v3440 = vpop.f32.mrb[0].mxu0
        %3441 = vdwg.mxu0
        %v3442 = vadd.f32 %v3250, %v3368
        %v3443 = vxor.u32 %v3442, 2147483648
        %v3444 = vmul.f32 %v3443, 1.442695
        %v3445 = vpow.pop %v3444
        %v3446 = vadd.f32 %v3445, 1.0
        %v3447 = vrcp.pop %v3446
        %v3448 = vmul.f32 1.0, %v3447
        %v3449 = vadd.f32 %v3251, %v3370
        %v3450 = vxor.u32 %v3449, 2147483648
        %v3451 = vmul.f32 %v3450, 1.442695
        %v3452 = vpow.pop %v3451
        %v3453 = vadd.f32 %v3452, 1.0
        %v3454 = vrcp.pop %v3453
        %v3455 = vmul.f32 1.0, %v3454
        %v3456 = vmul.f32 %v3448, %v3439
        %v3457 = vadd.f32 %v3252, %v3456
        %v3458 = vtanh.pop %v3457
        %v3459 = vsub.f32 1.0, %v3455
        %v3460 = vmul.f32 %v3459, %v3458
        %v3461 = vmul.f32 %v3455, %v2816
        %v3462 = vadd.f32 %v3460, %v3461
        %v3463 = vld [vmem:[#allocation26] sm:$0xff]
        %v3464 = vld [vmem:[#allocation26 + $0x8] sm:$0xff]
        %v3465 = vld [vmem:[#allocation26 + $0x10] sm:$0xff]
        %v3466 = vld [vmem:[#allocation26 + $0x18] sm:$0xff]
        %v3467 = vld [vmem:[#allocation26 + $0x20] sm:$0xff]
        %v3468 = vld [vmem:[#allocation26 + $0x28] sm:$0xff]
        %v3469 = vld [vmem:[#allocation26 + $0x30] sm:$0xff]
        %v3470 = vld [vmem:[#allocation26 + $0x38] sm:$0xff]
        %v3471 = vld [vmem:[#allocation26 + $0x40] sm:$0xff]
        %v3472 = vld [vmem:[#allocation26 + $0x48] sm:$0xff]
        %v3473 = vld [vmem:[#allocation26 + $0x50] sm:$0xff]
        %v3474 = vld [vmem:[#allocation26 + $0x58] sm:$0xff]
        %v3475 = vld [vmem:[#allocation26 + $0x60] sm:$0xff]
        %v3476 = vld [vmem:[#allocation26 + $0x68] sm:$0xff]
        %v3477 = vld [vmem:[#allocation26 + $0x70] sm:$0xff]
        %v3478 = vld [vmem:[#allocation26 + $0x78] sm:$0xff]
        %v3479 = vld [vmem:[#allocation26 + $0x80] sm:$0xff]
        %v3480 = vld [vmem:[#allocation26 + $0x88] sm:$0xff]
        %v3481 = vld [vmem:[#allocation26 + $0x90] sm:$0xff]
        %v3482 = vld [vmem:[#allocation26 + $0x98] sm:$0xff]
        %v3483 = vld [vmem:[#allocation26 + $0xa0] sm:$0xff]
        %v3484 = vld [vmem:[#allocation26 + $0xa8] sm:$0xff]
        %v3485 = vld [vmem:[#allocation26 + $0xb0] sm:$0xff]
        %v3486 = vld [vmem:[#allocation26 + $0xb8] sm:$0xff]
        %v3487 = vld [vmem:[#allocation26 + $0xc0] sm:$0xff]
        %v3488 = vld [vmem:[#allocation26 + $0xc8] sm:$0xff]
        %v3489 = vld [vmem:[#allocation26 + $0xd0] sm:$0xff]
        %v3490 = vld [vmem:[#allocation26 + $0xd8] sm:$0xff]
        %v3491 = vld [vmem:[#allocation26 + $0xe0] sm:$0xff]
        %v3492 = vld [vmem:[#allocation26 + $0xe8] sm:$0xff]
        %v3493 = vld [vmem:[#allocation26 + $0xf0] sm:$0xff]
        %v3494 = vld [vmem:[#allocation26 + $0xf8] sm:$0xff]
        %v3495 = vld [vmem:[#allocation26 + $0x100] sm:$0xff]
        %v3496 = vld [vmem:[#allocation26 + $0x108] sm:$0xff]
        %v3497 = vld [vmem:[#allocation26 + $0x110] sm:$0xff]
        %v3498 = vld [vmem:[#allocation26 + $0x118] sm:$0xff]
        %v3499 = vld [vmem:[#allocation26 + $0x120] sm:$0xff]
        %v3500 = vld [vmem:[#allocation26 + $0x128] sm:$0xff]
        %v3501 = vld [vmem:[#allocation26 + $0x130] sm:$0xff]
        %v3502 = vld [vmem:[#allocation26 + $0x138] sm:$0xff]
        %v3503 = vld [vmem:[#allocation26 + $0x140] sm:$0xff]
        %v3504 = vld [vmem:[#allocation26 + $0x148] sm:$0xff]
        %v3505 = vld [vmem:[#allocation26 + $0x150] sm:$0xff]
        %v3506 = vld [vmem:[#allocation26 + $0x158] sm:$0xff]
        %v3507 = vld [vmem:[#allocation26 + $0x160] sm:$0xff]
        %v3508 = vld [vmem:[#allocation26 + $0x168] sm:$0xff]
        %v3509 = vld [vmem:[#allocation26 + $0x170] sm:$0xff]
        %v3510 = vld [vmem:[#allocation26 + $0x178] sm:$0xff]
        %3511 = vmatprep.subr.mxu0 %v3464
        %3512 = vmatpush1.msra.mxu0 %v3463
        %3513 = vmatprep.subr.mxu0 %v3467
        %3514 = vmatpush1.msra.mxu0 %v3466
        %3515 = vmatprep.subr.mxu0 %v3470
        %3516 = vmatpush1.msra.mxu0 %v3469
        %3517 = vmatprep.subr.mxu0 %v3473
        %3518 = vmatpush1.msra.mxu0 %v3472
        %3519 = vmatprep.subr.mxu0 %v3476
        %3520 = vmatpush1.msra.mxu0 %v3475
        %3521 = vmatprep.subr.mxu0 %v3479
        %3522 = vmatpush1.msra.mxu0 %v3478
        %3523 = vmatprep.subr.mxu0 %v3482
        %3524 = vmatpush1.msra.mxu0 %v3481
        %3525 = vmatprep.subr.mxu0 %v3485
        %3526 = vmatpush1.msra.mxu0 %v3484
        %3527 = vmatprep.subr.mxu0 %v3488
        %3528 = vmatpush1.msra.mxu0 %v3487
        %3529 = vmatprep.subr.mxu0 %v3491
        %3530 = vmatpush1.msra.mxu0 %v3490
        %3531 = vmatprep.subr.mxu0 %v3494
        %3532 = vmatpush1.msra.mxu0 %v3493
        %3533 = vmatprep.subr.mxu0 %v3497
        %3534 = vmatpush1.msra.mxu0 %v3496
        %3535 = vmatprep.subr.mxu0 %v3500
        %3536 = vmatpush1.msra.mxu0 %v3499
        %3537 = vmatprep.subr.mxu0 %v3503
        %3538 = vmatpush1.msra.mxu0 %v3502
        %3539 = vmatprep.subr.mxu0 %v3506
        %3540 = vmatpush1.msra.mxu0 %v3505
        %3541 = vmatprep.subr.mxu0 %v3509
        %3542 = vmatpush1.msra.mxu0 %v3508
        %3543 = vmatprep.subr.mxu0 0.0
        %3544 = vmatpush1.msra.mxu0 0.0
        %3545 = vmatprep.subr.mxu0 0.0
        %3546 = vmatpush1.msra.mxu0 0.0
        %3547 = vmatprep.subr.mxu0 0.0
        %3548 = vmatpush1.msra.mxu0 0.0
        %3549 = vmatprep.subr.mxu0 0.0
        %3550 = vmatpush1.msra.mxu0 0.0
        %3551 = vmatprep.subr.mxu0 0.0
        %3552 = vmatpush1.msra.mxu0 0.0
        %3553 = vmatprep.subr.mxu0 0.0
        %3554 = vmatpush1.msra.mxu0 0.0
        %3555 = vmatprep.subr.mxu0 0.0
        %3556 = vmatpush1.msra.mxu0 0.0
        %3557 = vmatprep.subr.mxu0 0.0
        %3558 = vmatpush1.msra.mxu0 0.0
        %3559 = vmatprep.subr.mxu0 0.0
        %3560 = vmatpush1.msra.mxu0 0.0
        %3561 = vmatprep.subr.mxu0 0.0
        %3562 = vmatpush1.msra.mxu0 0.0
        %3563 = vmatprep.subr.mxu0 0.0
        %3564 = vmatpush1.msra.mxu0 0.0
        %3565 = vmatprep.subr.mxu0 0.0
        %3566 = vmatpush1.msra.mxu0 0.0
        %3567 = vmatprep.subr.mxu0 0.0
        %3568 = vmatpush1.msra.mxu0 0.0
        %3569 = vmatprep.subr.mxu0 0.0
        %3570 = vmatpush1.msra.mxu0 0.0
        %3571 = vmatprep.subr.mxu0 0.0
        %3572 = vmatpush1.msra.mxu0 0.0
        %3573 = vmatprep.subr.mxu0 0.0
        %3574 = vmatpush1.msra.mxu0 0.0
        %3575 = vmatprep.mubr.f32.mxu0 0.0
        %3576 = vmatmul.mubr.f32.gmra.mrb[0].mxu0 %v3462
        %v3577 = vpop.f32.mrb[0].mxu0
        %v3578 = vadd.f32 %v2869, %v3577
        %v3579 = vpop.f32.mrb[0].mxu0
        %v3580 = vadd.f32 %v2873, %v3579
        %3581 = vdwg.mxu0
        %3582 = vmatprep.subr.mxu0 0.0
        %3583 = vmatpush1.msra.mxu0 %v3465
        %3584 = vmatprep.subr.mxu0 0.0
        %3585 = vmatpush1.msra.mxu0 %v3468
        %3586 = vmatprep.subr.mxu0 0.0
        %3587 = vmatpush1.msra.mxu0 %v3471
        %3588 = vmatprep.subr.mxu0 0.0
        %3589 = vmatpush1.msra.mxu0 %v3474
        %3590 = vmatprep.subr.mxu0 0.0
        %3591 = vmatpush1.msra.mxu0 %v3477
        %3592 = vmatprep.subr.mxu0 0.0
        %3593 = vmatpush1.msra.mxu0 %v3480
        %3594 = vmatprep.subr.mxu0 0.0
        %3595 = vmatpush1.msra.mxu0 %v3483
        %3596 = vmatprep.subr.mxu0 0.0
        %3597 = vmatpush1.msra.mxu0 %v3486
        %3598 = vmatprep.subr.mxu0 0.0
        %3599 = vmatpush1.msra.mxu0 %v3489
        %3600 = vmatprep.subr.mxu0 0.0
        %3601 = vmatpush1.msra.mxu0 %v3492
        %3602 = vmatprep.subr.mxu0 0.0
        %3603 = vmatpush1.msra.mxu0 %v3495
        %3604 = vmatprep.subr.mxu0 0.0
        %3605 = vmatpush1.msra.mxu0 %v3498
        %3606 = vmatprep.subr.mxu0 0.0
        %3607 = vmatpush1.msra.mxu0 %v3501
        %3608 = vmatprep.subr.mxu0 0.0
        %3609 = vmatpush1.msra.mxu0 %v3504
        %3610 = vmatprep.subr.mxu0 0.0
        %3611 = vmatpush1.msra.mxu0 %v3507
        %3612 = vmatprep.subr.mxu0 0.0
        %3613 = vmatpush1.msra.mxu0 %v3510
        %3614 = vmatprep.subr.mxu0 0.0
        %3615 = vmatpush1.msra.mxu0 0.0
        %3616 = vmatprep.subr.mxu0 0.0
        %3617 = vmatpush1.msra.mxu0 0.0
        %3618 = vmatprep.subr.mxu0 0.0
        %3619 = vmatpush1.msra.mxu0 0.0
        %3620 = vmatprep.subr.mxu0 0.0
        %3621 = vmatpush1.msra.mxu0 0.0
        %3622 = vmatprep.subr.mxu0 0.0
        %3623 = vmatpush1.msra.mxu0 0.0
        %3624 = vmatprep.subr.mxu0 0.0
        %3625 = vmatpush1.msra.mxu0 0.0
        %3626 = vmatprep.subr.mxu0 0.0
        %3627 = vmatpush1.msra.mxu0 0.0
        %3628 = vmatprep.subr.mxu0 0.0
        %3629 = vmatpush1.msra.mxu0 0.0
        %3630 = vmatprep.subr.mxu0 0.0
        %3631 = vmatpush1.msra.mxu0 0.0
        %3632 = vmatprep.subr.mxu0 0.0
        %3633 = vmatpush1.msra.mxu0 0.0
        %3634 = vmatprep.subr.mxu0 0.0
        %3635 = vmatpush1.msra.mxu0 0.0
        %3636 = vmatprep.subr.mxu0 0.0
        %3637 = vmatpush1.msra.mxu0 0.0
        %3638 = vmatprep.subr.mxu0 0.0
        %3639 = vmatpush1.msra.mxu0 0.0
        %3640 = vmatprep.subr.mxu0 0.0
        %3641 = vmatpush1.msra.mxu0 0.0
        %3642 = vmatprep.subr.mxu0 0.0
        %3643 = vmatpush1.msra.mxu0 0.0
        %3644 = vmatprep.subr.mxu0 0.0
        %3645 = vmatpush1.msra.mxu0 0.0
        %3646 = vmatprep.mubr.f32.mxu0 0.0
        %3647 = vmatmul.mubr.f32.gmra.mrb[0].mxu0 %v3462
        %v3648 = vpop.f32.mrb[0].mxu0
        %v3649 = vadd.f32 %v2877, %v3648
        %v3650 = vpop.f32.mrb[0].mxu0
        %3651 = vdwg.mxu0
        %v3652 = vld [vmem:[#allocation28] sm:$0xff]
        %v3653 = vld [vmem:[#allocation28 + $0x8] sm:$0xff]
        %v3654 = vld [vmem:[#allocation28 + $0x10] sm:$0xff]
        %v3655 = vld [vmem:[#allocation28 + $0x18] sm:$0xff]
        %v3656 = vld [vmem:[#allocation28 + $0x20] sm:$0xff]
        %v3657 = vld [vmem:[#allocation28 + $0x28] sm:$0xff]
        %v3658 = vld [vmem:[#allocation28 + $0x30] sm:$0xff]
        %v3659 = vld [vmem:[#allocation28 + $0x38] sm:$0xff]
        %v3660 = vld [vmem:[#allocation28 + $0x40] sm:$0xff]
        %v3661 = vld [vmem:[#allocation28 + $0x48] sm:$0xff]
        %v3662 = vld [vmem:[#allocation28 + $0x50] sm:$0xff]
        %v3663 = vld [vmem:[#allocation28 + $0x58] sm:$0xff]
        %v3664 = vld [vmem:[#allocation28 + $0x60] sm:$0xff]
        %v3665 = vld [vmem:[#allocation28 + $0x68] sm:$0xff]
        %v3666 = vld [vmem:[#allocation28 + $0x70] sm:$0xff]
        %v3667 = vld [vmem:[#allocation28 + $0x78] sm:$0xff]
        %v3668 = vld [vmem:[#allocation28 + $0x80] sm:$0xff]
        %v3669 = vld [vmem:[#allocation28 + $0x88] sm:$0xff]
        %v3670 = vld [vmem:[#allocation28 + $0x90] sm:$0xff]
        %v3671 = vld [vmem:[#allocation28 + $0x98] sm:$0xff]
        %v3672 = vld [vmem:[#allocation28 + $0xa0] sm:$0xff]
        %v3673 = vld [vmem:[#allocation28 + $0xa8] sm:$0xff]
        %v3674 = vld [vmem:[#allocation28 + $0xb0] sm:$0xff]
        %v3675 = vld [vmem:[#allocation28 + $0xb8] sm:$0xff]
        %v3676 = vld [vmem:[#allocation28 + $0xc0] sm:$0xff]
        %v3677 = vld [vmem:[#allocation28 + $0xc8] sm:$0xff]
        %v3678 = vld [vmem:[#allocation28 + $0xd0] sm:$0xff]
        %v3679 = vld [vmem:[#allocation28 + $0xd8] sm:$0xff]
        %v3680 = vld [vmem:[#allocation28 + $0xe0] sm:$0xff]
        %v3681 = vld [vmem:[#allocation28 + $0xe8] sm:$0xff]
        %v3682 = vld [vmem:[#allocation28 + $0xf0] sm:$0xff]
        %v3683 = vld [vmem:[#allocation28 + $0xf8] sm:$0xff]
        %v3684 = vld [vmem:[#allocation28 + $0x100] sm:$0xff]
        %v3685 = vld [vmem:[#allocation28 + $0x108] sm:$0xff]
        %v3686 = vld [vmem:[#allocation28 + $0x110] sm:$0xff]
        %v3687 = vld [vmem:[#allocation28 + $0x118] sm:$0xff]
        %v3688 = vld [vmem:[#allocation28 + $0x120] sm:$0xff]
        %v3689 = vld [vmem:[#allocation28 + $0x128] sm:$0xff]
        %v3690 = vld [vmem:[#allocation28 + $0x130] sm:$0xff]
        %v3691 = vld [vmem:[#allocation28 + $0x138] sm:$0xff]
        %v3692 = vld [vmem:[#allocation28 + $0x140] sm:$0xff]
        %v3693 = vld [vmem:[#allocation28 + $0x148] sm:$0xff]
        %v3694 = vld [vmem:[#allocation28 + $0x150] sm:$0xff]
        %v3695 = vld [vmem:[#allocation28 + $0x158] sm:$0xff]
        %v3696 = vld [vmem:[#allocation28 + $0x160] sm:$0xff]
        %v3697 = vld [vmem:[#allocation28 + $0x168] sm:$0xff]
        %v3698 = vld [vmem:[#allocation28 + $0x170] sm:$0xff]
        %v3699 = vld [vmem:[#allocation28 + $0x178] sm:$0xff]
        %3700 = vmatprep.subr.mxu0 %v3653
        %3701 = vmatpush1.msra.mxu0 %v3652
        %3702 = vmatprep.subr.mxu0 %v3656
        %3703 = vmatpush1.msra.mxu0 %v3655
        %3704 = vmatprep.subr.mxu0 %v3659
        %3705 = vmatpush1.msra.mxu0 %v3658
        %3706 = vmatprep.subr.mxu0 %v3662
        %3707 = vmatpush1.msra.mxu0 %v3661
        %3708 = vmatprep.subr.mxu0 %v3665
        %3709 = vmatpush1.msra.mxu0 %v3664
        %3710 = vmatprep.subr.mxu0 %v3668
        %3711 = vmatpush1.msra.mxu0 %v3667
        %3712 = vmatprep.subr.mxu0 %v3671
        %3713 = vmatpush1.msra.mxu0 %v3670
        %3714 = vmatprep.subr.mxu0 %v3674
        %3715 = vmatpush1.msra.mxu0 %v3673
        %3716 = vmatprep.subr.mxu0 %v3677
        %3717 = vmatpush1.msra.mxu0 %v3676
        %3718 = vmatprep.subr.mxu0 %v3680
        %3719 = vmatpush1.msra.mxu0 %v3679
        %3720 = vmatprep.subr.mxu0 %v3683
        %3721 = vmatpush1.msra.mxu0 %v3682
        %3722 = vmatprep.subr.mxu0 %v3686
        %3723 = vmatpush1.msra.mxu0 %v3685
        %3724 = vmatprep.subr.mxu0 %v3689
        %3725 = vmatpush1.msra.mxu0 %v3688
        %3726 = vmatprep.subr.mxu0 %v3692
        %3727 = vmatpush1.msra.mxu0 %v3691
        %3728 = vmatprep.subr.mxu0 %v3695
        %3729 = vmatpush1.msra.mxu0 %v3694
        %3730 = vmatprep.subr.mxu0 %v3698
        %3731 = vmatpush1.msra.mxu0 %v3697
        %3732 = vmatprep.subr.mxu0 0.0
        %3733 = vmatpush1.msra.mxu0 0.0
        %3734 = vmatprep.subr.mxu0 0.0
        %3735 = vmatpush1.msra.mxu0 0.0
        %3736 = vmatprep.subr.mxu0 0.0
        %3737 = vmatpush1.msra.mxu0 0.0
        %3738 = vmatprep.subr.mxu0 0.0
        %3739 = vmatpush1.msra.mxu0 0.0
        %3740 = vmatprep.subr.mxu0 0.0
        %3741 = vmatpush1.msra.mxu0 0.0
        %3742 = vmatprep.subr.mxu0 0.0
        %3743 = vmatpush1.msra.mxu0 0.0
        %3744 = vmatprep.subr.mxu0 0.0
        %3745 = vmatpush1.msra.mxu0 0.0
        %3746 = vmatprep.subr.mxu0 0.0
        %3747 = vmatpush1.msra.mxu0 0.0
        %3748 = vmatprep.subr.mxu0 0.0
        %3749 = vmatpush1.msra.mxu0 0.0
        %3750 = vmatprep.subr.mxu0 0.0
        %3751 = vmatpush1.msra.mxu0 0.0
        %3752 = vmatprep.subr.mxu0 0.0
        %3753 = vmatpush1.msra.mxu0 0.0
        %3754 = vmatprep.subr.mxu0 0.0
        %3755 = vmatpush1.msra.mxu0 0.0
        %3756 = vmatprep.subr.mxu0 0.0
        %3757 = vmatpush1.msra.mxu0 0.0
        %3758 = vmatprep.subr.mxu0 0.0
        %3759 = vmatpush1.msra.mxu0 0.0
        %3760 = vmatprep.subr.mxu0 0.0
        %3761 = vmatpush1.msra.mxu0 0.0
        %3762 = vmatprep.subr.mxu0 0.0
        %3763 = vmatpush1.msra.mxu0 0.0
        %3764 = vmatprep.mubr.f32.mxu0 0.0
        %3765 = vmatmul.mubr.f32.gmra.mrb[0].mxu0 %v3247
        %v3766 = vpop.f32.mrb[0].mxu0
        %v3767 = vadd.f32 %v3074, %v3766
        %v3768 = vpop.f32.mrb[0].mxu0
        %v3769 = vadd.f32 %v3078, %v3768
        %3770 = vdwg.mxu0
        %3771 = vmatprep.subr.mxu0 0.0
        %3772 = vmatpush1.msra.mxu0 %v3654
        %3773 = vmatprep.subr.mxu0 0.0
        %3774 = vmatpush1.msra.mxu0 %v3657
        %3775 = vmatprep.subr.mxu0 0.0
        %3776 = vmatpush1.msra.mxu0 %v3660
        %3777 = vmatprep.subr.mxu0 0.0
        %3778 = vmatpush1.msra.mxu0 %v3663
        %3779 = vmatprep.subr.mxu0 0.0
        %3780 = vmatpush1.msra.mxu0 %v3666
        %3781 = vmatprep.subr.mxu0 0.0
        %3782 = vmatpush1.msra.mxu0 %v3669
        %3783 = vmatprep.subr.mxu0 0.0
        %3784 = vmatpush1.msra.mxu0 %v3672
        %3785 = vmatprep.subr.mxu0 0.0
        %3786 = vmatpush1.msra.mxu0 %v3675
        %3787 = vmatprep.subr.mxu0 0.0
        %3788 = vmatpush1.msra.mxu0 %v3678
        %3789 = vmatprep.subr.mxu0 0.0
        %3790 = vmatpush1.msra.mxu0 %v3681
        %3791 = vmatprep.subr.mxu0 0.0
        %3792 = vmatpush1.msra.mxu0 %v3684
        %3793 = vmatprep.subr.mxu0 0.0
        %3794 = vmatpush1.msra.mxu0 %v3687
        %3795 = vmatprep.subr.mxu0 0.0
        %3796 = vmatpush1.msra.mxu0 %v3690
        %3797 = vmatprep.subr.mxu0 0.0
        %3798 = vmatpush1.msra.mxu0 %v3693
        %3799 = vmatprep.subr.mxu0 0.0
        %3800 = vmatpush1.msra.mxu0 %v3696
        %3801 = vmatprep.subr.mxu0 0.0
        %3802 = vmatpush1.msra.mxu0 %v3699
        %3803 = vmatprep.subr.mxu0 0.0
        %3804 = vmatpush1.msra.mxu0 0.0
        %3805 = vmatprep.subr.mxu0 0.0
        %3806 = vmatpush1.msra.mxu0 0.0
        %3807 = vmatprep.subr.mxu0 0.0
        %3808 = vmatpush1.msra.mxu0 0.0
        %3809 = vmatprep.subr.mxu0 0.0
        %3810 = vmatpush1.msra.mxu0 0.0
        %3811 = vmatprep.subr.mxu0 0.0
        %3812 = vmatpush1.msra.mxu0 0.0
        %3813 = vmatprep.subr.mxu0 0.0
        %3814 = vmatpush1.msra.mxu0 0.0
        %3815 = vmatprep.subr.mxu0 0.0
        %3816 = vmatpush1.msra.mxu0 0.0
        %3817 = vmatprep.subr.mxu0 0.0
        %3818 = vmatpush1.msra.mxu0 0.0
        %3819 = vmatprep.subr.mxu0 0.0
        %3820 = vmatpush1.msra.mxu0 0.0
        %3821 = vmatprep.subr.mxu0 0.0
        %3822 = vmatpush1.msra.mxu0 0.0
        %3823 = vmatprep.subr.mxu0 0.0
        %3824 = vmatpush1.msra.mxu0 0.0
        %3825 = vmatprep.subr.mxu0 0.0
        %3826 = vmatpush1.msra.mxu0 0.0
        %3827 = vmatprep.subr.mxu0 0.0
        %3828 = vmatpush1.msra.mxu0 0.0
        %3829 = vmatprep.subr.mxu0 0.0
        %3830 = vmatpush1.msra.mxu0 0.0
        %3831 = vmatprep.subr.mxu0 0.0
        %3832 = vmatpush1.msra.mxu0 0.0
        %3833 = vmatprep.subr.mxu0 0.0
        %3834 = vmatpush1.msra.mxu0 0.0
        %3835 = vmatprep.mubr.f32.mxu0 0.0
        %3836 = vmatmul.mubr.f32.gmra.mrb[0].mxu0 %v3247
        %v3837 = vpop.f32.mrb[0].mxu0
        %v3838 = vadd.f32 %v3082, %v3837
        %v3839 = vpop.f32.mrb[0].mxu0
        %3840 = vdwg.mxu0
        %v3841 = vadd.f32 %v3578, %v3767
        %v3842 = vxor.u32 %v3841, 2147483648
        %v3843 = vmul.f32 %v3842, 1.442695
        %v3844 = vpow.pop %v3843
        %v3845 = vadd.f32 %v3844, 1.0
        %v3846 = vrcp.pop %v3845
        %v3847 = vmul.f32 1.0, %v3846
        %v3848 = vadd.f32 %v3580, %v3769
        %v3849 = vxor.u32 %v3848, 2147483648
        %v3850 = vmul.f32 %v3849, 1.442695
        %v3851 = vpow.pop %v3850
        %v3852 = vadd.f32 %v3851, 1.0
        %v3853 = vrcp.pop %v3852
        %v3854 = vmul.f32 1.0, %v3853
        %v3855 = vmul.f32 %v3847, %v3838
        %v3856 = vadd.f32 %v3649, %v3855
        %v3857 = vtanh.pop %v3856
        %v3858 = vsub.f32 1.0, %v3854
        %v3859 = vmul.f32 %v3858, %v3857
        %v3860 = vmul.f32 %v3854, %v3247
        %v3861 = vadd.f32 %v3859, %v3860
        %s3862 = scalar_lea.vmem [#allocation4], 8
        %3863 = vst [vmem:[%s3862] sm:$0xff] %v3861
        %s3864 = scalar_lea.vmem [#allocation3], 48
        %v3865 = vld [vmem:[%s3864] sm:$0xff]
        %v3866 = vld [vmem:[%s3864 + $0x8] sm:$0xff]
        %v3867 = vld [vmem:[%s3864 + $0x10] sm:$0xff]
        %v3868 = vld [vmem:[#allocation25] sm:$0xff]
        %v3869 = vld [vmem:[#allocation25 + $0x8] sm:$0xff]
        %v3870 = vld [vmem:[#allocation25 + $0x10] sm:$0xff]
        %v3871 = vld [vmem:[#allocation25 + $0x18] sm:$0xff]
        %v3872 = vld [vmem:[#allocation25 + $0x20] sm:$0xff]
        %v3873 = vld [vmem:[#allocation25 + $0x28] sm:$0xff]
        %v3874 = vld [vmem:[#allocation25 + $0x30] sm:$0xff]
        %v3875 = vld [vmem:[#allocation25 + $0x38] sm:$0xff]
        %v3876 = vld [vmem:[#allocation25 + $0x40] sm:$0xff]
        %v3877 = vld [vmem:[#allocation25 + $0x48] sm:$0xff]
        %v3878 = vld [vmem:[#allocation25 + $0x50] sm:$0xff]
        %v3879 = vld [vmem:[#allocation25 + $0x58] sm:$0xff]
        %v3880 = vld [vmem:[#allocation25 + $0x60] sm:$0xff]
        %v3881 = vld [vmem:[#allocation25 + $0x68] sm:$0xff]
        %v3882 = vld [vmem:[#allocation25 + $0x70] sm:$0xff]
        %v3883 = vld [vmem:[#allocation25 + $0x78] sm:$0xff]
        %v3884 = vld [vmem:[#allocation25 + $0x80] sm:$0xff]
        %v3885 = vld [vmem:[#allocation25 + $0x88] sm:$0xff]
        %v3886 = vld [vmem:[#allocation25 + $0x90] sm:$0xff]
        %v3887 = vld [vmem:[#allocation25 + $0x98] sm:$0xff]
        %v3888 = vld [vmem:[#allocation25 + $0xa0] sm:$0xff]
        %v3889 = vld [vmem:[#allocation25 + $0xa8] sm:$0xff]
        %v3890 = vld [vmem:[#allocation25 + $0xb0] sm:$0xff]
        %v3891 = vld [vmem:[#allocation25 + $0xb8] sm:$0xff]
        %v3892 = vld [vmem:[#allocation25 + $0xc0] sm:$0xff]
        %v3893 = vld [vmem:[#allocation25 + $0xc8] sm:$0xff]
        %v3894 = vld [vmem:[#allocation25 + $0xd0] sm:$0xff]
        %v3895 = vld [vmem:[#allocation25 + $0xd8] sm:$0xff]
        %v3896 = vld [vmem:[#allocation25 + $0xe0] sm:$0xff]
        %v3897 = vld [vmem:[#allocation25 + $0xe8] sm:$0xff]
        %v3898 = vld [vmem:[#allocation25 + $0xf0] sm:$0xff]
        %v3899 = vld [vmem:[#allocation25 + $0xf8] sm:$0xff]
        %v3900 = vld [vmem:[#allocation25 + $0x100] sm:$0xff]
        %v3901 = vld [vmem:[#allocation25 + $0x108] sm:$0xff]
        %v3902 = vld [vmem:[#allocation25 + $0x110] sm:$0xff]
        %v3903 = vld [vmem:[#allocation25 + $0x118] sm:$0xff]
        %v3904 = vld [vmem:[#allocation25 + $0x120] sm:$0xff]
        %v3905 = vld [vmem:[#allocation25 + $0x128] sm:$0xff]
        %v3906 = vld [vmem:[#allocation25 + $0x130] sm:$0xff]
        %v3907 = vld [vmem:[#allocation25 + $0x138] sm:$0xff]
        %v3908 = vld [vmem:[#allocation25 + $0x140] sm:$0xff]
        %v3909 = vld [vmem:[#allocation25 + $0x148] sm:$0xff]
        %v3910 = vld [vmem:[#allocation25 + $0x150] sm:$0xff]
        %v3911 = vld [vmem:[#allocation25 + $0x158] sm:$0xff]
        %v3912 = vld [vmem:[#allocation25 + $0x160] sm:$0xff]
        %v3913 = vld [vmem:[#allocation25 + $0x168] sm:$0xff]
        %v3914 = vld [vmem:[#allocation25 + $0x170] sm:$0xff]
        %v3915 = vld [vmem:[#allocation25 + $0x178] sm:$0xff]
        %3916 = vmatprep.subr.mxu0 %v3869
        %3917 = vmatpush1.msra.mxu0 %v3868
        %3918 = vmatprep.subr.mxu0 %v3872
        %3919 = vmatpush1.msra.mxu0 %v3871
        %3920 = vmatprep.subr.mxu0 %v3875
        %3921 = vmatpush1.msra.mxu0 %v3874
        %3922 = vmatprep.subr.mxu0 %v3878
        %3923 = vmatpush1.msra.mxu0 %v3877
        %3924 = vmatprep.subr.mxu0 %v3881
        %3925 = vmatpush1.msra.mxu0 %v3880
        %3926 = vmatprep.subr.mxu0 %v3884
        %3927 = vmatpush1.msra.mxu0 %v3883
        %3928 = vmatprep.subr.mxu0 %v3887
        %3929 = vmatpush1.msra.mxu0 %v3886
        %3930 = vmatprep.subr.mxu0 %v3890
        %3931 = vmatpush1.msra.mxu0 %v3889
        %3932 = vmatprep.subr.mxu0 %v3893
        %3933 = vmatpush1.msra.mxu0 %v3892
        %3934 = vmatprep.subr.mxu0 %v3896
        %3935 = vmatpush1.msra.mxu0 %v3895
        %3936 = vmatprep.subr.mxu0 %v3899
        %3937 = vmatpush1.msra.mxu0 %v3898
        %3938 = vmatprep.subr.mxu0 %v3902
        %3939 = vmatpush1.msra.mxu0 %v3901
        %3940 = vmatprep.subr.mxu0 %v3905
        %3941 = vmatpush1.msra.mxu0 %v3904
        %3942 = vmatprep.subr.mxu0 %v3908
        %3943 = vmatpush1.msra.mxu0 %v3907
        %3944 = vmatprep.subr.mxu0 %v3911
        %3945 = vmatpush1.msra.mxu0 %v3910
        %3946 = vmatprep.subr.mxu0 %v3914
        %3947 = vmatpush1.msra.mxu0 %v3913
        %3948 = vmatprep.subr.mxu0 0.0
        %3949 = vmatpush1.msra.mxu0 0.0
        %3950 = vmatprep.subr.mxu0 0.0
        %3951 = vmatpush1.msra.mxu0 0.0
        %3952 = vmatprep.subr.mxu0 0.0
        %3953 = vmatpush1.msra.mxu0 0.0
        %3954 = vmatprep.subr.mxu0 0.0
        %3955 = vmatpush1.msra.mxu0 0.0
        %3956 = vmatprep.subr.mxu0 0.0
        %3957 = vmatpush1.msra.mxu0 0.0
        %3958 = vmatprep.subr.mxu0 0.0
        %3959 = vmatpush1.msra.mxu0 0.0
        %3960 = vmatprep.subr.mxu0 0.0
        %3961 = vmatpush1.msra.mxu0 0.0
        %3962 = vmatprep.subr.mxu0 0.0
        %3963 = vmatpush1.msra.mxu0 0.0
        %3964 = vmatprep.subr.mxu0 0.0
        %3965 = vmatpush1.msra.mxu0 0.0
        %3966 = vmatprep.subr.mxu0 0.0
        %3967 = vmatpush1.msra.mxu0 0.0
        %3968 = vmatprep.subr.mxu0 0.0
        %3969 = vmatpush1.msra.mxu0 0.0
        %3970 = vmatprep.subr.mxu0 0.0
        %3971 = vmatpush1.msra.mxu0 0.0
        %3972 = vmatprep.subr.mxu0 0.0
        %3973 = vmatpush1.msra.mxu0 0.0
        %3974 = vmatprep.subr.mxu0 0.0
        %3975 = vmatpush1.msra.mxu0 0.0
        %3976 = vmatprep.subr.mxu0 0.0
        %3977 = vmatpush1.msra.mxu0 0.0
        %3978 = vmatprep.subr.mxu0 0.0
        %3979 = vmatpush1.msra.mxu0 0.0
        %3980 = vmatprep.mubr.f32.mxu0 0.0
        %3981 = vmatmul.mubr.f32.gmra.mrb[0].mxu0 %v3462
        %v3982 = vpop.f32.mrb[0].mxu0
        %v3983 = vadd.f32 %v2643, %v3982
        %v3984 = vpop.f32.mrb[0].mxu0
        %v3985 = vadd.f32 %v2647, %v3984
        %3986 = vdwg.mxu0
        %3987 = vmatprep.subr.mxu0 0.0
        %3988 = vmatpush1.msra.mxu0 %v3870
        %3989 = vmatprep.subr.mxu0 0.0
        %3990 = vmatpush1.msra.mxu0 %v3873
        %3991 = vmatprep.subr.mxu0 0.0
        %3992 = vmatpush1.msra.mxu0 %v3876
        %3993 = vmatprep.subr.mxu0 0.0
        %3994 = vmatpush1.msra.mxu0 %v3879
        %3995 = vmatprep.subr.mxu0 0.0
        %3996 = vmatpush1.msra.mxu0 %v3882
        %3997 = vmatprep.subr.mxu0 0.0
        %3998 = vmatpush1.msra.mxu0 %v3885
        %3999 = vmatprep.subr.mxu0 0.0
        %4000 = vmatpush1.msra.mxu0 %v3888
        %4001 = vmatprep.subr.mxu0 0.0
        %4002 = vmatpush1.msra.mxu0 %v3891
        %4003 = vmatprep.subr.mxu0 0.0
        %4004 = vmatpush1.msra.mxu0 %v3894
        %4005 = vmatprep.subr.mxu0 0.0
        %4006 = vmatpush1.msra.mxu0 %v3897
        %4007 = vmatprep.subr.mxu0 0.0
        %4008 = vmatpush1.msra.mxu0 %v3900
        %4009 = vmatprep.subr.mxu0 0.0
        %4010 = vmatpush1.msra.mxu0 %v3903
        %4011 = vmatprep.subr.mxu0 0.0
        %4012 = vmatpush1.msra.mxu0 %v3906
        %4013 = vmatprep.subr.mxu0 0.0
        %4014 = vmatpush1.msra.mxu0 %v3909
        %4015 = vmatprep.subr.mxu0 0.0
        %4016 = vmatpush1.msra.mxu0 %v3912
        %4017 = vmatprep.subr.mxu0 0.0
        %4018 = vmatpush1.msra.mxu0 %v3915
        %4019 = vmatprep.subr.mxu0 0.0
        %4020 = vmatpush1.msra.mxu0 0.0
        %4021 = vmatprep.subr.mxu0 0.0
        %4022 = vmatpush1.msra.mxu0 0.0
        %4023 = vmatprep.subr.mxu0 0.0
        %4024 = vmatpush1.msra.mxu0 0.0
        %4025 = vmatprep.subr.mxu0 0.0
        %4026 = vmatpush1.msra.mxu0 0.0
        %4027 = vmatprep.subr.mxu0 0.0
        %4028 = vmatpush1.msra.mxu0 0.0
        %4029 = vmatprep.subr.mxu0 0.0
        %4030 = vmatpush1.msra.mxu0 0.0
        %4031 = vmatprep.subr.mxu0 0.0
        %4032 = vmatpush1.msra.mxu0 0.0
        %4033 = vmatprep.subr.mxu0 0.0
        %4034 = vmatpush1.msra.mxu0 0.0
        %4035 = vmatprep.subr.mxu0 0.0
        %4036 = vmatpush1.msra.mxu0 0.0
        %4037 = vmatprep.subr.mxu0 0.0
        %4038 = vmatpush1.msra.mxu0 0.0
        %4039 = vmatprep.subr.mxu0 0.0
        %4040 = vmatpush1.msra.mxu0 0.0
        %4041 = vmatprep.subr.mxu0 0.0
        %4042 = vmatpush1.msra.mxu0 0.0
        %4043 = vmatprep.subr.mxu0 0.0
        %4044 = vmatpush1.msra.mxu0 0.0
        %4045 = vmatprep.subr.mxu0 0.0
        %4046 = vmatpush1.msra.mxu0 0.0
        %4047 = vmatprep.subr.mxu0 0.0
        %4048 = vmatpush1.msra.mxu0 0.0
        %4049 = vmatprep.subr.mxu0 0.0
        %4050 = vmatpush1.msra.mxu0 0.0
        %4051 = vmatprep.mubr.f32.mxu0 0.0
        %4052 = vmatmul.mubr.f32.gmra.mrb[0].mxu0 %v3462
        %v4053 = vpop.f32.mrb[0].mxu0
        %v4054 = vadd.f32 %v2651, %v4053
        %v4055 = vpop.f32.mrb[0].mxu0
        %4056 = vdwg.mxu0
        %v4057 = vadd.f32 %v3865, %v3983
        %v4058 = vxor.u32 %v4057, 2147483648
        %v4059 = vmul.f32 %v4058, 1.442695
        %v4060 = vpow.pop %v4059
        %v4061 = vadd.f32 %v4060, 1.0
        %v4062 = vrcp.pop %v4061
        %v4063 = vmul.f32 1.0, %v4062
        %v4064 = vadd.f32 %v3866, %v3985
        %v4065 = vxor.u32 %v4064, 2147483648
        %v4066 = vmul.f32 %v4065, 1.442695
        %v4067 = vpow.pop %v4066
        %v4068 = vadd.f32 %v4067, 1.0
        %v4069 = vrcp.pop %v4068
        %v4070 = vmul.f32 1.0, %v4069
        %v4071 = vmul.f32 %v4063, %v4054
        %v4072 = vadd.f32 %v3867, %v4071
        %v4073 = vtanh.pop %v4072
        %v4074 = vsub.f32 1.0, %v4070
        %v4075 = vmul.f32 %v4074, %v4073
        %v4076 = vmul.f32 %v4070, %v3462
        %v4077 = vadd.f32 %v4075, %v4076
        %v4078 = vld [vmem:[#allocation26] sm:$0xff]
        %v4079 = vld [vmem:[#allocation26 + $0x8] sm:$0xff]
        %v4080 = vld [vmem:[#allocation26 + $0x10] sm:$0xff]
        %v4081 = vld [vmem:[#allocation26 + $0x18] sm:$0xff]
        %v4082 = vld [vmem:[#allocation26 + $0x20] sm:$0xff]
        %v4083 = vld [vmem:[#allocation26 + $0x28] sm:$0xff]
        %v4084 = vld [vmem:[#allocation26 + $0x30] sm:$0xff]
        %v4085 = vld [vmem:[#allocation26 + $0x38] sm:$0xff]
        %v4086 = vld [vmem:[#allocation26 + $0x40] sm:$0xff]
        %v4087 = vld [vmem:[#allocation26 + $0x48] sm:$0xff]
        %v4088 = vld [vmem:[#allocation26 + $0x50] sm:$0xff]
        %v4089 = vld [vmem:[#allocation26 + $0x58] sm:$0xff]
        %v4090 = vld [vmem:[#allocation26 + $0x60] sm:$0xff]
        %v4091 = vld [vmem:[#allocation26 + $0x68] sm:$0xff]
        %v4092 = vld [vmem:[#allocation26 + $0x70] sm:$0xff]
        %v4093 = vld [vmem:[#allocation26 + $0x78] sm:$0xff]
        %v4094 = vld [vmem:[#allocation26 + $0x80] sm:$0xff]
        %v4095 = vld [vmem:[#allocation26 + $0x88] sm:$0xff]
        %v4096 = vld [vmem:[#allocation26 + $0x90] sm:$0xff]
        %v4097 = vld [vmem:[#allocation26 + $0x98] sm:$0xff]
        %v4098 = vld [vmem:[#allocation26 + $0xa0] sm:$0xff]
        %v4099 = vld [vmem:[#allocation26 + $0xa8] sm:$0xff]
        %v4100 = vld [vmem:[#allocation26 + $0xb0] sm:$0xff]
        %v4101 = vld [vmem:[#allocation26 + $0xb8] sm:$0xff]
        %v4102 = vld [vmem:[#allocation26 + $0xc0] sm:$0xff]
        %v4103 = vld [vmem:[#allocation26 + $0xc8] sm:$0xff]
        %v4104 = vld [vmem:[#allocation26 + $0xd0] sm:$0xff]
        %v4105 = vld [vmem:[#allocation26 + $0xd8] sm:$0xff]
        %v4106 = vld [vmem:[#allocation26 + $0xe0] sm:$0xff]
        %v4107 = vld [vmem:[#allocation26 + $0xe8] sm:$0xff]
        %v4108 = vld [vmem:[#allocation26 + $0xf0] sm:$0xff]
        %v4109 = vld [vmem:[#allocation26 + $0xf8] sm:$0xff]
        %v4110 = vld [vmem:[#allocation26 + $0x100] sm:$0xff]
        %v4111 = vld [vmem:[#allocation26 + $0x108] sm:$0xff]
        %v4112 = vld [vmem:[#allocation26 + $0x110] sm:$0xff]
        %v4113 = vld [vmem:[#allocation26 + $0x118] sm:$0xff]
        %v4114 = vld [vmem:[#allocation26 + $0x120] sm:$0xff]
        %v4115 = vld [vmem:[#allocation26 + $0x128] sm:$0xff]
        %v4116 = vld [vmem:[#allocation26 + $0x130] sm:$0xff]
        %v4117 = vld [vmem:[#allocation26 + $0x138] sm:$0xff]
        %v4118 = vld [vmem:[#allocation26 + $0x140] sm:$0xff]
        %v4119 = vld [vmem:[#allocation26 + $0x148] sm:$0xff]
        %v4120 = vld [vmem:[#allocation26 + $0x150] sm:$0xff]
        %v4121 = vld [vmem:[#allocation26 + $0x158] sm:$0xff]
        %v4122 = vld [vmem:[#allocation26 + $0x160] sm:$0xff]
        %v4123 = vld [vmem:[#allocation26 + $0x168] sm:$0xff]
        %v4124 = vld [vmem:[#allocation26 + $0x170] sm:$0xff]
        %v4125 = vld [vmem:[#allocation26 + $0x178] sm:$0xff]
        %4126 = vmatprep.subr.mxu0 %v4079
        %4127 = vmatpush1.msra.mxu0 %v4078
        %4128 = vmatprep.subr.mxu0 %v4082
        %4129 = vmatpush1.msra.mxu0 %v4081
        %4130 = vmatprep.subr.mxu0 %v4085
        %4131 = vmatpush1.msra.mxu0 %v4084
        %4132 = vmatprep.subr.mxu0 %v4088
        %4133 = vmatpush1.msra.mxu0 %v4087
        %4134 = vmatprep.subr.mxu0 %v4091
        %4135 = vmatpush1.msra.mxu0 %v4090
        %4136 = vmatprep.subr.mxu0 %v4094
        %4137 = vmatpush1.msra.mxu0 %v4093
        %4138 = vmatprep.subr.mxu0 %v4097
        %4139 = vmatpush1.msra.mxu0 %v4096
        %4140 = vmatprep.subr.mxu0 %v4100
        %4141 = vmatpush1.msra.mxu0 %v4099
        %4142 = vmatprep.subr.mxu0 %v4103
        %4143 = vmatpush1.msra.mxu0 %v4102
        %4144 = vmatprep.subr.mxu0 %v4106
        %4145 = vmatpush1.msra.mxu0 %v4105
        %4146 = vmatprep.subr.mxu0 %v4109
        %4147 = vmatpush1.msra.mxu0 %v4108
        %4148 = vmatprep.subr.mxu0 %v4112
        %4149 = vmatpush1.msra.mxu0 %v4111
        %4150 = vmatprep.subr.mxu0 %v4115
        %4151 = vmatpush1.msra.mxu0 %v4114
        %4152 = vmatprep.subr.mxu0 %v4118
        %4153 = vmatpush1.msra.mxu0 %v4117
        %4154 = vmatprep.subr.mxu0 %v4121
        %4155 = vmatpush1.msra.mxu0 %v4120
        %4156 = vmatprep.subr.mxu0 %v4124
        %4157 = vmatpush1.msra.mxu0 %v4123
        %4158 = vmatprep.subr.mxu0 0.0
        %4159 = vmatpush1.msra.mxu0 0.0
        %4160 = vmatprep.subr.mxu0 0.0
        %4161 = vmatpush1.msra.mxu0 0.0
        %4162 = vmatprep.subr.mxu0 0.0
        %4163 = vmatpush1.msra.mxu0 0.0
        %4164 = vmatprep.subr.mxu0 0.0
        %4165 = vmatpush1.msra.mxu0 0.0
        %4166 = vmatprep.subr.mxu0 0.0
        %4167 = vmatpush1.msra.mxu0 0.0
        %4168 = vmatprep.subr.mxu0 0.0
        %4169 = vmatpush1.msra.mxu0 0.0
        %4170 = vmatprep.subr.mxu0 0.0
        %4171 = vmatpush1.msra.mxu0 0.0
        %4172 = vmatprep.subr.mxu0 0.0
        %4173 = vmatpush1.msra.mxu0 0.0
        %4174 = vmatprep.subr.mxu0 0.0
        %4175 = vmatpush1.msra.mxu0 0.0
        %4176 = vmatprep.subr.mxu0 0.0
        %4177 = vmatpush1.msra.mxu0 0.0
        %4178 = vmatprep.subr.mxu0 0.0
        %4179 = vmatpush1.msra.mxu0 0.0
        %4180 = vmatprep.subr.mxu0 0.0
        %4181 = vmatpush1.msra.mxu0 0.0
        %4182 = vmatprep.subr.mxu0 0.0
        %4183 = vmatpush1.msra.mxu0 0.0
        %4184 = vmatprep.subr.mxu0 0.0
        %4185 = vmatpush1.msra.mxu0 0.0
        %4186 = vmatprep.subr.mxu0 0.0
        %4187 = vmatpush1.msra.mxu0 0.0
        %4188 = vmatprep.subr.mxu0 0.0
        %4189 = vmatpush1.msra.mxu0 0.0
        %4190 = vmatprep.mubr.f32.mxu0 0.0
        %4191 = vmatmul.mubr.f32.gmra.mrb[0].mxu0 %v4077
        %v4192 = vpop.f32.mrb[0].mxu0
        %v4193 = vadd.f32 %v2869, %v4192
        %v4194 = vpop.f32.mrb[0].mxu0
        %v4195 = vadd.f32 %v2873, %v4194
        %4196 = vdwg.mxu0
        %4197 = vmatprep.subr.mxu0 0.0
        %4198 = vmatpush1.msra.mxu0 %v4080
        %4199 = vmatprep.subr.mxu0 0.0
        %4200 = vmatpush1.msra.mxu0 %v4083
        %4201 = vmatprep.subr.mxu0 0.0
        %4202 = vmatpush1.msra.mxu0 %v4086
        %4203 = vmatprep.subr.mxu0 0.0
        %4204 = vmatpush1.msra.mxu0 %v4089
        %4205 = vmatprep.subr.mxu0 0.0
        %4206 = vmatpush1.msra.mxu0 %v4092
        %4207 = vmatprep.subr.mxu0 0.0
        %4208 = vmatpush1.msra.mxu0 %v4095
        %4209 = vmatprep.subr.mxu0 0.0
        %4210 = vmatpush1.msra.mxu0 %v4098
        %4211 = vmatprep.subr.mxu0 0.0
        %4212 = vmatpush1.msra.mxu0 %v4101
        %4213 = vmatprep.subr.mxu0 0.0
        %4214 = vmatpush1.msra.mxu0 %v4104
        %4215 = vmatprep.subr.mxu0 0.0
        %4216 = vmatpush1.msra.mxu0 %v4107
        %4217 = vmatprep.subr.mxu0 0.0
        %4218 = vmatpush1.msra.mxu0 %v4110
        %4219 = vmatprep.subr.mxu0 0.0
        %4220 = vmatpush1.msra.mxu0 %v4113
        %4221 = vmatprep.subr.mxu0 0.0
        %4222 = vmatpush1.msra.mxu0 %v4116
        %4223 = vmatprep.subr.mxu0 0.0
        %4224 = vmatpush1.msra.mxu0 %v4119
        %4225 = vmatprep.subr.mxu0 0.0
        %4226 = vmatpush1.msra.mxu0 %v4122
        %4227 = vmatprep.subr.mxu0 0.0
        %4228 = vmatpush1.msra.mxu0 %v4125
        %4229 = vmatprep.subr.mxu0 0.0
        %4230 = vmatpush1.msra.mxu0 0.0
        %4231 = vmatprep.subr.mxu0 0.0
        %4232 = vmatpush1.msra.mxu0 0.0
        %4233 = vmatprep.subr.mxu0 0.0
        %4234 = vmatpush1.msra.mxu0 0.0
        %4235 = vmatprep.subr.mxu0 0.0
        %4236 = vmatpush1.msra.mxu0 0.0
        %4237 = vmatprep.subr.mxu0 0.0
        %4238 = vmatpush1.msra.mxu0 0.0
        %4239 = vmatprep.subr.mxu0 0.0
        %4240 = vmatpush1.msra.mxu0 0.0
        %4241 = vmatprep.subr.mxu0 0.0
        %4242 = vmatpush1.msra.mxu0 0.0
        %4243 = vmatprep.subr.mxu0 0.0
        %4244 = vmatpush1.msra.mxu0 0.0
        %4245 = vmatprep.subr.mxu0 0.0
        %4246 = vmatpush1.msra.mxu0 0.0
        %4247 = vmatprep.subr.mxu0 0.0
        %4248 = vmatpush1.msra.mxu0 0.0
        %4249 = vmatprep.subr.mxu0 0.0
        %4250 = vmatpush1.msra.mxu0 0.0
        %4251 = vmatprep.subr.mxu0 0.0
        %4252 = vmatpush1.msra.mxu0 0.0
        %4253 = vmatprep.subr.mxu0 0.0
        %4254 = vmatpush1.msra.mxu0 0.0
        %4255 = vmatprep.subr.mxu0 0.0
        %4256 = vmatpush1.msra.mxu0 0.0
        %4257 = vmatprep.subr.mxu0 0.0
        %4258 = vmatpush1.msra.mxu0 0.0
        %4259 = vmatprep.subr.mxu0 0.0
        %4260 = vmatpush1.msra.mxu0 0.0
        %4261 = vmatprep.mubr.f32.mxu0 0.0
        %4262 = vmatmul.mubr.f32.gmra.mrb[0].mxu0 %v4077
        %v4263 = vpop.f32.mrb[0].mxu0
        %v4264 = vadd.f32 %v2877, %v4263
        %v4265 = vpop.f32.mrb[0].mxu0
        %4266 = vdwg.mxu0
        %v4267 = vld [vmem:[#allocation28] sm:$0xff]
        %v4268 = vld [vmem:[#allocation28 + $0x8] sm:$0xff]
        %v4269 = vld [vmem:[#allocation28 + $0x10] sm:$0xff]
        %v4270 = vld [vmem:[#allocation28 + $0x18] sm:$0xff]
        %v4271 = vld [vmem:[#allocation28 + $0x20] sm:$0xff]
        %v4272 = vld [vmem:[#allocation28 + $0x28] sm:$0xff]
        %v4273 = vld [vmem:[#allocation28 + $0x30] sm:$0xff]
        %v4274 = vld [vmem:[#allocation28 + $0x38] sm:$0xff]
        %v4275 = vld [vmem:[#allocation28 + $0x40] sm:$0xff]
        %v4276 = vld [vmem:[#allocation28 + $0x48] sm:$0xff]
        %v4277 = vld [vmem:[#allocation28 + $0x50] sm:$0xff]
        %v4278 = vld [vmem:[#allocation28 + $0x58] sm:$0xff]
        %v4279 = vld [vmem:[#allocation28 + $0x60] sm:$0xff]
        %v4280 = vld [vmem:[#allocation28 + $0x68] sm:$0xff]
        %v4281 = vld [vmem:[#allocation28 + $0x70] sm:$0xff]
        %v4282 = vld [vmem:[#allocation28 + $0x78] sm:$0xff]
        %v4283 = vld [vmem:[#allocation28 + $0x80] sm:$0xff]
        %v4284 = vld [vmem:[#allocation28 + $0x88] sm:$0xff]
        %v4285 = vld [vmem:[#allocation28 + $0x90] sm:$0xff]
        %v4286 = vld [vmem:[#allocation28 + $0x98] sm:$0xff]
        %v4287 = vld [vmem:[#allocation28 + $0xa0] sm:$0xff]
        %v4288 = vld [vmem:[#allocation28 + $0xa8] sm:$0xff]
        %v4289 = vld [vmem:[#allocation28 + $0xb0] sm:$0xff]
        %v4290 = vld [vmem:[#allocation28 + $0xb8] sm:$0xff]
        %v4291 = vld [vmem:[#allocation28 + $0xc0] sm:$0xff]
        %v4292 = vld [vmem:[#allocation28 + $0xc8] sm:$0xff]
        %v4293 = vld [vmem:[#allocation28 + $0xd0] sm:$0xff]
        %v4294 = vld [vmem:[#allocation28 + $0xd8] sm:$0xff]
        %v4295 = vld [vmem:[#allocation28 + $0xe0] sm:$0xff]
        %v4296 = vld [vmem:[#allocation28 + $0xe8] sm:$0xff]
        %v4297 = vld [vmem:[#allocation28 + $0xf0] sm:$0xff]
        %v4298 = vld [vmem:[#allocation28 + $0xf8] sm:$0xff]
        %v4299 = vld [vmem:[#allocation28 + $0x100] sm:$0xff]
        %v4300 = vld [vmem:[#allocation28 + $0x108] sm:$0xff]
        %v4301 = vld [vmem:[#allocation28 + $0x110] sm:$0xff]
        %v4302 = vld [vmem:[#allocation28 + $0x118] sm:$0xff]
        %v4303 = vld [vmem:[#allocation28 + $0x120] sm:$0xff]
        %v4304 = vld [vmem:[#allocation28 + $0x128] sm:$0xff]
        %v4305 = vld [vmem:[#allocation28 + $0x130] sm:$0xff]
        %v4306 = vld [vmem:[#allocation28 + $0x138] sm:$0xff]
        %v4307 = vld [vmem:[#allocation28 + $0x140] sm:$0xff]
        %v4308 = vld [vmem:[#allocation28 + $0x148] sm:$0xff]
        %v4309 = vld [vmem:[#allocation28 + $0x150] sm:$0xff]
        %v4310 = vld [vmem:[#allocation28 + $0x158] sm:$0xff]
        %v4311 = vld [vmem:[#allocation28 + $0x160] sm:$0xff]
        %v4312 = vld [vmem:[#allocation28 + $0x168] sm:$0xff]
        %v4313 = vld [vmem:[#allocation28 + $0x170] sm:$0xff]
        %v4314 = vld [vmem:[#allocation28 + $0x178] sm:$0xff]
        %4315 = vmatprep.subr.mxu0 %v4268
        %4316 = vmatpush1.msra.mxu0 %v4267
        %4317 = vmatprep.subr.mxu0 %v4271
        %4318 = vmatpush1.msra.mxu0 %v4270
        %4319 = vmatprep.subr.mxu0 %v4274
        %4320 = vmatpush1.msra.mxu0 %v4273
        %4321 = vmatprep.subr.mxu0 %v4277
        %4322 = vmatpush1.msra.mxu0 %v4276
        %4323 = vmatprep.subr.mxu0 %v4280
        %4324 = vmatpush1.msra.mxu0 %v4279
        %4325 = vmatprep.subr.mxu0 %v4283
        %4326 = vmatpush1.msra.mxu0 %v4282
        %4327 = vmatprep.subr.mxu0 %v4286
        %4328 = vmatpush1.msra.mxu0 %v4285
        %4329 = vmatprep.subr.mxu0 %v4289
        %4330 = vmatpush1.msra.mxu0 %v4288
        %4331 = vmatprep.subr.mxu0 %v4292
        %4332 = vmatpush1.msra.mxu0 %v4291
        %4333 = vmatprep.subr.mxu0 %v4295
        %4334 = vmatpush1.msra.mxu0 %v4294
        %4335 = vmatprep.subr.mxu0 %v4298
        %4336 = vmatpush1.msra.mxu0 %v4297
        %4337 = vmatprep.subr.mxu0 %v4301
        %4338 = vmatpush1.msra.mxu0 %v4300
        %4339 = vmatprep.subr.mxu0 %v4304
        %4340 = vmatpush1.msra.mxu0 %v4303
        %4341 = vmatprep.subr.mxu0 %v4307
        %4342 = vmatpush1.msra.mxu0 %v4306
        %4343 = vmatprep.subr.mxu0 %v4310
        %4344 = vmatpush1.msra.mxu0 %v4309
        %4345 = vmatprep.subr.mxu0 %v4313
        %4346 = vmatpush1.msra.mxu0 %v4312
        %4347 = vmatprep.subr.mxu0 0.0
        %4348 = vmatpush1.msra.mxu0 0.0
        %4349 = vmatprep.subr.mxu0 0.0
        %4350 = vmatpush1.msra.mxu0 0.0
        %4351 = vmatprep.subr.mxu0 0.0
        %4352 = vmatpush1.msra.mxu0 0.0
        %4353 = vmatprep.subr.mxu0 0.0
        %4354 = vmatpush1.msra.mxu0 0.0
        %4355 = vmatprep.subr.mxu0 0.0
        %4356 = vmatpush1.msra.mxu0 0.0
        %4357 = vmatprep.subr.mxu0 0.0
        %4358 = vmatpush1.msra.mxu0 0.0
        %4359 = vmatprep.subr.mxu0 0.0
        %4360 = vmatpush1.msra.mxu0 0.0
        %4361 = vmatprep.subr.mxu0 0.0
        %4362 = vmatpush1.msra.mxu0 0.0
        %4363 = vmatprep.subr.mxu0 0.0
        %4364 = vmatpush1.msra.mxu0 0.0
        %4365 = vmatprep.subr.mxu0 0.0
        %4366 = vmatpush1.msra.mxu0 0.0
        %4367 = vmatprep.subr.mxu0 0.0
        %4368 = vmatpush1.msra.mxu0 0.0
        %4369 = vmatprep.subr.mxu0 0.0
        %4370 = vmatpush1.msra.mxu0 0.0
        %4371 = vmatprep.subr.mxu0 0.0
        %4372 = vmatpush1.msra.mxu0 0.0
        %4373 = vmatprep.subr.mxu0 0.0
        %4374 = vmatpush1.msra.mxu0 0.0
        %4375 = vmatprep.subr.mxu0 0.0
        %4376 = vmatpush1.msra.mxu0 0.0
        %4377 = vmatprep.subr.mxu0 0.0
        %4378 = vmatpush1.msra.mxu0 0.0
        %4379 = vmatprep.mubr.f32.mxu0 0.0
        %4380 = vmatmul.mubr.f32.gmra.mrb[0].mxu0 %v3861
        %v4381 = vpop.f32.mrb[0].mxu0
        %v4382 = vadd.f32 %v3074, %v4381
        %v4383 = vpop.f32.mrb[0].mxu0
        %v4384 = vadd.f32 %v3078, %v4383
        %4385 = vdwg.mxu0
        %4386 = vmatprep.subr.mxu0 0.0
        %4387 = vmatpush1.msra.mxu0 %v4269
        %4388 = vmatprep.subr.mxu0 0.0
        %4389 = vmatpush1.msra.mxu0 %v4272
        %4390 = vmatprep.subr.mxu0 0.0
        %4391 = vmatpush1.msra.mxu0 %v4275
        %4392 = vmatprep.subr.mxu0 0.0
        %4393 = vmatpush1.msra.mxu0 %v4278
        %4394 = vmatprep.subr.mxu0 0.0
        %4395 = vmatpush1.msra.mxu0 %v4281
        %4396 = vmatprep.subr.mxu0 0.0
        %4397 = vmatpush1.msra.mxu0 %v4284
        %4398 = vmatprep.subr.mxu0 0.0
        %4399 = vmatpush1.msra.mxu0 %v4287
        %4400 = vmatprep.subr.mxu0 0.0
        %4401 = vmatpush1.msra.mxu0 %v4290
        %4402 = vmatprep.subr.mxu0 0.0
        %4403 = vmatpush1.msra.mxu0 %v4293
        %4404 = vmatprep.subr.mxu0 0.0
        %4405 = vmatpush1.msra.mxu0 %v4296
        %4406 = vmatprep.subr.mxu0 0.0
        %4407 = vmatpush1.msra.mxu0 %v4299
        %4408 = vmatprep.subr.mxu0 0.0
        %4409 = vmatpush1.msra.mxu0 %v4302
        %4410 = vmatprep.subr.mxu0 0.0
        %4411 = vmatpush1.msra.mxu0 %v4305
        %4412 = vmatprep.subr.mxu0 0.0
        %4413 = vmatpush1.msra.mxu0 %v4308
        %4414 = vmatprep.subr.mxu0 0.0
        %4415 = vmatpush1.msra.mxu0 %v4311
        %4416 = vmatprep.subr.mxu0 0.0
        %4417 = vmatpush1.msra.mxu0 %v4314
        %4418 = vmatprep.subr.mxu0 0.0
        %4419 = vmatpush1.msra.mxu0 0.0
        %4420 = vmatprep.subr.mxu0 0.0
        %4421 = vmatpush1.msra.mxu0 0.0
        %4422 = vmatprep.subr.mxu0 0.0
        %4423 = vmatpush1.msra.mxu0 0.0
        %4424 = vmatprep.subr.mxu0 0.0
        %4425 = vmatpush1.msra.mxu0 0.0
        %4426 = vmatprep.subr.mxu0 0.0
        %4427 = vmatpush1.msra.mxu0 0.0
        %4428 = vmatprep.subr.mxu0 0.0
        %4429 = vmatpush1.msra.mxu0 0.0
        %4430 = vmatprep.subr.mxu0 0.0
        %4431 = vmatpush1.msra.mxu0 0.0
        %4432 = vmatprep.subr.mxu0 0.0
        %4433 = vmatpush1.msra.mxu0 0.0
        %4434 = vmatprep.subr.mxu0 0.0
        %4435 = vmatpush1.msra.mxu0 0.0
        %4436 = vmatprep.subr.mxu0 0.0
        %4437 = vmatpush1.msra.mxu0 0.0
        %4438 = vmatprep.subr.mxu0 0.0
        %4439 = vmatpush1.msra.mxu0 0.0
        %4440 = vmatprep.subr.mxu0 0.0
        %4441 = vmatpush1.msra.mxu0 0.0
        %4442 = vmatprep.subr.mxu0 0.0
        %4443 = vmatpush1.msra.mxu0 0.0
        %4444 = vmatprep.subr.mxu0 0.0
        %4445 = vmatpush1.msra.mxu0 0.0
        %4446 = vmatprep.subr.mxu0 0.0
        %4447 = vmatpush1.msra.mxu0 0.0
        %4448 = vmatprep.subr.mxu0 0.0
        %4449 = vmatpush1.msra.mxu0 0.0
        %4450 = vmatprep.mubr.f32.mxu0 0.0
        %4451 = vmatmul.mubr.f32.gmra.mrb[0].mxu0 %v3861
        %v4452 = vpop.f32.mrb[0].mxu0
        %v4453 = vadd.f32 %v3082, %v4452
        %v4454 = vpop.f32.mrb[0].mxu0
        %4455 = vdwg.mxu0
        %v4456 = vadd.f32 %v4193, %v4382
        %v4457 = vxor.u32 %v4456, 2147483648
        %v4458 = vmul.f32 %v4457, 1.442695
        %v4459 = vpow.pop %v4458
        %v4460 = vadd.f32 %v4459, 1.0
        %v4461 = vrcp.pop %v4460
        %v4462 = vmul.f32 1.0, %v4461
        %v4463 = vadd.f32 %v4195, %v4384
        %v4464 = vxor.u32 %v4463, 2147483648
        %v4465 = vmul.f32 %v4464, 1.442695
        %v4466 = vpow.pop %v4465
        %v4467 = vadd.f32 %v4466, 1.0
        %v4468 = vrcp.pop %v4467
        %v4469 = vmul.f32 1.0, %v4468
        %v4470 = vmul.f32 %v4462, %v4453
        %v4471 = vadd.f32 %v4264, %v4470
        %v4472 = vtanh.pop %v4471
        %v4473 = vsub.f32 1.0, %v4469
        %v4474 = vmul.f32 %v4473, %v4472
        %v4475 = vmul.f32 %v4469, %v3861
        %v4476 = vadd.f32 %v4474, %v4475
        %s4477 = scalar_lea.vmem [#allocation4], 16
        %4478 = vst [vmem:[%s4477] sm:$0xff] %v4476
        %s4479 = scalar_lea.vmem [#allocation3], 72
        %v4480 = vld [vmem:[%s4479] sm:$0xff]
        %v4481 = vld [vmem:[%s4479 + $0x8] sm:$0xff]
        %v4482 = vld [vmem:[%s4479 + $0x10] sm:$0xff]
        %v4483 = vld [vmem:[#allocation25] sm:$0xff]
        %v4484 = vld [vmem:[#allocation25 + $0x8] sm:$0xff]
        %v4485 = vld [vmem:[#allocation25 + $0x10] sm:$0xff]
        %v4486 = vld [vmem:[#allocation25 + $0x18] sm:$0xff]
        %v4487 = vld [vmem:[#allocation25 + $0x20] sm:$0xff]
        %v4488 = vld [vmem:[#allocation25 + $0x28] sm:$0xff]
        %v4489 = vld [vmem:[#allocation25 + $0x30] sm:$0xff]
        %v4490 = vld [vmem:[#allocation25 + $0x38] sm:$0xff]
        %v4491 = vld [vmem:[#allocation25 + $0x40] sm:$0xff]
        %v4492 = vld [vmem:[#allocation25 + $0x48] sm:$0xff]
        %v4493 = vld [vmem:[#allocation25 + $0x50] sm:$0xff]
        %v4494 = vld [vmem:[#allocation25 + $0x58] sm:$0xff]
        %v4495 = vld [vmem:[#allocation25 + $0x60] sm:$0xff]
        %v4496 = vld [vmem:[#allocation25 + $0x68] sm:$0xff]
        %v4497 = vld [vmem:[#allocation25 + $0x70] sm:$0xff]
        %v4498 = vld [vmem:[#allocation25 + $0x78] sm:$0xff]
        %v4499 = vld [vmem:[#allocation25 + $0x80] sm:$0xff]
        %v4500 = vld [vmem:[#allocation25 + $0x88] sm:$0xff]
        %v4501 = vld [vmem:[#allocation25 + $0x90] sm:$0xff]
        %v4502 = vld [vmem:[#allocation25 + $0x98] sm:$0xff]
        %v4503 = vld [vmem:[#allocation25 + $0xa0] sm:$0xff]
        %v4504 = vld [vmem:[#allocation25 + $0xa8] sm:$0xff]
        %v4505 = vld [vmem:[#allocation25 + $0xb0] sm:$0xff]
        %v4506 = vld [vmem:[#allocation25 + $0xb8] sm:$0xff]
        %v4507 = vld [vmem:[#allocation25 + $0xc0] sm:$0xff]
        %v4508 = vld [vmem:[#allocation25 + $0xc8] sm:$0xff]
        %v4509 = vld [vmem:[#allocation25 + $0xd0] sm:$0xff]
        %v4510 = vld [vmem:[#allocation25 + $0xd8] sm:$0xff]
        %v4511 = vld [vmem:[#allocation25 + $0xe0] sm:$0xff]
        %v4512 = vld [vmem:[#allocation25 + $0xe8] sm:$0xff]
        %v4513 = vld [vmem:[#allocation25 + $0xf0] sm:$0xff]
        %v4514 = vld [vmem:[#allocation25 + $0xf8] sm:$0xff]
        %v4515 = vld [vmem:[#allocation25 + $0x100] sm:$0xff]
        %v4516 = vld [vmem:[#allocation25 + $0x108] sm:$0xff]
        %v4517 = vld [vmem:[#allocation25 + $0x110] sm:$0xff]
        %v4518 = vld [vmem:[#allocation25 + $0x118] sm:$0xff]
        %v4519 = vld [vmem:[#allocation25 + $0x120] sm:$0xff]
        %v4520 = vld [vmem:[#allocation25 + $0x128] sm:$0xff]
        %v4521 = vld [vmem:[#allocation25 + $0x130] sm:$0xff]
        %v4522 = vld [vmem:[#allocation25 + $0x138] sm:$0xff]
        %v4523 = vld [vmem:[#allocation25 + $0x140] sm:$0xff]
        %v4524 = vld [vmem:[#allocation25 + $0x148] sm:$0xff]
        %v4525 = vld [vmem:[#allocation25 + $0x150] sm:$0xff]
        %v4526 = vld [vmem:[#allocation25 + $0x158] sm:$0xff]
        %v4527 = vld [vmem:[#allocation25 + $0x160] sm:$0xff]
        %v4528 = vld [vmem:[#allocation25 + $0x168] sm:$0xff]
        %v4529 = vld [vmem:[#allocation25 + $0x170] sm:$0xff]
        %v4530 = vld [vmem:[#allocation25 + $0x178] sm:$0xff]
        %4531 = vmatprep.subr.mxu0 %v4484
        %4532 = vmatpush1.msra.mxu0 %v4483
        %4533 = vmatprep.subr.mxu0 %v4487
        %4534 = vmatpush1.msra.mxu0 %v4486
        %4535 = vmatprep.subr.mxu0 %v4490
        %4536 = vmatpush1.msra.mxu0 %v4489
        %4537 = vmatprep.subr.mxu0 %v4493
        %4538 = vmatpush1.msra.mxu0 %v4492
        %4539 = vmatprep.subr.mxu0 %v4496
        %4540 = vmatpush1.msra.mxu0 %v4495
        %4541 = vmatprep.subr.mxu0 %v4499
        %4542 = vmatpush1.msra.mxu0 %v4498
        %4543 = vmatprep.subr.mxu0 %v4502
        %4544 = vmatpush1.msra.mxu0 %v4501
        %4545 = vmatprep.subr.mxu0 %v4505
        %4546 = vmatpush1.msra.mxu0 %v4504
        %4547 = vmatprep.subr.mxu0 %v4508
        %4548 = vmatpush1.msra.mxu0 %v4507
        %4549 = vmatprep.subr.mxu0 %v4511
        %4550 = vmatpush1.msra.mxu0 %v4510
        %4551 = vmatprep.subr.mxu0 %v4514
        %4552 = vmatpush1.msra.mxu0 %v4513
        %4553 = vmatprep.subr.mxu0 %v4517
        %4554 = vmatpush1.msra.mxu0 %v4516
        %4555 = vmatprep.subr.mxu0 %v4520
        %4556 = vmatpush1.msra.mxu0 %v4519
        %4557 = vmatprep.subr.mxu0 %v4523
        %4558 = vmatpush1.msra.mxu0 %v4522
        %4559 = vmatprep.subr.mxu0 %v4526
        %4560 = vmatpush1.msra.mxu0 %v4525
        %4561 = vmatprep.subr.mxu0 %v4529
        %4562 = vmatpush1.msra.mxu0 %v4528
        %4563 = vmatprep.subr.mxu0 0.0
        %4564 = vmatpush1.msra.mxu0 0.0
        %4565 = vmatprep.subr.mxu0 0.0
        %4566 = vmatpush1.msra.mxu0 0.0
        %4567 = vmatprep.subr.mxu0 0.0
        %4568 = vmatpush1.msra.mxu0 0.0
        %4569 = vmatprep.subr.mxu0 0.0
        %4570 = vmatpush1.msra.mxu0 0.0
        %4571 = vmatprep.subr.mxu0 0.0
        %4572 = vmatpush1.msra.mxu0 0.0
        %4573 = vmatprep.subr.mxu0 0.0
        %4574 = vmatpush1.msra.mxu0 0.0
        %4575 = vmatprep.subr.mxu0 0.0
        %4576 = vmatpush1.msra.mxu0 0.0
        %4577 = vmatprep.subr.mxu0 0.0
        %4578 = vmatpush1.msra.mxu0 0.0
        %4579 = vmatprep.subr.mxu0 0.0
        %4580 = vmatpush1.msra.mxu0 0.0
        %4581 = vmatprep.subr.mxu0 0.0
        %4582 = vmatpush1.msra.mxu0 0.0
        %4583 = vmatprep.subr.mxu0 0.0
        %4584 = vmatpush1.msra.mxu0 0.0
        %4585 = vmatprep.subr.mxu0 0.0
        %4586 = vmatpush1.msra.mxu0 0.0
        %4587 = vmatprep.subr.mxu0 0.0
        %4588 = vmatpush1.msra.mxu0 0.0
        %4589 = vmatprep.subr.mxu0 0.0
        %4590 = vmatpush1.msra.mxu0 0.0
        %4591 = vmatprep.subr.mxu0 0.0
        %4592 = vmatpush1.msra.mxu0 0.0
        %4593 = vmatprep.subr.mxu0 0.0
        %4594 = vmatpush1.msra.mxu0 0.0
        %4595 = vmatprep.mubr.f32.mxu0 0.0
        %4596 = vmatmul.mubr.f32.gmra.mrb[0].mxu0 %v4077
        %v4597 = vpop.f32.mrb[0].mxu0
        %v4598 = vadd.f32 %v2643, %v4597
        %v4599 = vpop.f32.mrb[0].mxu0
        %v4600 = vadd.f32 %v2647, %v4599
        %4601 = vdwg.mxu0
        %4602 = vmatprep.subr.mxu0 0.0
        %4603 = vmatpush1.msra.mxu0 %v4485
        %4604 = vmatprep.subr.mxu0 0.0
        %4605 = vmatpush1.msra.mxu0 %v4488
        %4606 = vmatprep.subr.mxu0 0.0
        %4607 = vmatpush1.msra.mxu0 %v4491
        %4608 = vmatprep.subr.mxu0 0.0
        %4609 = vmatpush1.msra.mxu0 %v4494
        %4610 = vmatprep.subr.mxu0 0.0
        %4611 = vmatpush1.msra.mxu0 %v4497
        %4612 = vmatprep.subr.mxu0 0.0
        %4613 = vmatpush1.msra.mxu0 %v4500
        %4614 = vmatprep.subr.mxu0 0.0
        %4615 = vmatpush1.msra.mxu0 %v4503
        %4616 = vmatprep.subr.mxu0 0.0
        %4617 = vmatpush1.msra.mxu0 %v4506
        %4618 = vmatprep.subr.mxu0 0.0
        %4619 = vmatpush1.msra.mxu0 %v4509
        %4620 = vmatprep.subr.mxu0 0.0
        %4621 = vmatpush1.msra.mxu0 %v4512
        %4622 = vmatprep.subr.mxu0 0.0
        %4623 = vmatpush1.msra.mxu0 %v4515
        %4624 = vmatprep.subr.mxu0 0.0
        %4625 = vmatpush1.msra.mxu0 %v4518
        %4626 = vmatprep.subr.mxu0 0.0
        %4627 = vmatpush1.msra.mxu0 %v4521
        %4628 = vmatprep.subr.mxu0 0.0
        %4629 = vmatpush1.msra.mxu0 %v4524
        %4630 = vmatprep.subr.mxu0 0.0
        %4631 = vmatpush1.msra.mxu0 %v4527
        %4632 = vmatprep.subr.mxu0 0.0
        %4633 = vmatpush1.msra.mxu0 %v4530
        %4634 = vmatprep.subr.mxu0 0.0
        %4635 = vmatpush1.msra.mxu0 0.0
        %4636 = vmatprep.subr.mxu0 0.0
        %4637 = vmatpush1.msra.mxu0 0.0
        %4638 = vmatprep.subr.mxu0 0.0
        %4639 = vmatpush1.msra.mxu0 0.0
        %4640 = vmatprep.subr.mxu0 0.0
        %4641 = vmatpush1.msra.mxu0 0.0
        %4642 = vmatprep.subr.mxu0 0.0
        %4643 = vmatpush1.msra.mxu0 0.0
        %4644 = vmatprep.subr.mxu0 0.0
        %4645 = vmatpush1.msra.mxu0 0.0
        %4646 = vmatprep.subr.mxu0 0.0
        %4647 = vmatpush1.msra.mxu0 0.0
        %4648 = vmatprep.subr.mxu0 0.0
        %4649 = vmatpush1.msra.mxu0 0.0
        %4650 = vmatprep.subr.mxu0 0.0
        %4651 = vmatpush1.msra.mxu0 0.0
        %4652 = vmatprep.subr.mxu0 0.0
        %4653 = vmatpush1.msra.mxu0 0.0
        %4654 = vmatprep.subr.mxu0 0.0
        %4655 = vmatpush1.msra.mxu0 0.0
        %4656 = vmatprep.subr.mxu0 0.0
        %4657 = vmatpush1.msra.mxu0 0.0
        %4658 = vmatprep.subr.mxu0 0.0
        %4659 = vmatpush1.msra.mxu0 0.0
        %4660 = vmatprep.subr.mxu0 0.0
        %4661 = vmatpush1.msra.mxu0 0.0
        %4662 = vmatprep.subr.mxu0 0.0
        %4663 = vmatpush1.msra.mxu0 0.0
        %4664 = vmatprep.subr.mxu0 0.0
        %4665 = vmatpush1.msra.mxu0 0.0
        %4666 = vmatprep.mubr.f32.mxu0 0.0
        %4667 = vmatmul.mubr.f32.gmra.mrb[0].mxu0 %v4077
        %v4668 = vpop.f32.mrb[0].mxu0
        %v4669 = vadd.f32 %v2651, %v4668
        %v4670 = vpop.f32.mrb[0].mxu0
        %4671 = vdwg.mxu0
        %v4672 = vadd.f32 %v4480, %v4598
        %v4673 = vxor.u32 %v4672, 2147483648
        %v4674 = vmul.f32 %v4673, 1.442695
        %v4675 = vpow.pop %v4674
        %v4676 = vadd.f32 %v4675, 1.0
        %v4677 = vrcp.pop %v4676
        %v4678 = vmul.f32 1.0, %v4677
        %v4679 = vadd.f32 %v4481, %v4600
        %v4680 = vxor.u32 %v4679, 2147483648
        %v4681 = vmul.f32 %v4680, 1.442695
        %v4682 = vpow.pop %v4681
        %v4683 = vadd.f32 %v4682, 1.0
        %v4684 = vrcp.pop %v4683
        %v4685 = vmul.f32 1.0, %v4684
        %v4686 = vmul.f32 %v4678, %v4669
        %v4687 = vadd.f32 %v4482, %v4686
        %v4688 = vtanh.pop %v4687
        %v4689 = vsub.f32 1.0, %v4685
        %v4690 = vmul.f32 %v4689, %v4688
        %v4691 = vmul.f32 %v4685, %v4077
        %v4692 = vadd.f32 %v4690, %v4691
        %v4693 = vld [vmem:[#allocation26] sm:$0xff]
        %v4694 = vld [vmem:[#allocation26 + $0x8] sm:$0xff]
        %v4695 = vld [vmem:[#allocation26 + $0x10] sm:$0xff]
        %v4696 = vld [vmem:[#allocation26 + $0x18] sm:$0xff]
        %v4697 = vld [vmem:[#allocation26 + $0x20] sm:$0xff]
        %v4698 = vld [vmem:[#allocation26 + $0x28] sm:$0xff]
        %v4699 = vld [vmem:[#allocation26 + $0x30] sm:$0xff]
        %v4700 = vld [vmem:[#allocation26 + $0x38] sm:$0xff]
        %v4701 = vld [vmem:[#allocation26 + $0x40] sm:$0xff]
        %v4702 = vld [vmem:[#allocation26 + $0x48] sm:$0xff]
        %v4703 = vld [vmem:[#allocation26 + $0x50] sm:$0xff]
        %v4704 = vld [vmem:[#allocation26 + $0x58] sm:$0xff]
        %v4705 = vld [vmem:[#allocation26 + $0x60] sm:$0xff]
        %v4706 = vld [vmem:[#allocation26 + $0x68] sm:$0xff]
        %v4707 = vld [vmem:[#allocation26 + $0x70] sm:$0xff]
        %v4708 = vld [vmem:[#allocation26 + $0x78] sm:$0xff]
        %v4709 = vld [vmem:[#allocation26 + $0x80] sm:$0xff]
        %v4710 = vld [vmem:[#allocation26 + $0x88] sm:$0xff]
        %v4711 = vld [vmem:[#allocation26 + $0x90] sm:$0xff]
        %v4712 = vld [vmem:[#allocation26 + $0x98] sm:$0xff]
        %v4713 = vld [vmem:[#allocation26 + $0xa0] sm:$0xff]
        %v4714 = vld [vmem:[#allocation26 + $0xa8] sm:$0xff]
        %v4715 = vld [vmem:[#allocation26 + $0xb0] sm:$0xff]
        %v4716 = vld [vmem:[#allocation26 + $0xb8] sm:$0xff]
        %v4717 = vld [vmem:[#allocation26 + $0xc0] sm:$0xff]
        %v4718 = vld [vmem:[#allocation26 + $0xc8] sm:$0xff]
        %v4719 = vld [vmem:[#allocation26 + $0xd0] sm:$0xff]
        %v4720 = vld [vmem:[#allocation26 + $0xd8] sm:$0xff]
        %v4721 = vld [vmem:[#allocation26 + $0xe0] sm:$0xff]
        %v4722 = vld [vmem:[#allocation26 + $0xe8] sm:$0xff]
        %v4723 = vld [vmem:[#allocation26 + $0xf0] sm:$0xff]
        %v4724 = vld [vmem:[#allocation26 + $0xf8] sm:$0xff]
        %v4725 = vld [vmem:[#allocation26 + $0x100] sm:$0xff]
        %v4726 = vld [vmem:[#allocation26 + $0x108] sm:$0xff]
        %v4727 = vld [vmem:[#allocation26 + $0x110] sm:$0xff]
        %v4728 = vld [vmem:[#allocation26 + $0x118] sm:$0xff]
        %v4729 = vld [vmem:[#allocation26 + $0x120] sm:$0xff]
        %v4730 = vld [vmem:[#allocation26 + $0x128] sm:$0xff]
        %v4731 = vld [vmem:[#allocation26 + $0x130] sm:$0xff]
        %v4732 = vld [vmem:[#allocation26 + $0x138] sm:$0xff]
        %v4733 = vld [vmem:[#allocation26 + $0x140] sm:$0xff]
        %v4734 = vld [vmem:[#allocation26 + $0x148] sm:$0xff]
        %v4735 = vld [vmem:[#allocation26 + $0x150] sm:$0xff]
        %v4736 = vld [vmem:[#allocation26 + $0x158] sm:$0xff]
        %v4737 = vld [vmem:[#allocation26 + $0x160] sm:$0xff]
        %v4738 = vld [vmem:[#allocation26 + $0x168] sm:$0xff]
        %v4739 = vld [vmem:[#allocation26 + $0x170] sm:$0xff]
        %v4740 = vld [vmem:[#allocation26 + $0x178] sm:$0xff]
        %4741 = vmatprep.subr.mxu0 %v4694
        %4742 = vmatpush1.msra.mxu0 %v4693
        %4743 = vmatprep.subr.mxu0 %v4697
        %4744 = vmatpush1.msra.mxu0 %v4696
        %4745 = vmatprep.subr.mxu0 %v4700
        %4746 = vmatpush1.msra.mxu0 %v4699
        %4747 = vmatprep.subr.mxu0 %v4703
        %4748 = vmatpush1.msra.mxu0 %v4702
        %4749 = vmatprep.subr.mxu0 %v4706
        %4750 = vmatpush1.msra.mxu0 %v4705
        %4751 = vmatprep.subr.mxu0 %v4709
        %4752 = vmatpush1.msra.mxu0 %v4708
        %4753 = vmatprep.subr.mxu0 %v4712
        %4754 = vmatpush1.msra.mxu0 %v4711
        %4755 = vmatprep.subr.mxu0 %v4715
        %4756 = vmatpush1.msra.mxu0 %v4714
        %4757 = vmatprep.subr.mxu0 %v4718
        %4758 = vmatpush1.msra.mxu0 %v4717
        %4759 = vmatprep.subr.mxu0 %v4721
        %4760 = vmatpush1.msra.mxu0 %v4720
        %4761 = vmatprep.subr.mxu0 %v4724
        %4762 = vmatpush1.msra.mxu0 %v4723
        %4763 = vmatprep.subr.mxu0 %v4727
        %4764 = vmatpush1.msra.mxu0 %v4726
        %4765 = vmatprep.subr.mxu0 %v4730
        %4766 = vmatpush1.msra.mxu0 %v4729
        %4767 = vmatprep.subr.mxu0 %v4733
        %4768 = vmatpush1.msra.mxu0 %v4732
        %4769 = vmatprep.subr.mxu0 %v4736
        %4770 = vmatpush1.msra.mxu0 %v4735
        %4771 = vmatprep.subr.mxu0 %v4739
        %4772 = vmatpush1.msra.mxu0 %v4738
        %4773 = vmatprep.subr.mxu0 0.0
        %4774 = vmatpush1.msra.mxu0 0.0
        %4775 = vmatprep.subr.mxu0 0.0
        %4776 = vmatpush1.msra.mxu0 0.0
        %4777 = vmatprep.subr.mxu0 0.0
        %4778 = vmatpush1.msra.mxu0 0.0
        %4779 = vmatprep.subr.mxu0 0.0
        %4780 = vmatpush1.msra.mxu0 0.0
        %4781 = vmatprep.subr.mxu0 0.0
        %4782 = vmatpush1.msra.mxu0 0.0
        %4783 = vmatprep.subr.mxu0 0.0
        %4784 = vmatpush1.msra.mxu0 0.0
        %4785 = vmatprep.subr.mxu0 0.0
        %4786 = vmatpush1.msra.mxu0 0.0
        %4787 = vmatprep.subr.mxu0 0.0
        %4788 = vmatpush1.msra.mxu0 0.0
        %4789 = vmatprep.subr.mxu0 0.0
        %4790 = vmatpush1.msra.mxu0 0.0
        %4791 = vmatprep.subr.mxu0 0.0
        %4792 = vmatpush1.msra.mxu0 0.0
        %4793 = vmatprep.subr.mxu0 0.0
        %4794 = vmatpush1.msra.mxu0 0.0
        %4795 = vmatprep.subr.mxu0 0.0
        %4796 = vmatpush1.msra.mxu0 0.0
        %4797 = vmatprep.subr.mxu0 0.0
        %4798 = vmatpush1.msra.mxu0 0.0
        %4799 = vmatprep.subr.mxu0 0.0
        %4800 = vmatpush1.msra.mxu0 0.0
        %4801 = vmatprep.subr.mxu0 0.0
        %4802 = vmatpush1.msra.mxu0 0.0
        %4803 = vmatprep.subr.mxu0 0.0
        %4804 = vmatpush1.msra.mxu0 0.0
        %4805 = vmatprep.mubr.f32.mxu0 0.0
        %4806 = vmatmul.mubr.f32.gmra.mrb[0].mxu0 %v4692
        %v4807 = vpop.f32.mrb[0].mxu0
        %v4808 = vadd.f32 %v2869, %v4807
        %v4809 = vpop.f32.mrb[0].mxu0
        %v4810 = vadd.f32 %v2873, %v4809
        %4811 = vdwg.mxu0
        %4812 = vmatprep.subr.mxu0 0.0
        %4813 = vmatpush1.msra.mxu0 %v4695
        %4814 = vmatprep.subr.mxu0 0.0
        %4815 = vmatpush1.msra.mxu0 %v4698
        %4816 = vmatprep.subr.mxu0 0.0
        %4817 = vmatpush1.msra.mxu0 %v4701
        %4818 = vmatprep.subr.mxu0 0.0
        %4819 = vmatpush1.msra.mxu0 %v4704
        %4820 = vmatprep.subr.mxu0 0.0
        %4821 = vmatpush1.msra.mxu0 %v4707
        %4822 = vmatprep.subr.mxu0 0.0
        %4823 = vmatpush1.msra.mxu0 %v4710
        %4824 = vmatprep.subr.mxu0 0.0
        %4825 = vmatpush1.msra.mxu0 %v4713
        %4826 = vmatprep.subr.mxu0 0.0
        %4827 = vmatpush1.msra.mxu0 %v4716
        %4828 = vmatprep.subr.mxu0 0.0
        %4829 = vmatpush1.msra.mxu0 %v4719
        %4830 = vmatprep.subr.mxu0 0.0
        %4831 = vmatpush1.msra.mxu0 %v4722
        %4832 = vmatprep.subr.mxu0 0.0
        %4833 = vmatpush1.msra.mxu0 %v4725
        %4834 = vmatprep.subr.mxu0 0.0
        %4835 = vmatpush1.msra.mxu0 %v4728
        %4836 = vmatprep.subr.mxu0 0.0
        %4837 = vmatpush1.msra.mxu0 %v4731
        %4838 = vmatprep.subr.mxu0 0.0
        %4839 = vmatpush1.msra.mxu0 %v4734
        %4840 = vmatprep.subr.mxu0 0.0
        %4841 = vmatpush1.msra.mxu0 %v4737
        %4842 = vmatprep.subr.mxu0 0.0
        %4843 = vmatpush1.msra.mxu0 %v4740
        %4844 = vmatprep.subr.mxu0 0.0
        %4845 = vmatpush1.msra.mxu0 0.0
        %4846 = vmatprep.subr.mxu0 0.0
        %4847 = vmatpush1.msra.mxu0 0.0
        %4848 = vmatprep.subr.mxu0 0.0
        %4849 = vmatpush1.msra.mxu0 0.0
        %4850 = vmatprep.subr.mxu0 0.0
        %4851 = vmatpush1.msra.mxu0 0.0
        %4852 = vmatprep.subr.mxu0 0.0
        %4853 = vmatpush1.msra.mxu0 0.0
        %4854 = vmatprep.subr.mxu0 0.0
        %4855 = vmatpush1.msra.mxu0 0.0
        %4856 = vmatprep.subr.mxu0 0.0
        %4857 = vmatpush1.msra.mxu0 0.0
        %4858 = vmatprep.subr.mxu0 0.0
        %4859 = vmatpush1.msra.mxu0 0.0
        %4860 = vmatprep.subr.mxu0 0.0
        %4861 = vmatpush1.msra.mxu0 0.0
        %4862 = vmatprep.subr.mxu0 0.0
        %4863 = vmatpush1.msra.mxu0 0.0
        %4864 = vmatprep.subr.mxu0 0.0
        %4865 = vmatpush1.msra.mxu0 0.0
        %4866 = vmatprep.subr.mxu0 0.0
        %4867 = vmatpush1.msra.mxu0 0.0
        %4868 = vmatprep.subr.mxu0 0.0
        %4869 = vmatpush1.msra.mxu0 0.0
        %4870 = vmatprep.subr.mxu0 0.0
        %4871 = vmatpush1.msra.mxu0 0.0
        %4872 = vmatprep.subr.mxu0 0.0
        %4873 = vmatpush1.msra.mxu0 0.0
        %4874 = vmatprep.subr.mxu0 0.0
        %4875 = vmatpush1.msra.mxu0 0.0
        %4876 = vmatprep.mubr.f32.mxu0 0.0
        %4877 = vmatmul.mubr.f32.gmra.mrb[0].mxu0 %v4692
        %v4878 = vpop.f32.mrb[0].mxu0
        %v4879 = vadd.f32 %v2877, %v4878
        %v4880 = vpop.f32.mrb[0].mxu0
        %4881 = vdwg.mxu0
        %v4882 = vld [vmem:[#allocation28] sm:$0xff]
        %v4883 = vld [vmem:[#allocation28 + $0x8] sm:$0xff]
        %v4884 = vld [vmem:[#allocation28 + $0x10] sm:$0xff]
        %v4885 = vld [vmem:[#allocation28 + $0x18] sm:$0xff]
        %v4886 = vld [vmem:[#allocation28 + $0x20] sm:$0xff]
        %v4887 = vld [vmem:[#allocation28 + $0x28] sm:$0xff]
        %v4888 = vld [vmem:[#allocation28 + $0x30] sm:$0xff]
        %v4889 = vld [vmem:[#allocation28 + $0x38] sm:$0xff]
        %v4890 = vld [vmem:[#allocation28 + $0x40] sm:$0xff]
        %v4891 = vld [vmem:[#allocation28 + $0x48] sm:$0xff]
        %v4892 = vld [vmem:[#allocation28 + $0x50] sm:$0xff]
        %v4893 = vld [vmem:[#allocation28 + $0x58] sm:$0xff]
        %v4894 = vld [vmem:[#allocation28 + $0x60] sm:$0xff]
        %v4895 = vld [vmem:[#allocation28 + $0x68] sm:$0xff]
        %v4896 = vld [vmem:[#allocation28 + $0x70] sm:$0xff]
        %v4897 = vld [vmem:[#allocation28 + $0x78] sm:$0xff]
        %v4898 = vld [vmem:[#allocation28 + $0x80] sm:$0xff]
        %v4899 = vld [vmem:[#allocation28 + $0x88] sm:$0xff]
        %v4900 = vld [vmem:[#allocation28 + $0x90] sm:$0xff]
        %v4901 = vld [vmem:[#allocation28 + $0x98] sm:$0xff]
        %v4902 = vld [vmem:[#allocation28 + $0xa0] sm:$0xff]
        %v4903 = vld [vmem:[#allocation28 + $0xa8] sm:$0xff]
        %v4904 = vld [vmem:[#allocation28 + $0xb0] sm:$0xff]
        %v4905 = vld [vmem:[#allocation28 + $0xb8] sm:$0xff]
        %v4906 = vld [vmem:[#allocation28 + $0xc0] sm:$0xff]
        %v4907 = vld [vmem:[#allocation28 + $0xc8] sm:$0xff]
        %v4908 = vld [vmem:[#allocation28 + $0xd0] sm:$0xff]
        %v4909 = vld [vmem:[#allocation28 + $0xd8] sm:$0xff]
        %v4910 = vld [vmem:[#allocation28 + $0xe0] sm:$0xff]
        %v4911 = vld [vmem:[#allocation28 + $0xe8] sm:$0xff]
        %v4912 = vld [vmem:[#allocation28 + $0xf0] sm:$0xff]
        %v4913 = vld [vmem:[#allocation28 + $0xf8] sm:$0xff]
        %v4914 = vld [vmem:[#allocation28 + $0x100] sm:$0xff]
        %v4915 = vld [vmem:[#allocation28 + $0x108] sm:$0xff]
        %v4916 = vld [vmem:[#allocation28 + $0x110] sm:$0xff]
        %v4917 = vld [vmem:[#allocation28 + $0x118] sm:$0xff]
        %v4918 = vld [vmem:[#allocation28 + $0x120] sm:$0xff]
        %v4919 = vld [vmem:[#allocation28 + $0x128] sm:$0xff]
        %v4920 = vld [vmem:[#allocation28 + $0x130] sm:$0xff]
        %v4921 = vld [vmem:[#allocation28 + $0x138] sm:$0xff]
        %v4922 = vld [vmem:[#allocation28 + $0x140] sm:$0xff]
        %v4923 = vld [vmem:[#allocation28 + $0x148] sm:$0xff]
        %v4924 = vld [vmem:[#allocation28 + $0x150] sm:$0xff]
        %v4925 = vld [vmem:[#allocation28 + $0x158] sm:$0xff]
        %v4926 = vld [vmem:[#allocation28 + $0x160] sm:$0xff]
        %v4927 = vld [vmem:[#allocation28 + $0x168] sm:$0xff]
        %v4928 = vld [vmem:[#allocation28 + $0x170] sm:$0xff]
        %v4929 = vld [vmem:[#allocation28 + $0x178] sm:$0xff]
        %4930 = vmatprep.subr.mxu0 %v4883
        %4931 = vmatpush1.msra.mxu0 %v4882
        %4932 = vmatprep.subr.mxu0 %v4886
        %4933 = vmatpush1.msra.mxu0 %v4885
        %4934 = vmatprep.subr.mxu0 %v4889
        %4935 = vmatpush1.msra.mxu0 %v4888
        %4936 = vmatprep.subr.mxu0 %v4892
        %4937 = vmatpush1.msra.mxu0 %v4891
        %4938 = vmatprep.subr.mxu0 %v4895
        %4939 = vmatpush1.msra.mxu0 %v4894
        %4940 = vmatprep.subr.mxu0 %v4898
        %4941 = vmatpush1.msra.mxu0 %v4897
        %4942 = vmatprep.subr.mxu0 %v4901
        %4943 = vmatpush1.msra.mxu0 %v4900
        %4944 = vmatprep.subr.mxu0 %v4904
        %4945 = vmatpush1.msra.mxu0 %v4903
        %4946 = vmatprep.subr.mxu0 %v4907
        %4947 = vmatpush1.msra.mxu0 %v4906
        %4948 = vmatprep.subr.mxu0 %v4910
        %4949 = vmatpush1.msra.mxu0 %v4909
        %4950 = vmatprep.subr.mxu0 %v4913
        %4951 = vmatpush1.msra.mxu0 %v4912
        %4952 = vmatprep.subr.mxu0 %v4916
        %4953 = vmatpush1.msra.mxu0 %v4915
        %4954 = vmatprep.subr.mxu0 %v4919
        %4955 = vmatpush1.msra.mxu0 %v4918
        %4956 = vmatprep.subr.mxu0 %v4922
        %4957 = vmatpush1.msra.mxu0 %v4921
        %4958 = vmatprep.subr.mxu0 %v4925
        %4959 = vmatpush1.msra.mxu0 %v4924
        %4960 = vmatprep.subr.mxu0 %v4928
        %4961 = vmatpush1.msra.mxu0 %v4927
        %4962 = vmatprep.subr.mxu0 0.0
        %4963 = vmatpush1.msra.mxu0 0.0
        %4964 = vmatprep.subr.mxu0 0.0
        %4965 = vmatpush1.msra.mxu0 0.0
        %4966 = vmatprep.subr.mxu0 0.0
        %4967 = vmatpush1.msra.mxu0 0.0
        %4968 = vmatprep.subr.mxu0 0.0
        %4969 = vmatpush1.msra.mxu0 0.0
        %4970 = vmatprep.subr.mxu0 0.0
        %4971 = vmatpush1.msra.mxu0 0.0
        %4972 = vmatprep.subr.mxu0 0.0
        %4973 = vmatpush1.msra.mxu0 0.0
        %4974 = vmatprep.subr.mxu0 0.0
        %4975 = vmatpush1.msra.mxu0 0.0
        %4976 = vmatprep.subr.mxu0 0.0
        %4977 = vmatpush1.msra.mxu0 0.0
        %4978 = vmatprep.subr.mxu0 0.0
        %4979 = vmatpush1.msra.mxu0 0.0
        %4980 = vmatprep.subr.mxu0 0.0
        %4981 = vmatpush1.msra.mxu0 0.0
        %4982 = vmatprep.subr.mxu0 0.0
        %4983 = vmatpush1.msra.mxu0 0.0
        %4984 = vmatprep.subr.mxu0 0.0
        %4985 = vmatpush1.msra.mxu0 0.0
        %4986 = vmatprep.subr.mxu0 0.0
        %4987 = vmatpush1.msra.mxu0 0.0
        %4988 = vmatprep.subr.mxu0 0.0
        %4989 = vmatpush1.msra.mxu0 0.0
        %4990 = vmatprep.subr.mxu0 0.0
        %4991 = vmatpush1.msra.mxu0 0.0
        %4992 = vmatprep.subr.mxu0 0.0
        %4993 = vmatpush1.msra.mxu0 0.0
        %4994 = vmatprep.mubr.f32.mxu0 0.0
        %4995 = vmatmul.mubr.f32.gmra.mrb[0].mxu0 %v4476
        %v4996 = vpop.f32.mrb[0].mxu0
        %v4997 = vadd.f32 %v3074, %v4996
        %v4998 = vpop.f32.mrb[0].mxu0
        %v4999 = vadd.f32 %v3078, %v4998
        %5000 = vdwg.mxu0
        %5001 = vmatprep.subr.mxu0 0.0
        %5002 = vmatpush1.msra.mxu0 %v4884
        %5003 = vmatprep.subr.mxu0 0.0
        %5004 = vmatpush1.msra.mxu0 %v4887
        %5005 = vmatprep.subr.mxu0 0.0
        %5006 = vmatpush1.msra.mxu0 %v4890
        %5007 = vmatprep.subr.mxu0 0.0
        %5008 = vmatpush1.msra.mxu0 %v4893
        %5009 = vmatprep.subr.mxu0 0.0
        %5010 = vmatpush1.msra.mxu0 %v4896
        %5011 = vmatprep.subr.mxu0 0.0
        %5012 = vmatpush1.msra.mxu0 %v4899
        %5013 = vmatprep.subr.mxu0 0.0
        %5014 = vmatpush1.msra.mxu0 %v4902
        %5015 = vmatprep.subr.mxu0 0.0
        %5016 = vmatpush1.msra.mxu0 %v4905
        %5017 = vmatprep.subr.mxu0 0.0
        %5018 = vmatpush1.msra.mxu0 %v4908
        %5019 = vmatprep.subr.mxu0 0.0
        %5020 = vmatpush1.msra.mxu0 %v4911
        %5021 = vmatprep.subr.mxu0 0.0
        %5022 = vmatpush1.msra.mxu0 %v4914
        %5023 = vmatprep.subr.mxu0 0.0
        %5024 = vmatpush1.msra.mxu0 %v4917
        %5025 = vmatprep.subr.mxu0 0.0
        %5026 = vmatpush1.msra.mxu0 %v4920
        %5027 = vmatprep.subr.mxu0 0.0
        %5028 = vmatpush1.msra.mxu0 %v4923
        %5029 = vmatprep.subr.mxu0 0.0
        %5030 = vmatpush1.msra.mxu0 %v4926
        %5031 = vmatprep.subr.mxu0 0.0
        %5032 = vmatpush1.msra.mxu0 %v4929
        %5033 = vmatprep.subr.mxu0 0.0
        %5034 = vmatpush1.msra.mxu0 0.0
        %5035 = vmatprep.subr.mxu0 0.0
        %5036 = vmatpush1.msra.mxu0 0.0
        %5037 = vmatprep.subr.mxu0 0.0
        %5038 = vmatpush1.msra.mxu0 0.0
        %5039 = vmatprep.subr.mxu0 0.0
        %5040 = vmatpush1.msra.mxu0 0.0
        %5041 = vmatprep.subr.mxu0 0.0
        %5042 = vmatpush1.msra.mxu0 0.0
        %5043 = vmatprep.subr.mxu0 0.0
        %5044 = vmatpush1.msra.mxu0 0.0
        %5045 = vmatprep.subr.mxu0 0.0
        %5046 = vmatpush1.msra.mxu0 0.0
        %5047 = vmatprep.subr.mxu0 0.0
        %5048 = vmatpush1.msra.mxu0 0.0
        %5049 = vmatprep.subr.mxu0 0.0
        %5050 = vmatpush1.msra.mxu0 0.0
        %5051 = vmatprep.subr.mxu0 0.0
        %5052 = vmatpush1.msra.mxu0 0.0
        %5053 = vmatprep.subr.mxu0 0.0
        %5054 = vmatpush1.msra.mxu0 0.0
        %5055 = vmatprep.subr.mxu0 0.0
        %5056 = vmatpush1.msra.mxu0 0.0
        %5057 = vmatprep.subr.mxu0 0.0
        %5058 = vmatpush1.msra.mxu0 0.0
        %5059 = vmatprep.subr.mxu0 0.0
        %5060 = vmatpush1.msra.mxu0 0.0
        %5061 = vmatprep.subr.mxu0 0.0
        %5062 = vmatpush1.msra.mxu0 0.0
        %5063 = vmatprep.subr.mxu0 0.0
        %5064 = vmatpush1.msra.mxu0 0.0
        %5065 = vmatprep.mubr.f32.mxu0 0.0
        %5066 = vmatmul.mubr.f32.gmra.mrb[0].mxu0 %v4476
        %v5067 = vpop.f32.mrb[0].mxu0
        %v5068 = vadd.f32 %v3082, %v5067
        %v5069 = vpop.f32.mrb[0].mxu0
        %5070 = vdwg.mxu0
        %v5071 = vadd.f32 %v4808, %v4997
        %v5072 = vxor.u32 %v5071, 2147483648
        %v5073 = vmul.f32 %v5072, 1.442695
        %v5074 = vpow.pop %v5073
        %v5075 = vadd.f32 %v5074, 1.0
        %v5076 = vrcp.pop %v5075
        %v5077 = vmul.f32 1.0, %v5076
        %v5078 = vadd.f32 %v4810, %v4999
        %v5079 = vxor.u32 %v5078, 2147483648
        %v5080 = vmul.f32 %v5079, 1.442695
        %v5081 = vpow.pop %v5080
        %v5082 = vadd.f32 %v5081, 1.0
        %v5083 = vrcp.pop %v5082
        %v5084 = vmul.f32 1.0, %v5083
        %v5085 = vmul.f32 %v5077, %v5068
        %v5086 = vadd.f32 %v4879, %v5085
        %v5087 = vtanh.pop %v5086
        %v5088 = vsub.f32 1.0, %v5084
        %v5089 = vmul.f32 %v5088, %v5087
        %v5090 = vmul.f32 %v5084, %v4476
        %v5091 = vadd.f32 %v5089, %v5090
        %s5092 = scalar_lea.vmem [#allocation4], 24
        %5093 = vst [vmem:[%s5092] sm:$0xff] %v5091
        %s5094 = scalar_lea.vmem [#allocation3], 96
        %v5095 = vld [vmem:[%s5094] sm:$0xff]
        %v5096 = vld [vmem:[%s5094 + $0x8] sm:$0xff]
        %v5097 = vld [vmem:[%s5094 + $0x10] sm:$0xff]
        %v5098 = vld [vmem:[#allocation25] sm:$0xff]
        %v5099 = vld [vmem:[#allocation25 + $0x8] sm:$0xff]
        %v5100 = vld [vmem:[#allocation25 + $0x10] sm:$0xff]
        %v5101 = vld [vmem:[#allocation25 + $0x18] sm:$0xff]
        %v5102 = vld [vmem:[#allocation25 + $0x20] sm:$0xff]
        %v5103 = vld [vmem:[#allocation25 + $0x28] sm:$0xff]
        %v5104 = vld [vmem:[#allocation25 + $0x30] sm:$0xff]
        %v5105 = vld [vmem:[#allocation25 + $0x38] sm:$0xff]
        %v5106 = vld [vmem:[#allocation25 + $0x40] sm:$0xff]
        %v5107 = vld [vmem:[#allocation25 + $0x48] sm:$0xff]
        %v5108 = vld [vmem:[#allocation25 + $0x50] sm:$0xff]
        %v5109 = vld [vmem:[#allocation25 + $0x58] sm:$0xff]
        %v5110 = vld [vmem:[#allocation25 + $0x60] sm:$0xff]
        %v5111 = vld [vmem:[#allocation25 + $0x68] sm:$0xff]
        %v5112 = vld [vmem:[#allocation25 + $0x70] sm:$0xff]
        %v5113 = vld [vmem:[#allocation25 + $0x78] sm:$0xff]
        %v5114 = vld [vmem:[#allocation25 + $0x80] sm:$0xff]
        %v5115 = vld [vmem:[#allocation25 + $0x88] sm:$0xff]
        %v5116 = vld [vmem:[#allocation25 + $0x90] sm:$0xff]
        %v5117 = vld [vmem:[#allocation25 + $0x98] sm:$0xff]
        %v5118 = vld [vmem:[#allocation25 + $0xa0] sm:$0xff]
        %v5119 = vld [vmem:[#allocation25 + $0xa8] sm:$0xff]
        %v5120 = vld [vmem:[#allocation25 + $0xb0] sm:$0xff]
        %v5121 = vld [vmem:[#allocation25 + $0xb8] sm:$0xff]
        %v5122 = vld [vmem:[#allocation25 + $0xc0] sm:$0xff]
        %v5123 = vld [vmem:[#allocation25 + $0xc8] sm:$0xff]
        %v5124 = vld [vmem:[#allocation25 + $0xd0] sm:$0xff]
        %v5125 = vld [vmem:[#allocation25 + $0xd8] sm:$0xff]
        %v5126 = vld [vmem:[#allocation25 + $0xe0] sm:$0xff]
        %v5127 = vld [vmem:[#allocation25 + $0xe8] sm:$0xff]
        %v5128 = vld [vmem:[#allocation25 + $0xf0] sm:$0xff]
        %v5129 = vld [vmem:[#allocation25 + $0xf8] sm:$0xff]
        %v5130 = vld [vmem:[#allocation25 + $0x100] sm:$0xff]
        %v5131 = vld [vmem:[#allocation25 + $0x108] sm:$0xff]
        %v5132 = vld [vmem:[#allocation25 + $0x110] sm:$0xff]
        %v5133 = vld [vmem:[#allocation25 + $0x118] sm:$0xff]
        %v5134 = vld [vmem:[#allocation25 + $0x120] sm:$0xff]
        %v5135 = vld [vmem:[#allocation25 + $0x128] sm:$0xff]
        %v5136 = vld [vmem:[#allocation25 + $0x130] sm:$0xff]
        %v5137 = vld [vmem:[#allocation25 + $0x138] sm:$0xff]
        %v5138 = vld [vmem:[#allocation25 + $0x140] sm:$0xff]
        %v5139 = vld [vmem:[#allocation25 + $0x148] sm:$0xff]
        %v5140 = vld [vmem:[#allocation25 + $0x150] sm:$0xff]
        %v5141 = vld [vmem:[#allocation25 + $0x158] sm:$0xff]
        %v5142 = vld [vmem:[#allocation25 + $0x160] sm:$0xff]
        %v5143 = vld [vmem:[#allocation25 + $0x168] sm:$0xff]
        %v5144 = vld [vmem:[#allocation25 + $0x170] sm:$0xff]
        %v5145 = vld [vmem:[#allocation25 + $0x178] sm:$0xff]
        %5146 = vmatprep.subr.mxu0 %v5099
        %5147 = vmatpush1.msra.mxu0 %v5098
        %5148 = vmatprep.subr.mxu0 %v5102
        %5149 = vmatpush1.msra.mxu0 %v5101
        %5150 = vmatprep.subr.mxu0 %v5105
        %5151 = vmatpush1.msra.mxu0 %v5104
        %5152 = vmatprep.subr.mxu0 %v5108
        %5153 = vmatpush1.msra.mxu0 %v5107
        %5154 = vmatprep.subr.mxu0 %v5111
        %5155 = vmatpush1.msra.mxu0 %v5110
        %5156 = vmatprep.subr.mxu0 %v5114
        %5157 = vmatpush1.msra.mxu0 %v5113
        %5158 = vmatprep.subr.mxu0 %v5117
        %5159 = vmatpush1.msra.mxu0 %v5116
        %5160 = vmatprep.subr.mxu0 %v5120
        %5161 = vmatpush1.msra.mxu0 %v5119
        %5162 = vmatprep.subr.mxu0 %v5123
        %5163 = vmatpush1.msra.mxu0 %v5122
        %5164 = vmatprep.subr.mxu0 %v5126
        %5165 = vmatpush1.msra.mxu0 %v5125
        %5166 = vmatprep.subr.mxu0 %v5129
        %5167 = vmatpush1.msra.mxu0 %v5128
        %5168 = vmatprep.subr.mxu0 %v5132
        %5169 = vmatpush1.msra.mxu0 %v5131
        %5170 = vmatprep.subr.mxu0 %v5135
        %5171 = vmatpush1.msra.mxu0 %v5134
        %5172 = vmatprep.subr.mxu0 %v5138
        %5173 = vmatpush1.msra.mxu0 %v5137
        %5174 = vmatprep.subr.mxu0 %v5141
        %5175 = vmatpush1.msra.mxu0 %v5140
        %5176 = vmatprep.subr.mxu0 %v5144
        %5177 = vmatpush1.msra.mxu0 %v5143
        %5178 = vmatprep.subr.mxu0 0.0
        %5179 = vmatpush1.msra.mxu0 0.0
        %5180 = vmatprep.subr.mxu0 0.0
        %5181 = vmatpush1.msra.mxu0 0.0
        %5182 = vmatprep.subr.mxu0 0.0
        %5183 = vmatpush1.msra.mxu0 0.0
        %5184 = vmatprep.subr.mxu0 0.0
        %5185 = vmatpush1.msra.mxu0 0.0
        %5186 = vmatprep.subr.mxu0 0.0
        %5187 = vmatpush1.msra.mxu0 0.0
        %5188 = vmatprep.subr.mxu0 0.0
        %5189 = vmatpush1.msra.mxu0 0.0
        %5190 = vmatprep.subr.mxu0 0.0
        %5191 = vmatpush1.msra.mxu0 0.0
        %5192 = vmatprep.subr.mxu0 0.0
        %5193 = vmatpush1.msra.mxu0 0.0
        %5194 = vmatprep.subr.mxu0 0.0
        %5195 = vmatpush1.msra.mxu0 0.0
        %5196 = vmatprep.subr.mxu0 0.0
        %5197 = vmatpush1.msra.mxu0 0.0
        %5198 = vmatprep.subr.mxu0 0.0
        %5199 = vmatpush1.msra.mxu0 0.0
        %5200 = vmatprep.subr.mxu0 0.0
        %5201 = vmatpush1.msra.mxu0 0.0
        %5202 = vmatprep.subr.mxu0 0.0
        %5203 = vmatpush1.msra.mxu0 0.0
        %5204 = vmatprep.subr.mxu0 0.0
        %5205 = vmatpush1.msra.mxu0 0.0
        %5206 = vmatprep.subr.mxu0 0.0
        %5207 = vmatpush1.msra.mxu0 0.0
        %5208 = vmatprep.subr.mxu0 0.0
        %5209 = vmatpush1.msra.mxu0 0.0
        %5210 = vmatprep.mubr.f32.mxu0 0.0
        %5211 = vmatmul.mubr.f32.gmra.mrb[0].mxu0 %v4692
        %v5212 = vpop.f32.mrb[0].mxu0
        %v5213 = vadd.f32 %v2643, %v5212
        %v5214 = vpop.f32.mrb[0].mxu0
        %v5215 = vadd.f32 %v2647, %v5214
        %5216 = vdwg.mxu0
        %5217 = vmatprep.subr.mxu0 0.0
        %5218 = vmatpush1.msra.mxu0 %v5100
        %5219 = vmatprep.subr.mxu0 0.0
        %5220 = vmatpush1.msra.mxu0 %v5103
        %5221 = vmatprep.subr.mxu0 0.0
        %5222 = vmatpush1.msra.mxu0 %v5106
        %5223 = vmatprep.subr.mxu0 0.0
        %5224 = vmatpush1.msra.mxu0 %v5109
        %5225 = vmatprep.subr.mxu0 0.0
        %5226 = vmatpush1.msra.mxu0 %v5112
        %5227 = vmatprep.subr.mxu0 0.0
        %5228 = vmatpush1.msra.mxu0 %v5115
        %5229 = vmatprep.subr.mxu0 0.0
        %5230 = vmatpush1.msra.mxu0 %v5118
        %5231 = vmatprep.subr.mxu0 0.0
        %5232 = vmatpush1.msra.mxu0 %v5121
        %5233 = vmatprep.subr.mxu0 0.0
        %5234 = vmatpush1.msra.mxu0 %v5124
        %5235 = vmatprep.subr.mxu0 0.0
        %5236 = vmatpush1.msra.mxu0 %v5127
        %5237 = vmatprep.subr.mxu0 0.0
        %5238 = vmatpush1.msra.mxu0 %v5130
        %5239 = vmatprep.subr.mxu0 0.0
        %5240 = vmatpush1.msra.mxu0 %v5133
        %5241 = vmatprep.subr.mxu0 0.0
        %5242 = vmatpush1.msra.mxu0 %v5136
        %5243 = vmatprep.subr.mxu0 0.0
        %5244 = vmatpush1.msra.mxu0 %v5139
        %5245 = vmatprep.subr.mxu0 0.0
        %5246 = vmatpush1.msra.mxu0 %v5142
        %5247 = vmatprep.subr.mxu0 0.0
        %5248 = vmatpush1.msra.mxu0 %v5145
        %5249 = vmatprep.subr.mxu0 0.0
        %5250 = vmatpush1.msra.mxu0 0.0
        %5251 = vmatprep.subr.mxu0 0.0
        %5252 = vmatpush1.msra.mxu0 0.0
        %5253 = vmatprep.subr.mxu0 0.0
        %5254 = vmatpush1.msra.mxu0 0.0
        %5255 = vmatprep.subr.mxu0 0.0
        %5256 = vmatpush1.msra.mxu0 0.0
        %5257 = vmatprep.subr.mxu0 0.0
        %5258 = vmatpush1.msra.mxu0 0.0
        %5259 = vmatprep.subr.mxu0 0.0
        %5260 = vmatpush1.msra.mxu0 0.0
        %5261 = vmatprep.subr.mxu0 0.0
        %5262 = vmatpush1.msra.mxu0 0.0
        %5263 = vmatprep.subr.mxu0 0.0
        %5264 = vmatpush1.msra.mxu0 0.0
        %5265 = vmatprep.subr.mxu0 0.0
        %5266 = vmatpush1.msra.mxu0 0.0
        %5267 = vmatprep.subr.mxu0 0.0
        %5268 = vmatpush1.msra.mxu0 0.0
        %5269 = vmatprep.subr.mxu0 0.0
        %5270 = vmatpush1.msra.mxu0 0.0
        %5271 = vmatprep.subr.mxu0 0.0
        %5272 = vmatpush1.msra.mxu0 0.0
        %5273 = vmatprep.subr.mxu0 0.0
        %5274 = vmatpush1.msra.mxu0 0.0
        %5275 = vmatprep.subr.mxu0 0.0
        %5276 = vmatpush1.msra.mxu0 0.0
        %5277 = vmatprep.subr.mxu0 0.0
        %5278 = vmatpush1.msra.mxu0 0.0
        %5279 = vmatprep.subr.mxu0 0.0
        %5280 = vmatpush1.msra.mxu0 0.0
        %5281 = vmatprep.mubr.f32.mxu0 0.0
        %5282 = vmatmul.mubr.f32.gmra.mrb[0].mxu0 %v4692
        %v5283 = vpop.f32.mrb[0].mxu0
        %v5284 = vadd.f32 %v2651, %v5283
        %v5285 = vpop.f32.mrb[0].mxu0
        %5286 = vdwg.mxu0
        %v5287 = vadd.f32 %v5095, %v5213
        %v5288 = vxor.u32 %v5287, 2147483648
        %v5289 = vmul.f32 %v5288, 1.442695
        %v5290 = vpow.pop %v5289
        %v5291 = vadd.f32 %v5290, 1.0
        %v5292 = vrcp.pop %v5291
        %v5293 = vmul.f32 1.0, %v5292
        %v5294 = vadd.f32 %v5096, %v5215
        %v5295 = vxor.u32 %v5294, 2147483648
        %v5296 = vmul.f32 %v5295, 1.442695
        %v5297 = vpow.pop %v5296
        %v5298 = vadd.f32 %v5297, 1.0
        %v5299 = vrcp.pop %v5298
        %v5300 = vmul.f32 1.0, %v5299
        %v5301 = vmul.f32 %v5293, %v5284
        %v5302 = vadd.f32 %v5097, %v5301
        %v5303 = vtanh.pop %v5302
        %v5304 = vsub.f32 1.0, %v5300
        %v5305 = vmul.f32 %v5304, %v5303
        %v5306 = vmul.f32 %v5300, %v4692
        %v5307 = vadd.f32 %v5305, %v5306
        %v5308 = vld [vmem:[#allocation26] sm:$0xff]
        %v5309 = vld [vmem:[#allocation26 + $0x8] sm:$0xff]
        %v5310 = vld [vmem:[#allocation26 + $0x10] sm:$0xff]
        %v5311 = vld [vmem:[#allocation26 + $0x18] sm:$0xff]
        %v5312 = vld [vmem:[#allocation26 + $0x20] sm:$0xff]
        %v5313 = vld [vmem:[#allocation26 + $0x28] sm:$0xff]
        %v5314 = vld [vmem:[#allocation26 + $0x30] sm:$0xff]
        %v5315 = vld [vmem:[#allocation26 + $0x38] sm:$0xff]
        %v5316 = vld [vmem:[#allocation26 + $0x40] sm:$0xff]
        %v5317 = vld [vmem:[#allocation26 + $0x48] sm:$0xff]
        %v5318 = vld [vmem:[#allocation26 + $0x50] sm:$0xff]
        %v5319 = vld [vmem:[#allocation26 + $0x58] sm:$0xff]
        %v5320 = vld [vmem:[#allocation26 + $0x60] sm:$0xff]
        %v5321 = vld [vmem:[#allocation26 + $0x68] sm:$0xff]
        %v5322 = vld [vmem:[#allocation26 + $0x70] sm:$0xff]
        %v5323 = vld [vmem:[#allocation26 + $0x78] sm:$0xff]
        %v5324 = vld [vmem:[#allocation26 + $0x80] sm:$0xff]
        %v5325 = vld [vmem:[#allocation26 + $0x88] sm:$0xff]
        %v5326 = vld [vmem:[#allocation26 + $0x90] sm:$0xff]
        %v5327 = vld [vmem:[#allocation26 + $0x98] sm:$0xff]
        %v5328 = vld [vmem:[#allocation26 + $0xa0] sm:$0xff]
        %v5329 = vld [vmem:[#allocation26 + $0xa8] sm:$0xff]
        %v5330 = vld [vmem:[#allocation26 + $0xb0] sm:$0xff]
        %v5331 = vld [vmem:[#allocation26 + $0xb8] sm:$0xff]
        %v5332 = vld [vmem:[#allocation26 + $0xc0] sm:$0xff]
        %v5333 = vld [vmem:[#allocation26 + $0xc8] sm:$0xff]
        %v5334 = vld [vmem:[#allocation26 + $0xd0] sm:$0xff]
        %v5335 = vld [vmem:[#allocation26 + $0xd8] sm:$0xff]
        %v5336 = vld [vmem:[#allocation26 + $0xe0] sm:$0xff]
        %v5337 = vld [vmem:[#allocation26 + $0xe8] sm:$0xff]
        %v5338 = vld [vmem:[#allocation26 + $0xf0] sm:$0xff]
        %v5339 = vld [vmem:[#allocation26 + $0xf8] sm:$0xff]
        %v5340 = vld [vmem:[#allocation26 + $0x100] sm:$0xff]
        %v5341 = vld [vmem:[#allocation26 + $0x108] sm:$0xff]
        %v5342 = vld [vmem:[#allocation26 + $0x110] sm:$0xff]
        %v5343 = vld [vmem:[#allocation26 + $0x118] sm:$0xff]
        %v5344 = vld [vmem:[#allocation26 + $0x120] sm:$0xff]
        %v5345 = vld [vmem:[#allocation26 + $0x128] sm:$0xff]
        %v5346 = vld [vmem:[#allocation26 + $0x130] sm:$0xff]
        %v5347 = vld [vmem:[#allocation26 + $0x138] sm:$0xff]
        %v5348 = vld [vmem:[#allocation26 + $0x140] sm:$0xff]
        %v5349 = vld [vmem:[#allocation26 + $0x148] sm:$0xff]
        %v5350 = vld [vmem:[#allocation26 + $0x150] sm:$0xff]
        %v5351 = vld [vmem:[#allocation26 + $0x158] sm:$0xff]
        %v5352 = vld [vmem:[#allocation26 + $0x160] sm:$0xff]
        %v5353 = vld [vmem:[#allocation26 + $0x168] sm:$0xff]
        %v5354 = vld [vmem:[#allocation26 + $0x170] sm:$0xff]
        %v5355 = vld [vmem:[#allocation26 + $0x178] sm:$0xff]
        %5356 = vmatprep.subr.mxu0 %v5309
        %5357 = vmatpush1.msra.mxu0 %v5308
        %5358 = vmatprep.subr.mxu0 %v5312
        %5359 = vmatpush1.msra.mxu0 %v5311
        %5360 = vmatprep.subr.mxu0 %v5315
        %5361 = vmatpush1.msra.mxu0 %v5314
        %5362 = vmatprep.subr.mxu0 %v5318
        %5363 = vmatpush1.msra.mxu0 %v5317
        %5364 = vmatprep.subr.mxu0 %v5321
        %5365 = vmatpush1.msra.mxu0 %v5320
        %5366 = vmatprep.subr.mxu0 %v5324
        %5367 = vmatpush1.msra.mxu0 %v5323
        %5368 = vmatprep.subr.mxu0 %v5327
        %5369 = vmatpush1.msra.mxu0 %v5326
        %5370 = vmatprep.subr.mxu0 %v5330
        %5371 = vmatpush1.msra.mxu0 %v5329
        %5372 = vmatprep.subr.mxu0 %v5333
        %5373 = vmatpush1.msra.mxu0 %v5332
        %5374 = vmatprep.subr.mxu0 %v5336
        %5375 = vmatpush1.msra.mxu0 %v5335
        %5376 = vmatprep.subr.mxu0 %v5339
        %5377 = vmatpush1.msra.mxu0 %v5338
        %5378 = vmatprep.subr.mxu0 %v5342
        %5379 = vmatpush1.msra.mxu0 %v5341
        %5380 = vmatprep.subr.mxu0 %v5345
        %5381 = vmatpush1.msra.mxu0 %v5344
        %5382 = vmatprep.subr.mxu0 %v5348
        %5383 = vmatpush1.msra.mxu0 %v5347
        %5384 = vmatprep.subr.mxu0 %v5351
        %5385 = vmatpush1.msra.mxu0 %v5350
        %5386 = vmatprep.subr.mxu0 %v5354
        %5387 = vmatpush1.msra.mxu0 %v5353
        %5388 = vmatprep.subr.mxu0 0.0
        %5389 = vmatpush1.msra.mxu0 0.0
        %5390 = vmatprep.subr.mxu0 0.0
        %5391 = vmatpush1.msra.mxu0 0.0
        %5392 = vmatprep.subr.mxu0 0.0
        %5393 = vmatpush1.msra.mxu0 0.0
        %5394 = vmatprep.subr.mxu0 0.0
        %5395 = vmatpush1.msra.mxu0 0.0
        %5396 = vmatprep.subr.mxu0 0.0
        %5397 = vmatpush1.msra.mxu0 0.0
        %5398 = vmatprep.subr.mxu0 0.0
        %5399 = vmatpush1.msra.mxu0 0.0
        %5400 = vmatprep.subr.mxu0 0.0
        %5401 = vmatpush1.msra.mxu0 0.0
        %5402 = vmatprep.subr.mxu0 0.0
        %5403 = vmatpush1.msra.mxu0 0.0
        %5404 = vmatprep.subr.mxu0 0.0
        %5405 = vmatpush1.msra.mxu0 0.0
        %5406 = vmatprep.subr.mxu0 0.0
        %5407 = vmatpush1.msra.mxu0 0.0
        %5408 = vmatprep.subr.mxu0 0.0
        %5409 = vmatpush1.msra.mxu0 0.0
        %5410 = vmatprep.subr.mxu0 0.0
        %5411 = vmatpush1.msra.mxu0 0.0
        %5412 = vmatprep.subr.mxu0 0.0
        %5413 = vmatpush1.msra.mxu0 0.0
        %5414 = vmatprep.subr.mxu0 0.0
        %5415 = vmatpush1.msra.mxu0 0.0
        %5416 = vmatprep.subr.mxu0 0.0
        %5417 = vmatpush1.msra.mxu0 0.0
        %5418 = vmatprep.subr.mxu0 0.0
        %5419 = vmatpush1.msra.mxu0 0.0
        %5420 = vmatprep.mubr.f32.mxu0 0.0
        %5421 = vmatmul.mubr.f32.gmra.mrb[0].mxu0 %v5307
        %v5422 = vpop.f32.mrb[0].mxu0
        %v5423 = vadd.f32 %v2869, %v5422
        %v5424 = vpop.f32.mrb[0].mxu0
        %v5425 = vadd.f32 %v2873, %v5424
        %5426 = vdwg.mxu0
        %5427 = vmatprep.subr.mxu0 0.0
        %5428 = vmatpush1.msra.mxu0 %v5310
        %5429 = vmatprep.subr.mxu0 0.0
        %5430 = vmatpush1.msra.mxu0 %v5313
        %5431 = vmatprep.subr.mxu0 0.0
        %5432 = vmatpush1.msra.mxu0 %v5316
        %5433 = vmatprep.subr.mxu0 0.0
        %5434 = vmatpush1.msra.mxu0 %v5319
        %5435 = vmatprep.subr.mxu0 0.0
        %5436 = vmatpush1.msra.mxu0 %v5322
        %5437 = vmatprep.subr.mxu0 0.0
        %5438 = vmatpush1.msra.mxu0 %v5325
        %5439 = vmatprep.subr.mxu0 0.0
        %5440 = vmatpush1.msra.mxu0 %v5328
        %5441 = vmatprep.subr.mxu0 0.0
        %5442 = vmatpush1.msra.mxu0 %v5331
        %5443 = vmatprep.subr.mxu0 0.0
        %5444 = vmatpush1.msra.mxu0 %v5334
        %5445 = vmatprep.subr.mxu0 0.0
        %5446 = vmatpush1.msra.mxu0 %v5337
        %5447 = vmatprep.subr.mxu0 0.0
        %5448 = vmatpush1.msra.mxu0 %v5340
        %5449 = vmatprep.subr.mxu0 0.0
        %5450 = vmatpush1.msra.mxu0 %v5343
        %5451 = vmatprep.subr.mxu0 0.0
        %5452 = vmatpush1.msra.mxu0 %v5346
        %5453 = vmatprep.subr.mxu0 0.0
        %5454 = vmatpush1.msra.mxu0 %v5349
        %5455 = vmatprep.subr.mxu0 0.0
        %5456 = vmatpush1.msra.mxu0 %v5352
        %5457 = vmatprep.subr.mxu0 0.0
        %5458 = vmatpush1.msra.mxu0 %v5355
        %5459 = vmatprep.subr.mxu0 0.0
        %5460 = vmatpush1.msra.mxu0 0.0
        %5461 = vmatprep.subr.mxu0 0.0
        %5462 = vmatpush1.msra.mxu0 0.0
        %5463 = vmatprep.subr.mxu0 0.0
        %5464 = vmatpush1.msra.mxu0 0.0
        %5465 = vmatprep.subr.mxu0 0.0
        %5466 = vmatpush1.msra.mxu0 0.0
        %5467 = vmatprep.subr.mxu0 0.0
        %5468 = vmatpush1.msra.mxu0 0.0
        %5469 = vmatprep.subr.mxu0 0.0
        %5470 = vmatpush1.msra.mxu0 0.0
        %5471 = vmatprep.subr.mxu0 0.0
        %5472 = vmatpush1.msra.mxu0 0.0
        %5473 = vmatprep.subr.mxu0 0.0
        %5474 = vmatpush1.msra.mxu0 0.0
        %5475 = vmatprep.subr.mxu0 0.0
        %5476 = vmatpush1.msra.mxu0 0.0
        %5477 = vmatprep.subr.mxu0 0.0
        %5478 = vmatpush1.msra.mxu0 0.0
        %5479 = vmatprep.subr.mxu0 0.0
        %5480 = vmatpush1.msra.mxu0 0.0
        %5481 = vmatprep.subr.mxu0 0.0
        %5482 = vmatpush1.msra.mxu0 0.0
        %5483 = vmatprep.subr.mxu0 0.0
        %5484 = vmatpush1.msra.mxu0 0.0
        %5485 = vmatprep.subr.mxu0 0.0
        %5486 = vmatpush1.msra.mxu0 0.0
        %5487 = vmatprep.subr.mxu0 0.0
        %5488 = vmatpush1.msra.mxu0 0.0
        %5489 = vmatprep.subr.mxu0 0.0
        %5490 = vmatpush1.msra.mxu0 0.0
        %5491 = vmatprep.mubr.f32.mxu0 0.0
        %5492 = vmatmul.mubr.f32.gmra.mrb[0].mxu0 %v5307
        %v5493 = vpop.f32.mrb[0].mxu0
        %v5494 = vadd.f32 %v2877, %v5493
        %v5495 = vpop.f32.mrb[0].mxu0
        %5496 = vdwg.mxu0
        %v5497 = vld [vmem:[#allocation28] sm:$0xff]
        %v5498 = vld [vmem:[#allocation28 + $0x8] sm:$0xff]
        %v5499 = vld [vmem:[#allocation28 + $0x10] sm:$0xff]
        %v5500 = vld [vmem:[#allocation28 + $0x18] sm:$0xff]
        %v5501 = vld [vmem:[#allocation28 + $0x20] sm:$0xff]
        %v5502 = vld [vmem:[#allocation28 + $0x28] sm:$0xff]
        %v5503 = vld [vmem:[#allocation28 + $0x30] sm:$0xff]
        %v5504 = vld [vmem:[#allocation28 + $0x38] sm:$0xff]
        %v5505 = vld [vmem:[#allocation28 + $0x40] sm:$0xff]
        %v5506 = vld [vmem:[#allocation28 + $0x48] sm:$0xff]
        %v5507 = vld [vmem:[#allocation28 + $0x50] sm:$0xff]
        %v5508 = vld [vmem:[#allocation28 + $0x58] sm:$0xff]
        %v5509 = vld [vmem:[#allocation28 + $0x60] sm:$0xff]
        %v5510 = vld [vmem:[#allocation28 + $0x68] sm:$0xff]
        %v5511 = vld [vmem:[#allocation28 + $0x70] sm:$0xff]
        %v5512 = vld [vmem:[#allocation28 + $0x78] sm:$0xff]
        %v5513 = vld [vmem:[#allocation28 + $0x80] sm:$0xff]
        %v5514 = vld [vmem:[#allocation28 + $0x88] sm:$0xff]
        %v5515 = vld [vmem:[#allocation28 + $0x90] sm:$0xff]
        %v5516 = vld [vmem:[#allocation28 + $0x98] sm:$0xff]
        %v5517 = vld [vmem:[#allocation28 + $0xa0] sm:$0xff]
        %v5518 = vld [vmem:[#allocation28 + $0xa8] sm:$0xff]
        %v5519 = vld [vmem:[#allocation28 + $0xb0] sm:$0xff]
        %v5520 = vld [vmem:[#allocation28 + $0xb8] sm:$0xff]
        %v5521 = vld [vmem:[#allocation28 + $0xc0] sm:$0xff]
        %v5522 = vld [vmem:[#allocation28 + $0xc8] sm:$0xff]
        %v5523 = vld [vmem:[#allocation28 + $0xd0] sm:$0xff]
        %v5524 = vld [vmem:[#allocation28 + $0xd8] sm:$0xff]
        %v5525 = vld [vmem:[#allocation28 + $0xe0] sm:$0xff]
        %v5526 = vld [vmem:[#allocation28 + $0xe8] sm:$0xff]
        %v5527 = vld [vmem:[#allocation28 + $0xf0] sm:$0xff]
        %v5528 = vld [vmem:[#allocation28 + $0xf8] sm:$0xff]
        %v5529 = vld [vmem:[#allocation28 + $0x100] sm:$0xff]
        %v5530 = vld [vmem:[#allocation28 + $0x108] sm:$0xff]
        %v5531 = vld [vmem:[#allocation28 + $0x110] sm:$0xff]
        %v5532 = vld [vmem:[#allocation28 + $0x118] sm:$0xff]
        %v5533 = vld [vmem:[#allocation28 + $0x120] sm:$0xff]
        %v5534 = vld [vmem:[#allocation28 + $0x128] sm:$0xff]
        %v5535 = vld [vmem:[#allocation28 + $0x130] sm:$0xff]
        %v5536 = vld [vmem:[#allocation28 + $0x138] sm:$0xff]
        %v5537 = vld [vmem:[#allocation28 + $0x140] sm:$0xff]
        %v5538 = vld [vmem:[#allocation28 + $0x148] sm:$0xff]
        %v5539 = vld [vmem:[#allocation28 + $0x150] sm:$0xff]
        %v5540 = vld [vmem:[#allocation28 + $0x158] sm:$0xff]
        %v5541 = vld [vmem:[#allocation28 + $0x160] sm:$0xff]
        %v5542 = vld [vmem:[#allocation28 + $0x168] sm:$0xff]
        %v5543 = vld [vmem:[#allocation28 + $0x170] sm:$0xff]
        %v5544 = vld [vmem:[#allocation28 + $0x178] sm:$0xff]
        %5545 = vmatprep.subr.mxu0 %v5498
        %5546 = vmatpush1.msra.mxu0 %v5497
        %5547 = vmatprep.subr.mxu0 %v5501
        %5548 = vmatpush1.msra.mxu0 %v5500
        %5549 = vmatprep.subr.mxu0 %v5504
        %5550 = vmatpush1.msra.mxu0 %v5503
        %5551 = vmatprep.subr.mxu0 %v5507
        %5552 = vmatpush1.msra.mxu0 %v5506
        %5553 = vmatprep.subr.mxu0 %v5510
        %5554 = vmatpush1.msra.mxu0 %v5509
        %5555 = vmatprep.subr.mxu0 %v5513
        %5556 = vmatpush1.msra.mxu0 %v5512
        %5557 = vmatprep.subr.mxu0 %v5516
        %5558 = vmatpush1.msra.mxu0 %v5515
        %5559 = vmatprep.subr.mxu0 %v5519
        %5560 = vmatpush1.msra.mxu0 %v5518
        %5561 = vmatprep.subr.mxu0 %v5522
        %5562 = vmatpush1.msra.mxu0 %v5521
        %5563 = vmatprep.subr.mxu0 %v5525
        %5564 = vmatpush1.msra.mxu0 %v5524
        %5565 = vmatprep.subr.mxu0 %v5528
        %5566 = vmatpush1.msra.mxu0 %v5527
        %5567 = vmatprep.subr.mxu0 %v5531
        %5568 = vmatpush1.msra.mxu0 %v5530
        %5569 = vmatprep.subr.mxu0 %v5534
        %5570 = vmatpush1.msra.mxu0 %v5533
        %5571 = vmatprep.subr.mxu0 %v5537
        %5572 = vmatpush1.msra.mxu0 %v5536
        %5573 = vmatprep.subr.mxu0 %v5540
        %5574 = vmatpush1.msra.mxu0 %v5539
        %5575 = vmatprep.subr.mxu0 %v5543
        %5576 = vmatpush1.msra.mxu0 %v5542
        %5577 = vmatprep.subr.mxu0 0.0
        %5578 = vmatpush1.msra.mxu0 0.0
        %5579 = vmatprep.subr.mxu0 0.0
        %5580 = vmatpush1.msra.mxu0 0.0
        %5581 = vmatprep.subr.mxu0 0.0
        %5582 = vmatpush1.msra.mxu0 0.0
        %5583 = vmatprep.subr.mxu0 0.0
        %5584 = vmatpush1.msra.mxu0 0.0
        %5585 = vmatprep.subr.mxu0 0.0
        %5586 = vmatpush1.msra.mxu0 0.0
        %5587 = vmatprep.subr.mxu0 0.0
        %5588 = vmatpush1.msra.mxu0 0.0
        %5589 = vmatprep.subr.mxu0 0.0
        %5590 = vmatpush1.msra.mxu0 0.0
        %5591 = vmatprep.subr.mxu0 0.0
        %5592 = vmatpush1.msra.mxu0 0.0
        %5593 = vmatprep.subr.mxu0 0.0
        %5594 = vmatpush1.msra.mxu0 0.0
        %5595 = vmatprep.subr.mxu0 0.0
        %5596 = vmatpush1.msra.mxu0 0.0
        %5597 = vmatprep.subr.mxu0 0.0
        %5598 = vmatpush1.msra.mxu0 0.0
        %5599 = vmatprep.subr.mxu0 0.0
        %5600 = vmatpush1.msra.mxu0 0.0
        %5601 = vmatprep.subr.mxu0 0.0
        %5602 = vmatpush1.msra.mxu0 0.0
        %5603 = vmatprep.subr.mxu0 0.0
        %5604 = vmatpush1.msra.mxu0 0.0
        %5605 = vmatprep.subr.mxu0 0.0
        %5606 = vmatpush1.msra.mxu0 0.0
        %5607 = vmatprep.subr.mxu0 0.0
        %5608 = vmatpush1.msra.mxu0 0.0
        %5609 = vmatprep.mubr.f32.mxu0 0.0
        %5610 = vmatmul.mubr.f32.gmra.mrb[0].mxu0 %v5091
        %v5611 = vpop.f32.mrb[0].mxu0
        %v5612 = vadd.f32 %v3074, %v5611
        %v5613 = vpop.f32.mrb[0].mxu0
        %v5614 = vadd.f32 %v3078, %v5613
        %5615 = vdwg.mxu0
        %5616 = vmatprep.subr.mxu0 0.0
        %5617 = vmatpush1.msra.mxu0 %v5499
        %5618 = vmatprep.subr.mxu0 0.0
        %5619 = vmatpush1.msra.mxu0 %v5502
        %5620 = vmatprep.subr.mxu0 0.0
        %5621 = vmatpush1.msra.mxu0 %v5505
        %5622 = vmatprep.subr.mxu0 0.0
        %5623 = vmatpush1.msra.mxu0 %v5508
        %5624 = vmatprep.subr.mxu0 0.0
        %5625 = vmatpush1.msra.mxu0 %v5511
        %5626 = vmatprep.subr.mxu0 0.0
        %5627 = vmatpush1.msra.mxu0 %v5514
        %5628 = vmatprep.subr.mxu0 0.0
        %5629 = vmatpush1.msra.mxu0 %v5517
        %5630 = vmatprep.subr.mxu0 0.0
        %5631 = vmatpush1.msra.mxu0 %v5520
        %5632 = vmatprep.subr.mxu0 0.0
        %5633 = vmatpush1.msra.mxu0 %v5523
        %5634 = vmatprep.subr.mxu0 0.0
        %5635 = vmatpush1.msra.mxu0 %v5526
        %5636 = vmatprep.subr.mxu0 0.0
        %5637 = vmatpush1.msra.mxu0 %v5529
        %5638 = vmatprep.subr.mxu0 0.0
        %5639 = vmatpush1.msra.mxu0 %v5532
        %5640 = vmatprep.subr.mxu0 0.0
        %5641 = vmatpush1.msra.mxu0 %v5535
        %5642 = vmatprep.subr.mxu0 0.0
        %5643 = vmatpush1.msra.mxu0 %v5538
        %5644 = vmatprep.subr.mxu0 0.0
        %5645 = vmatpush1.msra.mxu0 %v5541
        %5646 = vmatprep.subr.mxu0 0.0
        %5647 = vmatpush1.msra.mxu0 %v5544
        %5648 = vmatprep.subr.mxu0 0.0
        %5649 = vmatpush1.msra.mxu0 0.0
        %5650 = vmatprep.subr.mxu0 0.0
        %5651 = vmatpush1.msra.mxu0 0.0
        %5652 = vmatprep.subr.mxu0 0.0
        %5653 = vmatpush1.msra.mxu0 0.0
        %5654 = vmatprep.subr.mxu0 0.0
        %5655 = vmatpush1.msra.mxu0 0.0
        %5656 = vmatprep.subr.mxu0 0.0
        %5657 = vmatpush1.msra.mxu0 0.0
        %5658 = vmatprep.subr.mxu0 0.0
        %5659 = vmatpush1.msra.mxu0 0.0
        %5660 = vmatprep.subr.mxu0 0.0
        %5661 = vmatpush1.msra.mxu0 0.0
        %5662 = vmatprep.subr.mxu0 0.0
        %5663 = vmatpush1.msra.mxu0 0.0
        %5664 = vmatprep.subr.mxu0 0.0
        %5665 = vmatpush1.msra.mxu0 0.0
        %5666 = vmatprep.subr.mxu0 0.0
        %5667 = vmatpush1.msra.mxu0 0.0
        %5668 = vmatprep.subr.mxu0 0.0
        %5669 = vmatpush1.msra.mxu0 0.0
        %5670 = vmatprep.subr.mxu0 0.0
        %5671 = vmatpush1.msra.mxu0 0.0
        %5672 = vmatprep.subr.mxu0 0.0
        %5673 = vmatpush1.msra.mxu0 0.0
        %5674 = vmatprep.subr.mxu0 0.0
        %5675 = vmatpush1.msra.mxu0 0.0
        %5676 = vmatprep.subr.mxu0 0.0
        %5677 = vmatpush1.msra.mxu0 0.0
        %5678 = vmatprep.subr.mxu0 0.0
        %5679 = vmatpush1.msra.mxu0 0.0
        %5680 = vmatprep.mubr.f32.mxu0 0.0
        %5681 = vmatmul.mubr.f32.gmra.mrb[0].mxu0 %v5091
        %v5682 = vpop.f32.mrb[0].mxu0
        %v5683 = vadd.f32 %v3082, %v5682
        %v5684 = vpop.f32.mrb[0].mxu0
        %5685 = vdwg.mxu0
        %v5686 = vadd.f32 %v5423, %v5612
        %v5687 = vxor.u32 %v5686, 2147483648
        %v5688 = vmul.f32 %v5687, 1.442695
        %v5689 = vpow.pop %v5688
        %v5690 = vadd.f32 %v5689, 1.0
        %v5691 = vrcp.pop %v5690
        %v5692 = vmul.f32 1.0, %v5691
        %v5693 = vadd.f32 %v5425, %v5614
        %v5694 = vxor.u32 %v5693, 2147483648
        %v5695 = vmul.f32 %v5694, 1.442695
        %v5696 = vpow.pop %v5695
        %v5697 = vadd.f32 %v5696, 1.0
        %v5698 = vrcp.pop %v5697
        %v5699 = vmul.f32 1.0, %v5698
        %v5700 = vmul.f32 %v5692, %v5683
        %v5701 = vadd.f32 %v5494, %v5700
        %v5702 = vtanh.pop %v5701
        %v5703 = vsub.f32 1.0, %v5699
        %v5704 = vmul.f32 %v5703, %v5702
        %v5705 = vmul.f32 %v5699, %v5091
        %v5706 = vadd.f32 %v5704, %v5705
        %s5707 = scalar_lea.vmem [#allocation4], 32
        %5708 = vst [vmem:[%s5707] sm:$0xff] %v5706
        %s5709 = scalar_lea.vmem [#allocation3], 120
        %v5710 = vld [vmem:[%s5709] sm:$0xff]
        %v5711 = vld [vmem:[%s5709 + $0x8] sm:$0xff]
        %v5712 = vld [vmem:[%s5709 + $0x10] sm:$0xff]
        %v5713 = vld [vmem:[#allocation25] sm:$0xff]
        %v5714 = vld [vmem:[#allocation25 + $0x8] sm:$0xff]
        %v5715 = vld [vmem:[#allocation25 + $0x10] sm:$0xff]
        %v5716 = vld [vmem:[#allocation25 + $0x18] sm:$0xff]
        %v5717 = vld [vmem:[#allocation25 + $0x20] sm:$0xff]
        %v5718 = vld [vmem:[#allocation25 + $0x28] sm:$0xff]
        %v5719 = vld [vmem:[#allocation25 + $0x30] sm:$0xff]
        %v5720 = vld [vmem:[#allocation25 + $0x38] sm:$0xff]
        %v5721 = vld [vmem:[#allocation25 + $0x40] sm:$0xff]
        %v5722 = vld [vmem:[#allocation25 + $0x48] sm:$0xff]
        %v5723 = vld [vmem:[#allocation25 + $0x50] sm:$0xff]
        %v5724 = vld [vmem:[#allocation25 + $0x58] sm:$0xff]
        %v5725 = vld [vmem:[#allocation25 + $0x60] sm:$0xff]
        %v5726 = vld [vmem:[#allocation25 + $0x68] sm:$0xff]
        %v5727 = vld [vmem:[#allocation25 + $0x70] sm:$0xff]
        %v5728 = vld [vmem:[#allocation25 + $0x78] sm:$0xff]
        %v5729 = vld [vmem:[#allocation25 + $0x80] sm:$0xff]
        %v5730 = vld [vmem:[#allocation25 + $0x88] sm:$0xff]
        %v5731 = vld [vmem:[#allocation25 + $0x90] sm:$0xff]
        %v5732 = vld [vmem:[#allocation25 + $0x98] sm:$0xff]
        %v5733 = vld [vmem:[#allocation25 + $0xa0] sm:$0xff]
        %v5734 = vld [vmem:[#allocation25 + $0xa8] sm:$0xff]
        %v5735 = vld [vmem:[#allocation25 + $0xb0] sm:$0xff]
        %v5736 = vld [vmem:[#allocation25 + $0xb8] sm:$0xff]
        %v5737 = vld [vmem:[#allocation25 + $0xc0] sm:$0xff]
        %v5738 = vld [vmem:[#allocation25 + $0xc8] sm:$0xff]
        %v5739 = vld [vmem:[#allocation25 + $0xd0] sm:$0xff]
        %v5740 = vld [vmem:[#allocation25 + $0xd8] sm:$0xff]
        %v5741 = vld [vmem:[#allocation25 + $0xe0] sm:$0xff]
        %v5742 = vld [vmem:[#allocation25 + $0xe8] sm:$0xff]
        %v5743 = vld [vmem:[#allocation25 + $0xf0] sm:$0xff]
        %v5744 = vld [vmem:[#allocation25 + $0xf8] sm:$0xff]
        %v5745 = vld [vmem:[#allocation25 + $0x100] sm:$0xff]
        %v5746 = vld [vmem:[#allocation25 + $0x108] sm:$0xff]
        %v5747 = vld [vmem:[#allocation25 + $0x110] sm:$0xff]
        %v5748 = vld [vmem:[#allocation25 + $0x118] sm:$0xff]
        %v5749 = vld [vmem:[#allocation25 + $0x120] sm:$0xff]
        %v5750 = vld [vmem:[#allocation25 + $0x128] sm:$0xff]
        %v5751 = vld [vmem:[#allocation25 + $0x130] sm:$0xff]
        %v5752 = vld [vmem:[#allocation25 + $0x138] sm:$0xff]
        %v5753 = vld [vmem:[#allocation25 + $0x140] sm:$0xff]
        %v5754 = vld [vmem:[#allocation25 + $0x148] sm:$0xff]
        %v5755 = vld [vmem:[#allocation25 + $0x150] sm:$0xff]
        %v5756 = vld [vmem:[#allocation25 + $0x158] sm:$0xff]
        %v5757 = vld [vmem:[#allocation25 + $0x160] sm:$0xff]
        %v5758 = vld [vmem:[#allocation25 + $0x168] sm:$0xff]
        %v5759 = vld [vmem:[#allocation25 + $0x170] sm:$0xff]
        %v5760 = vld [vmem:[#allocation25 + $0x178] sm:$0xff]
        %5761 = vmatprep.subr.mxu0 %v5714
        %5762 = vmatpush1.msra.mxu0 %v5713
        %5763 = vmatprep.subr.mxu0 %v5717
        %5764 = vmatpush1.msra.mxu0 %v5716
        %5765 = vmatprep.subr.mxu0 %v5720
        %5766 = vmatpush1.msra.mxu0 %v5719
        %5767 = vmatprep.subr.mxu0 %v5723
        %5768 = vmatpush1.msra.mxu0 %v5722
        %5769 = vmatprep.subr.mxu0 %v5726
        %5770 = vmatpush1.msra.mxu0 %v5725
        %5771 = vmatprep.subr.mxu0 %v5729
        %5772 = vmatpush1.msra.mxu0 %v5728
        %5773 = vmatprep.subr.mxu0 %v5732
        %5774 = vmatpush1.msra.mxu0 %v5731
        %5775 = vmatprep.subr.mxu0 %v5735
        %5776 = vmatpush1.msra.mxu0 %v5734
        %5777 = vmatprep.subr.mxu0 %v5738
        %5778 = vmatpush1.msra.mxu0 %v5737
        %5779 = vmatprep.subr.mxu0 %v5741
        %5780 = vmatpush1.msra.mxu0 %v5740
        %5781 = vmatprep.subr.mxu0 %v5744
        %5782 = vmatpush1.msra.mxu0 %v5743
        %5783 = vmatprep.subr.mxu0 %v5747
        %5784 = vmatpush1.msra.mxu0 %v5746
        %5785 = vmatprep.subr.mxu0 %v5750
        %5786 = vmatpush1.msra.mxu0 %v5749
        %5787 = vmatprep.subr.mxu0 %v5753
        %5788 = vmatpush1.msra.mxu0 %v5752
        %5789 = vmatprep.subr.mxu0 %v5756
        %5790 = vmatpush1.msra.mxu0 %v5755
        %5791 = vmatprep.subr.mxu0 %v5759
        %5792 = vmatpush1.msra.mxu0 %v5758
        %5793 = vmatprep.subr.mxu0 0.0
        %5794 = vmatpush1.msra.mxu0 0.0
        %5795 = vmatprep.subr.mxu0 0.0
        %5796 = vmatpush1.msra.mxu0 0.0
        %5797 = vmatprep.subr.mxu0 0.0
        %5798 = vmatpush1.msra.mxu0 0.0
        %5799 = vmatprep.subr.mxu0 0.0
        %5800 = vmatpush1.msra.mxu0 0.0
        %5801 = vmatprep.subr.mxu0 0.0
        %5802 = vmatpush1.msra.mxu0 0.0
        %5803 = vmatprep.subr.mxu0 0.0
        %5804 = vmatpush1.msra.mxu0 0.0
        %5805 = vmatprep.subr.mxu0 0.0
        %5806 = vmatpush1.msra.mxu0 0.0
        %5807 = vmatprep.subr.mxu0 0.0
        %5808 = vmatpush1.msra.mxu0 0.0
        %5809 = vmatprep.subr.mxu0 0.0
        %5810 = vmatpush1.msra.mxu0 0.0
        %5811 = vmatprep.subr.mxu0 0.0
        %5812 = vmatpush1.msra.mxu0 0.0
        %5813 = vmatprep.subr.mxu0 0.0
        %5814 = vmatpush1.msra.mxu0 0.0
        %5815 = vmatprep.subr.mxu0 0.0
        %5816 = vmatpush1.msra.mxu0 0.0
        %5817 = vmatprep.subr.mxu0 0.0
        %5818 = vmatpush1.msra.mxu0 0.0
        %5819 = vmatprep.subr.mxu0 0.0
        %5820 = vmatpush1.msra.mxu0 0.0
        %5821 = vmatprep.subr.mxu0 0.0
        %5822 = vmatpush1.msra.mxu0 0.0
        %5823 = vmatprep.subr.mxu0 0.0
        %5824 = vmatpush1.msra.mxu0 0.0
        %5825 = vmatprep.mubr.f32.mxu0 0.0
        %5826 = vmatmul.mubr.f32.gmra.mrb[0].mxu0 %v5307
        %v5827 = vpop.f32.mrb[0].mxu0
        %v5828 = vadd.f32 %v2643, %v5827
        %v5829 = vpop.f32.mrb[0].mxu0
        %v5830 = vadd.f32 %v2647, %v5829
        %5831 = vdwg.mxu0
        %5832 = vmatprep.subr.mxu0 0.0
        %5833 = vmatpush1.msra.mxu0 %v5715
        %5834 = vmatprep.subr.mxu0 0.0
        %5835 = vmatpush1.msra.mxu0 %v5718
        %5836 = vmatprep.subr.mxu0 0.0
        %5837 = vmatpush1.msra.mxu0 %v5721
        %5838 = vmatprep.subr.mxu0 0.0
        %5839 = vmatpush1.msra.mxu0 %v5724
        %5840 = vmatprep.subr.mxu0 0.0
        %5841 = vmatpush1.msra.mxu0 %v5727
        %5842 = vmatprep.subr.mxu0 0.0
        %5843 = vmatpush1.msra.mxu0 %v5730
        %5844 = vmatprep.subr.mxu0 0.0
        %5845 = vmatpush1.msra.mxu0 %v5733
        %5846 = vmatprep.subr.mxu0 0.0
        %5847 = vmatpush1.msra.mxu0 %v5736
        %5848 = vmatprep.subr.mxu0 0.0
        %5849 = vmatpush1.msra.mxu0 %v5739
        %5850 = vmatprep.subr.mxu0 0.0
        %5851 = vmatpush1.msra.mxu0 %v5742
        %5852 = vmatprep.subr.mxu0 0.0
        %5853 = vmatpush1.msra.mxu0 %v5745
        %5854 = vmatprep.subr.mxu0 0.0
        %5855 = vmatpush1.msra.mxu0 %v5748
        %5856 = vmatprep.subr.mxu0 0.0
        %5857 = vmatpush1.msra.mxu0 %v5751
        %5858 = vmatprep.subr.mxu0 0.0
        %5859 = vmatpush1.msra.mxu0 %v5754
        %5860 = vmatprep.subr.mxu0 0.0
        %5861 = vmatpush1.msra.mxu0 %v5757
        %5862 = vmatprep.subr.mxu0 0.0
        %5863 = vmatpush1.msra.mxu0 %v5760
        %5864 = vmatprep.subr.mxu0 0.0
        %5865 = vmatpush1.msra.mxu0 0.0
        %5866 = vmatprep.subr.mxu0 0.0
        %5867 = vmatpush1.msra.mxu0 0.0
        %5868 = vmatprep.subr.mxu0 0.0
        %5869 = vmatpush1.msra.mxu0 0.0
        %5870 = vmatprep.subr.mxu0 0.0
        %5871 = vmatpush1.msra.mxu0 0.0
        %5872 = vmatprep.subr.mxu0 0.0
        %5873 = vmatpush1.msra.mxu0 0.0
        %5874 = vmatprep.subr.mxu0 0.0
        %5875 = vmatpush1.msra.mxu0 0.0
        %5876 = vmatprep.subr.mxu0 0.0
        %5877 = vmatpush1.msra.mxu0 0.0
        %5878 = vmatprep.subr.mxu0 0.0
        %5879 = vmatpush1.msra.mxu0 0.0
        %5880 = vmatprep.subr.mxu0 0.0
        %5881 = vmatpush1.msra.mxu0 0.0
        %5882 = vmatprep.subr.mxu0 0.0
        %5883 = vmatpush1.msra.mxu0 0.0
        %5884 = vmatprep.subr.mxu0 0.0
        %5885 = vmatpush1.msra.mxu0 0.0
        %5886 = vmatprep.subr.mxu0 0.0
        %5887 = vmatpush1.msra.mxu0 0.0
        %5888 = vmatprep.subr.mxu0 0.0
        %5889 = vmatpush1.msra.mxu0 0.0
        %5890 = vmatprep.subr.mxu0 0.0
        %5891 = vmatpush1.msra.mxu0 0.0
        %5892 = vmatprep.subr.mxu0 0.0
        %5893 = vmatpush1.msra.mxu0 0.0
        %5894 = vmatprep.subr.mxu0 0.0
        %5895 = vmatpush1.msra.mxu0 0.0
        %5896 = vmatprep.mubr.f32.mxu0 0.0
        %5897 = vmatmul.mubr.f32.gmra.mrb[0].mxu0 %v5307
        %v5898 = vpop.f32.mrb[0].mxu0
        %v5899 = vadd.f32 %v2651, %v5898
        %v5900 = vpop.f32.mrb[0].mxu0
        %5901 = vdwg.mxu0
        %v5902 = vadd.f32 %v5710, %v5828
        %v5903 = vxor.u32 %v5902, 2147483648
        %v5904 = vmul.f32 %v5903, 1.442695
        %v5905 = vpow.pop %v5904
        %v5906 = vadd.f32 %v5905, 1.0
        %v5907 = vrcp.pop %v5906
        %v5908 = vmul.f32 1.0, %v5907
        %v5909 = vadd.f32 %v5711, %v5830
        %v5910 = vxor.u32 %v5909, 2147483648
        %v5911 = vmul.f32 %v5910, 1.442695
        %v5912 = vpow.pop %v5911
        %v5913 = vadd.f32 %v5912, 1.0
        %v5914 = vrcp.pop %v5913
        %v5915 = vmul.f32 1.0, %v5914
        %v5916 = vmul.f32 %v5908, %v5899
        %v5917 = vadd.f32 %v5712, %v5916
        %v5918 = vtanh.pop %v5917
        %v5919 = vsub.f32 1.0, %v5915
        %v5920 = vmul.f32 %v5919, %v5918
        %v5921 = vmul.f32 %v5915, %v5307
        %v5922 = vadd.f32 %v5920, %v5921
        %v5923 = vld [vmem:[#allocation26] sm:$0xff]
        %v5924 = vld [vmem:[#allocation26 + $0x8] sm:$0xff]
        %v5925 = vld [vmem:[#allocation26 + $0x10] sm:$0xff]
        %v5926 = vld [vmem:[#allocation26 + $0x18] sm:$0xff]
        %v5927 = vld [vmem:[#allocation26 + $0x20] sm:$0xff]
        %v5928 = vld [vmem:[#allocation26 + $0x28] sm:$0xff]
        %v5929 = vld [vmem:[#allocation26 + $0x30] sm:$0xff]
        %v5930 = vld [vmem:[#allocation26 + $0x38] sm:$0xff]
        %v5931 = vld [vmem:[#allocation26 + $0x40] sm:$0xff]
        %v5932 = vld [vmem:[#allocation26 + $0x48] sm:$0xff]
        %v5933 = vld [vmem:[#allocation26 + $0x50] sm:$0xff]
        %v5934 = vld [vmem:[#allocation26 + $0x58] sm:$0xff]
        %v5935 = vld [vmem:[#allocation26 + $0x60] sm:$0xff]
        %v5936 = vld [vmem:[#allocation26 + $0x68] sm:$0xff]
        %v5937 = vld [vmem:[#allocation26 + $0x70] sm:$0xff]
        %v5938 = vld [vmem:[#allocation26 + $0x78] sm:$0xff]
        %v5939 = vld [vmem:[#allocation26 + $0x80] sm:$0xff]
        %v5940 = vld [vmem:[#allocation26 + $0x88] sm:$0xff]
        %v5941 = vld [vmem:[#allocation26 + $0x90] sm:$0xff]
        %v5942 = vld [vmem:[#allocation26 + $0x98] sm:$0xff]
        %v5943 = vld [vmem:[#allocation26 + $0xa0] sm:$0xff]
        %v5944 = vld [vmem:[#allocation26 + $0xa8] sm:$0xff]
        %v5945 = vld [vmem:[#allocation26 + $0xb0] sm:$0xff]
        %v5946 = vld [vmem:[#allocation26 + $0xb8] sm:$0xff]
        %v5947 = vld [vmem:[#allocation26 + $0xc0] sm:$0xff]
        %v5948 = vld [vmem:[#allocation26 + $0xc8] sm:$0xff]
        %v5949 = vld [vmem:[#allocation26 + $0xd0] sm:$0xff]
        %v5950 = vld [vmem:[#allocation26 + $0xd8] sm:$0xff]
        %v5951 = vld [vmem:[#allocation26 + $0xe0] sm:$0xff]
        %v5952 = vld [vmem:[#allocation26 + $0xe8] sm:$0xff]
        %v5953 = vld [vmem:[#allocation26 + $0xf0] sm:$0xff]
        %v5954 = vld [vmem:[#allocation26 + $0xf8] sm:$0xff]
        %v5955 = vld [vmem:[#allocation26 + $0x100] sm:$0xff]
        %v5956 = vld [vmem:[#allocation26 + $0x108] sm:$0xff]
        %v5957 = vld [vmem:[#allocation26 + $0x110] sm:$0xff]
        %v5958 = vld [vmem:[#allocation26 + $0x118] sm:$0xff]
        %v5959 = vld [vmem:[#allocation26 + $0x120] sm:$0xff]
        %v5960 = vld [vmem:[#allocation26 + $0x128] sm:$0xff]
        %v5961 = vld [vmem:[#allocation26 + $0x130] sm:$0xff]
        %v5962 = vld [vmem:[#allocation26 + $0x138] sm:$0xff]
        %v5963 = vld [vmem:[#allocation26 + $0x140] sm:$0xff]
        %v5964 = vld [vmem:[#allocation26 + $0x148] sm:$0xff]
        %v5965 = vld [vmem:[#allocation26 + $0x150] sm:$0xff]
        %v5966 = vld [vmem:[#allocation26 + $0x158] sm:$0xff]
        %v5967 = vld [vmem:[#allocation26 + $0x160] sm:$0xff]
        %v5968 = vld [vmem:[#allocation26 + $0x168] sm:$0xff]
        %v5969 = vld [vmem:[#allocation26 + $0x170] sm:$0xff]
        %v5970 = vld [vmem:[#allocation26 + $0x178] sm:$0xff]
        %5971 = vmatprep.subr.mxu0 %v5924
        %5972 = vmatpush1.msra.mxu0 %v5923
        %5973 = vmatprep.subr.mxu0 %v5927
        %5974 = vmatpush1.msra.mxu0 %v5926
        %5975 = vmatprep.subr.mxu0 %v5930
        %5976 = vmatpush1.msra.mxu0 %v5929
        %5977 = vmatprep.subr.mxu0 %v5933
        %5978 = vmatpush1.msra.mxu0 %v5932
        %5979 = vmatprep.subr.mxu0 %v5936
        %5980 = vmatpush1.msra.mxu0 %v5935
        %5981 = vmatprep.subr.mxu0 %v5939
        %5982 = vmatpush1.msra.mxu0 %v5938
        %5983 = vmatprep.subr.mxu0 %v5942
        %5984 = vmatpush1.msra.mxu0 %v5941
        %5985 = vmatprep.subr.mxu0 %v5945
        %5986 = vmatpush1.msra.mxu0 %v5944
        %5987 = vmatprep.subr.mxu0 %v5948
        %5988 = vmatpush1.msra.mxu0 %v5947
        %5989 = vmatprep.subr.mxu0 %v5951
        %5990 = vmatpush1.msra.mxu0 %v5950
        %5991 = vmatprep.subr.mxu0 %v5954
        %5992 = vmatpush1.msra.mxu0 %v5953
        %5993 = vmatprep.subr.mxu0 %v5957
        %5994 = vmatpush1.msra.mxu0 %v5956
        %5995 = vmatprep.subr.mxu0 %v5960
        %5996 = vmatpush1.msra.mxu0 %v5959
        %5997 = vmatprep.subr.mxu0 %v5963
        %5998 = vmatpush1.msra.mxu0 %v5962
        %5999 = vmatprep.subr.mxu0 %v5966
        %6000 = vmatpush1.msra.mxu0 %v5965
        %6001 = vmatprep.subr.mxu0 %v5969
        %6002 = vmatpush1.msra.mxu0 %v5968
        %6003 = vmatprep.subr.mxu0 0.0
        %6004 = vmatpush1.msra.mxu0 0.0
        %6005 = vmatprep.subr.mxu0 0.0
        %6006 = vmatpush1.msra.mxu0 0.0
        %6007 = vmatprep.subr.mxu0 0.0
        %6008 = vmatpush1.msra.mxu0 0.0
        %6009 = vmatprep.subr.mxu0 0.0
        %6010 = vmatpush1.msra.mxu0 0.0
        %6011 = vmatprep.subr.mxu0 0.0
        %6012 = vmatpush1.msra.mxu0 0.0
        %6013 = vmatprep.subr.mxu0 0.0
        %6014 = vmatpush1.msra.mxu0 0.0
        %6015 = vmatprep.subr.mxu0 0.0
        %6016 = vmatpush1.msra.mxu0 0.0
        %6017 = vmatprep.subr.mxu0 0.0
        %6018 = vmatpush1.msra.mxu0 0.0
        %6019 = vmatprep.subr.mxu0 0.0
        %6020 = vmatpush1.msra.mxu0 0.0
        %6021 = vmatprep.subr.mxu0 0.0
        %6022 = vmatpush1.msra.mxu0 0.0
        %6023 = vmatprep.subr.mxu0 0.0
        %6024 = vmatpush1.msra.mxu0 0.0
        %6025 = vmatprep.subr.mxu0 0.0
        %6026 = vmatpush1.msra.mxu0 0.0
        %6027 = vmatprep.subr.mxu0 0.0
        %6028 = vmatpush1.msra.mxu0 0.0
        %6029 = vmatprep.subr.mxu0 0.0
        %6030 = vmatpush1.msra.mxu0 0.0
        %6031 = vmatprep.subr.mxu0 0.0
        %6032 = vmatpush1.msra.mxu0 0.0
        %6033 = vmatprep.subr.mxu0 0.0
        %6034 = vmatpush1.msra.mxu0 0.0
        %6035 = vmatprep.mubr.f32.mxu0 0.0
        %6036 = vmatmul.mubr.f32.gmra.mrb[0].mxu0 %v5922
        %v6037 = vpop.f32.mrb[0].mxu0
        %v6038 = vadd.f32 %v2869, %v6037
        %v6039 = vpop.f32.mrb[0].mxu0
        %v6040 = vadd.f32 %v2873, %v6039
        %6041 = vdwg.mxu0
        %6042 = vmatprep.subr.mxu0 0.0
        %6043 = vmatpush1.msra.mxu0 %v5925
        %6044 = vmatprep.subr.mxu0 0.0
        %6045 = vmatpush1.msra.mxu0 %v5928
        %6046 = vmatprep.subr.mxu0 0.0
        %6047 = vmatpush1.msra.mxu0 %v5931
        %6048 = vmatprep.subr.mxu0 0.0
        %6049 = vmatpush1.msra.mxu0 %v5934
        %6050 = vmatprep.subr.mxu0 0.0
        %6051 = vmatpush1.msra.mxu0 %v5937
        %6052 = vmatprep.subr.mxu0 0.0
        %6053 = vmatpush1.msra.mxu0 %v5940
        %6054 = vmatprep.subr.mxu0 0.0
        %6055 = vmatpush1.msra.mxu0 %v5943
        %6056 = vmatprep.subr.mxu0 0.0
        %6057 = vmatpush1.msra.mxu0 %v5946
        %6058 = vmatprep.subr.mxu0 0.0
        %6059 = vmatpush1.msra.mxu0 %v5949
        %6060 = vmatprep.subr.mxu0 0.0
        %6061 = vmatpush1.msra.mxu0 %v5952
        %6062 = vmatprep.subr.mxu0 0.0
        %6063 = vmatpush1.msra.mxu0 %v5955
        %6064 = vmatprep.subr.mxu0 0.0
        %6065 = vmatpush1.msra.mxu0 %v5958
        %6066 = vmatprep.subr.mxu0 0.0
        %6067 = vmatpush1.msra.mxu0 %v5961
        %6068 = vmatprep.subr.mxu0 0.0
        %6069 = vmatpush1.msra.mxu0 %v5964
        %6070 = vmatprep.subr.mxu0 0.0
        %6071 = vmatpush1.msra.mxu0 %v5967
        %6072 = vmatprep.subr.mxu0 0.0
        %6073 = vmatpush1.msra.mxu0 %v5970
        %6074 = vmatprep.subr.mxu0 0.0
        %6075 = vmatpush1.msra.mxu0 0.0
        %6076 = vmatprep.subr.mxu0 0.0
        %6077 = vmatpush1.msra.mxu0 0.0
        %6078 = vmatprep.subr.mxu0 0.0
        %6079 = vmatpush1.msra.mxu0 0.0
        %6080 = vmatprep.subr.mxu0 0.0
        %6081 = vmatpush1.msra.mxu0 0.0
        %6082 = vmatprep.subr.mxu0 0.0
        %6083 = vmatpush1.msra.mxu0 0.0
        %6084 = vmatprep.subr.mxu0 0.0
        %6085 = vmatpush1.msra.mxu0 0.0
        %6086 = vmatprep.subr.mxu0 0.0
        %6087 = vmatpush1.msra.mxu0 0.0
        %6088 = vmatprep.subr.mxu0 0.0
        %6089 = vmatpush1.msra.mxu0 0.0
        %6090 = vmatprep.subr.mxu0 0.0
        %6091 = vmatpush1.msra.mxu0 0.0
        %6092 = vmatprep.subr.mxu0 0.0
        %6093 = vmatpush1.msra.mxu0 0.0
        %6094 = vmatprep.subr.mxu0 0.0
        %6095 = vmatpush1.msra.mxu0 0.0
        %6096 = vmatprep.subr.mxu0 0.0
        %6097 = vmatpush1.msra.mxu0 0.0
        %6098 = vmatprep.subr.mxu0 0.0
        %6099 = vmatpush1.msra.mxu0 0.0
        %6100 = vmatprep.subr.mxu0 0.0
        %6101 = vmatpush1.msra.mxu0 0.0
        %6102 = vmatprep.subr.mxu0 0.0
        %6103 = vmatpush1.msra.mxu0 0.0
        %6104 = vmatprep.subr.mxu0 0.0
        %6105 = vmatpush1.msra.mxu0 0.0
        %6106 = vmatprep.mubr.f32.mxu0 0.0
        %6107 = vmatmul.mubr.f32.gmra.mrb[0].mxu0 %v5922
        %v6108 = vpop.f32.mrb[0].mxu0
        %v6109 = vadd.f32 %v2877, %v6108
        %v6110 = vpop.f32.mrb[0].mxu0
        %6111 = vdwg.mxu0
        %v6112 = vld [vmem:[#allocation28] sm:$0xff]
        %v6113 = vld [vmem:[#allocation28 + $0x8] sm:$0xff]
        %v6114 = vld [vmem:[#allocation28 + $0x10] sm:$0xff]
        %v6115 = vld [vmem:[#allocation28 + $0x18] sm:$0xff]
        %v6116 = vld [vmem:[#allocation28 + $0x20] sm:$0xff]
        %v6117 = vld [vmem:[#allocation28 + $0x28] sm:$0xff]
        %v6118 = vld [vmem:[#allocation28 + $0x30] sm:$0xff]
        %v6119 = vld [vmem:[#allocation28 + $0x38] sm:$0xff]
        %v6120 = vld [vmem:[#allocation28 + $0x40] sm:$0xff]
        %v6121 = vld [vmem:[#allocation28 + $0x48] sm:$0xff]
        %v6122 = vld [vmem:[#allocation28 + $0x50] sm:$0xff]
        %v6123 = vld [vmem:[#allocation28 + $0x58] sm:$0xff]
        %v6124 = vld [vmem:[#allocation28 + $0x60] sm:$0xff]
        %v6125 = vld [vmem:[#allocation28 + $0x68] sm:$0xff]
        %v6126 = vld [vmem:[#allocation28 + $0x70] sm:$0xff]
        %v6127 = vld [vmem:[#allocation28 + $0x78] sm:$0xff]
        %v6128 = vld [vmem:[#allocation28 + $0x80] sm:$0xff]
        %v6129 = vld [vmem:[#allocation28 + $0x88] sm:$0xff]
        %v6130 = vld [vmem:[#allocation28 + $0x90] sm:$0xff]
        %v6131 = vld [vmem:[#allocation28 + $0x98] sm:$0xff]
        %v6132 = vld [vmem:[#allocation28 + $0xa0] sm:$0xff]
        %v6133 = vld [vmem:[#allocation28 + $0xa8] sm:$0xff]
        %v6134 = vld [vmem:[#allocation28 + $0xb0] sm:$0xff]
        %v6135 = vld [vmem:[#allocation28 + $0xb8] sm:$0xff]
        %v6136 = vld [vmem:[#allocation28 + $0xc0] sm:$0xff]
        %v6137 = vld [vmem:[#allocation28 + $0xc8] sm:$0xff]
        %v6138 = vld [vmem:[#allocation28 + $0xd0] sm:$0xff]
        %v6139 = vld [vmem:[#allocation28 + $0xd8] sm:$0xff]
        %v6140 = vld [vmem:[#allocation28 + $0xe0] sm:$0xff]
        %v6141 = vld [vmem:[#allocation28 + $0xe8] sm:$0xff]
        %v6142 = vld [vmem:[#allocation28 + $0xf0] sm:$0xff]
        %v6143 = vld [vmem:[#allocation28 + $0xf8] sm:$0xff]
        %v6144 = vld [vmem:[#allocation28 + $0x100] sm:$0xff]
        %v6145 = vld [vmem:[#allocation28 + $0x108] sm:$0xff]
        %v6146 = vld [vmem:[#allocation28 + $0x110] sm:$0xff]
        %v6147 = vld [vmem:[#allocation28 + $0x118] sm:$0xff]
        %v6148 = vld [vmem:[#allocation28 + $0x120] sm:$0xff]
        %v6149 = vld [vmem:[#allocation28 + $0x128] sm:$0xff]
        %v6150 = vld [vmem:[#allocation28 + $0x130] sm:$0xff]
        %v6151 = vld [vmem:[#allocation28 + $0x138] sm:$0xff]
        %v6152 = vld [vmem:[#allocation28 + $0x140] sm:$0xff]
        %v6153 = vld [vmem:[#allocation28 + $0x148] sm:$0xff]
        %v6154 = vld [vmem:[#allocation28 + $0x150] sm:$0xff]
        %v6155 = vld [vmem:[#allocation28 + $0x158] sm:$0xff]
        %v6156 = vld [vmem:[#allocation28 + $0x160] sm:$0xff]
        %v6157 = vld [vmem:[#allocation28 + $0x168] sm:$0xff]
        %v6158 = vld [vmem:[#allocation28 + $0x170] sm:$0xff]
        %v6159 = vld [vmem:[#allocation28 + $0x178] sm:$0xff]
        %6160 = vmatprep.subr.mxu0 %v6113
        %6161 = vmatpush1.msra.mxu0 %v6112
        %6162 = vmatprep.subr.mxu0 %v6116
        %6163 = vmatpush1.msra.mxu0 %v6115
        %6164 = vmatprep.subr.mxu0 %v6119
        %6165 = vmatpush1.msra.mxu0 %v6118
        %6166 = vmatprep.subr.mxu0 %v6122
        %6167 = vmatpush1.msra.mxu0 %v6121
        %6168 = vmatprep.subr.mxu0 %v6125
        %6169 = vmatpush1.msra.mxu0 %v6124
        %6170 = vmatprep.subr.mxu0 %v6128
        %6171 = vmatpush1.msra.mxu0 %v6127
        %6172 = vmatprep.subr.mxu0 %v6131
        %6173 = vmatpush1.msra.mxu0 %v6130
        %6174 = vmatprep.subr.mxu0 %v6134
        %6175 = vmatpush1.msra.mxu0 %v6133
        %6176 = vmatprep.subr.mxu0 %v6137
        %6177 = vmatpush1.msra.mxu0 %v6136
        %6178 = vmatprep.subr.mxu0 %v6140
        %6179 = vmatpush1.msra.mxu0 %v6139
        %6180 = vmatprep.subr.mxu0 %v6143
        %6181 = vmatpush1.msra.mxu0 %v6142
        %6182 = vmatprep.subr.mxu0 %v6146
        %6183 = vmatpush1.msra.mxu0 %v6145
        %6184 = vmatprep.subr.mxu0 %v6149
        %6185 = vmatpush1.msra.mxu0 %v6148
        %6186 = vmatprep.subr.mxu0 %v6152
        %6187 = vmatpush1.msra.mxu0 %v6151
        %6188 = vmatprep.subr.mxu0 %v6155
        %6189 = vmatpush1.msra.mxu0 %v6154
        %6190 = vmatprep.subr.mxu0 %v6158
        %6191 = vmatpush1.msra.mxu0 %v6157
        %6192 = vmatprep.subr.mxu0 0.0
        %6193 = vmatpush1.msra.mxu0 0.0
        %6194 = vmatprep.subr.mxu0 0.0
        %6195 = vmatpush1.msra.mxu0 0.0
        %6196 = vmatprep.subr.mxu0 0.0
        %6197 = vmatpush1.msra.mxu0 0.0
        %6198 = vmatprep.subr.mxu0 0.0
        %6199 = vmatpush1.msra.mxu0 0.0
        %6200 = vmatprep.subr.mxu0 0.0
        %6201 = vmatpush1.msra.mxu0 0.0
        %6202 = vmatprep.subr.mxu0 0.0
        %6203 = vmatpush1.msra.mxu0 0.0
        %6204 = vmatprep.subr.mxu0 0.0
        %6205 = vmatpush1.msra.mxu0 0.0
        %6206 = vmatprep.subr.mxu0 0.0
        %6207 = vmatpush1.msra.mxu0 0.0
        %6208 = vmatprep.subr.mxu0 0.0
        %6209 = vmatpush1.msra.mxu0 0.0
        %6210 = vmatprep.subr.mxu0 0.0
        %6211 = vmatpush1.msra.mxu0 0.0
        %6212 = vmatprep.subr.mxu0 0.0
        %6213 = vmatpush1.msra.mxu0 0.0
        %6214 = vmatprep.subr.mxu0 0.0
        %6215 = vmatpush1.msra.mxu0 0.0
        %6216 = vmatprep.subr.mxu0 0.0
        %6217 = vmatpush1.msra.mxu0 0.0
        %6218 = vmatprep.subr.mxu0 0.0
        %6219 = vmatpush1.msra.mxu0 0.0
        %6220 = vmatprep.subr.mxu0 0.0
        %6221 = vmatpush1.msra.mxu0 0.0
        %6222 = vmatprep.subr.mxu0 0.0
        %6223 = vmatpush1.msra.mxu0 0.0
        %6224 = vmatprep.mubr.f32.mxu0 0.0
        %6225 = vmatmul.mubr.f32.gmra.mrb[0].mxu0 %v5706
        %v6226 = vpop.f32.mrb[0].mxu0
        %v6227 = vadd.f32 %v3074, %v6226
        %v6228 = vpop.f32.mrb[0].mxu0
        %v6229 = vadd.f32 %v3078, %v6228
        %6230 = vdwg.mxu0
        %6231 = vmatprep.subr.mxu0 0.0
        %6232 = vmatpush1.msra.mxu0 %v6114
        %6233 = vmatprep.subr.mxu0 0.0
        %6234 = vmatpush1.msra.mxu0 %v6117
        %6235 = vmatprep.subr.mxu0 0.0
        %6236 = vmatpush1.msra.mxu0 %v6120
        %6237 = vmatprep.subr.mxu0 0.0
        %6238 = vmatpush1.msra.mxu0 %v6123
        %6239 = vmatprep.subr.mxu0 0.0
        %6240 = vmatpush1.msra.mxu0 %v6126
        %6241 = vmatprep.subr.mxu0 0.0
        %6242 = vmatpush1.msra.mxu0 %v6129
        %6243 = vmatprep.subr.mxu0 0.0
        %6244 = vmatpush1.msra.mxu0 %v6132
        %6245 = vmatprep.subr.mxu0 0.0
        %6246 = vmatpush1.msra.mxu0 %v6135
        %6247 = vmatprep.subr.mxu0 0.0
        %6248 = vmatpush1.msra.mxu0 %v6138
        %6249 = vmatprep.subr.mxu0 0.0
        %6250 = vmatpush1.msra.mxu0 %v6141
        %6251 = vmatprep.subr.mxu0 0.0
        %6252 = vmatpush1.msra.mxu0 %v6144
        %6253 = vmatprep.subr.mxu0 0.0
        %6254 = vmatpush1.msra.mxu0 %v6147
        %6255 = vmatprep.subr.mxu0 0.0
        %6256 = vmatpush1.msra.mxu0 %v6150
        %6257 = vmatprep.subr.mxu0 0.0
        %6258 = vmatpush1.msra.mxu0 %v6153
        %6259 = vmatprep.subr.mxu0 0.0
        %6260 = vmatpush1.msra.mxu0 %v6156
        %6261 = vmatprep.subr.mxu0 0.0
        %6262 = vmatpush1.msra.mxu0 %v6159
        %6263 = vmatprep.subr.mxu0 0.0
        %6264 = vmatpush1.msra.mxu0 0.0
        %6265 = vmatprep.subr.mxu0 0.0
        %6266 = vmatpush1.msra.mxu0 0.0
        %6267 = vmatprep.subr.mxu0 0.0
        %6268 = vmatpush1.msra.mxu0 0.0
        %6269 = vmatprep.subr.mxu0 0.0
        %6270 = vmatpush1.msra.mxu0 0.0
        %6271 = vmatprep.subr.mxu0 0.0
        %6272 = vmatpush1.msra.mxu0 0.0
        %6273 = vmatprep.subr.mxu0 0.0
        %6274 = vmatpush1.msra.mxu0 0.0
        %6275 = vmatprep.subr.mxu0 0.0
        %6276 = vmatpush1.msra.mxu0 0.0
        %6277 = vmatprep.subr.mxu0 0.0
        %6278 = vmatpush1.msra.mxu0 0.0
        %6279 = vmatprep.subr.mxu0 0.0
        %6280 = vmatpush1.msra.mxu0 0.0
        %6281 = vmatprep.subr.mxu0 0.0
        %6282 = vmatpush1.msra.mxu0 0.0
        %6283 = vmatprep.subr.mxu0 0.0
        %6284 = vmatpush1.msra.mxu0 0.0
        %6285 = vmatprep.subr.mxu0 0.0
        %6286 = vmatpush1.msra.mxu0 0.0
        %6287 = vmatprep.subr.mxu0 0.0
        %6288 = vmatpush1.msra.mxu0 0.0
        %6289 = vmatprep.subr.mxu0 0.0
        %6290 = vmatpush1.msra.mxu0 0.0
        %6291 = vmatprep.subr.mxu0 0.0
        %6292 = vmatpush1.msra.mxu0 0.0
        %6293 = vmatprep.subr.mxu0 0.0
        %6294 = vmatpush1.msra.mxu0 0.0
        %6295 = vmatprep.mubr.f32.mxu0 0.0
        %6296 = vmatmul.mubr.f32.gmra.mrb[0].mxu0 %v5706
        %v6297 = vpop.f32.mrb[0].mxu0
        %v6298 = vadd.f32 %v3082, %v6297
        %v6299 = vpop.f32.mrb[0].mxu0
        %6300 = vdwg.mxu0
        %v6301 = vadd.f32 %v6038, %v6227
        %v6302 = vxor.u32 %v6301, 2147483648
        %v6303 = vmul.f32 %v6302, 1.442695
        %v6304 = vpow.pop %v6303
        %v6305 = vadd.f32 %v6304, 1.0
        %v6306 = vrcp.pop %v6305
        %v6307 = vmul.f32 1.0, %v6306
        %v6308 = vadd.f32 %v6040, %v6229
        %v6309 = vxor.u32 %v6308, 2147483648
        %v6310 = vmul.f32 %v6309, 1.442695
        %v6311 = vpow.pop %v6310
        %v6312 = vadd.f32 %v6311, 1.0
        %v6313 = vrcp.pop %v6312
        %v6314 = vmul.f32 1.0, %v6313
        %v6315 = vmul.f32 %v6307, %v6298
        %v6316 = vadd.f32 %v6109, %v6315
        %v6317 = vtanh.pop %v6316
        %v6318 = vsub.f32 1.0, %v6314
        %v6319 = vmul.f32 %v6318, %v6317
        %v6320 = vmul.f32 %v6314, %v5706
        %v6321 = vadd.f32 %v6319, %v6320
        %s6322 = scalar_lea.vmem [#allocation4], 40
        %6323 = vst [vmem:[%s6322] sm:$0xff] %v6321
        %s6324 = scalar_lea.vmem [#allocation3], 144
        %v6325 = vld [vmem:[%s6324] sm:$0xff]
        %v6326 = vld [vmem:[%s6324 + $0x8] sm:$0xff]
        %v6327 = vld [vmem:[%s6324 + $0x10] sm:$0xff]
        %v6328 = vld [vmem:[#allocation25] sm:$0xff]
        %v6329 = vld [vmem:[#allocation25 + $0x8] sm:$0xff]
        %v6330 = vld [vmem:[#allocation25 + $0x10] sm:$0xff]
        %v6331 = vld [vmem:[#allocation25 + $0x18] sm:$0xff]
        %v6332 = vld [vmem:[#allocation25 + $0x20] sm:$0xff]
        %v6333 = vld [vmem:[#allocation25 + $0x28] sm:$0xff]
        %v6334 = vld [vmem:[#allocation25 + $0x30] sm:$0xff]
        %v6335 = vld [vmem:[#allocation25 + $0x38] sm:$0xff]
        %v6336 = vld [vmem:[#allocation25 + $0x40] sm:$0xff]
        %v6337 = vld [vmem:[#allocation25 + $0x48] sm:$0xff]
        %v6338 = vld [vmem:[#allocation25 + $0x50] sm:$0xff]
        %v6339 = vld [vmem:[#allocation25 + $0x58] sm:$0xff]
        %v6340 = vld [vmem:[#allocation25 + $0x60] sm:$0xff]
        %v6341 = vld [vmem:[#allocation25 + $0x68] sm:$0xff]
        %v6342 = vld [vmem:[#allocation25 + $0x70] sm:$0xff]
        %v6343 = vld [vmem:[#allocation25 + $0x78] sm:$0xff]
        %v6344 = vld [vmem:[#allocation25 + $0x80] sm:$0xff]
        %v6345 = vld [vmem:[#allocation25 + $0x88] sm:$0xff]
        %v6346 = vld [vmem:[#allocation25 + $0x90] sm:$0xff]
        %v6347 = vld [vmem:[#allocation25 + $0x98] sm:$0xff]
        %v6348 = vld [vmem:[#allocation25 + $0xa0] sm:$0xff]
        %v6349 = vld [vmem:[#allocation25 + $0xa8] sm:$0xff]
        %v6350 = vld [vmem:[#allocation25 + $0xb0] sm:$0xff]
        %v6351 = vld [vmem:[#allocation25 + $0xb8] sm:$0xff]
        %v6352 = vld [vmem:[#allocation25 + $0xc0] sm:$0xff]
        %v6353 = vld [vmem:[#allocation25 + $0xc8] sm:$0xff]
        %v6354 = vld [vmem:[#allocation25 + $0xd0] sm:$0xff]
        %v6355 = vld [vmem:[#allocation25 + $0xd8] sm:$0xff]
        %v6356 = vld [vmem:[#allocation25 + $0xe0] sm:$0xff]
        %v6357 = vld [vmem:[#allocation25 + $0xe8] sm:$0xff]
        %v6358 = vld [vmem:[#allocation25 + $0xf0] sm:$0xff]
        %v6359 = vld [vmem:[#allocation25 + $0xf8] sm:$0xff]
        %v6360 = vld [vmem:[#allocation25 + $0x100] sm:$0xff]
        %v6361 = vld [vmem:[#allocation25 + $0x108] sm:$0xff]
        %v6362 = vld [vmem:[#allocation25 + $0x110] sm:$0xff]
        %v6363 = vld [vmem:[#allocation25 + $0x118] sm:$0xff]
        %v6364 = vld [vmem:[#allocation25 + $0x120] sm:$0xff]
        %v6365 = vld [vmem:[#allocation25 + $0x128] sm:$0xff]
        %v6366 = vld [vmem:[#allocation25 + $0x130] sm:$0xff]
        %v6367 = vld [vmem:[#allocation25 + $0x138] sm:$0xff]
        %v6368 = vld [vmem:[#allocation25 + $0x140] sm:$0xff]
        %v6369 = vld [vmem:[#allocation25 + $0x148] sm:$0xff]
        %v6370 = vld [vmem:[#allocation25 + $0x150] sm:$0xff]
        %v6371 = vld [vmem:[#allocation25 + $0x158] sm:$0xff]
        %v6372 = vld [vmem:[#allocation25 + $0x160] sm:$0xff]
        %v6373 = vld [vmem:[#allocation25 + $0x168] sm:$0xff]
        %v6374 = vld [vmem:[#allocation25 + $0x170] sm:$0xff]
        %v6375 = vld [vmem:[#allocation25 + $0x178] sm:$0xff]
        %6376 = vmatprep.subr.mxu0 %v6329
        %6377 = vmatpush1.msra.mxu0 %v6328
        %6378 = vmatprep.subr.mxu0 %v6332
        %6379 = vmatpush1.msra.mxu0 %v6331
        %6380 = vmatprep.subr.mxu0 %v6335
        %6381 = vmatpush1.msra.mxu0 %v6334
        %6382 = vmatprep.subr.mxu0 %v6338
        %6383 = vmatpush1.msra.mxu0 %v6337
        %6384 = vmatprep.subr.mxu0 %v6341
        %6385 = vmatpush1.msra.mxu0 %v6340
        %6386 = vmatprep.subr.mxu0 %v6344
        %6387 = vmatpush1.msra.mxu0 %v6343
        %6388 = vmatprep.subr.mxu0 %v6347
        %6389 = vmatpush1.msra.mxu0 %v6346
        %6390 = vmatprep.subr.mxu0 %v6350
        %6391 = vmatpush1.msra.mxu0 %v6349
        %6392 = vmatprep.subr.mxu0 %v6353
        %6393 = vmatpush1.msra.mxu0 %v6352
        %6394 = vmatprep.subr.mxu0 %v6356
        %6395 = vmatpush1.msra.mxu0 %v6355
        %6396 = vmatprep.subr.mxu0 %v6359
        %6397 = vmatpush1.msra.mxu0 %v6358
        %6398 = vmatprep.subr.mxu0 %v6362
        %6399 = vmatpush1.msra.mxu0 %v6361
        %6400 = vmatprep.subr.mxu0 %v6365
        %6401 = vmatpush1.msra.mxu0 %v6364
        %6402 = vmatprep.subr.mxu0 %v6368
        %6403 = vmatpush1.msra.mxu0 %v6367
        %6404 = vmatprep.subr.mxu0 %v6371
        %6405 = vmatpush1.msra.mxu0 %v6370
        %6406 = vmatprep.subr.mxu0 %v6374
        %6407 = vmatpush1.msra.mxu0 %v6373
        %6408 = vmatprep.subr.mxu0 0.0
        %6409 = vmatpush1.msra.mxu0 0.0
        %6410 = vmatprep.subr.mxu0 0.0
        %6411 = vmatpush1.msra.mxu0 0.0
        %6412 = vmatprep.subr.mxu0 0.0
        %6413 = vmatpush1.msra.mxu0 0.0
        %6414 = vmatprep.subr.mxu0 0.0
        %6415 = vmatpush1.msra.mxu0 0.0
        %6416 = vmatprep.subr.mxu0 0.0
        %6417 = vmatpush1.msra.mxu0 0.0
        %6418 = vmatprep.subr.mxu0 0.0
        %6419 = vmatpush1.msra.mxu0 0.0
        %6420 = vmatprep.subr.mxu0 0.0
        %6421 = vmatpush1.msra.mxu0 0.0
        %6422 = vmatprep.subr.mxu0 0.0
        %6423 = vmatpush1.msra.mxu0 0.0
        %6424 = vmatprep.subr.mxu0 0.0
        %6425 = vmatpush1.msra.mxu0 0.0
        %6426 = vmatprep.subr.mxu0 0.0
        %6427 = vmatpush1.msra.mxu0 0.0
        %6428 = vmatprep.subr.mxu0 0.0
        %6429 = vmatpush1.msra.mxu0 0.0
        %6430 = vmatprep.subr.mxu0 0.0
        %6431 = vmatpush1.msra.mxu0 0.0
        %6432 = vmatprep.subr.mxu0 0.0
        %6433 = vmatpush1.msra.mxu0 0.0
        %6434 = vmatprep.subr.mxu0 0.0
        %6435 = vmatpush1.msra.mxu0 0.0
        %6436 = vmatprep.subr.mxu0 0.0
        %6437 = vmatpush1.msra.mxu0 0.0
        %6438 = vmatprep.subr.mxu0 0.0
        %6439 = vmatpush1.msra.mxu0 0.0
        %6440 = vmatprep.mubr.f32.mxu0 0.0
        %6441 = vmatmul.mubr.f32.gmra.mrb[0].mxu0 %v5922
        %v6442 = vpop.f32.mrb[0].mxu0
        %v6443 = vadd.f32 %v2643, %v6442
        %v6444 = vpop.f32.mrb[0].mxu0
        %v6445 = vadd.f32 %v2647, %v6444
        %6446 = vdwg.mxu0
        %6447 = vmatprep.subr.mxu0 0.0
        %6448 = vmatpush1.msra.mxu0 %v6330
        %6449 = vmatprep.subr.mxu0 0.0
        %6450 = vmatpush1.msra.mxu0 %v6333
        %6451 = vmatprep.subr.mxu0 0.0
        %6452 = vmatpush1.msra.mxu0 %v6336
        %6453 = vmatprep.subr.mxu0 0.0
        %6454 = vmatpush1.msra.mxu0 %v6339
        %6455 = vmatprep.subr.mxu0 0.0
        %6456 = vmatpush1.msra.mxu0 %v6342
        %6457 = vmatprep.subr.mxu0 0.0
        %6458 = vmatpush1.msra.mxu0 %v6345
        %6459 = vmatprep.subr.mxu0 0.0
        %6460 = vmatpush1.msra.mxu0 %v6348
        %6461 = vmatprep.subr.mxu0 0.0
        %6462 = vmatpush1.msra.mxu0 %v6351
        %6463 = vmatprep.subr.mxu0 0.0
        %6464 = vmatpush1.msra.mxu0 %v6354
        %6465 = vmatprep.subr.mxu0 0.0
        %6466 = vmatpush1.msra.mxu0 %v6357
        %6467 = vmatprep.subr.mxu0 0.0
        %6468 = vmatpush1.msra.mxu0 %v6360
        %6469 = vmatprep.subr.mxu0 0.0
        %6470 = vmatpush1.msra.mxu0 %v6363
        %6471 = vmatprep.subr.mxu0 0.0
        %6472 = vmatpush1.msra.mxu0 %v6366
        %6473 = vmatprep.subr.mxu0 0.0
        %6474 = vmatpush1.msra.mxu0 %v6369
        %6475 = vmatprep.subr.mxu0 0.0
        %6476 = vmatpush1.msra.mxu0 %v6372
        %6477 = vmatprep.subr.mxu0 0.0
        %6478 = vmatpush1.msra.mxu0 %v6375
        %6479 = vmatprep.subr.mxu0 0.0
        %6480 = vmatpush1.msra.mxu0 0.0
        %6481 = vmatprep.subr.mxu0 0.0
        %6482 = vmatpush1.msra.mxu0 0.0
        %6483 = vmatprep.subr.mxu0 0.0
        %6484 = vmatpush1.msra.mxu0 0.0
        %6485 = vmatprep.subr.mxu0 0.0
        %6486 = vmatpush1.msra.mxu0 0.0
        %6487 = vmatprep.subr.mxu0 0.0
        %6488 = vmatpush1.msra.mxu0 0.0
        %6489 = vmatprep.subr.mxu0 0.0
        %6490 = vmatpush1.msra.mxu0 0.0
        %6491 = vmatprep.subr.mxu0 0.0
        %6492 = vmatpush1.msra.mxu0 0.0
        %6493 = vmatprep.subr.mxu0 0.0
        %6494 = vmatpush1.msra.mxu0 0.0
        %6495 = vmatprep.subr.mxu0 0.0
        %6496 = vmatpush1.msra.mxu0 0.0
        %6497 = vmatprep.subr.mxu0 0.0
        %6498 = vmatpush1.msra.mxu0 0.0
        %6499 = vmatprep.subr.mxu0 0.0
        %6500 = vmatpush1.msra.mxu0 0.0
        %6501 = vmatprep.subr.mxu0 0.0
        %6502 = vmatpush1.msra.mxu0 0.0
        %6503 = vmatprep.subr.mxu0 0.0
        %6504 = vmatpush1.msra.mxu0 0.0
        %6505 = vmatprep.subr.mxu0 0.0
        %6506 = vmatpush1.msra.mxu0 0.0
        %6507 = vmatprep.subr.mxu0 0.0
        %6508 = vmatpush1.msra.mxu0 0.0
        %6509 = vmatprep.subr.mxu0 0.0
        %6510 = vmatpush1.msra.mxu0 0.0
        %6511 = vmatprep.mubr.f32.mxu0 0.0
        %6512 = vmatmul.mubr.f32.gmra.mrb[0].mxu0 %v5922
        %v6513 = vpop.f32.mrb[0].mxu0
        %v6514 = vadd.f32 %v2651, %v6513
        %v6515 = vpop.f32.mrb[0].mxu0
        %6516 = vdwg.mxu0
        %v6517 = vadd.f32 %v6325, %v6443
        %v6518 = vxor.u32 %v6517, 2147483648
        %v6519 = vmul.f32 %v6518, 1.442695
        %v6520 = vpow.pop %v6519
        %v6521 = vadd.f32 %v6520, 1.0
        %v6522 = vrcp.pop %v6521
        %v6523 = vmul.f32 1.0, %v6522
        %v6524 = vadd.f32 %v6326, %v6445
        %v6525 = vxor.u32 %v6524, 2147483648
        %v6526 = vmul.f32 %v6525, 1.442695
        %v6527 = vpow.pop %v6526
        %v6528 = vadd.f32 %v6527, 1.0
        %v6529 = vrcp.pop %v6528
        %v6530 = vmul.f32 1.0, %v6529
        %v6531 = vmul.f32 %v6523, %v6514
        %v6532 = vadd.f32 %v6327, %v6531
        %v6533 = vtanh.pop %v6532
        %v6534 = vsub.f32 1.0, %v6530
        %v6535 = vmul.f32 %v6534, %v6533
        %v6536 = vmul.f32 %v6530, %v5922
        %v6537 = vadd.f32 %v6535, %v6536
        %v6538 = vld [vmem:[#allocation26] sm:$0xff]
        %v6539 = vld [vmem:[#allocation26 + $0x8] sm:$0xff]
        %v6540 = vld [vmem:[#allocation26 + $0x10] sm:$0xff]
        %v6541 = vld [vmem:[#allocation26 + $0x18] sm:$0xff]
        %v6542 = vld [vmem:[#allocation26 + $0x20] sm:$0xff]
        %v6543 = vld [vmem:[#allocation26 + $0x28] sm:$0xff]
        %v6544 = vld [vmem:[#allocation26 + $0x30] sm:$0xff]
        %v6545 = vld [vmem:[#allocation26 + $0x38] sm:$0xff]
        %v6546 = vld [vmem:[#allocation26 + $0x40] sm:$0xff]
        %v6547 = vld [vmem:[#allocation26 + $0x48] sm:$0xff]
        %v6548 = vld [vmem:[#allocation26 + $0x50] sm:$0xff]
        %v6549 = vld [vmem:[#allocation26 + $0x58] sm:$0xff]
        %v6550 = vld [vmem:[#allocation26 + $0x60] sm:$0xff]
        %v6551 = vld [vmem:[#allocation26 + $0x68] sm:$0xff]
        %v6552 = vld [vmem:[#allocation26 + $0x70] sm:$0xff]
        %v6553 = vld [vmem:[#allocation26 + $0x78] sm:$0xff]
        %v6554 = vld [vmem:[#allocation26 + $0x80] sm:$0xff]
        %v6555 = vld [vmem:[#allocation26 + $0x88] sm:$0xff]
        %v6556 = vld [vmem:[#allocation26 + $0x90] sm:$0xff]
        %v6557 = vld [vmem:[#allocation26 + $0x98] sm:$0xff]
        %v6558 = vld [vmem:[#allocation26 + $0xa0] sm:$0xff]
        %v6559 = vld [vmem:[#allocation26 + $0xa8] sm:$0xff]
        %v6560 = vld [vmem:[#allocation26 + $0xb0] sm:$0xff]
        %v6561 = vld [vmem:[#allocation26 + $0xb8] sm:$0xff]
        %v6562 = vld [vmem:[#allocation26 + $0xc0] sm:$0xff]
        %v6563 = vld [vmem:[#allocation26 + $0xc8] sm:$0xff]
        %v6564 = vld [vmem:[#allocation26 + $0xd0] sm:$0xff]
        %v6565 = vld [vmem:[#allocation26 + $0xd8] sm:$0xff]
        %v6566 = vld [vmem:[#allocation26 + $0xe0] sm:$0xff]
        %v6567 = vld [vmem:[#allocation26 + $0xe8] sm:$0xff]
        %v6568 = vld [vmem:[#allocation26 + $0xf0] sm:$0xff]
        %v6569 = vld [vmem:[#allocation26 + $0xf8] sm:$0xff]
        %v6570 = vld [vmem:[#allocation26 + $0x100] sm:$0xff]
        %v6571 = vld [vmem:[#allocation26 + $0x108] sm:$0xff]
        %v6572 = vld [vmem:[#allocation26 + $0x110] sm:$0xff]
        %v6573 = vld [vmem:[#allocation26 + $0x118] sm:$0xff]
        %v6574 = vld [vmem:[#allocation26 + $0x120] sm:$0xff]
        %v6575 = vld [vmem:[#allocation26 + $0x128] sm:$0xff]
        %v6576 = vld [vmem:[#allocation26 + $0x130] sm:$0xff]
        %v6577 = vld [vmem:[#allocation26 + $0x138] sm:$0xff]
        %v6578 = vld [vmem:[#allocation26 + $0x140] sm:$0xff]
        %v6579 = vld [vmem:[#allocation26 + $0x148] sm:$0xff]
        %v6580 = vld [vmem:[#allocation26 + $0x150] sm:$0xff]
        %v6581 = vld [vmem:[#allocation26 + $0x158] sm:$0xff]
        %v6582 = vld [vmem:[#allocation26 + $0x160] sm:$0xff]
        %v6583 = vld [vmem:[#allocation26 + $0x168] sm:$0xff]
        %v6584 = vld [vmem:[#allocation26 + $0x170] sm:$0xff]
        %v6585 = vld [vmem:[#allocation26 + $0x178] sm:$0xff]
        %6586 = vmatprep.subr.mxu0 %v6539
        %6587 = vmatpush1.msra.mxu0 %v6538
        %6588 = vmatprep.subr.mxu0 %v6542
        %6589 = vmatpush1.msra.mxu0 %v6541
        %6590 = vmatprep.subr.mxu0 %v6545
        %6591 = vmatpush1.msra.mxu0 %v6544
        %6592 = vmatprep.subr.mxu0 %v6548
        %6593 = vmatpush1.msra.mxu0 %v6547
        %6594 = vmatprep.subr.mxu0 %v6551
        %6595 = vmatpush1.msra.mxu0 %v6550
        %6596 = vmatprep.subr.mxu0 %v6554
        %6597 = vmatpush1.msra.mxu0 %v6553
        %6598 = vmatprep.subr.mxu0 %v6557
        %6599 = vmatpush1.msra.mxu0 %v6556
        %6600 = vmatprep.subr.mxu0 %v6560
        %6601 = vmatpush1.msra.mxu0 %v6559
        %6602 = vmatprep.subr.mxu0 %v6563
        %6603 = vmatpush1.msra.mxu0 %v6562
        %6604 = vmatprep.subr.mxu0 %v6566
        %6605 = vmatpush1.msra.mxu0 %v6565
        %6606 = vmatprep.subr.mxu0 %v6569
        %6607 = vmatpush1.msra.mxu0 %v6568
        %6608 = vmatprep.subr.mxu0 %v6572
        %6609 = vmatpush1.msra.mxu0 %v6571
        %6610 = vmatprep.subr.mxu0 %v6575
        %6611 = vmatpush1.msra.mxu0 %v6574
        %6612 = vmatprep.subr.mxu0 %v6578
        %6613 = vmatpush1.msra.mxu0 %v6577
        %6614 = vmatprep.subr.mxu0 %v6581
        %6615 = vmatpush1.msra.mxu0 %v6580
        %6616 = vmatprep.subr.mxu0 %v6584
        %6617 = vmatpush1.msra.mxu0 %v6583
        %6618 = vmatprep.subr.mxu0 0.0
        %6619 = vmatpush1.msra.mxu0 0.0
        %6620 = vmatprep.subr.mxu0 0.0
        %6621 = vmatpush1.msra.mxu0 0.0
        %6622 = vmatprep.subr.mxu0 0.0
        %6623 = vmatpush1.msra.mxu0 0.0
        %6624 = vmatprep.subr.mxu0 0.0
        %6625 = vmatpush1.msra.mxu0 0.0
        %6626 = vmatprep.subr.mxu0 0.0
        %6627 = vmatpush1.msra.mxu0 0.0
        %6628 = vmatprep.subr.mxu0 0.0
        %6629 = vmatpush1.msra.mxu0 0.0
        %6630 = vmatprep.subr.mxu0 0.0
        %6631 = vmatpush1.msra.mxu0 0.0
        %6632 = vmatprep.subr.mxu0 0.0
        %6633 = vmatpush1.msra.mxu0 0.0
        %6634 = vmatprep.subr.mxu0 0.0
        %6635 = vmatpush1.msra.mxu0 0.0
        %6636 = vmatprep.subr.mxu0 0.0
        %6637 = vmatpush1.msra.mxu0 0.0
        %6638 = vmatprep.subr.mxu0 0.0
        %6639 = vmatpush1.msra.mxu0 0.0
        %6640 = vmatprep.subr.mxu0 0.0
        %6641 = vmatpush1.msra.mxu0 0.0
        %6642 = vmatprep.subr.mxu0 0.0
        %6643 = vmatpush1.msra.mxu0 0.0
        %6644 = vmatprep.subr.mxu0 0.0
        %6645 = vmatpush1.msra.mxu0 0.0
        %6646 = vmatprep.subr.mxu0 0.0
        %6647 = vmatpush1.msra.mxu0 0.0
        %6648 = vmatprep.subr.mxu0 0.0
        %6649 = vmatpush1.msra.mxu0 0.0
        %6650 = vmatprep.mubr.f32.mxu0 0.0
        %6651 = vmatmul.mubr.f32.gmra.mrb[0].mxu0 %v6537
        %v6652 = vpop.f32.mrb[0].mxu0
        %v6653 = vadd.f32 %v2869, %v6652
        %v6654 = vpop.f32.mrb[0].mxu0
        %v6655 = vadd.f32 %v2873, %v6654
        %6656 = vdwg.mxu0
        %6657 = vmatprep.subr.mxu0 0.0
        %6658 = vmatpush1.msra.mxu0 %v6540
        %6659 = vmatprep.subr.mxu0 0.0
        %6660 = vmatpush1.msra.mxu0 %v6543
        %6661 = vmatprep.subr.mxu0 0.0
        %6662 = vmatpush1.msra.mxu0 %v6546
        %6663 = vmatprep.subr.mxu0 0.0
        %6664 = vmatpush1.msra.mxu0 %v6549
        %6665 = vmatprep.subr.mxu0 0.0
        %6666 = vmatpush1.msra.mxu0 %v6552
        %6667 = vmatprep.subr.mxu0 0.0
        %6668 = vmatpush1.msra.mxu0 %v6555
        %6669 = vmatprep.subr.mxu0 0.0
        %6670 = vmatpush1.msra.mxu0 %v6558
        %6671 = vmatprep.subr.mxu0 0.0
        %6672 = vmatpush1.msra.mxu0 %v6561
        %6673 = vmatprep.subr.mxu0 0.0
        %6674 = vmatpush1.msra.mxu0 %v6564
        %6675 = vmatprep.subr.mxu0 0.0
        %6676 = vmatpush1.msra.mxu0 %v6567
        %6677 = vmatprep.subr.mxu0 0.0
        %6678 = vmatpush1.msra.mxu0 %v6570
        %6679 = vmatprep.subr.mxu0 0.0
        %6680 = vmatpush1.msra.mxu0 %v6573
        %6681 = vmatprep.subr.mxu0 0.0
        %6682 = vmatpush1.msra.mxu0 %v6576
        %6683 = vmatprep.subr.mxu0 0.0
        %6684 = vmatpush1.msra.mxu0 %v6579
        %6685 = vmatprep.subr.mxu0 0.0
        %6686 = vmatpush1.msra.mxu0 %v6582
        %6687 = vmatprep.subr.mxu0 0.0
        %6688 = vmatpush1.msra.mxu0 %v6585
        %6689 = vmatprep.subr.mxu0 0.0
        %6690 = vmatpush1.msra.mxu0 0.0
        %6691 = vmatprep.subr.mxu0 0.0
        %6692 = vmatpush1.msra.mxu0 0.0
        %6693 = vmatprep.subr.mxu0 0.0
        %6694 = vmatpush1.msra.mxu0 0.0
        %6695 = vmatprep.subr.mxu0 0.0
        %6696 = vmatpush1.msra.mxu0 0.0
        %6697 = vmatprep.subr.mxu0 0.0
        %6698 = vmatpush1.msra.mxu0 0.0
        %6699 = vmatprep.subr.mxu0 0.0
        %6700 = vmatpush1.msra.mxu0 0.0
        %6701 = vmatprep.subr.mxu0 0.0
        %6702 = vmatpush1.msra.mxu0 0.0
        %6703 = vmatprep.subr.mxu0 0.0
        %6704 = vmatpush1.msra.mxu0 0.0
        %6705 = vmatprep.subr.mxu0 0.0
        %6706 = vmatpush1.msra.mxu0 0.0
        %6707 = vmatprep.subr.mxu0 0.0
        %6708 = vmatpush1.msra.mxu0 0.0
        %6709 = vmatprep.subr.mxu0 0.0
        %6710 = vmatpush1.msra.mxu0 0.0
        %6711 = vmatprep.subr.mxu0 0.0
        %6712 = vmatpush1.msra.mxu0 0.0
        %6713 = vmatprep.subr.mxu0 0.0
        %6714 = vmatpush1.msra.mxu0 0.0
        %6715 = vmatprep.subr.mxu0 0.0
        %6716 = vmatpush1.msra.mxu0 0.0
        %6717 = vmatprep.subr.mxu0 0.0
        %6718 = vmatpush1.msra.mxu0 0.0
        %6719 = vmatprep.subr.mxu0 0.0
        %6720 = vmatpush1.msra.mxu0 0.0
        %6721 = vmatprep.mubr.f32.mxu0 0.0
        %6722 = vmatmul.mubr.f32.gmra.mrb[0].mxu0 %v6537
        %v6723 = vpop.f32.mrb[0].mxu0
        %v6724 = vadd.f32 %v2877, %v6723
        %v6725 = vpop.f32.mrb[0].mxu0
        %6726 = vdwg.mxu0
        %v6727 = vld [vmem:[#allocation28] sm:$0xff]
        %v6728 = vld [vmem:[#allocation28 + $0x8] sm:$0xff]
        %v6729 = vld [vmem:[#allocation28 + $0x10] sm:$0xff]
        %v6730 = vld [vmem:[#allocation28 + $0x18] sm:$0xff]
        %v6731 = vld [vmem:[#allocation28 + $0x20] sm:$0xff]
        %v6732 = vld [vmem:[#allocation28 + $0x28] sm:$0xff]
        %v6733 = vld [vmem:[#allocation28 + $0x30] sm:$0xff]
        %v6734 = vld [vmem:[#allocation28 + $0x38] sm:$0xff]
        %v6735 = vld [vmem:[#allocation28 + $0x40] sm:$0xff]
        %v6736 = vld [vmem:[#allocation28 + $0x48] sm:$0xff]
        %v6737 = vld [vmem:[#allocation28 + $0x50] sm:$0xff]
        %v6738 = vld [vmem:[#allocation28 + $0x58] sm:$0xff]
        %v6739 = vld [vmem:[#allocation28 + $0x60] sm:$0xff]
        %v6740 = vld [vmem:[#allocation28 + $0x68] sm:$0xff]
        %v6741 = vld [vmem:[#allocation28 + $0x70] sm:$0xff]
        %v6742 = vld [vmem:[#allocation28 + $0x78] sm:$0xff]
        %v6743 = vld [vmem:[#allocation28 + $0x80] sm:$0xff]
        %v6744 = vld [vmem:[#allocation28 + $0x88] sm:$0xff]
        %v6745 = vld [vmem:[#allocation28 + $0x90] sm:$0xff]
        %v6746 = vld [vmem:[#allocation28 + $0x98] sm:$0xff]
        %v6747 = vld [vmem:[#allocation28 + $0xa0] sm:$0xff]
        %v6748 = vld [vmem:[#allocation28 + $0xa8] sm:$0xff]
        %v6749 = vld [vmem:[#allocation28 + $0xb0] sm:$0xff]
        %v6750 = vld [vmem:[#allocation28 + $0xb8] sm:$0xff]
        %v6751 = vld [vmem:[#allocation28 + $0xc0] sm:$0xff]
        %v6752 = vld [vmem:[#allocation28 + $0xc8] sm:$0xff]
        %v6753 = vld [vmem:[#allocation28 + $0xd0] sm:$0xff]
        %v6754 = vld [vmem:[#allocation28 + $0xd8] sm:$0xff]
        %v6755 = vld [vmem:[#allocation28 + $0xe0] sm:$0xff]
        %v6756 = vld [vmem:[#allocation28 + $0xe8] sm:$0xff]
        %v6757 = vld [vmem:[#allocation28 + $0xf0] sm:$0xff]
        %v6758 = vld [vmem:[#allocation28 + $0xf8] sm:$0xff]
        %v6759 = vld [vmem:[#allocation28 + $0x100] sm:$0xff]
        %v6760 = vld [vmem:[#allocation28 + $0x108] sm:$0xff]
        %v6761 = vld [vmem:[#allocation28 + $0x110] sm:$0xff]
        %v6762 = vld [vmem:[#allocation28 + $0x118] sm:$0xff]
        %v6763 = vld [vmem:[#allocation28 + $0x120] sm:$0xff]
        %v6764 = vld [vmem:[#allocation28 + $0x128] sm:$0xff]
        %v6765 = vld [vmem:[#allocation28 + $0x130] sm:$0xff]
        %v6766 = vld [vmem:[#allocation28 + $0x138] sm:$0xff]
        %v6767 = vld [vmem:[#allocation28 + $0x140] sm:$0xff]
        %v6768 = vld [vmem:[#allocation28 + $0x148] sm:$0xff]
        %v6769 = vld [vmem:[#allocation28 + $0x150] sm:$0xff]
        %v6770 = vld [vmem:[#allocation28 + $0x158] sm:$0xff]
        %v6771 = vld [vmem:[#allocation28 + $0x160] sm:$0xff]
        %v6772 = vld [vmem:[#allocation28 + $0x168] sm:$0xff]
        %v6773 = vld [vmem:[#allocation28 + $0x170] sm:$0xff]
        %v6774 = vld [vmem:[#allocation28 + $0x178] sm:$0xff]
        %6775 = vmatprep.subr.mxu0 %v6728
        %6776 = vmatpush1.msra.mxu0 %v6727
        %6777 = vmatprep.subr.mxu0 %v6731
        %6778 = vmatpush1.msra.mxu0 %v6730
        %6779 = vmatprep.subr.mxu0 %v6734
        %6780 = vmatpush1.msra.mxu0 %v6733
        %6781 = vmatprep.subr.mxu0 %v6737
        %6782 = vmatpush1.msra.mxu0 %v6736
        %6783 = vmatprep.subr.mxu0 %v6740
        %6784 = vmatpush1.msra.mxu0 %v6739
        %6785 = vmatprep.subr.mxu0 %v6743
        %6786 = vmatpush1.msra.mxu0 %v6742
        %6787 = vmatprep.subr.mxu0 %v6746
        %6788 = vmatpush1.msra.mxu0 %v6745
        %6789 = vmatprep.subr.mxu0 %v6749
        %6790 = vmatpush1.msra.mxu0 %v6748
        %6791 = vmatprep.subr.mxu0 %v6752
        %6792 = vmatpush1.msra.mxu0 %v6751
        %6793 = vmatprep.subr.mxu0 %v6755
        %6794 = vmatpush1.msra.mxu0 %v6754
        %6795 = vmatprep.subr.mxu0 %v6758
        %6796 = vmatpush1.msra.mxu0 %v6757
        %6797 = vmatprep.subr.mxu0 %v6761
        %6798 = vmatpush1.msra.mxu0 %v6760
        %6799 = vmatprep.subr.mxu0 %v6764
        %6800 = vmatpush1.msra.mxu0 %v6763
        %6801 = vmatprep.subr.mxu0 %v6767
        %6802 = vmatpush1.msra.mxu0 %v6766
        %6803 = vmatprep.subr.mxu0 %v6770
        %6804 = vmatpush1.msra.mxu0 %v6769
        %6805 = vmatprep.subr.mxu0 %v6773
        %6806 = vmatpush1.msra.mxu0 %v6772
        %6807 = vmatprep.subr.mxu0 0.0
        %6808 = vmatpush1.msra.mxu0 0.0
        %6809 = vmatprep.subr.mxu0 0.0
        %6810 = vmatpush1.msra.mxu0 0.0
        %6811 = vmatprep.subr.mxu0 0.0
        %6812 = vmatpush1.msra.mxu0 0.0
        %6813 = vmatprep.subr.mxu0 0.0
        %6814 = vmatpush1.msra.mxu0 0.0
        %6815 = vmatprep.subr.mxu0 0.0
        %6816 = vmatpush1.msra.mxu0 0.0
        %6817 = vmatprep.subr.mxu0 0.0
        %6818 = vmatpush1.msra.mxu0 0.0
        %6819 = vmatprep.subr.mxu0 0.0
        %6820 = vmatpush1.msra.mxu0 0.0
        %6821 = vmatprep.subr.mxu0 0.0
        %6822 = vmatpush1.msra.mxu0 0.0
        %6823 = vmatprep.subr.mxu0 0.0
        %6824 = vmatpush1.msra.mxu0 0.0
        %6825 = vmatprep.subr.mxu0 0.0
        %6826 = vmatpush1.msra.mxu0 0.0
        %6827 = vmatprep.subr.mxu0 0.0
        %6828 = vmatpush1.msra.mxu0 0.0
        %6829 = vmatprep.subr.mxu0 0.0
        %6830 = vmatpush1.msra.mxu0 0.0
        %6831 = vmatprep.subr.mxu0 0.0
        %6832 = vmatpush1.msra.mxu0 0.0
        %6833 = vmatprep.subr.mxu0 0.0
        %6834 = vmatpush1.msra.mxu0 0.0
        %6835 = vmatprep.subr.mxu0 0.0
        %6836 = vmatpush1.msra.mxu0 0.0
        %6837 = vmatprep.subr.mxu0 0.0
        %6838 = vmatpush1.msra.mxu0 0.0
        %6839 = vmatprep.mubr.f32.mxu0 0.0
        %6840 = vmatmul.mubr.f32.gmra.mrb[0].mxu0 %v6321
        %v6841 = vpop.f32.mrb[0].mxu0
        %v6842 = vadd.f32 %v3074, %v6841
        %v6843 = vpop.f32.mrb[0].mxu0
        %v6844 = vadd.f32 %v3078, %v6843
        %6845 = vdwg.mxu0
        %6846 = vmatprep.subr.mxu0 0.0
        %6847 = vmatpush1.msra.mxu0 %v6729
        %6848 = vmatprep.subr.mxu0 0.0
        %6849 = vmatpush1.msra.mxu0 %v6732
        %6850 = vmatprep.subr.mxu0 0.0
        %6851 = vmatpush1.msra.mxu0 %v6735
        %6852 = vmatprep.subr.mxu0 0.0
        %6853 = vmatpush1.msra.mxu0 %v6738
        %6854 = vmatprep.subr.mxu0 0.0
        %6855 = vmatpush1.msra.mxu0 %v6741
        %6856 = vmatprep.subr.mxu0 0.0
        %6857 = vmatpush1.msra.mxu0 %v6744
        %6858 = vmatprep.subr.mxu0 0.0
        %6859 = vmatpush1.msra.mxu0 %v6747
        %6860 = vmatprep.subr.mxu0 0.0
        %6861 = vmatpush1.msra.mxu0 %v6750
        %6862 = vmatprep.subr.mxu0 0.0
        %6863 = vmatpush1.msra.mxu0 %v6753
        %6864 = vmatprep.subr.mxu0 0.0
        %6865 = vmatpush1.msra.mxu0 %v6756
        %6866 = vmatprep.subr.mxu0 0.0
        %6867 = vmatpush1.msra.mxu0 %v6759
        %6868 = vmatprep.subr.mxu0 0.0
        %6869 = vmatpush1.msra.mxu0 %v6762
        %6870 = vmatprep.subr.mxu0 0.0
        %6871 = vmatpush1.msra.mxu0 %v6765
        %6872 = vmatprep.subr.mxu0 0.0
        %6873 = vmatpush1.msra.mxu0 %v6768
        %6874 = vmatprep.subr.mxu0 0.0
        %6875 = vmatpush1.msra.mxu0 %v6771
        %6876 = vmatprep.subr.mxu0 0.0
        %6877 = vmatpush1.msra.mxu0 %v6774
        %6878 = vmatprep.subr.mxu0 0.0
        %6879 = vmatpush1.msra.mxu0 0.0
        %6880 = vmatprep.subr.mxu0 0.0
        %6881 = vmatpush1.msra.mxu0 0.0
        %6882 = vmatprep.subr.mxu0 0.0
        %6883 = vmatpush1.msra.mxu0 0.0
        %6884 = vmatprep.subr.mxu0 0.0
        %6885 = vmatpush1.msra.mxu0 0.0
        %6886 = vmatprep.subr.mxu0 0.0
        %6887 = vmatpush1.msra.mxu0 0.0
        %6888 = vmatprep.subr.mxu0 0.0
        %6889 = vmatpush1.msra.mxu0 0.0
        %6890 = vmatprep.subr.mxu0 0.0
        %6891 = vmatpush1.msra.mxu0 0.0
        %6892 = vmatprep.subr.mxu0 0.0
        %6893 = vmatpush1.msra.mxu0 0.0
        %6894 = vmatprep.subr.mxu0 0.0
        %6895 = vmatpush1.msra.mxu0 0.0
        %6896 = vmatprep.subr.mxu0 0.0
        %6897 = vmatpush1.msra.mxu0 0.0
        %6898 = vmatprep.subr.mxu0 0.0
        %6899 = vmatpush1.msra.mxu0 0.0
        %6900 = vmatprep.subr.mxu0 0.0
        %6901 = vmatpush1.msra.mxu0 0.0
        %6902 = vmatprep.subr.mxu0 0.0
        %6903 = vmatpush1.msra.mxu0 0.0
        %6904 = vmatprep.subr.mxu0 0.0
        %6905 = vmatpush1.msra.mxu0 0.0
        %6906 = vmatprep.subr.mxu0 0.0
        %6907 = vmatpush1.msra.mxu0 0.0
        %6908 = vmatprep.subr.mxu0 0.0
        %6909 = vmatpush1.msra.mxu0 0.0
        %6910 = vmatprep.mubr.f32.mxu0 0.0
        %6911 = vmatmul.mubr.f32.gmra.mrb[0].mxu0 %v6321
        %v6912 = vpop.f32.mrb[0].mxu0
        %v6913 = vadd.f32 %v3082, %v6912
        %v6914 = vpop.f32.mrb[0].mxu0
        %6915 = vdwg.mxu0
        %v6916 = vadd.f32 %v6653, %v6842
        %v6917 = vxor.u32 %v6916, 2147483648
        %v6918 = vmul.f32 %v6917, 1.442695
        %v6919 = vpow.pop %v6918
        %v6920 = vadd.f32 %v6919, 1.0
        %v6921 = vrcp.pop %v6920
        %v6922 = vmul.f32 1.0, %v6921
        %v6923 = vadd.f32 %v6655, %v6844
        %v6924 = vxor.u32 %v6923, 2147483648
        %v6925 = vmul.f32 %v6924, 1.442695
        %v6926 = vpow.pop %v6925
        %v6927 = vadd.f32 %v6926, 1.0
        %v6928 = vrcp.pop %v6927
        %v6929 = vmul.f32 1.0, %v6928
        %v6930 = vmul.f32 %v6922, %v6913
        %v6931 = vadd.f32 %v6724, %v6930
        %v6932 = vtanh.pop %v6931
        %v6933 = vsub.f32 1.0, %v6929
        %v6934 = vmul.f32 %v6933, %v6932
        %v6935 = vmul.f32 %v6929, %v6321
        %v6936 = vadd.f32 %v6934, %v6935
        %s6937 = scalar_lea.vmem [#allocation4], 48
        %6938 = vst [vmem:[%s6937] sm:$0xff] %v6936
        %s6939 = scalar_lea.vmem [#allocation3], 168
        %v6940 = vld [vmem:[%s6939] sm:$0xff]
        %v6941 = vld [vmem:[%s6939 + $0x8] sm:$0xff]
        %v6942 = vld [vmem:[%s6939 + $0x10] sm:$0xff]
        %v6943 = vld [vmem:[#allocation25] sm:$0xff]
        %v6944 = vld [vmem:[#allocation25 + $0x8] sm:$0xff]
        %v6945 = vld [vmem:[#allocation25 + $0x10] sm:$0xff]
        %v6946 = vld [vmem:[#allocation25 + $0x18] sm:$0xff]
        %v6947 = vld [vmem:[#allocation25 + $0x20] sm:$0xff]
        %v6948 = vld [vmem:[#allocation25 + $0x28] sm:$0xff]
        %v6949 = vld [vmem:[#allocation25 + $0x30] sm:$0xff]
        %v6950 = vld [vmem:[#allocation25 + $0x38] sm:$0xff]
        %v6951 = vld [vmem:[#allocation25 + $0x40] sm:$0xff]
        %v6952 = vld [vmem:[#allocation25 + $0x48] sm:$0xff]
        %v6953 = vld [vmem:[#allocation25 + $0x50] sm:$0xff]
        %v6954 = vld [vmem:[#allocation25 + $0x58] sm:$0xff]
        %v6955 = vld [vmem:[#allocation25 + $0x60] sm:$0xff]
        %v6956 = vld [vmem:[#allocation25 + $0x68] sm:$0xff]
        %v6957 = vld [vmem:[#allocation25 + $0x70] sm:$0xff]
        %v6958 = vld [vmem:[#allocation25 + $0x78] sm:$0xff]
        %v6959 = vld [vmem:[#allocation25 + $0x80] sm:$0xff]
        %v6960 = vld [vmem:[#allocation25 + $0x88] sm:$0xff]
        %v6961 = vld [vmem:[#allocation25 + $0x90] sm:$0xff]
        %v6962 = vld [vmem:[#allocation25 + $0x98] sm:$0xff]
        %v6963 = vld [vmem:[#allocation25 + $0xa0] sm:$0xff]
        %v6964 = vld [vmem:[#allocation25 + $0xa8] sm:$0xff]
        %v6965 = vld [vmem:[#allocation25 + $0xb0] sm:$0xff]
        %v6966 = vld [vmem:[#allocation25 + $0xb8] sm:$0xff]
        %v6967 = vld [vmem:[#allocation25 + $0xc0] sm:$0xff]
        %v6968 = vld [vmem:[#allocation25 + $0xc8] sm:$0xff]
        %v6969 = vld [vmem:[#allocation25 + $0xd0] sm:$0xff]
        %v6970 = vld [vmem:[#allocation25 + $0xd8] sm:$0xff]
        %v6971 = vld [vmem:[#allocation25 + $0xe0] sm:$0xff]
        %v6972 = vld [vmem:[#allocation25 + $0xe8] sm:$0xff]
        %v6973 = vld [vmem:[#allocation25 + $0xf0] sm:$0xff]
        %v6974 = vld [vmem:[#allocation25 + $0xf8] sm:$0xff]
        %v6975 = vld [vmem:[#allocation25 + $0x100] sm:$0xff]
        %v6976 = vld [vmem:[#allocation25 + $0x108] sm:$0xff]
        %v6977 = vld [vmem:[#allocation25 + $0x110] sm:$0xff]
        %v6978 = vld [vmem:[#allocation25 + $0x118] sm:$0xff]
        %v6979 = vld [vmem:[#allocation25 + $0x120] sm:$0xff]
        %v6980 = vld [vmem:[#allocation25 + $0x128] sm:$0xff]
        %v6981 = vld [vmem:[#allocation25 + $0x130] sm:$0xff]
        %v6982 = vld [vmem:[#allocation25 + $0x138] sm:$0xff]
        %v6983 = vld [vmem:[#allocation25 + $0x140] sm:$0xff]
        %v6984 = vld [vmem:[#allocation25 + $0x148] sm:$0xff]
        %v6985 = vld [vmem:[#allocation25 + $0x150] sm:$0xff]
        %v6986 = vld [vmem:[#allocation25 + $0x158] sm:$0xff]
        %v6987 = vld [vmem:[#allocation25 + $0x160] sm:$0xff]
        %v6988 = vld [vmem:[#allocation25 + $0x168] sm:$0xff]
        %v6989 = vld [vmem:[#allocation25 + $0x170] sm:$0xff]
        %v6990 = vld [vmem:[#allocation25 + $0x178] sm:$0xff]
        %6991 = vmatprep.subr.mxu0 %v6944
        %6992 = vmatpush1.msra.mxu0 %v6943
        %6993 = vmatprep.subr.mxu0 %v6947
        %6994 = vmatpush1.msra.mxu0 %v6946
        %6995 = vmatprep.subr.mxu0 %v6950
        %6996 = vmatpush1.msra.mxu0 %v6949
        %6997 = vmatprep.subr.mxu0 %v6953
        %6998 = vmatpush1.msra.mxu0 %v6952
        %6999 = vmatprep.subr.mxu0 %v6956
        %7000 = vmatpush1.msra.mxu0 %v6955
        %7001 = vmatprep.subr.mxu0 %v6959
        %7002 = vmatpush1.msra.mxu0 %v6958
        %7003 = vmatprep.subr.mxu0 %v6962
        %7004 = vmatpush1.msra.mxu0 %v6961
        %7005 = vmatprep.subr.mxu0 %v6965
        %7006 = vmatpush1.msra.mxu0 %v6964
        %7007 = vmatprep.subr.mxu0 %v6968
        %7008 = vmatpush1.msra.mxu0 %v6967
        %7009 = vmatprep.subr.mxu0 %v6971
        %7010 = vmatpush1.msra.mxu0 %v6970
        %7011 = vmatprep.subr.mxu0 %v6974
        %7012 = vmatpush1.msra.mxu0 %v6973
        %7013 = vmatprep.subr.mxu0 %v6977
        %7014 = vmatpush1.msra.mxu0 %v6976
        %7015 = vmatprep.subr.mxu0 %v6980
        %7016 = vmatpush1.msra.mxu0 %v6979
        %7017 = vmatprep.subr.mxu0 %v6983
        %7018 = vmatpush1.msra.mxu0 %v6982
        %7019 = vmatprep.subr.mxu0 %v6986
        %7020 = vmatpush1.msra.mxu0 %v6985
        %7021 = vmatprep.subr.mxu0 %v6989
        %7022 = vmatpush1.msra.mxu0 %v6988
        %7023 = vmatprep.subr.mxu0 0.0
        %7024 = vmatpush1.msra.mxu0 0.0
        %7025 = vmatprep.subr.mxu0 0.0
        %7026 = vmatpush1.msra.mxu0 0.0
        %7027 = vmatprep.subr.mxu0 0.0
        %7028 = vmatpush1.msra.mxu0 0.0
        %7029 = vmatprep.subr.mxu0 0.0
        %7030 = vmatpush1.msra.mxu0 0.0
        %7031 = vmatprep.subr.mxu0 0.0
        %7032 = vmatpush1.msra.mxu0 0.0
        %7033 = vmatprep.subr.mxu0 0.0
        %7034 = vmatpush1.msra.mxu0 0.0
        %7035 = vmatprep.subr.mxu0 0.0
        %7036 = vmatpush1.msra.mxu0 0.0
        %7037 = vmatprep.subr.mxu0 0.0
        %7038 = vmatpush1.msra.mxu0 0.0
        %7039 = vmatprep.subr.mxu0 0.0
        %7040 = vmatpush1.msra.mxu0 0.0
        %7041 = vmatprep.subr.mxu0 0.0
        %7042 = vmatpush1.msra.mxu0 0.0
        %7043 = vmatprep.subr.mxu0 0.0
        %7044 = vmatpush1.msra.mxu0 0.0
        %7045 = vmatprep.subr.mxu0 0.0
        %7046 = vmatpush1.msra.mxu0 0.0
        %7047 = vmatprep.subr.mxu0 0.0
        %7048 = vmatpush1.msra.mxu0 0.0
        %7049 = vmatprep.subr.mxu0 0.0
        %7050 = vmatpush1.msra.mxu0 0.0
        %7051 = vmatprep.subr.mxu0 0.0
        %7052 = vmatpush1.msra.mxu0 0.0
        %7053 = vmatprep.subr.mxu0 0.0
        %7054 = vmatpush1.msra.mxu0 0.0
        %7055 = vmatprep.mubr.f32.mxu0 0.0
        %7056 = vmatmul.mubr.f32.gmra.mrb[0].mxu0 %v6537
        %v7057 = vpop.f32.mrb[0].mxu0
        %v7058 = vadd.f32 %v2643, %v7057
        %v7059 = vpop.f32.mrb[0].mxu0
        %v7060 = vadd.f32 %v2647, %v7059
        %7061 = vdwg.mxu0
        %7062 = vmatprep.subr.mxu0 0.0
        %7063 = vmatpush1.msra.mxu0 %v6945
        %7064 = vmatprep.subr.mxu0 0.0
        %7065 = vmatpush1.msra.mxu0 %v6948
        %7066 = vmatprep.subr.mxu0 0.0
        %7067 = vmatpush1.msra.mxu0 %v6951
        %7068 = vmatprep.subr.mxu0 0.0
        %7069 = vmatpush1.msra.mxu0 %v6954
        %7070 = vmatprep.subr.mxu0 0.0
        %7071 = vmatpush1.msra.mxu0 %v6957
        %7072 = vmatprep.subr.mxu0 0.0
        %7073 = vmatpush1.msra.mxu0 %v6960
        %7074 = vmatprep.subr.mxu0 0.0
        %7075 = vmatpush1.msra.mxu0 %v6963
        %7076 = vmatprep.subr.mxu0 0.0
        %7077 = vmatpush1.msra.mxu0 %v6966
        %7078 = vmatprep.subr.mxu0 0.0
        %7079 = vmatpush1.msra.mxu0 %v6969
        %7080 = vmatprep.subr.mxu0 0.0
        %7081 = vmatpush1.msra.mxu0 %v6972
        %7082 = vmatprep.subr.mxu0 0.0
        %7083 = vmatpush1.msra.mxu0 %v6975
        %7084 = vmatprep.subr.mxu0 0.0
        %7085 = vmatpush1.msra.mxu0 %v6978
        %7086 = vmatprep.subr.mxu0 0.0
        %7087 = vmatpush1.msra.mxu0 %v6981
        %7088 = vmatprep.subr.mxu0 0.0
        %7089 = vmatpush1.msra.mxu0 %v6984
        %7090 = vmatprep.subr.mxu0 0.0
        %7091 = vmatpush1.msra.mxu0 %v6987
        %7092 = vmatprep.subr.mxu0 0.0
        %7093 = vmatpush1.msra.mxu0 %v6990
        %7094 = vmatprep.subr.mxu0 0.0
        %7095 = vmatpush1.msra.mxu0 0.0
        %7096 = vmatprep.subr.mxu0 0.0
        %7097 = vmatpush1.msra.mxu0 0.0
        %7098 = vmatprep.subr.mxu0 0.0
        %7099 = vmatpush1.msra.mxu0 0.0
        %7100 = vmatprep.subr.mxu0 0.0
        %7101 = vmatpush1.msra.mxu0 0.0
        %7102 = vmatprep.subr.mxu0 0.0
        %7103 = vmatpush1.msra.mxu0 0.0
        %7104 = vmatprep.subr.mxu0 0.0
        %7105 = vmatpush1.msra.mxu0 0.0
        %7106 = vmatprep.subr.mxu0 0.0
        %7107 = vmatpush1.msra.mxu0 0.0
        %7108 = vmatprep.subr.mxu0 0.0
        %7109 = vmatpush1.msra.mxu0 0.0
        %7110 = vmatprep.subr.mxu0 0.0
        %7111 = vmatpush1.msra.mxu0 0.0
        %7112 = vmatprep.subr.mxu0 0.0
        %7113 = vmatpush1.msra.mxu0 0.0
        %7114 = vmatprep.subr.mxu0 0.0
        %7115 = vmatpush1.msra.mxu0 0.0
        %7116 = vmatprep.subr.mxu0 0.0
        %7117 = vmatpush1.msra.mxu0 0.0
        %7118 = vmatprep.subr.mxu0 0.0
        %7119 = vmatpush1.msra.mxu0 0.0
        %7120 = vmatprep.subr.mxu0 0.0
        %7121 = vmatpush1.msra.mxu0 0.0
        %7122 = vmatprep.subr.mxu0 0.0
        %7123 = vmatpush1.msra.mxu0 0.0
        %7124 = vmatprep.subr.mxu0 0.0
        %7125 = vmatpush1.msra.mxu0 0.0
        %7126 = vmatprep.mubr.f32.mxu0 0.0
        %7127 = vmatmul.mubr.f32.gmra.mrb[0].mxu0 %v6537
        %v7128 = vpop.f32.mrb[0].mxu0
        %v7129 = vadd.f32 %v2651, %v7128
        %v7130 = vpop.f32.mrb[0].mxu0
        %7131 = vdwg.mxu0
        %v7132 = vadd.f32 %v6940, %v7058
        %v7133 = vxor.u32 %v7132, 2147483648
        %v7134 = vmul.f32 %v7133, 1.442695
        %v7135 = vpow.pop %v7134
        %v7136 = vadd.f32 %v7135, 1.0
        %v7137 = vrcp.pop %v7136
        %v7138 = vmul.f32 1.0, %v7137
        %v7139 = vadd.f32 %v6941, %v7060
        %v7140 = vxor.u32 %v7139, 2147483648
        %v7141 = vmul.f32 %v7140, 1.442695
        %v7142 = vpow.pop %v7141
        %v7143 = vadd.f32 %v7142, 1.0
        %v7144 = vrcp.pop %v7143
        %v7145 = vmul.f32 1.0, %v7144
        %v7146 = vmul.f32 %v7138, %v7129
        %v7147 = vadd.f32 %v6942, %v7146
        %v7148 = vtanh.pop %v7147
        %v7149 = vsub.f32 1.0, %v7145
        %v7150 = vmul.f32 %v7149, %v7148
        %v7151 = vmul.f32 %v7145, %v6537
        %v7152 = vadd.f32 %v7150, %v7151
        %v7153 = vld [vmem:[#allocation26] sm:$0xff]
        %v7154 = vld [vmem:[#allocation26 + $0x8] sm:$0xff]
        %v7155 = vld [vmem:[#allocation26 + $0x10] sm:$0xff]
        %v7156 = vld [vmem:[#allocation26 + $0x18] sm:$0xff]
        %v7157 = vld [vmem:[#allocation26 + $0x20] sm:$0xff]
        %v7158 = vld [vmem:[#allocation26 + $0x28] sm:$0xff]
        %v7159 = vld [vmem:[#allocation26 + $0x30] sm:$0xff]
        %v7160 = vld [vmem:[#allocation26 + $0x38] sm:$0xff]
        %v7161 = vld [vmem:[#allocation26 + $0x40] sm:$0xff]
        %v7162 = vld [vmem:[#allocation26 + $0x48] sm:$0xff]
        %v7163 = vld [vmem:[#allocation26 + $0x50] sm:$0xff]
        %v7164 = vld [vmem:[#allocation26 + $0x58] sm:$0xff]
        %v7165 = vld [vmem:[#allocation26 + $0x60] sm:$0xff]
        %v7166 = vld [vmem:[#allocation26 + $0x68] sm:$0xff]
        %v7167 = vld [vmem:[#allocation26 + $0x70] sm:$0xff]
        %v7168 = vld [vmem:[#allocation26 + $0x78] sm:$0xff]
        %v7169 = vld [vmem:[#allocation26 + $0x80] sm:$0xff]
        %v7170 = vld [vmem:[#allocation26 + $0x88] sm:$0xff]
        %v7171 = vld [vmem:[#allocation26 + $0x90] sm:$0xff]
        %v7172 = vld [vmem:[#allocation26 + $0x98] sm:$0xff]
        %v7173 = vld [vmem:[#allocation26 + $0xa0] sm:$0xff]
        %v7174 = vld [vmem:[#allocation26 + $0xa8] sm:$0xff]
        %v7175 = vld [vmem:[#allocation26 + $0xb0] sm:$0xff]
        %v7176 = vld [vmem:[#allocation26 + $0xb8] sm:$0xff]
        %v7177 = vld [vmem:[#allocation26 + $0xc0] sm:$0xff]
        %v7178 = vld [vmem:[#allocation26 + $0xc8] sm:$0xff]
        %v7179 = vld [vmem:[#allocation26 + $0xd0] sm:$0xff]
        %v7180 = vld [vmem:[#allocation26 + $0xd8] sm:$0xff]
        %v7181 = vld [vmem:[#allocation26 + $0xe0] sm:$0xff]
        %v7182 = vld [vmem:[#allocation26 + $0xe8] sm:$0xff]
        %v7183 = vld [vmem:[#allocation26 + $0xf0] sm:$0xff]
        %v7184 = vld [vmem:[#allocation26 + $0xf8] sm:$0xff]
        %v7185 = vld [vmem:[#allocation26 + $0x100] sm:$0xff]
        %v7186 = vld [vmem:[#allocation26 + $0x108] sm:$0xff]
        %v7187 = vld [vmem:[#allocation26 + $0x110] sm:$0xff]
        %v7188 = vld [vmem:[#allocation26 + $0x118] sm:$0xff]
        %v7189 = vld [vmem:[#allocation26 + $0x120] sm:$0xff]
        %v7190 = vld [vmem:[#allocation26 + $0x128] sm:$0xff]
        %v7191 = vld [vmem:[#allocation26 + $0x130] sm:$0xff]
        %v7192 = vld [vmem:[#allocation26 + $0x138] sm:$0xff]
        %v7193 = vld [vmem:[#allocation26 + $0x140] sm:$0xff]
        %v7194 = vld [vmem:[#allocation26 + $0x148] sm:$0xff]
        %v7195 = vld [vmem:[#allocation26 + $0x150] sm:$0xff]
        %v7196 = vld [vmem:[#allocation26 + $0x158] sm:$0xff]
        %v7197 = vld [vmem:[#allocation26 + $0x160] sm:$0xff]
        %v7198 = vld [vmem:[#allocation26 + $0x168] sm:$0xff]
        %v7199 = vld [vmem:[#allocation26 + $0x170] sm:$0xff]
        %v7200 = vld [vmem:[#allocation26 + $0x178] sm:$0xff]
        %7201 = vmatprep.subr.mxu0 %v7154
        %7202 = vmatpush1.msra.mxu0 %v7153
        %7203 = vmatprep.subr.mxu0 %v7157
        %7204 = vmatpush1.msra.mxu0 %v7156
        %7205 = vmatprep.subr.mxu0 %v7160
        %7206 = vmatpush1.msra.mxu0 %v7159
        %7207 = vmatprep.subr.mxu0 %v7163
        %7208 = vmatpush1.msra.mxu0 %v7162
        %7209 = vmatprep.subr.mxu0 %v7166
        %7210 = vmatpush1.msra.mxu0 %v7165
        %7211 = vmatprep.subr.mxu0 %v7169
        %7212 = vmatpush1.msra.mxu0 %v7168
        %7213 = vmatprep.subr.mxu0 %v7172
        %7214 = vmatpush1.msra.mxu0 %v7171
        %7215 = vmatprep.subr.mxu0 %v7175
        %7216 = vmatpush1.msra.mxu0 %v7174
        %7217 = vmatprep.subr.mxu0 %v7178
        %7218 = vmatpush1.msra.mxu0 %v7177
        %7219 = vmatprep.subr.mxu0 %v7181
        %7220 = vmatpush1.msra.mxu0 %v7180
        %7221 = vmatprep.subr.mxu0 %v7184
        %7222 = vmatpush1.msra.mxu0 %v7183
        %7223 = vmatprep.subr.mxu0 %v7187
        %7224 = vmatpush1.msra.mxu0 %v7186
        %7225 = vmatprep.subr.mxu0 %v7190
        %7226 = vmatpush1.msra.mxu0 %v7189
        %7227 = vmatprep.subr.mxu0 %v7193
        %7228 = vmatpush1.msra.mxu0 %v7192
        %7229 = vmatprep.subr.mxu0 %v7196
        %7230 = vmatpush1.msra.mxu0 %v7195
        %7231 = vmatprep.subr.mxu0 %v7199
        %7232 = vmatpush1.msra.mxu0 %v7198
        %7233 = vmatprep.subr.mxu0 0.0
        %7234 = vmatpush1.msra.mxu0 0.0
        %7235 = vmatprep.subr.mxu0 0.0
        %7236 = vmatpush1.msra.mxu0 0.0
        %7237 = vmatprep.subr.mxu0 0.0
        %7238 = vmatpush1.msra.mxu0 0.0
        %7239 = vmatprep.subr.mxu0 0.0
        %7240 = vmatpush1.msra.mxu0 0.0
        %7241 = vmatprep.subr.mxu0 0.0
        %7242 = vmatpush1.msra.mxu0 0.0
        %7243 = vmatprep.subr.mxu0 0.0
        %7244 = vmatpush1.msra.mxu0 0.0
        %7245 = vmatprep.subr.mxu0 0.0
        %7246 = vmatpush1.msra.mxu0 0.0
        %7247 = vmatprep.subr.mxu0 0.0
        %7248 = vmatpush1.msra.mxu0 0.0
        %7249 = vmatprep.subr.mxu0 0.0
        %7250 = vmatpush1.msra.mxu0 0.0
        %7251 = vmatprep.subr.mxu0 0.0
        %7252 = vmatpush1.msra.mxu0 0.0
        %7253 = vmatprep.subr.mxu0 0.0
        %7254 = vmatpush1.msra.mxu0 0.0
        %7255 = vmatprep.subr.mxu0 0.0
        %7256 = vmatpush1.msra.mxu0 0.0
        %7257 = vmatprep.subr.mxu0 0.0
        %7258 = vmatpush1.msra.mxu0 0.0
        %7259 = vmatprep.subr.mxu0 0.0
        %7260 = vmatpush1.msra.mxu0 0.0
        %7261 = vmatprep.subr.mxu0 0.0
        %7262 = vmatpush1.msra.mxu0 0.0
        %7263 = vmatprep.subr.mxu0 0.0
        %7264 = vmatpush1.msra.mxu0 0.0
        %7265 = vmatprep.mubr.f32.mxu0 0.0
        %7266 = vmatmul.mubr.f32.gmra.mrb[0].mxu0 %v7152
        %v7267 = vpop.f32.mrb[0].mxu0
        %v7268 = vadd.f32 %v2869, %v7267
        %v7269 = vpop.f32.mrb[0].mxu0
        %v7270 = vadd.f32 %v2873, %v7269
        %7271 = vdwg.mxu0
        %7272 = vmatprep.subr.mxu0 0.0
        %7273 = vmatpush1.msra.mxu0 %v7155
        %7274 = vmatprep.subr.mxu0 0.0
        %7275 = vmatpush1.msra.mxu0 %v7158
        %7276 = vmatprep.subr.mxu0 0.0
        %7277 = vmatpush1.msra.mxu0 %v7161
        %7278 = vmatprep.subr.mxu0 0.0
        %7279 = vmatpush1.msra.mxu0 %v7164
        %7280 = vmatprep.subr.mxu0 0.0
        %7281 = vmatpush1.msra.mxu0 %v7167
        %7282 = vmatprep.subr.mxu0 0.0
        %7283 = vmatpush1.msra.mxu0 %v7170
        %7284 = vmatprep.subr.mxu0 0.0
        %7285 = vmatpush1.msra.mxu0 %v7173
        %7286 = vmatprep.subr.mxu0 0.0
        %7287 = vmatpush1.msra.mxu0 %v7176
        %7288 = vmatprep.subr.mxu0 0.0
        %7289 = vmatpush1.msra.mxu0 %v7179
        %7290 = vmatprep.subr.mxu0 0.0
        %7291 = vmatpush1.msra.mxu0 %v7182
        %7292 = vmatprep.subr.mxu0 0.0
        %7293 = vmatpush1.msra.mxu0 %v7185
        %7294 = vmatprep.subr.mxu0 0.0
        %7295 = vmatpush1.msra.mxu0 %v7188
        %7296 = vmatprep.subr.mxu0 0.0
        %7297 = vmatpush1.msra.mxu0 %v7191
        %7298 = vmatprep.subr.mxu0 0.0
        %7299 = vmatpush1.msra.mxu0 %v7194
        %7300 = vmatprep.subr.mxu0 0.0
        %7301 = vmatpush1.msra.mxu0 %v7197
        %7302 = vmatprep.subr.mxu0 0.0
        %7303 = vmatpush1.msra.mxu0 %v7200
        %7304 = vmatprep.subr.mxu0 0.0
        %7305 = vmatpush1.msra.mxu0 0.0
        %7306 = vmatprep.subr.mxu0 0.0
        %7307 = vmatpush1.msra.mxu0 0.0
        %7308 = vmatprep.subr.mxu0 0.0
        %7309 = vmatpush1.msra.mxu0 0.0
        %7310 = vmatprep.subr.mxu0 0.0
        %7311 = vmatpush1.msra.mxu0 0.0
        %7312 = vmatprep.subr.mxu0 0.0
        %7313 = vmatpush1.msra.mxu0 0.0
        %7314 = vmatprep.subr.mxu0 0.0
        %7315 = vmatpush1.msra.mxu0 0.0
        %7316 = vmatprep.subr.mxu0 0.0
        %7317 = vmatpush1.msra.mxu0 0.0
        %7318 = vmatprep.subr.mxu0 0.0
        %7319 = vmatpush1.msra.mxu0 0.0
        %7320 = vmatprep.subr.mxu0 0.0
        %7321 = vmatpush1.msra.mxu0 0.0
        %7322 = vmatprep.subr.mxu0 0.0
        %7323 = vmatpush1.msra.mxu0 0.0
        %7324 = vmatprep.subr.mxu0 0.0
        %7325 = vmatpush1.msra.mxu0 0.0
        %7326 = vmatprep.subr.mxu0 0.0
        %7327 = vmatpush1.msra.mxu0 0.0
        %7328 = vmatprep.subr.mxu0 0.0
        %7329 = vmatpush1.msra.mxu0 0.0
        %7330 = vmatprep.subr.mxu0 0.0
        %7331 = vmatpush1.msra.mxu0 0.0
        %7332 = vmatprep.subr.mxu0 0.0
        %7333 = vmatpush1.msra.mxu0 0.0
        %7334 = vmatprep.subr.mxu0 0.0
        %7335 = vmatpush1.msra.mxu0 0.0
        %7336 = vmatprep.mubr.f32.mxu0 0.0
        %7337 = vmatmul.mubr.f32.gmra.mrb[0].mxu0 %v7152
        %v7338 = vpop.f32.mrb[0].mxu0
        %v7339 = vadd.f32 %v2877, %v7338
        %v7340 = vpop.f32.mrb[0].mxu0
        %7341 = vdwg.mxu0
        %v7342 = vld [vmem:[#allocation28] sm:$0xff]
        %v7343 = vld [vmem:[#allocation28 + $0x8] sm:$0xff]
        %v7344 = vld [vmem:[#allocation28 + $0x10] sm:$0xff]
        %v7345 = vld [vmem:[#allocation28 + $0x18] sm:$0xff]
        %v7346 = vld [vmem:[#allocation28 + $0x20] sm:$0xff]
        %v7347 = vld [vmem:[#allocation28 + $0x28] sm:$0xff]
        %v7348 = vld [vmem:[#allocation28 + $0x30] sm:$0xff]
        %v7349 = vld [vmem:[#allocation28 + $0x38] sm:$0xff]
        %v7350 = vld [vmem:[#allocation28 + $0x40] sm:$0xff]
        %v7351 = vld [vmem:[#allocation28 + $0x48] sm:$0xff]
        %v7352 = vld [vmem:[#allocation28 + $0x50] sm:$0xff]
        %v7353 = vld [vmem:[#allocation28 + $0x58] sm:$0xff]
        %v7354 = vld [vmem:[#allocation28 + $0x60] sm:$0xff]
        %v7355 = vld [vmem:[#allocation28 + $0x68] sm:$0xff]
        %v7356 = vld [vmem:[#allocation28 + $0x70] sm:$0xff]
        %v7357 = vld [vmem:[#allocation28 + $0x78] sm:$0xff]
        %v7358 = vld [vmem:[#allocation28 + $0x80] sm:$0xff]
        %v7359 = vld [vmem:[#allocation28 + $0x88] sm:$0xff]
        %v7360 = vld [vmem:[#allocation28 + $0x90] sm:$0xff]
        %v7361 = vld [vmem:[#allocation28 + $0x98] sm:$0xff]
        %v7362 = vld [vmem:[#allocation28 + $0xa0] sm:$0xff]
        %v7363 = vld [vmem:[#allocation28 + $0xa8] sm:$0xff]
        %v7364 = vld [vmem:[#allocation28 + $0xb0] sm:$0xff]
        %v7365 = vld [vmem:[#allocation28 + $0xb8] sm:$0xff]
        %v7366 = vld [vmem:[#allocation28 + $0xc0] sm:$0xff]
        %v7367 = vld [vmem:[#allocation28 + $0xc8] sm:$0xff]
        %v7368 = vld [vmem:[#allocation28 + $0xd0] sm:$0xff]
        %v7369 = vld [vmem:[#allocation28 + $0xd8] sm:$0xff]
        %v7370 = vld [vmem:[#allocation28 + $0xe0] sm:$0xff]
        %v7371 = vld [vmem:[#allocation28 + $0xe8] sm:$0xff]
        %v7372 = vld [vmem:[#allocation28 + $0xf0] sm:$0xff]
        %v7373 = vld [vmem:[#allocation28 + $0xf8] sm:$0xff]
        %v7374 = vld [vmem:[#allocation28 + $0x100] sm:$0xff]
        %v7375 = vld [vmem:[#allocation28 + $0x108] sm:$0xff]
        %v7376 = vld [vmem:[#allocation28 + $0x110] sm:$0xff]
        %v7377 = vld [vmem:[#allocation28 + $0x118] sm:$0xff]
        %v7378 = vld [vmem:[#allocation28 + $0x120] sm:$0xff]
        %v7379 = vld [vmem:[#allocation28 + $0x128] sm:$0xff]
        %v7380 = vld [vmem:[#allocation28 + $0x130] sm:$0xff]
        %v7381 = vld [vmem:[#allocation28 + $0x138] sm:$0xff]
        %v7382 = vld [vmem:[#allocation28 + $0x140] sm:$0xff]
        %v7383 = vld [vmem:[#allocation28 + $0x148] sm:$0xff]
        %v7384 = vld [vmem:[#allocation28 + $0x150] sm:$0xff]
        %v7385 = vld [vmem:[#allocation28 + $0x158] sm:$0xff]
        %v7386 = vld [vmem:[#allocation28 + $0x160] sm:$0xff]
        %v7387 = vld [vmem:[#allocation28 + $0x168] sm:$0xff]
        %v7388 = vld [vmem:[#allocation28 + $0x170] sm:$0xff]
        %v7389 = vld [vmem:[#allocation28 + $0x178] sm:$0xff]
        %7390 = vmatprep.subr.mxu0 %v7343
        %7391 = vmatpush1.msra.mxu0 %v7342
        %7392 = vmatprep.subr.mxu0 %v7346
        %7393 = vmatpush1.msra.mxu0 %v7345
        %7394 = vmatprep.subr.mxu0 %v7349
        %7395 = vmatpush1.msra.mxu0 %v7348
        %7396 = vmatprep.subr.mxu0 %v7352
        %7397 = vmatpush1.msra.mxu0 %v7351
        %7398 = vmatprep.subr.mxu0 %v7355
        %7399 = vmatpush1.msra.mxu0 %v7354
        %7400 = vmatprep.subr.mxu0 %v7358
        %7401 = vmatpush1.msra.mxu0 %v7357
        %7402 = vmatprep.subr.mxu0 %v7361
        %7403 = vmatpush1.msra.mxu0 %v7360
        %7404 = vmatprep.subr.mxu0 %v7364
        %7405 = vmatpush1.msra.mxu0 %v7363
        %7406 = vmatprep.subr.mxu0 %v7367
        %7407 = vmatpush1.msra.mxu0 %v7366
        %7408 = vmatprep.subr.mxu0 %v7370
        %7409 = vmatpush1.msra.mxu0 %v7369
        %7410 = vmatprep.subr.mxu0 %v7373
        %7411 = vmatpush1.msra.mxu0 %v7372
        %7412 = vmatprep.subr.mxu0 %v7376
        %7413 = vmatpush1.msra.mxu0 %v7375
        %7414 = vmatprep.subr.mxu0 %v7379
        %7415 = vmatpush1.msra.mxu0 %v7378
        %7416 = vmatprep.subr.mxu0 %v7382
        %7417 = vmatpush1.msra.mxu0 %v7381
        %7418 = vmatprep.subr.mxu0 %v7385
        %7419 = vmatpush1.msra.mxu0 %v7384
        %7420 = vmatprep.subr.mxu0 %v7388
        %7421 = vmatpush1.msra.mxu0 %v7387
        %7422 = vmatprep.subr.mxu0 0.0
        %7423 = vmatpush1.msra.mxu0 0.0
        %7424 = vmatprep.subr.mxu0 0.0
        %7425 = vmatpush1.msra.mxu0 0.0
        %7426 = vmatprep.subr.mxu0 0.0
        %7427 = vmatpush1.msra.mxu0 0.0
        %7428 = vmatprep.subr.mxu0 0.0
        %7429 = vmatpush1.msra.mxu0 0.0
        %7430 = vmatprep.subr.mxu0 0.0
        %7431 = vmatpush1.msra.mxu0 0.0
        %7432 = vmatprep.subr.mxu0 0.0
        %7433 = vmatpush1.msra.mxu0 0.0
        %7434 = vmatprep.subr.mxu0 0.0
        %7435 = vmatpush1.msra.mxu0 0.0
        %7436 = vmatprep.subr.mxu0 0.0
        %7437 = vmatpush1.msra.mxu0 0.0
        %7438 = vmatprep.subr.mxu0 0.0
        %7439 = vmatpush1.msra.mxu0 0.0
        %7440 = vmatprep.subr.mxu0 0.0
        %7441 = vmatpush1.msra.mxu0 0.0
        %7442 = vmatprep.subr.mxu0 0.0
        %7443 = vmatpush1.msra.mxu0 0.0
        %7444 = vmatprep.subr.mxu0 0.0
        %7445 = vmatpush1.msra.mxu0 0.0
        %7446 = vmatprep.subr.mxu0 0.0
        %7447 = vmatpush1.msra.mxu0 0.0
        %7448 = vmatprep.subr.mxu0 0.0
        %7449 = vmatpush1.msra.mxu0 0.0
        %7450 = vmatprep.subr.mxu0 0.0
        %7451 = vmatpush1.msra.mxu0 0.0
        %7452 = vmatprep.subr.mxu0 0.0
        %7453 = vmatpush1.msra.mxu0 0.0
        %7454 = vmatprep.mubr.f32.mxu0 0.0
        %7455 = vmatmul.mubr.f32.gmra.mrb[0].mxu0 %v6936
        %v7456 = vpop.f32.mrb[0].mxu0
        %v7457 = vadd.f32 %v3074, %v7456
        %v7458 = vpop.f32.mrb[0].mxu0
        %v7459 = vadd.f32 %v3078, %v7458
        %7460 = vdwg.mxu0
        %7461 = vmatprep.subr.mxu0 0.0
        %7462 = vmatpush1.msra.mxu0 %v7344
        %7463 = vmatprep.subr.mxu0 0.0
        %7464 = vmatpush1.msra.mxu0 %v7347
        %7465 = vmatprep.subr.mxu0 0.0
        %7466 = vmatpush1.msra.mxu0 %v7350
        %7467 = vmatprep.subr.mxu0 0.0
        %7468 = vmatpush1.msra.mxu0 %v7353
        %7469 = vmatprep.subr.mxu0 0.0
        %7470 = vmatpush1.msra.mxu0 %v7356
        %7471 = vmatprep.subr.mxu0 0.0
        %7472 = vmatpush1.msra.mxu0 %v7359
        %7473 = vmatprep.subr.mxu0 0.0
        %7474 = vmatpush1.msra.mxu0 %v7362
        %7475 = vmatprep.subr.mxu0 0.0
        %7476 = vmatpush1.msra.mxu0 %v7365
        %7477 = vmatprep.subr.mxu0 0.0
        %7478 = vmatpush1.msra.mxu0 %v7368
        %7479 = vmatprep.subr.mxu0 0.0
        %7480 = vmatpush1.msra.mxu0 %v7371
        %7481 = vmatprep.subr.mxu0 0.0
        %7482 = vmatpush1.msra.mxu0 %v7374
        %7483 = vmatprep.subr.mxu0 0.0
        %7484 = vmatpush1.msra.mxu0 %v7377
        %7485 = vmatprep.subr.mxu0 0.0
        %7486 = vmatpush1.msra.mxu0 %v7380
        %7487 = vmatprep.subr.mxu0 0.0
        %7488 = vmatpush1.msra.mxu0 %v7383
        %7489 = vmatprep.subr.mxu0 0.0
        %7490 = vmatpush1.msra.mxu0 %v7386
        %7491 = vmatprep.subr.mxu0 0.0
        %7492 = vmatpush1.msra.mxu0 %v7389
        %7493 = vmatprep.subr.mxu0 0.0
        %7494 = vmatpush1.msra.mxu0 0.0
        %7495 = vmatprep.subr.mxu0 0.0
        %7496 = vmatpush1.msra.mxu0 0.0
        %7497 = vmatprep.subr.mxu0 0.0
        %7498 = vmatpush1.msra.mxu0 0.0
        %7499 = vmatprep.subr.mxu0 0.0
        %7500 = vmatpush1.msra.mxu0 0.0
        %7501 = vmatprep.subr.mxu0 0.0
        %7502 = vmatpush1.msra.mxu0 0.0
        %7503 = vmatprep.subr.mxu0 0.0
        %7504 = vmatpush1.msra.mxu0 0.0
        %7505 = vmatprep.subr.mxu0 0.0
        %7506 = vmatpush1.msra.mxu0 0.0
        %7507 = vmatprep.subr.mxu0 0.0
        %7508 = vmatpush1.msra.mxu0 0.0
        %7509 = vmatprep.subr.mxu0 0.0
        %7510 = vmatpush1.msra.mxu0 0.0
        %7511 = vmatprep.subr.mxu0 0.0
        %7512 = vmatpush1.msra.mxu0 0.0
        %7513 = vmatprep.subr.mxu0 0.0
        %7514 = vmatpush1.msra.mxu0 0.0
        %7515 = vmatprep.subr.mxu0 0.0
        %7516 = vmatpush1.msra.mxu0 0.0
        %7517 = vmatprep.subr.mxu0 0.0
        %7518 = vmatpush1.msra.mxu0 0.0
        %7519 = vmatprep.subr.mxu0 0.0
        %7520 = vmatpush1.msra.mxu0 0.0
        %7521 = vmatprep.subr.mxu0 0.0
        %7522 = vmatpush1.msra.mxu0 0.0
        %7523 = vmatprep.subr.mxu0 0.0
        %7524 = vmatpush1.msra.mxu0 0.0
        %7525 = vmatprep.mubr.f32.mxu0 0.0
        %7526 = vmatmul.mubr.f32.gmra.mrb[0].mxu0 %v6936
        %v7527 = vpop.f32.mrb[0].mxu0
        %v7528 = vadd.f32 %v3082, %v7527
        %v7529 = vpop.f32.mrb[0].mxu0
        %7530 = vdwg.mxu0
        %v7531 = vadd.f32 %v7268, %v7457
        %v7532 = vxor.u32 %v7531, 2147483648
        %v7533 = vmul.f32 %v7532, 1.442695
        %v7534 = vpow.pop %v7533
        %v7535 = vadd.f32 %v7534, 1.0
        %v7536 = vrcp.pop %v7535
        %v7537 = vmul.f32 1.0, %v7536
        %v7538 = vadd.f32 %v7270, %v7459
        %v7539 = vxor.u32 %v7538, 2147483648
        %v7540 = vmul.f32 %v7539, 1.442695
        %v7541 = vpow.pop %v7540
        %v7542 = vadd.f32 %v7541, 1.0
        %v7543 = vrcp.pop %v7542
        %v7544 = vmul.f32 1.0, %v7543
        %v7545 = vmul.f32 %v7537, %v7528
        %v7546 = vadd.f32 %v7339, %v7545
        %v7547 = vtanh.pop %v7546
        %v7548 = vsub.f32 1.0, %v7544
        %v7549 = vmul.f32 %v7548, %v7547
        %v7550 = vmul.f32 %v7544, %v6936
        %v7551 = vadd.f32 %v7549, %v7550
        %s7552 = scalar_lea.vmem [#allocation4], 56
        %7553 = vst [vmem:[%s7552] sm:$0xff] %v7551
        %7554 = vst [vmem:[#allocation2] sm:$0xff] %v7152
        %7555 = vst [vmem:[%s2586] sm:$0xff] %v7551
        %v7556 = vld [vmem:[#allocation4] sm:$0xff]
        %v7557 = vld [vmem:[#allocation4 + $0x8] sm:$0xff]
        %v7558 = vld [vmem:[#allocation4 + $0x10] sm:$0xff]
        %v7559 = vld [vmem:[#allocation4 + $0x18] sm:$0xff]
        %v7560 = vld [vmem:[#allocation4 + $0x20] sm:$0xff]
        %v7561 = vld [vmem:[#allocation4 + $0x28] sm:$0xff]
        %v7562 = vld [vmem:[#allocation4 + $0x30] sm:$0xff]
        %v7563 = vld [vmem:[#allocation4 + $0x38] sm:$0xff]
        %v7564 = vld [vmem:[#allocation19] sm:$0xff]
        %v7565 = vld [vmem:[#allocation19 + $0x8] sm:$0xff]
        %v7566 = vld [vmem:[#allocation19 + $0x10] sm:$0xff]
        %v7567 = vld [vmem:[#allocation19 + $0x18] sm:$0xff]
        %v7568 = vld [vmem:[#allocation19 + $0x20] sm:$0xff]
        %v7569 = vld [vmem:[#allocation19 + $0x28] sm:$0xff]
        %v7570 = vld [vmem:[#allocation19 + $0x30] sm:$0xff]
        %v7571 = vld [vmem:[#allocation19 + $0x38] sm:$0xff]
        %v7572 = vld [vmem:[#allocation19 + $0x40] sm:$0xff]
        %v7573 = vld [vmem:[#allocation19 + $0x48] sm:$0xff]
        %v7574 = vld [vmem:[#allocation19 + $0x50] sm:$0xff]
        %v7575 = vld [vmem:[#allocation19 + $0x58] sm:$0xff]
        %v7576 = vld [vmem:[#allocation19 + $0x60] sm:$0xff]
        %v7577 = vld [vmem:[#allocation19 + $0x68] sm:$0xff]
        %v7578 = vld [vmem:[#allocation19 + $0x70] sm:$0xff]
        %v7579 = vld [vmem:[#allocation19 + $0x78] sm:$0xff]
        %v7580 = vld [vmem:[#allocation20] sm:$0xff]
        %v7581 = vld [vmem:[#allocation20 + $0x8] sm:$0xff]
        %v7582 = vld [vmem:[#allocation20 + $0x10] sm:$0xff]
        %v7583 = vld [vmem:[#allocation20 + $0x18] sm:$0xff]
        %v7584 = vld [vmem:[#allocation20 + $0x20] sm:$0xff]
        %v7585 = vld [vmem:[#allocation20 + $0x28] sm:$0xff]
        %v7586 = vld [vmem:[#allocation20 + $0x30] sm:$0xff]
        %v7587 = vld [vmem:[#allocation20 + $0x38] sm:$0xff]
        %v7588 = vld [vmem:[#allocation20 + $0x40] sm:$0xff]
        %v7589 = vld [vmem:[#allocation20 + $0x48] sm:$0xff]
        %v7590 = vld [vmem:[#allocation20 + $0x50] sm:$0xff]
        %v7591 = vld [vmem:[#allocation20 + $0x58] sm:$0xff]
        %v7592 = vld [vmem:[#allocation20 + $0x60] sm:$0xff]
        %v7593 = vld [vmem:[#allocation20 + $0x68] sm:$0xff]
        %v7594 = vld [vmem:[#allocation20 + $0x70] sm:$0xff]
        %v7595 = vld [vmem:[#allocation20 + $0x78] sm:$0xff]
        %7596 = vmatprep.subr.mxu0 0.0
        %7597 = vmatpush1.msra.mxu0 %v7580
        %7598 = vmatprep.subr.mxu0 0.0
        %7599 = vmatpush1.msra.mxu0 %v7581
        %7600 = vmatprep.subr.mxu0 0.0
        %7601 = vmatpush1.msra.mxu0 %v7582
        %7602 = vmatprep.subr.mxu0 0.0
        %7603 = vmatpush1.msra.mxu0 %v7583
        %7604 = vmatprep.subr.mxu0 0.0
        %7605 = vmatpush1.msra.mxu0 %v7584
        %7606 = vmatprep.subr.mxu0 0.0
        %7607 = vmatpush1.msra.mxu0 %v7585
        %7608 = vmatprep.subr.mxu0 0.0
        %7609 = vmatpush1.msra.mxu0 %v7586
        %7610 = vmatprep.subr.mxu0 0.0
        %7611 = vmatpush1.msra.mxu0 %v7587
        %7612 = vmatprep.subr.mxu0 0.0
        %7613 = vmatpush1.msra.mxu0 %v7588
        %7614 = vmatprep.subr.mxu0 0.0
        %7615 = vmatpush1.msra.mxu0 %v7589
        %7616 = vmatprep.subr.mxu0 0.0
        %7617 = vmatpush1.msra.mxu0 %v7590
        %7618 = vmatprep.subr.mxu0 0.0
        %7619 = vmatpush1.msra.mxu0 %v7591
        %7620 = vmatprep.subr.mxu0 0.0
        %7621 = vmatpush1.msra.mxu0 %v7592
        %7622 = vmatprep.subr.mxu0 0.0
        %7623 = vmatpush1.msra.mxu0 %v7593
        %7624 = vmatprep.subr.mxu0 0.0
        %7625 = vmatpush1.msra.mxu0 %v7594
        %7626 = vmatprep.subr.mxu0 0.0
        %7627 = vmatpush1.msra.mxu0 %v7595
        %7628 = vmatprep.subr.mxu0 0.0
        %7629 = vmatpush1.msra.mxu0 0.0
        %7630 = vmatprep.subr.mxu0 0.0
        %7631 = vmatpush1.msra.mxu0 0.0
        %7632 = vmatprep.subr.mxu0 0.0
        %7633 = vmatpush1.msra.mxu0 0.0
        %7634 = vmatprep.subr.mxu0 0.0
        %7635 = vmatpush1.msra.mxu0 0.0
        %7636 = vmatprep.subr.mxu0 0.0
        %7637 = vmatpush1.msra.mxu0 0.0
        %7638 = vmatprep.subr.mxu0 0.0
        %7639 = vmatpush1.msra.mxu0 0.0
        %7640 = vmatprep.subr.mxu0 0.0
        %7641 = vmatpush1.msra.mxu0 0.0
        %7642 = vmatprep.subr.mxu0 0.0
        %7643 = vmatpush1.msra.mxu0 0.0
        %7644 = vmatprep.subr.mxu0 0.0
        %7645 = vmatpush1.msra.mxu0 0.0
        %7646 = vmatprep.subr.mxu0 0.0
        %7647 = vmatpush1.msra.mxu0 0.0
        %7648 = vmatprep.subr.mxu0 0.0
        %7649 = vmatpush1.msra.mxu0 0.0
        %7650 = vmatprep.subr.mxu0 0.0
        %7651 = vmatpush1.msra.mxu0 0.0
        %7652 = vmatprep.subr.mxu0 0.0
        %7653 = vmatpush1.msra.mxu0 0.0
        %7654 = vmatprep.subr.mxu0 0.0
        %7655 = vmatpush1.msra.mxu0 0.0
        %7656 = vmatprep.subr.mxu0 0.0
        %7657 = vmatpush1.msra.mxu0 0.0
        %7658 = vmatprep.subr.mxu0 0.0
        %7659 = vmatpush1.msra.mxu0 0.0
        %7660 = vmatprep.mubr.f32.mxu0 0.0
        %7661 = vmatmul.mubr.f32.gmra.mrb[0].mxu0 %v7556
        %v7662 = vpop.f32.mrb[0].mxu0
        %v7663 = vadd.f32 0.0, %v7662
        %v7664 = vpop.f32.mrb[0].mxu0
        %7665 = vmatprep.mubr.f32.mxu0 0.0
        %7666 = vmatmul.mubr.f32.gmra.mrb[0].mxu0 %v7557
        %v7667 = vpop.f32.mrb[0].mxu0
        %v7668 = vadd.f32 0.0, %v7667
        %v7669 = vpop.f32.mrb[0].mxu0
        %7670 = vmatprep.mubr.f32.mxu0 0.0
        %7671 = vmatmul.mubr.f32.gmra.mrb[0].mxu0 %v7558
        %v7672 = vpop.f32.mrb[0].mxu0
        %v7673 = vadd.f32 0.0, %v7672
        %v7674 = vpop.f32.mrb[0].mxu0
        %7675 = vmatprep.mubr.f32.mxu0 0.0
        %7676 = vmatmul.mubr.f32.gmra.mrb[0].mxu0 %v7559
        %v7677 = vpop.f32.mrb[0].mxu0
        %v7678 = vadd.f32 0.0, %v7677
        %v7679 = vpop.f32.mrb[0].mxu0
        %7680 = vmatprep.mubr.f32.mxu0 0.0
        %7681 = vmatmul.mubr.f32.gmra.mrb[0].mxu0 %v7560
        %v7682 = vpop.f32.mrb[0].mxu0
        %v7683 = vadd.f32 0.0, %v7682
        %v7684 = vpop.f32.mrb[0].mxu0
        %7685 = vmatprep.mubr.f32.mxu0 0.0
        %7686 = vmatmul.mubr.f32.gmra.mrb[0].mxu0 %v7561
        %v7687 = vpop.f32.mrb[0].mxu0
        %v7688 = vadd.f32 0.0, %v7687
        %v7689 = vpop.f32.mrb[0].mxu0
        %7690 = vmatprep.mubr.f32.mxu0 0.0
        %7691 = vmatmul.mubr.f32.gmra.mrb[0].mxu0 %v7562
        %v7692 = vpop.f32.mrb[0].mxu0
        %v7693 = vadd.f32 0.0, %v7692
        %v7694 = vpop.f32.mrb[0].mxu0
        %7695 = vmatprep.mubr.f32.mxu0 0.0
        %7696 = vmatmul.mubr.f32.gmra.mrb[0].mxu0 %v7563
        %v7697 = vpop.f32.mrb[0].mxu0
        %v7698 = vadd.f32 0.0, %v7697
        %v7699 = vpop.f32.mrb[0].mxu0
        %7700 = vdwg.mxu0
        %7701 = vmatprep.subr.mxu0 0.0
        %7702 = vmatpush1.msra.mxu0 %v7564
        %7703 = vmatprep.subr.mxu0 0.0
        %7704 = vmatpush1.msra.mxu0 %v7565
        %7705 = vmatprep.subr.mxu0 0.0
        %7706 = vmatpush1.msra.mxu0 %v7566
        %7707 = vmatprep.subr.mxu0 0.0
        %7708 = vmatpush1.msra.mxu0 %v7567
        %7709 = vmatprep.subr.mxu0 0.0
        %7710 = vmatpush1.msra.mxu0 %v7568
        %7711 = vmatprep.subr.mxu0 0.0
        %7712 = vmatpush1.msra.mxu0 %v7569
        %7713 = vmatprep.subr.mxu0 0.0
        %7714 = vmatpush1.msra.mxu0 %v7570
        %7715 = vmatprep.subr.mxu0 0.0
        %7716 = vmatpush1.msra.mxu0 %v7571
        %7717 = vmatprep.subr.mxu0 0.0
        %7718 = vmatpush1.msra.mxu0 %v7572
        %7719 = vmatprep.subr.mxu0 0.0
        %7720 = vmatpush1.msra.mxu0 %v7573
        %7721 = vmatprep.subr.mxu0 0.0
        %7722 = vmatpush1.msra.mxu0 %v7574
        %7723 = vmatprep.subr.mxu0 0.0
        %7724 = vmatpush1.msra.mxu0 %v7575
        %7725 = vmatprep.subr.mxu0 0.0
        %7726 = vmatpush1.msra.mxu0 %v7576
        %7727 = vmatprep.subr.mxu0 0.0
        %7728 = vmatpush1.msra.mxu0 %v7577
        %7729 = vmatprep.subr.mxu0 0.0
        %7730 = vmatpush1.msra.mxu0 %v7578
        %7731 = vmatprep.subr.mxu0 0.0
        %7732 = vmatpush1.msra.mxu0 %v7579
        %7733 = vmatprep.subr.mxu0 0.0
        %7734 = vmatpush1.msra.mxu0 0.0
        %7735 = vmatprep.subr.mxu0 0.0
        %7736 = vmatpush1.msra.mxu0 0.0
        %7737 = vmatprep.subr.mxu0 0.0
        %7738 = vmatpush1.msra.mxu0 0.0
        %7739 = vmatprep.subr.mxu0 0.0
        %7740 = vmatpush1.msra.mxu0 0.0
        %7741 = vmatprep.subr.mxu0 0.0
        %7742 = vmatpush1.msra.mxu0 0.0
        %7743 = vmatprep.subr.mxu0 0.0
        %7744 = vmatpush1.msra.mxu0 0.0
        %7745 = vmatprep.subr.mxu0 0.0
        %7746 = vmatpush1.msra.mxu0 0.0
        %7747 = vmatprep.subr.mxu0 0.0
        %7748 = vmatpush1.msra.mxu0 0.0
        %7749 = vmatprep.subr.mxu0 0.0
        %7750 = vmatpush1.msra.mxu0 0.0
        %7751 = vmatprep.subr.mxu0 0.0
        %7752 = vmatpush1.msra.mxu0 0.0
        %7753 = vmatprep.subr.mxu0 0.0
        %7754 = vmatpush1.msra.mxu0 0.0
        %7755 = vmatprep.subr.mxu0 0.0
        %7756 = vmatpush1.msra.mxu0 0.0
        %7757 = vmatprep.subr.mxu0 0.0
        %7758 = vmatpush1.msra.mxu0 0.0
        %7759 = vmatprep.subr.mxu0 0.0
        %7760 = vmatpush1.msra.mxu0 0.0
        %7761 = vmatprep.subr.mxu0 0.0
        %7762 = vmatpush1.msra.mxu0 0.0
        %7763 = vmatprep.subr.mxu0 0.0
        %7764 = vmatpush1.msra.mxu0 0.0
        %7765 = vmatprep.mubr.f32.mxu0 0.0
        %7766 = vmatmul.mubr.f32.gmra.mrb[0].mxu0 %v2264
        %v7767 = vpop.f32.mrb[0].mxu0
        %v7768 = vadd.f32 %v7663, %v7767
        %v7769 = vpop.f32.mrb[0].mxu0
        %7770 = vmatprep.mubr.f32.mxu0 0.0
        %7771 = vmatmul.mubr.f32.gmra.mrb[0].mxu0 %v2265
        %v7772 = vpop.f32.mrb[0].mxu0
        %v7773 = vadd.f32 %v7668, %v7772
        %v7774 = vpop.f32.mrb[0].mxu0
        %7775 = vmatprep.mubr.f32.mxu0 0.0
        %7776 = vmatmul.mubr.f32.gmra.mrb[0].mxu0 %v2266
        %v7777 = vpop.f32.mrb[0].mxu0
        %v7778 = vadd.f32 %v7673, %v7777
        %v7779 = vpop.f32.mrb[0].mxu0
        %7780 = vmatprep.mubr.f32.mxu0 0.0
        %7781 = vmatmul.mubr.f32.gmra.mrb[0].mxu0 %v2267
        %v7782 = vpop.f32.mrb[0].mxu0
        %v7783 = vadd.f32 %v7678, %v7782
        %v7784 = vpop.f32.mrb[0].mxu0
        %7785 = vmatprep.mubr.f32.mxu0 0.0
        %7786 = vmatmul.mubr.f32.gmra.mrb[0].mxu0 %v2268
        %v7787 = vpop.f32.mrb[0].mxu0
        %v7788 = vadd.f32 %v7683, %v7787
        %v7789 = vpop.f32.mrb[0].mxu0
        %7790 = vmatprep.mubr.f32.mxu0 0.0
        %7791 = vmatmul.mubr.f32.gmra.mrb[0].mxu0 %v2269
        %v7792 = vpop.f32.mrb[0].mxu0
        %v7793 = vadd.f32 %v7688, %v7792
        %v7794 = vpop.f32.mrb[0].mxu0
        %7795 = vmatprep.mubr.f32.mxu0 0.0
        %7796 = vmatmul.mubr.f32.gmra.mrb[0].mxu0 %v2270
        %v7797 = vpop.f32.mrb[0].mxu0
        %v7798 = vadd.f32 %v7693, %v7797
        %v7799 = vpop.f32.mrb[0].mxu0
        %7800 = vmatprep.mubr.f32.mxu0 0.0
        %7801 = vmatmul.mubr.f32.gmra.mrb[0].mxu0 %v2271
        %v7802 = vpop.f32.mrb[0].mxu0
        %v7803 = vadd.f32 %v7698, %v7802
        %v7804 = vpop.f32.mrb[0].mxu0
        %7805 = vdwg.mxu0
        %v7806 = vld [vmem:[#allocation8 + $0x13] sm:$0x1]
        %v7807 = vlaneseq
        %v7808 = vshrl.u32 %v7807, 7
        %v7809 = vsub.s32 0, %v7808
        %v7810 = vrot.slane %v7806, %v7809
        %v7811 = vadd.f32 %v7768, %v7810
        %v7812 = vadd.f32 %v7773, %v7810
        %v7813 = vadd.f32 %v7778, %v7810
        %v7814 = vadd.f32 %v7783, %v7810
        %v7815 = vadd.f32 %v7788, %v7810
        %v7816 = vadd.f32 %v7793, %v7810
        %v7817 = vadd.f32 %v7798, %v7810
        %v7818 = vadd.f32 %v7803, %v7810
        %vm7819 = vcmp.gt.f32.partialorder %v7811, 0.0
        %vm7820 = vcmp.gt.f32.partialorder %v7812, 0.0
        %vm7821 = vcmp.gt.f32.partialorder %v7813, 0.0
        %vm7822 = vcmp.gt.f32.partialorder %v7814, 0.0
        %vm7823 = vcmp.gt.f32.partialorder %v7815, 0.0
        %vm7824 = vcmp.gt.f32.partialorder %v7816, 0.0
        %vm7825 = vcmp.gt.f32.partialorder %v7817, 0.0
        %vm7826 = vcmp.gt.f32.partialorder %v7818, 0.0
        %v7827 = vmul.f32 %v7811, 0.1
        %v7828 = vmul.f32 %v7812, 0.1
        %v7829 = vmul.f32 %v7813, 0.1
        %v7830 = vmul.f32 %v7814, 0.1
        %v7831 = vmul.f32 %v7815, 0.1
        %v7832 = vmul.f32 %v7816, 0.1
        %v7833 = vmul.f32 %v7817, 0.1
        %v7834 = vmul.f32 %v7818, 0.1
        %v7835 = vsel %vm7819, %v7811, %v7827
        %v7836 = vsel %vm7820, %v7812, %v7828
        %v7837 = vsel %vm7821, %v7813, %v7829
        %v7838 = vsel %vm7822, %v7814, %v7830
        %v7839 = vsel %vm7823, %v7815, %v7831
        %v7840 = vsel %vm7824, %v7816, %v7832
        %v7841 = vsel %vm7825, %v7817, %v7833
        %v7842 = vsel %vm7826, %v7818, %v7834
        %v7843 = vld [vmem:[#allocation22] sm:$0xff]
        %v7844 = vld [vmem:[#allocation22 + $0x8] sm:$0xff]
        %v7845 = vld [vmem:[#allocation22 + $0x10] sm:$0xff]
        %v7846 = vld [vmem:[#allocation22 + $0x18] sm:$0xff]
        %v7847 = vld [vmem:[#allocation22 + $0x20] sm:$0xff]
        %v7848 = vld [vmem:[#allocation22 + $0x28] sm:$0xff]
        %v7849 = vld [vmem:[#allocation22 + $0x30] sm:$0xff]
        %v7850 = vld [vmem:[#allocation22 + $0x38] sm:$0xff]
        %v7851 = vld [vmem:[#allocation22 + $0x40] sm:$0xff]
        %v7852 = vld [vmem:[#allocation22 + $0x48] sm:$0xff]
        %v7853 = vld [vmem:[#allocation22 + $0x50] sm:$0xff]
        %v7854 = vld [vmem:[#allocation22 + $0x58] sm:$0xff]
        %v7855 = vld [vmem:[#allocation22 + $0x60] sm:$0xff]
        %v7856 = vld [vmem:[#allocation22 + $0x68] sm:$0xff]
        %v7857 = vld [vmem:[#allocation22 + $0x70] sm:$0xff]
        %v7858 = vld [vmem:[#allocation22 + $0x78] sm:$0xff]
        %v7859 = vld [vmem:[%s3] sm:$0x1]
        %v7861 = vlaneseq
        %v7862 = vshrl.u32 %v7861, 7
        %v7863 = vsub.s32 0, %v7862
        %v7864 = vrot.slane %v7859, %v7863
        %7866 = vmatprep.subr.mxu0 0.0
        %7867 = vmatpush1.msra.mxu0 %v7843
        %7868 = vmatprep.subr.mxu0 0.0
        %7869 = vmatpush1.msra.mxu0 %v7844
        %7870 = vmatprep.subr.mxu0 0.0
        %7871 = vmatpush1.msra.mxu0 %v7845
        %7872 = vmatprep.subr.mxu0 0.0
        %7873 = vmatpush1.msra.mxu0 %v7846
        %7874 = vmatprep.subr.mxu0 0.0
        %7875 = vmatpush1.msra.mxu0 %v7847
        %7876 = vmatprep.subr.mxu0 0.0
        %7877 = vmatpush1.msra.mxu0 %v7848
        %7878 = vmatprep.subr.mxu0 0.0
        %7879 = vmatpush1.msra.mxu0 %v7849
        %7880 = vmatprep.subr.mxu0 0.0
        %7881 = vmatpush1.msra.mxu0 %v7850
        %7882 = vmatprep.subr.mxu0 0.0
        %7883 = vmatpush1.msra.mxu0 %v7851
        %7884 = vmatprep.subr.mxu0 0.0
        %7885 = vmatpush1.msra.mxu0 %v7852
        %7886 = vmatprep.subr.mxu0 0.0
        %7887 = vmatpush1.msra.mxu0 %v7853
        %7888 = vmatprep.subr.mxu0 0.0
        %7889 = vmatpush1.msra.mxu0 %v7854
        %7890 = vmatprep.subr.mxu0 0.0
        %7891 = vmatpush1.msra.mxu0 %v7855
        %7892 = vmatprep.subr.mxu0 0.0
        %7893 = vmatpush1.msra.mxu0 %v7856
        %7894 = vmatprep.subr.mxu0 0.0
        %7895 = vmatpush1.msra.mxu0 %v7857
        %7896 = vmatprep.subr.mxu0 0.0
        %7897 = vmatpush1.msra.mxu0 %v7858
        %7898 = vmatprep.subr.mxu0 0.0
        %7899 = vmatpush1.msra.mxu0 0.0
        %7900 = vmatprep.subr.mxu0 0.0
        %7901 = vmatpush1.msra.mxu0 0.0
        %7902 = vmatprep.subr.mxu0 0.0
        %7903 = vmatpush1.msra.mxu0 0.0
        %7904 = vmatprep.subr.mxu0 0.0
        %7905 = vmatpush1.msra.mxu0 0.0
        %7906 = vmatprep.subr.mxu0 0.0
        %7907 = vmatpush1.msra.mxu0 0.0
        %7908 = vmatprep.subr.mxu0 0.0
        %7909 = vmatpush1.msra.mxu0 0.0
        %7910 = vmatprep.subr.mxu0 0.0
        %7911 = vmatpush1.msra.mxu0 0.0
        %7912 = vmatprep.subr.mxu0 0.0
        %7913 = vmatpush1.msra.mxu0 0.0
        %7914 = vmatprep.subr.mxu0 0.0
        %7915 = vmatpush1.msra.mxu0 0.0
        %7916 = vmatprep.subr.mxu0 0.0
        %7917 = vmatpush1.msra.mxu0 0.0
        %7918 = vmatprep.subr.mxu0 0.0
        %7919 = vmatpush1.msra.mxu0 0.0
        %7920 = vmatprep.subr.mxu0 0.0
        %7921 = vmatpush1.msra.mxu0 0.0
        %7922 = vmatprep.subr.mxu0 0.0
        %7923 = vmatpush1.msra.mxu0 0.0
        %7924 = vmatprep.subr.mxu0 0.0
        %7925 = vmatpush1.msra.mxu0 0.0
        %7926 = vmatprep.subr.mxu0 0.0
        %7927 = vmatpush1.msra.mxu0 0.0
        %7928 = vmatprep.subr.mxu0 0.0
        %7929 = vmatpush1.msra.mxu0 0.0
        %7930 = vmatprep.mubr.f32.mxu0 0.0
        %7931 = vmatmul.mubr.f32.gmra.mrb[0].mxu0 %v7835
        %v7932 = vpop.f32.mrb[0].mxu0
        %v7933 = vadd.f32 %v7864, %v7932
        %v7934 = vpop.f32.mrb[0].mxu0
        %7935 = vmatprep.mubr.f32.mxu0 0.0
        %7936 = vmatmul.mubr.f32.gmra.mrb[0].mxu0 %v7836
        %v7937 = vpop.f32.mrb[0].mxu0
        %v7938 = vadd.f32 %v7864, %v7937
        %v7939 = vpop.f32.mrb[0].mxu0
        %7940 = vmatprep.mubr.f32.mxu0 0.0
        %7941 = vmatmul.mubr.f32.gmra.mrb[0].mxu0 %v7837
        %v7942 = vpop.f32.mrb[0].mxu0
        %v7943 = vadd.f32 %v7864, %v7942
        %v7944 = vpop.f32.mrb[0].mxu0
        %7945 = vmatprep.mubr.f32.mxu0 0.0
        %7946 = vmatmul.mubr.f32.gmra.mrb[0].mxu0 %v7838
        %v7947 = vpop.f32.mrb[0].mxu0
        %v7948 = vadd.f32 %v7864, %v7947
        %v7949 = vpop.f32.mrb[0].mxu0
        %7950 = vmatprep.mubr.f32.mxu0 0.0
        %7951 = vmatmul.mubr.f32.gmra.mrb[0].mxu0 %v7839
        %v7952 = vpop.f32.mrb[0].mxu0
        %v7953 = vadd.f32 %v7864, %v7952
        %v7954 = vpop.f32.mrb[0].mxu0
        %7955 = vmatprep.mubr.f32.mxu0 0.0
        %7956 = vmatmul.mubr.f32.gmra.mrb[0].mxu0 %v7840
        %v7957 = vpop.f32.mrb[0].mxu0
        %v7958 = vadd.f32 %v7864, %v7957
        %v7959 = vpop.f32.mrb[0].mxu0
        %7960 = vmatprep.mubr.f32.mxu0 0.0
        %7961 = vmatmul.mubr.f32.gmra.mrb[0].mxu0 %v7841
        %v7962 = vpop.f32.mrb[0].mxu0
        %v7963 = vadd.f32 %v7864, %v7962
        %v7964 = vpop.f32.mrb[0].mxu0
        %7965 = vmatprep.mubr.f32.mxu0 0.0
        %7966 = vmatmul.mubr.f32.gmra.mrb[0].mxu0 %v7842
        %v7967 = vpop.f32.mrb[0].mxu0
        %v7968 = vadd.f32 %v7864, %v7967
        %v7969 = vpop.f32.mrb[0].mxu0
        %7970 = vdwg.mxu0
        %v7971 = vtanh.pop %v7933
        %v7972 = vtanh.pop %v7938
        %v7973 = vtanh.pop %v7943
        %v7974 = vtanh.pop %v7948
        %v7975 = vtanh.pop %v7953
        %v7976 = vtanh.pop %v7958
        %v7977 = vtanh.pop %v7963
        %v7978 = vtanh.pop %v7968
        %v7979 = vadd.f32 %v7971, 1.0
        %v7980 = vadd.f32 %v7972, 1.0
        %v7981 = vadd.f32 %v7973, 1.0
        %v7982 = vadd.f32 %v7974, 1.0
        %v7983 = vadd.f32 %v7975, 1.0
        %v7984 = vadd.f32 %v7976, 1.0
        %v7985 = vadd.f32 %v7977, 1.0
        %v7986 = vadd.f32 %v7978, 1.0
        %v7987 = vmul.f32 %v7979, 0.5
        %v7988 = vmul.f32 %v7980, 0.5
        %v7989 = vmul.f32 %v7981, 0.5
        %v7990 = vmul.f32 %v7982, 0.5
        %v7991 = vmul.f32 %v7983, 0.5
        %v7992 = vmul.f32 %v7984, 0.5
        %v7993 = vmul.f32 %v7985, 0.5
        %v7994 = vmul.f32 %v7986, 0.5
        %v7995 = vmul.f32 %v7987, 0.499
        %v7996 = vmul.f32 %v7988, 0.499
        %v7997 = vmul.f32 %v7989, 0.499
        %v7998 = vmul.f32 %v7990, 0.499
        %v7999 = vmul.f32 %v7991, 0.499
        %v8000 = vmul.f32 %v7992, 0.499
        %v8001 = vmul.f32 %v7993, 0.499
        %v8002 = vmul.f32 %v7994, 0.499
        %v8003 = vadd.f32 %v7995, 0.001
        %v8004 = vadd.f32 %v7996, 0.001
        %v8005 = vadd.f32 %v7997, 0.001
        %v8006 = vadd.f32 %v7998, 0.001
        %v8007 = vadd.f32 %v7999, 0.001
        %v8008 = vadd.f32 %v8000, 0.001
        %v8009 = vadd.f32 %v8001, 0.001
        %v8010 = vadd.f32 %v8002, 0.001
        %v8011 = vlaneseq
        %v8012 = vand.u32 %v8011, 127
        %vm8013 = vcmp.ge.s32.totalorder %v8012, 0
        %vm8014 = vcmp.lt.s32.totalorder %v8012, 64
        %vm8015 = vmand %vm8013, %vm8014
        %v8016 = vsel %vm8015, %v7971, %v8003
        %v8017 = vsel %vm8015, %v7972, %v8004
        %v8018 = vsel %vm8015, %v7973, %v8005
        %v8019 = vsel %vm8015, %v7974, %v8006
        %v8020 = vsel %vm8015, %v7975, %v8007
        %v8021 = vsel %vm8015, %v7976, %v8008
        %v8022 = vsel %vm8015, %v7977, %v8009
        %v8023 = vsel %vm8015, %v7978, %v8010
        %8024 = vst [vmem:[%s757] sm:$0xff] %v8016
        %8025 = vst [vmem:[%s757 + $0x8] sm:$0xff] %v8017
        %8026 = vst [vmem:[%s757 + $0x10] sm:$0xff] %v8018
        %8027 = vst [vmem:[%s757 + $0x18] sm:$0xff] %v8019
        %8028 = vst [vmem:[%s757 + $0x20] sm:$0xff] %v8020
        %8029 = vst [vmem:[%s757 + $0x28] sm:$0xff] %v8021
        %8030 = vst [vmem:[%s757 + $0x30] sm:$0xff] %v8022
        %8031 = vst [vmem:[%s757 + $0x38] sm:$0xff] %v8023
        %s8032 = sand.u32 %s405, 1
        %s8033 = scalar_lea.sflag [#allocation7], %s8032
        %s8034 = sand.u32 %s405, 1
        %s8035 = smul.addr %s8034, 64
        %s8036 = scalar_lea.vmem [#allocation29], %s8035
        // Predicated region
        $region149: #{tpu_custom_call.1} parent=83 // pred_check
          %p8037 = pneg %p415
        $region150: #{tpu_custom_call.1} parent=83 // pred_check_branch
          %8039 = sbr.rel (%p8037) target = $region152
        $region151: #{tpu_custom_call.1} parent=83 // pred_region
          %s8040 = smul.u32 8, %s45
          %s8042 = ssub.s32 1024, 1024
          %8043 = vsyncadd %s8033, %s8042
          %s8044 = sadd.s32 %s44, %s8040
          %s8045 = smul.addr %s8044, 128
          %s8046 = scalar_lea.hbm %s16, %s8045
          %s8047 = sshll.u32 %s8036, 4
          %s8048 = int_to_ptr.vmem [resolvable:$true] %s8047
          %8053 = dma.vmem_to_hbm [thread:$0]  %s8048, 1024, %s8046, %s8033, 128, 128, 8
        $region152: #{tpu_custom_call.1} parent=83 // pred_fallthru
          _
      $region84: #{tpu_custom_call.1} parent=5 // pred_fallthru
        _
      %p8054 = scmp.le.s32.totalorder 2, %s35
      // Predicated region
      $region153: #{tpu_custom_call.1} parent=5 // pred_check
        %p8055 = pneg %p8054
      $region154: #{tpu_custom_call.1} parent=5 // pred_check_branch
        %8057 = sbr.rel (%p8055) target = $region156
      $region155: #{tpu_custom_call.1} parent=5 // pred_region
        %s8058 = ssub.s32 %s35, 2
        // Predicated region
        $region157: #{tpu_custom_call.1} parent=155 // pred_check
          %p8059 = pneg %p421
        $region158: #{tpu_custom_call.1} parent=155 // pred_check_branch
          %8061 = sbr.rel (%p8059) target = $region160
        $region159: #{tpu_custom_call.1} parent=155 // pred_region
          %s8062 = sand.u32 %s406, 1
          %s8063 = scalar_lea.sflag [#allocation7], %s8062
          %s8064 = sand.u32 %s406, 1
          %s8065 = smul.addr %s8064, 64
          %s8066 = scalar_lea.vmem [#allocation29], %s8065
          %8067 = dma.done %s8063, 1024
        $region160: #{tpu_custom_call.1} parent=155 // pred_fallthru
          _
      $region156: #{tpu_custom_call.1} parent=5 // pred_fallthru
        _
    $region6: #{tpu_custom_call.1} parent=1 // loop_footer
      %s39 = sadd.s32 1, %s35
    $region7: #{tpu_custom_call.1} parent=1 // loop_footer_branch
      %34 = sbr.rel target = $region3
    $region8: #{tpu_custom_call.1} parent=1 // loop_exit
      _
    %8068 = vsyncpa [#allocation6], 1
    %s8069 = scalar_lea.sflag [#allocation6], 1
    %8070 = vsyncpa %s8069, 1
    %8071 = vsyncpa [#allocation9], 1
    %8072 = vsyncpa [#allocation12], 1
    %8073 = vsyncpa [#allocation15], 1
    %8074 = vsyncpa [#allocation18], 1
    %8075 = vsyncpa [#allocation21], 1
    %8076 = vsyncpa [#allocation24], 1
    %8077 = vsyncpa [#allocation27], 1
    %8078 = vsyncpa [#allocation7], 1
    %s8079 = scalar_lea.sflag [#allocation7], 1
    %8080 = vsyncpa %s8079, 1

</llo_original>
